<compile_context>
chip_gen: v7x
topology: tpu7x:2x2x1
jax: 0.10.0
libtpu: 0.0.40
codegen_flags: <defaults>
</compile_context>

<pallas_src>
import jax
import jax.numpy as jnp
from jax import lax
from jax.experimental import pallas as pl
from jax.experimental.pallas import tpu as pltpu  # noqa: F401  (TPU backend)

# ----------------------------- model config ---------------------------------
VOCAB = 100
HIDDEN = 32
N_HEADS = 4
HEAD_DIM = HIDDEN // N_HEADS
N_LAYERS = 2
FFN = 64
MAX_POS = 16
LN_EPS = 1e-12
NEG_INF = -1e9

# --------------------- packed-weight blob layout -----------------------------
# wmat: [WMAT_ROWS, HIDDEN]  (all row offsets are multiples of 8 -> free
#                             sublane-aligned ref slices inside the kernel)
#   per layer l (base = l * ROWS_PER_LAYER):
#     base + n*3*HD + 0*HD : WqT head n  [HD, H]
#     base + n*3*HD + 1*HD : WkT head n  [HD, H]
#     base + n*3*HD + 2*HD : WvT head n  [HD, H]
#     base + 3*H           : Wo (natural) [H, H]
#     base + 4*H           : W1T          [FFN, H]
#     base + 4*H + FFN     : W2 (natural) [FFN, H]
#   POOL_W_OFF             : Wpool (natural) [H, H]
ROWS_PER_LAYER = 3 * HIDDEN + HIDDEN + FFN + FFN        # 256
POOL_W_OFF = N_LAYERS * ROWS_PER_LAYER                  # 512
WMAT_ROWS = POOL_W_OFF + HIDDEN                         # 544

# vecs: [VECS_ROWS, VEC_W]  (each bias / LN vector is one row, payload in
#                            lanes [0:width) -> offset-0 prefix lane slices)
#   row 0 / 1                 : emb_ln_g / emb_ln_b       [H]
#   per layer l (vbase = 2 + l * VROWS_PER_LAYER):
#     vbase + 3*n + {0,1,2}   : bq / bk / bv head n        [HD]
#     vbase + 12..18          : bo, ln1_g, ln1_b, b1, b2, ln2_g, ln2_b
#   POOL_B_ROW                : pool_b                     [H]
VEC_W = max(FFN, HIDDEN)                                # 64
VROWS_PER_LAYER = 3 * N_HEADS + 7                       # 19
POOL_B_ROW = 2 + N_LAYERS * VROWS_PER_LAYER             # 40
VECS_ROWS = ((POOL_B_ROW + 1 + 7) // 8) * 8             # 48 (padded)


# --------------------------- in-kernel helpers -------------------------------
def _layernorm(x, g, b):
    mean = jnp.mean(x, axis=-1, keepdims=True)
    var = jnp.mean(jnp.square(x - mean), axis=-1, keepdims=True)
    return (x - mean) * jax.lax.rsqrt(var + LN_EPS) * g + b


def _erf(x):
    # Abramowitz & Stegun 7.1.26 rational approximation (|err| < 1.5e-7).
    # Exact-GELU numerics (HF BERT uses erf-GELU) from exp/mul/add/select only.
    a1, a2, a3, a4, a5 = 0.254829592, -0.284496736, 1.421413741, -1.453152027, 1.061405429
    p = 0.3275911
    sign = jnp.where(x >= 0.0, 1.0, -1.0)
    ax = jnp.abs(x)
    t = 1.0 / (1.0 + p * ax)
    poly = ((((a5 * t + a4) * t + a3) * t + a2) * t + a1) * t
    return sign * (1.0 - poly * jnp.exp(-ax * ax))


def _gelu_exact(x):
    return 0.5 * x * (1.0 + _erf(x * 0.7071067811865476))


def _dotT(a, b):
    """a [m, k] . b [n, k] -> [m, n]; contracts dim 1 of BOTH operands (no transpose op)."""
    return lax.dot_general(a, b, (((1,), (1,)), ((), ())),
                           preferred_element_type=jnp.float32)


# ----------------------------- fused kernel ----------------------------------
def _bert_fused_kernel(h0_ref, mask_ref, wmat_ref, vecs_ref, out_ref):
    B, S = mask_ref.shape
    HD = HEAD_DIM
    scale = 1.0 / float(HEAD_DIM) ** 0.5

    def vrow(r, width):
        # one bias/LN vector as a [1, width] slab (static offset-0 lane slice)
        return vecs_ref[r:r + 1, 0:width]

    # Embedding LayerNorm.
    h = _layernorm(h0_ref[...], vrow(0, HIDDEN), vrow(1, HIDDEN))          # [B*S, H]

    # Additive attention-mask bias, broadcast ONCE (hoisted) to the packed
    # (batch*head) score-slab layout used by the batched softmax.
    bias = (1.0 - mask_ref[...]) * NEG_INF                                 # [B, S]
    bias_slab = jnp.concatenate(
        [jnp.broadcast_to(bias[b:b + 1, :], (N_HEADS * S, S)) for b in range(B)],
        axis=0)                                                            # [B*NH*S, S]

    for l in range(N_LAYERS):                                              # static unroll
        wbase = l * ROWS_PER_LAYER
        vbase = 2 + l * VROWS_PER_LAYER

        # ---- per-head Q/K/V projections from sublane-aligned weight slabs ----
        # (no lane slicing of activations anywhere; extra tiny matmuls are free)
        q_h, k_h, v_h = [], [], []
        for n in range(N_HEADS):
            r = wbase + n * 3 * HD
            q_h.append(_dotT(h, wmat_ref[r:r + HD, :]) + vrow(vbase + 3 * n + 0, HD))
            k_h.append(_dotT(h, wmat_ref[r + HD:r + 2 * HD, :]) + vrow(vbase + 3 * n + 1, HD))
            v_h.append(_dotT(h, wmat_ref[r + 2 * HD:r + 3 * HD, :]) + vrow(vbase + 3 * n + 2, HD))

        # ---- scores for all (batch, head) pairs; ONE softmax on the slab ----
        blocks = []
        for b in range(B):
            r0 = b * S
            for n in range(N_HEADS):
                blocks.append(_dotT(q_h[n][r0:r0 + S, :], k_h[n][r0:r0 + S, :]))   # [S, S]
        s_slab = jnp.concatenate(blocks, axis=0) * scale + bias_slab               # [B*NH*S, S]
        m = jnp.max(s_slab, axis=-1, keepdims=True)
        p = jnp.exp(s_slab - m)
        p = p / jnp.sum(p, axis=-1, keepdims=True)        # exact divide (review concern)

        # ---- context; head merge folded into per-head row-slabs of W_o ----
        wo_base = wbase + 3 * HIDDEN
        wo_slab = [wmat_ref[wo_base + n * HD: wo_base + (n + 1) * HD, :]
                   for n in range(N_HEADS)]
        attn_rows = []
        for b in range(B):
            r0 = b * S
            acc = None
            for n in range(N_HEADS):
                blk = (b * N_HEADS + n) * S
                ctx = jnp.dot(p[blk:blk + S, :], v_h[n][r0:r0 + S, :],
                              preferred_element_type=jnp.float32)                  # [S, HD]
                part = jnp.dot(ctx, wo_slab[n], preferred_element_type=jnp.float32)  # [S, H]
                acc = part if acc is None else acc + part
            attn_rows.append(acc)
        attn_out = jnp.concatenate(attn_rows, axis=0) + vrow(vbase + 12, HIDDEN)   # [B*S, H]
        h = _layernorm(h + attn_out, vrow(vbase + 13, HIDDEN), vrow(vbase + 14, HIDDEN))

        # ---- FFN (exact GELU) + residual + LN ----
        w1_base = wbase + 3 * HIDDEN + HIDDEN
        w2_base = w1_base + FFN
        f = _gelu_exact(_dotT(h, wmat_ref[w1_base:w1_base + FFN, :]) + vrow(vbase + 15, FFN))
        f = jnp.dot(f, wmat_ref[w2_base:w2_base + FFN, :],
                    preferred_element_type=jnp.float32) + vrow(vbase + 16, HIDDEN)
        h = _layernorm(h + f, vrow(vbase + 17, HIDDEN), vrow(vbase + 18, HIDDEN))

    # ---- pooler: tanh(hidden[:, 0] @ W_pool + b_pool) ----
    cls = jnp.concatenate([h[b * S:b * S + 1, :] for b in range(B)], axis=0)       # [B, H]
    pooled = jnp.tanh(
        jnp.dot(cls, wmat_ref[POOL_W_OFF:POOL_W_OFF + HIDDEN, :],
                preferred_element_type=jnp.float32) + vrow(POOL_B_ROW, HIDDEN))
    out_ref[...] = pooled.astype(out_ref.dtype)


def _full_spec(shape):
    ndim = len(shape)
    return pl.BlockSpec(shape, lambda: (0,) * ndim)   # no grid: whole array in VMEM


# ------------------------------ parameters ----------------------------------
def init_params(key):
    keys = iter(jax.random.split(key, 24))

    def w(shape, scale=0.02):
        return scale * jax.random.normal(next(keys), shape, dtype=jnp.float32)

    return {
        "word_emb": w((VOCAB, HIDDEN)),
        "pos_emb": w((MAX_POS, HIDDEN)),
        "type_emb": w((2, HIDDEN)),
        "emb_ln_g": 1.0 + w((HIDDEN,), 0.05),
        "emb_ln_b": w((HIDDEN,)),
        "wq": w((N_LAYERS, HIDDEN, HIDDEN)), "bq": w((N_LAYERS, HIDDEN)),
        "wk": w((N_LAYERS, HIDDEN, HIDDEN)), "bk": w((N_LAYERS, HIDDEN)),
        "wv": w((N_LAYERS, HIDDEN, HIDDEN)), "bv": w((N_LAYERS, HIDDEN)),
        "wo": w((N_LAYERS, HIDDEN, HIDDEN)), "bo": w((N_LAYERS, HIDDEN)),
        "ln1_g": 1.0 + w((N_LAYERS, HIDDEN), 0.05), "ln1_b": w((N_LAYERS, HIDDEN)),
        "w1": w((N_LAYERS, HIDDEN, FFN)), "b1": w((N_LAYERS, FFN)),
        "w2": w((N_LAYERS, FFN, HIDDEN)), "b2": w((N_LAYERS, HIDDEN)),
        "ln2_g": 1.0 + w((N_LAYERS, HIDDEN), 0.05), "ln2_b": w((N_LAYERS, HIDDEN)),
        "pool_w": w((HIDDEN, HIDDEN)), "pool_b": w((HIDDEN,)),
    }


def pack_params(params):
    """Pack all encoder weights into two blobs (2 DMAs) matching the kernel layout."""
    HD = HEAD_DIM

    rows = []
    for l in range(N_LAYERS):
        for n in range(N_HEADS):
            c0 = n * HD
            rows.append(params["wq"][l][:, c0:c0 + HD].T)      # [HD, H]
            rows.append(params["wk"][l][:, c0:c0 + HD].T)
            rows.append(params["wv"][l][:, c0:c0 + HD].T)
        rows.append(params["wo"][l])                           # [H, H]   natural
        rows.append(params["w1"][l].T)                         # [FFN, H] transposed
        rows.append(params["w2"][l])                           # [FFN, H] natural
    rows.append(params["pool_w"])                              # [H, H]   natural
    wmat = jnp.concatenate(rows, axis=0).astype(jnp.float32)
    assert wmat.shape == (WMAT_ROWS, HIDDEN)

    def vrow(v):
        v = jnp.asarray(v, jnp.float32).reshape(-1)
        return jnp.zeros((VEC_W,), jnp.float32).at[: v.shape[0]].set(v)

    vrows = [vrow(params["emb_ln_g"]), vrow(params["emb_ln_b"])]
    for l in range(N_LAYERS):
        for n in range(N_HEADS):
            c0 = n * HD
            vrows.append(vrow(params["bq"][l][c0:c0 + HD]))
            vrows.append(vrow(params["bk"][l][c0:c0 + HD]))
            vrows.append(vrow(params["bv"][l][c0:c0 + HD]))
        vrows += [vrow(params["bo"][l]),
                  vrow(params["ln1_g"][l]), vrow(params["ln1_b"][l]),
                  vrow(params["b1"][l]), vrow(params["b2"][l]),
                  vrow(params["ln2_g"][l]), vrow(params["ln2_b"][l])]
    vrows.append(vrow(params["pool_b"]))
    while len(vrows) < VECS_ROWS:
        vrows.append(jnp.zeros((VEC_W,), jnp.float32))
    vecs = jnp.stack(vrows, axis=0)
    assert vecs.shape == (VECS_ROWS, VEC_W)

    return {
        "word_emb": params["word_emb"],
        "pos_emb": params["pos_emb"],
        "type_emb": params["type_emb"],
        "wmat": wmat,
        "vecs": vecs,
    }


# ------------------------------ forward pass --------------------------------
def bm25_network_forward(packed, input_ids, attention_mask):
    """Returns pooler_output: tanh(W_pool @ hidden[:, 0] + b_pool), shape [B, H]."""
    B, S = input_ids.shape

    # Embedding gather (glue; the table lookup stays in JAX).
    h0 = (packed["word_emb"][input_ids]
          + packed["pos_emb"][:S][None, :, :]
          + packed["type_emb"][0][None, None, :]).reshape(B * S, HIDDEN).astype(jnp.float32)
    mask = attention_mask.astype(jnp.float32)

    inputs = (h0, mask, packed["wmat"], packed["vecs"])      # 4 input DMAs total
    return pl.pallas_call(
        _bert_fused_kernel,
        out_shape=jax.ShapeDtypeStruct((B, HIDDEN), jnp.float32),
        in_specs=[_full_spec(x.shape) for x in inputs],
        out_specs=_full_spec((B, HIDDEN)),
    )(*inputs)


# ------------------------- pure-JAX reference --------------------------------
def _reference_forward(params, input_ids, attention_mask):
    B, S = input_ids.shape
    h = (params["word_emb"][input_ids]
         + params["pos_emb"][:S][None, :, :]
         + params["type_emb"][0][None, None, :]).astype(jnp.float32)

    def ln(x, g, b):
        mu = x.mean(-1, keepdims=True)
        var = ((x - mu) ** 2).mean(-1, keepdims=True)
        return (x - mu) / jnp.sqrt(var + LN_EPS) * g + b

    h = ln(h, params["emb_ln_g"], params["emb_ln_b"])
    bias = (1.0 - attention_mask.astype(jnp.float32)) * NEG_INF
    for l in range(N_LAYERS):
        q = h @ params["wq"][l] + params["bq"][l]
        k = h @ params["wk"][l] + params["bk"][l]
        v = h @ params["wv"][l] + params["bv"][l]

        def split(x):
            return x.reshape(B, S, N_HEADS, HEAD_DIM).transpose(0, 2, 1, 3)

        s = jnp.einsum("bhqd,bhkd->bhqk", split(q), split(k)) / (HEAD_DIM ** 0.5)
        s = s + bias[:, None, None, :]
        p = jax.nn.softmax(s, axis=-1)
        ctx = jnp.einsum("bhqk,bhkd->bhqd", p, split(v)).transpose(0, 2, 1, 3)
        ctx = ctx.reshape(B, S, HIDDEN)
        h = ln(h + ctx @ params["wo"][l] + params["bo"][l],
               params["ln1_g"][l], params["ln1_b"][l])
        f = jax.nn.gelu(h @ params["w1"][l] + params["b1"][l], approximate=False)
        h = ln(h + f @ params["w2"][l] + params["b2"][l],
               params["ln2_g"][l], params["ln2_b"][l])
    cls = h[:, 0, :]
    return jnp.tanh(cls @ params["pool_w"] + params["pool_b"])


# --------------------------------- main --------------------------------------
if __name__ == "__main__":
    key = jax.random.PRNGKey(0)
    pkey, ikey = jax.random.split(key)

    params = init_params(pkey)
    packed = pack_params(params)   # one-time host-side packing (2 weight blobs)

    B, S = 2, 8
    input_ids = jax.random.randint(ikey, (B, S), 0, VOCAB, dtype=jnp.int32)
    attention_mask = jnp.array(
        [[1, 1, 1, 1, 1, 1, 0, 0],
         [1, 1, 1, 1, 1, 1, 1, 1]], dtype=jnp.int32)

    fwd = jax.jit(bm25_network_forward)
    pooled = fwd(packed, input_ids, attention_mask)
    jax.block_until_ready(pooled)

    assert pooled.shape == (B, HIDDEN)
    assert pooled.dtype == jnp.float32
    assert bool(jnp.all(jnp.isfinite(pooled)))

    # Tightened tolerance (exact softmax divide; only the erf polynomial and
    # f32 accumulation order differ from the reference).
    ref = _reference_forward(params, input_ids, attention_mask)
    assert bool(jnp.allclose(pooled, ref, atol=1e-4, rtol=1e-4))

    print("KERNEL_OK")
</pallas_src>

<mosaic_0001>
module attributes {stable_mosaic.version = 11 : i64} {
  func.func @_bert_fused_kernel(%arg0: memref<16x32xf32, #tpu.memory_space<vmem>>, %arg1: memref<2x8xf32, #tpu.memory_space<vmem>>, %arg2: memref<544x32xf32, #tpu.memory_space<vmem>>, %arg3: memref<48x64xf32, #tpu.memory_space<vmem>>, %arg4: memref<2x32xf32, #tpu.memory_space<vmem>>) attributes {dimension_semantics = [], scalar_prefetch = 0 : i64, scratch_operands = 0 : i64, tpu.core_type = #tpu.core_type<tc>} {
    %c0 = arith.constant 0 : index
    %c0_0 = arith.constant 0 : index
    %0 = vector.load %arg0[%c0, %c0_0] : memref<16x32xf32, #tpu.memory_space<vmem>>, vector<16x32xf32>
    %c0_1 = arith.constant 0 : index
    %c0_2 = arith.constant 0 : index
    %1 = vector.load %arg3[%c0_1, %c0_2] : memref<48x64xf32, #tpu.memory_space<vmem>>, vector<1x32xf32>
    %c1 = arith.constant 1 : index
    %c0_3 = arith.constant 0 : index
    %2 = vector.load %arg3[%c1, %c0_3] : memref<48x64xf32, #tpu.memory_space<vmem>>, vector<1x32xf32>
    %cst = arith.constant dense<0.000000e+00> : vector<16xf32>
    %3 = vector.multi_reduction <add>, %0, %cst [1] : vector<16x32xf32> to vector<16xf32>
    %4 = vector.shape_cast %3 : vector<16xf32> to vector<16x1xf32>
    %cst_4 = arith.constant 3.200000e+01 : f32
    %5 = vector.broadcast %cst_4 : f32 to vector<16x1xf32>
    %6 = arith.divf %4, %5 : vector<16x1xf32>
    %7 = vector.broadcast %6 : vector<16x1xf32> to vector<16x32xf32>
    %8 = arith.subf %0, %7 : vector<16x32xf32>
    %9 = arith.mulf %8, %8 : vector<16x32xf32>
    %cst_5 = arith.constant dense<0.000000e+00> : vector<16xf32>
    %10 = vector.multi_reduction <add>, %9, %cst_5 [1] : vector<16x32xf32> to vector<16xf32>
    %11 = vector.shape_cast %10 : vector<16xf32> to vector<16x1xf32>
    %cst_6 = arith.constant 3.200000e+01 : f32
    %12 = vector.broadcast %cst_6 : f32 to vector<16x1xf32>
    %13 = arith.divf %11, %12 : vector<16x1xf32>
    %14 = vector.broadcast %6 : vector<16x1xf32> to vector<16x32xf32>
    %15 = arith.subf %0, %14 : vector<16x32xf32>
    %cst_7 = arith.constant 9.99999996E-13 : f32
    %16 = vector.broadcast %cst_7 : f32 to vector<16x1xf32>
    %17 = arith.addf %13, %16 : vector<16x1xf32>
    %18 = math.rsqrt %17 : vector<16x1xf32>
    %19 = vector.broadcast %18 : vector<16x1xf32> to vector<16x32xf32>
    %20 = arith.mulf %15, %19 : vector<16x32xf32>
    %21 = vector.broadcast %1 : vector<1x32xf32> to vector<16x32xf32>
    %22 = arith.mulf %20, %21 : vector<16x32xf32>
    %23 = vector.broadcast %2 : vector<1x32xf32> to vector<16x32xf32>
    %24 = arith.addf %22, %23 : vector<16x32xf32>
    %c0_8 = arith.constant 0 : index
    %c0_9 = arith.constant 0 : index
    %25 = vector.load %arg1[%c0_8, %c0_9] : memref<2x8xf32, #tpu.memory_space<vmem>>, vector<2x8xf32>
    %cst_10 = arith.constant 1.000000e+00 : f32
    %26 = vector.broadcast %cst_10 : f32 to vector<2x8xf32>
    %27 = arith.subf %26, %25 : vector<2x8xf32>
    %cst_11 = arith.constant -1.000000e+09 : f32
    %28 = vector.broadcast %cst_11 : f32 to vector<2x8xf32>
    %29 = arith.mulf %27, %28 : vector<2x8xf32>
    %30 = vector.extract_strided_slice %29 {offsets = [0, 0], sizes = [1, 8], strides = [1, 1]} : vector<2x8xf32> to vector<1x8xf32>
    %31 = vector.shape_cast %30 : vector<1x8xf32> to vector<1x8xf32>
    %32 = vector.broadcast %31 : vector<1x8xf32> to vector<32x8xf32>
    %33 = vector.extract_strided_slice %29 {offsets = [1, 0], sizes = [1, 8], strides = [1, 1]} : vector<2x8xf32> to vector<1x8xf32>
    %34 = vector.shape_cast %33 : vector<1x8xf32> to vector<1x8xf32>
    %35 = vector.broadcast %34 : vector<1x8xf32> to vector<32x8xf32>
    %36 = tpu.concatenate %32, %35 in 0 : vector<32x8xf32>, vector<32x8xf32> -> vector<64x8xf32>
    %c0_12 = arith.constant 0 : index
    %c0_13 = arith.constant 0 : index
    %37 = vector.load %arg2[%c0_12, %c0_13] : memref<544x32xf32, #tpu.memory_space<vmem>>, vector<8x32xf32>
    %cst_14 = arith.constant dense<0.000000e+00> : vector<16x8xf32>
    %38 = tpu.matmul %24, %37, %cst_14 {dimension_numbers = #tpu.dot_dimension_numbers<[1], [1], [0], [0], [0, 0, 1, 0], [], []>} : vector<16x32xf32>, vector<8x32xf32>, vector<16x8xf32> -> vector<16x8xf32>
    %c2 = arith.constant 2 : index
    %c0_15 = arith.constant 0 : index
    %39 = vector.load %arg3[%c2, %c0_15] : memref<48x64xf32, #tpu.memory_space<vmem>>, vector<1x8xf32>
    %40 = vector.broadcast %39 : vector<1x8xf32> to vector<16x8xf32>
    %41 = arith.addf %38, %40 : vector<16x8xf32>
    %c8 = arith.constant 8 : index
    %c0_16 = arith.constant 0 : index
    %42 = vector.load %arg2[%c8, %c0_16] : memref<544x32xf32, #tpu.memory_space<vmem>>, vector<8x32xf32>
    %cst_17 = arith.constant dense<0.000000e+00> : vector<16x8xf32>
    %43 = tpu.matmul %24, %42, %cst_17 {dimension_numbers = #tpu.dot_dimension_numbers<[1], [1], [0], [0], [0, 0, 1, 0], [], []>} : vector<16x32xf32>, vector<8x32xf32>, vector<16x8xf32> -> vector<16x8xf32>
    %c3 = arith.constant 3 : index
    %c0_18 = arith.constant 0 : index
    %44 = vector.load %arg3[%c3, %c0_18] : memref<48x64xf32, #tpu.memory_space<vmem>>, vector<1x8xf32>
    %45 = vector.broadcast %44 : vector<1x8xf32> to vector<16x8xf32>
    %46 = arith.addf %43, %45 : vector<16x8xf32>
    %c16 = arith.constant 16 : index
    %c0_19 = arith.constant 0 : index
    %47 = vector.load %arg2[%c16, %c0_19] : memref<544x32xf32, #tpu.memory_space<vmem>>, vector<8x32xf32>
    %cst_20 = arith.constant dense<0.000000e+00> : vector<16x8xf32>
    %48 = tpu.matmul %24, %47, %cst_20 {dimension_numbers = #tpu.dot_dimension_numbers<[1], [1], [0], [0], [0, 0, 1, 0], [], []>} : vector<16x32xf32>, vector<8x32xf32>, vector<16x8xf32> -> vector<16x8xf32>
    %c4 = arith.constant 4 : index
    %c0_21 = arith.constant 0 : index
    %49 = vector.load %arg3[%c4, %c0_21] : memref<48x64xf32, #tpu.memory_space<vmem>>, vector<1x8xf32>
    %50 = vector.broadcast %49 : vector<1x8xf32> to vector<16x8xf32>
    %51 = arith.addf %48, %50 : vector<16x8xf32>
    %c24 = arith.constant 24 : index
    %c0_22 = arith.constant 0 : index
    %52 = vector.load %arg2[%c24, %c0_22] : memref<544x32xf32, #tpu.memory_space<vmem>>, vector<8x32xf32>
    %cst_23 = arith.constant dense<0.000000e+00> : vector<16x8xf32>
    %53 = tpu.matmul %24, %52, %cst_23 {dimension_numbers = #tpu.dot_dimension_numbers<[1], [1], [0], [0], [0, 0, 1, 0], [], []>} : vector<16x32xf32>, vector<8x32xf32>, vector<16x8xf32> -> vector<16x8xf32>
    %c5 = arith.constant 5 : index
    %c0_24 = arith.constant 0 : index
    %54 = vector.load %arg3[%c5, %c0_24] : memref<48x64xf32, #tpu.memory_space<vmem>>, vector<1x8xf32>
    %55 = vector.broadcast %54 : vector<1x8xf32> to vector<16x8xf32>
    %56 = arith.addf %53, %55 : vector<16x8xf32>
    %c32 = arith.constant 32 : index
    %c0_25 = arith.constant 0 : index
    %57 = vector.load %arg2[%c32, %c0_25] : memref<544x32xf32, #tpu.memory_space<vmem>>, vector<8x32xf32>
    %cst_26 = arith.constant dense<0.000000e+00> : vector<16x8xf32>
    %58 = tpu.matmul %24, %57, %cst_26 {dimension_numbers = #tpu.dot_dimension_numbers<[1], [1], [0], [0], [0, 0, 1, 0], [], []>} : vector<16x32xf32>, vector<8x32xf32>, vector<16x8xf32> -> vector<16x8xf32>
    %c6 = arith.constant 6 : index
    %c0_27 = arith.constant 0 : index
    %59 = vector.load %arg3[%c6, %c0_27] : memref<48x64xf32, #tpu.memory_space<vmem>>, vector<1x8xf32>
    %60 = vector.broadcast %59 : vector<1x8xf32> to vector<16x8xf32>
    %61 = arith.addf %58, %60 : vector<16x8xf32>
    %c40 = arith.constant 40 : index
    %c0_28 = arith.constant 0 : index
    %62 = vector.load %arg2[%c40, %c0_28] : memref<544x32xf32, #tpu.memory_space<vmem>>, vector<8x32xf32>
    %cst_29 = arith.constant dense<0.000000e+00> : vector<16x8xf32>
    %63 = tpu.matmul %24, %62, %cst_29 {dimension_numbers = #tpu.dot_dimension_numbers<[1], [1], [0], [0], [0, 0, 1, 0], [], []>} : vector<16x32xf32>, vector<8x32xf32>, vector<16x8xf32> -> vector<16x8xf32>
    %c7 = arith.constant 7 : index
    %c0_30 = arith.constant 0 : index
    %64 = vector.load %arg3[%c7, %c0_30] : memref<48x64xf32, #tpu.memory_space<vmem>>, vector<1x8xf32>
    %65 = vector.broadcast %64 : vector<1x8xf32> to vector<16x8xf32>
    %66 = arith.addf %63, %65 : vector<16x8xf32>
    %c48 = arith.constant 48 : index
    %c0_31 = arith.constant 0 : index
    %67 = vector.load %arg2[%c48, %c0_31] : memref<544x32xf32, #tpu.memory_space<vmem>>, vector<8x32xf32>
    %cst_32 = arith.constant dense<0.000000e+00> : vector<16x8xf32>
    %68 = tpu.matmul %24, %67, %cst_32 {dimension_numbers = #tpu.dot_dimension_numbers<[1], [1], [0], [0], [0, 0, 1, 0], [], []>} : vector<16x32xf32>, vector<8x32xf32>, vector<16x8xf32> -> vector<16x8xf32>
    %c8_33 = arith.constant 8 : index
    %c0_34 = arith.constant 0 : index
    %69 = vector.load %arg3[%c8_33, %c0_34] : memref<48x64xf32, #tpu.memory_space<vmem>>, vector<1x8xf32>
    %70 = vector.broadcast %69 : vector<1x8xf32> to vector<16x8xf32>
    %71 = arith.addf %68, %70 : vector<16x8xf32>
    %c56 = arith.constant 56 : index
    %c0_35 = arith.constant 0 : index
    %72 = vector.load %arg2[%c56, %c0_35] : memref<544x32xf32, #tpu.memory_space<vmem>>, vector<8x32xf32>
    %cst_36 = arith.constant dense<0.000000e+00> : vector<16x8xf32>
    %73 = tpu.matmul %24, %72, %cst_36 {dimension_numbers = #tpu.dot_dimension_numbers<[1], [1], [0], [0], [0, 0, 1, 0], [], []>} : vector<16x32xf32>, vector<8x32xf32>, vector<16x8xf32> -> vector<16x8xf32>
    %c9 = arith.constant 9 : index
    %c0_37 = arith.constant 0 : index
    %74 = vector.load %arg3[%c9, %c0_37] : memref<48x64xf32, #tpu.memory_space<vmem>>, vector<1x8xf32>
    %75 = vector.broadcast %74 : vector<1x8xf32> to vector<16x8xf32>
    %76 = arith.addf %73, %75 : vector<16x8xf32>
    %c64 = arith.constant 64 : index
    %c0_38 = arith.constant 0 : index
    %77 = vector.load %arg2[%c64, %c0_38] : memref<544x32xf32, #tpu.memory_space<vmem>>, vector<8x32xf32>
    %cst_39 = arith.constant dense<0.000000e+00> : vector<16x8xf32>
    %78 = tpu.matmul %24, %77, %cst_39 {dimension_numbers = #tpu.dot_dimension_numbers<[1], [1], [0], [0], [0, 0, 1, 0], [], []>} : vector<16x32xf32>, vector<8x32xf32>, vector<16x8xf32> -> vector<16x8xf32>
    %c10 = arith.constant 10 : index
    %c0_40 = arith.constant 0 : index
    %79 = vector.load %arg3[%c10, %c0_40] : memref<48x64xf32, #tpu.memory_space<vmem>>, vector<1x8xf32>
    %80 = vector.broadcast %79 : vector<1x8xf32> to vector<16x8xf32>
    %81 = arith.addf %78, %80 : vector<16x8xf32>
    %c72 = arith.constant 72 : index
    %c0_41 = arith.constant 0 : index
    %82 = vector.load %arg2[%c72, %c0_41] : memref<544x32xf32, #tpu.memory_space<vmem>>, vector<8x32xf32>
    %cst_42 = arith.constant dense<0.000000e+00> : vector<16x8xf32>
    %83 = tpu.matmul %24, %82, %cst_42 {dimension_numbers = #tpu.dot_dimension_numbers<[1], [1], [0], [0], [0, 0, 1, 0], [], []>} : vector<16x32xf32>, vector<8x32xf32>, vector<16x8xf32> -> vector<16x8xf32>
    %c11 = arith.constant 11 : index
    %c0_43 = arith.constant 0 : index
    %84 = vector.load %arg3[%c11, %c0_43] : memref<48x64xf32, #tpu.memory_space<vmem>>, vector<1x8xf32>
    %85 = vector.broadcast %84 : vector<1x8xf32> to vector<16x8xf32>
    %86 = arith.addf %83, %85 : vector<16x8xf32>
    %c80 = arith.constant 80 : index
    %c0_44 = arith.constant 0 : index
    %87 = vector.load %arg2[%c80, %c0_44] : memref<544x32xf32, #tpu.memory_space<vmem>>, vector<8x32xf32>
    %cst_45 = arith.constant dense<0.000000e+00> : vector<16x8xf32>
    %88 = tpu.matmul %24, %87, %cst_45 {dimension_numbers = #tpu.dot_dimension_numbers<[1], [1], [0], [0], [0, 0, 1, 0], [], []>} : vector<16x32xf32>, vector<8x32xf32>, vector<16x8xf32> -> vector<16x8xf32>
    %c12 = arith.constant 12 : index
    %c0_46 = arith.constant 0 : index
    %89 = vector.load %arg3[%c12, %c0_46] : memref<48x64xf32, #tpu.memory_space<vmem>>, vector<1x8xf32>
    %90 = vector.broadcast %89 : vector<1x8xf32> to vector<16x8xf32>
    %91 = arith.addf %88, %90 : vector<16x8xf32>
    %c88 = arith.constant 88 : index
    %c0_47 = arith.constant 0 : index
    %92 = vector.load %arg2[%c88, %c0_47] : memref<544x32xf32, #tpu.memory_space<vmem>>, vector<8x32xf32>
    %cst_48 = arith.constant dense<0.000000e+00> : vector<16x8xf32>
    %93 = tpu.matmul %24, %92, %cst_48 {dimension_numbers = #tpu.dot_dimension_numbers<[1], [1], [0], [0], [0, 0, 1, 0], [], []>} : vector<16x32xf32>, vector<8x32xf32>, vector<16x8xf32> -> vector<16x8xf32>
    %c13 = arith.constant 13 : index
    %c0_49 = arith.constant 0 : index
    %94 = vector.load %arg3[%c13, %c0_49] : memref<48x64xf32, #tpu.memory_space<vmem>>, vector<1x8xf32>
    %95 = vector.broadcast %94 : vector<1x8xf32> to vector<16x8xf32>
    %96 = arith.addf %93, %95 : vector<16x8xf32>
    %97 = vector.extract_strided_slice %41 {offsets = [0, 0], sizes = [8, 8], strides = [1, 1]} : vector<16x8xf32> to vector<8x8xf32>
    %98 = vector.extract_strided_slice %46 {offsets = [0, 0], sizes = [8, 8], strides = [1, 1]} : vector<16x8xf32> to vector<8x8xf32>
    %cst_50 = arith.constant dense<0.000000e+00> : vector<8x8xf32>
    %99 = tpu.matmul %97, %98, %cst_50 {dimension_numbers = #tpu.dot_dimension_numbers<[1], [1], [0], [0], [0, 0, 1, 0], [], []>} : vector<8x8xf32>, vector<8x8xf32>, vector<8x8xf32> -> vector<8x8xf32>
    %100 = vector.extract_strided_slice %56 {offsets = [0, 0], sizes = [8, 8], strides = [1, 1]} : vector<16x8xf32> to vector<8x8xf32>
    %101 = vector.extract_strided_slice %61 {offsets = [0, 0], sizes = [8, 8], strides = [1, 1]} : vector<16x8xf32> to vector<8x8xf32>
    %cst_51 = arith.constant dense<0.000000e+00> : vector<8x8xf32>
    %102 = tpu.matmul %100, %101, %cst_51 {dimension_numbers = #tpu.dot_dimension_numbers<[1], [1], [0], [0], [0, 0, 1, 0], [], []>} : vector<8x8xf32>, vector<8x8xf32>, vector<8x8xf32> -> vector<8x8xf32>
    %103 = vector.extract_strided_slice %71 {offsets = [0, 0], sizes = [8, 8], strides = [1, 1]} : vector<16x8xf32> to vector<8x8xf32>
    %104 = vector.extract_strided_slice %76 {offsets = [0, 0], sizes = [8, 8], strides = [1, 1]} : vector<16x8xf32> to vector<8x8xf32>
    %cst_52 = arith.constant dense<0.000000e+00> : vector<8x8xf32>
    %105 = tpu.matmul %103, %104, %cst_52 {dimension_numbers = #tpu.dot_dimension_numbers<[1], [1], [0], [0], [0, 0, 1, 0], [], []>} : vector<8x8xf32>, vector<8x8xf32>, vector<8x8xf32> -> vector<8x8xf32>
    %106 = vector.extract_strided_slice %86 {offsets = [0, 0], sizes = [8, 8], strides = [1, 1]} : vector<16x8xf32> to vector<8x8xf32>
    %107 = vector.extract_strided_slice %91 {offsets = [0, 0], sizes = [8, 8], strides = [1, 1]} : vector<16x8xf32> to vector<8x8xf32>
    %cst_53 = arith.constant dense<0.000000e+00> : vector<8x8xf32>
    %108 = tpu.matmul %106, %107, %cst_53 {dimension_numbers = #tpu.dot_dimension_numbers<[1], [1], [0], [0], [0, 0, 1, 0], [], []>} : vector<8x8xf32>, vector<8x8xf32>, vector<8x8xf32> -> vector<8x8xf32>
    %109 = vector.extract_strided_slice %41 {offsets = [8, 0], sizes = [8, 8], strides = [1, 1]} : vector<16x8xf32> to vector<8x8xf32>
    %110 = vector.extract_strided_slice %46 {offsets = [8, 0], sizes = [8, 8], strides = [1, 1]} : vector<16x8xf32> to vector<8x8xf32>
    %cst_54 = arith.constant dense<0.000000e+00> : vector<8x8xf32>
    %111 = tpu.matmul %109, %110, %cst_54 {dimension_numbers = #tpu.dot_dimension_numbers<[1], [1], [0], [0], [0, 0, 1, 0], [], []>} : vector<8x8xf32>, vector<8x8xf32>, vector<8x8xf32> -> vector<8x8xf32>
    %112 = vector.extract_strided_slice %56 {offsets = [8, 0], sizes = [8, 8], strides = [1, 1]} : vector<16x8xf32> to vector<8x8xf32>
    %113 = vector.extract_strided_slice %61 {offsets = [8, 0], sizes = [8, 8], strides = [1, 1]} : vector<16x8xf32> to vector<8x8xf32>
    %cst_55 = arith.constant dense<0.000000e+00> : vector<8x8xf32>
    %114 = tpu.matmul %112, %113, %cst_55 {dimension_numbers = #tpu.dot_dimension_numbers<[1], [1], [0], [0], [0, 0, 1, 0], [], []>} : vector<8x8xf32>, vector<8x8xf32>, vector<8x8xf32> -> vector<8x8xf32>
    %115 = vector.extract_strided_slice %71 {offsets = [8, 0], sizes = [8, 8], strides = [1, 1]} : vector<16x8xf32> to vector<8x8xf32>
    %116 = vector.extract_strided_slice %76 {offsets = [8, 0], sizes = [8, 8], strides = [1, 1]} : vector<16x8xf32> to vector<8x8xf32>
    %cst_56 = arith.constant dense<0.000000e+00> : vector<8x8xf32>
    %117 = tpu.matmul %115, %116, %cst_56 {dimension_numbers = #tpu.dot_dimension_numbers<[1], [1], [0], [0], [0, 0, 1, 0], [], []>} : vector<8x8xf32>, vector<8x8xf32>, vector<8x8xf32> -> vector<8x8xf32>
    %118 = vector.extract_strided_slice %86 {offsets = [8, 0], sizes = [8, 8], strides = [1, 1]} : vector<16x8xf32> to vector<8x8xf32>
    %119 = vector.extract_strided_slice %91 {offsets = [8, 0], sizes = [8, 8], strides = [1, 1]} : vector<16x8xf32> to vector<8x8xf32>
    %cst_57 = arith.constant dense<0.000000e+00> : vector<8x8xf32>
    %120 = tpu.matmul %118, %119, %cst_57 {dimension_numbers = #tpu.dot_dimension_numbers<[1], [1], [0], [0], [0, 0, 1, 0], [], []>} : vector<8x8xf32>, vector<8x8xf32>, vector<8x8xf32> -> vector<8x8xf32>
    %121 = tpu.concatenate %99, %102, %105, %108, %111, %114, %117, %120 in 0 : vector<8x8xf32>, vector<8x8xf32>, vector<8x8xf32>, vector<8x8xf32>, vector<8x8xf32>, vector<8x8xf32>, vector<8x8xf32>, vector<8x8xf32> -> vector<64x8xf32>
    %cst_58 = arith.constant 0.353553385 : f32
    %122 = vector.broadcast %cst_58 : f32 to vector<64x8xf32>
    %123 = arith.mulf %121, %122 : vector<64x8xf32>
    %124 = arith.addf %123, %36 : vector<64x8xf32>
    %cst_59 = arith.constant dense<0xFF800000> : vector<64xf32>
    %125 = vector.multi_reduction <maximumf>, %124, %cst_59 [1] : vector<64x8xf32> to vector<64xf32>
    %126 = vector.shape_cast %125 : vector<64xf32> to vector<64x1xf32>
    %127 = vector.broadcast %126 : vector<64x1xf32> to vector<64x8xf32>
    %128 = arith.subf %124, %127 : vector<64x8xf32>
    %129 = math.exp %128 : vector<64x8xf32>
    %cst_60 = arith.constant dense<0.000000e+00> : vector<64xf32>
    %130 = vector.multi_reduction <add>, %129, %cst_60 [1] : vector<64x8xf32> to vector<64xf32>
    %131 = vector.shape_cast %130 : vector<64xf32> to vector<64x1xf32>
    %132 = vector.broadcast %131 : vector<64x1xf32> to vector<64x8xf32>
    %133 = arith.divf %129, %132 : vector<64x8xf32>
    %c96 = arith.constant 96 : index
    %c0_61 = arith.constant 0 : index
    %134 = vector.load %arg2[%c96, %c0_61] : memref<544x32xf32, #tpu.memory_space<vmem>>, vector<8x32xf32>
    %c104 = arith.constant 104 : index
    %c0_62 = arith.constant 0 : index
    %135 = vector.load %arg2[%c104, %c0_62] : memref<544x32xf32, #tpu.memory_space<vmem>>, vector<8x32xf32>
    %c112 = arith.constant 112 : index
    %c0_63 = arith.constant 0 : index
    %136 = vector.load %arg2[%c112, %c0_63] : memref<544x32xf32, #tpu.memory_space<vmem>>, vector<8x32xf32>
    %c120 = arith.constant 120 : index
    %c0_64 = arith.constant 0 : index
    %137 = vector.load %arg2[%c120, %c0_64] : memref<544x32xf32, #tpu.memory_space<vmem>>, vector<8x32xf32>
    %138 = vector.extract_strided_slice %133 {offsets = [0, 0], sizes = [8, 8], strides = [1, 1]} : vector<64x8xf32> to vector<8x8xf32>
    %139 = vector.extract_strided_slice %51 {offsets = [0, 0], sizes = [8, 8], strides = [1, 1]} : vector<16x8xf32> to vector<8x8xf32>
    %cst_65 = arith.constant dense<0.000000e+00> : vector<8x8xf32>
    %140 = tpu.matmul %138, %139, %cst_65 {dimension_numbers = #tpu.dot_dimension_numbers<[1], [0], [0], [1], [0, 0, 1, 1], [], []>} : vector<8x8xf32>, vector<8x8xf32>, vector<8x8xf32> -> vector<8x8xf32>
    %cst_66 = arith.constant dense<0.000000e+00> : vector<8x32xf32>
    %141 = tpu.matmul %140, %134, %cst_66 {dimension_numbers = #tpu.dot_dimension_numbers<[1], [0], [0], [1], [0, 0, 1, 1], [], []>} : vector<8x8xf32>, vector<8x32xf32>, vector<8x32xf32> -> vector<8x32xf32>
    %142 = vector.extract_strided_slice %133 {offsets = [8, 0], sizes = [8, 8], strides = [1, 1]} : vector<64x8xf32> to vector<8x8xf32>
    %143 = vector.extract_strided_slice %66 {offsets = [0, 0], sizes = [8, 8], strides = [1, 1]} : vector<16x8xf32> to vector<8x8xf32>
    %cst_67 = arith.constant dense<0.000000e+00> : vector<8x8xf32>
    %144 = tpu.matmul %142, %143, %cst_67 {dimension_numbers = #tpu.dot_dimension_numbers<[1], [0], [0], [1], [0, 0, 1, 1], [], []>} : vector<8x8xf32>, vector<8x8xf32>, vector<8x8xf32> -> vector<8x8xf32>
    %cst_68 = arith.constant dense<0.000000e+00> : vector<8x32xf32>
    %145 = tpu.matmul %144, %135, %cst_68 {dimension_numbers = #tpu.dot_dimension_numbers<[1], [0], [0], [1], [0, 0, 1, 1], [], []>} : vector<8x8xf32>, vector<8x32xf32>, vector<8x32xf32> -> vector<8x32xf32>
    %146 = arith.addf %141, %145 : vector<8x32xf32>
    %147 = vector.extract_strided_slice %133 {offsets = [16, 0], sizes = [8, 8], strides = [1, 1]} : vector<64x8xf32> to vector<8x8xf32>
    %148 = vector.extract_strided_slice %81 {offsets = [0, 0], sizes = [8, 8], strides = [1, 1]} : vector<16x8xf32> to vector<8x8xf32>
    %cst_69 = arith.constant dense<0.000000e+00> : vector<8x8xf32>
    %149 = tpu.matmul %147, %148, %cst_69 {dimension_numbers = #tpu.dot_dimension_numbers<[1], [0], [0], [1], [0, 0, 1, 1], [], []>} : vector<8x8xf32>, vector<8x8xf32>, vector<8x8xf32> -> vector<8x8xf32>
    %cst_70 = arith.constant dense<0.000000e+00> : vector<8x32xf32>
    %150 = tpu.matmul %149, %136, %cst_70 {dimension_numbers = #tpu.dot_dimension_numbers<[1], [0], [0], [1], [0, 0, 1, 1], [], []>} : vector<8x8xf32>, vector<8x32xf32>, vector<8x32xf32> -> vector<8x32xf32>
    %151 = arith.addf %146, %150 : vector<8x32xf32>
    %152 = vector.extract_strided_slice %133 {offsets = [24, 0], sizes = [8, 8], strides = [1, 1]} : vector<64x8xf32> to vector<8x8xf32>
    %153 = vector.extract_strided_slice %96 {offsets = [0, 0], sizes = [8, 8], strides = [1, 1]} : vector<16x8xf32> to vector<8x8xf32>
    %cst_71 = arith.constant dense<0.000000e+00> : vector<8x8xf32>
    %154 = tpu.matmul %152, %153, %cst_71 {dimension_numbers = #tpu.dot_dimension_numbers<[1], [0], [0], [1], [0, 0, 1, 1], [], []>} : vector<8x8xf32>, vector<8x8xf32>, vector<8x8xf32> -> vector<8x8xf32>
    %cst_72 = arith.constant dense<0.000000e+00> : vector<8x32xf32>
    %155 = tpu.matmul %154, %137, %cst_72 {dimension_numbers = #tpu.dot_dimension_numbers<[1], [0], [0], [1], [0, 0, 1, 1], [], []>} : vector<8x8xf32>, vector<8x32xf32>, vector<8x32xf32> -> vector<8x32xf32>
    %156 = arith.addf %151, %155 : vector<8x32xf32>
    %157 = vector.extract_strided_slice %133 {offsets = [32, 0], sizes = [8, 8], strides = [1, 1]} : vector<64x8xf32> to vector<8x8xf32>
    %158 = vector.extract_strided_slice %51 {offsets = [8, 0], sizes = [8, 8], strides = [1, 1]} : vector<16x8xf32> to vector<8x8xf32>
    %cst_73 = arith.constant dense<0.000000e+00> : vector<8x8xf32>
    %159 = tpu.matmul %157, %158, %cst_73 {dimension_numbers = #tpu.dot_dimension_numbers<[1], [0], [0], [1], [0, 0, 1, 1], [], []>} : vector<8x8xf32>, vector<8x8xf32>, vector<8x8xf32> -> vector<8x8xf32>
    %cst_74 = arith.constant dense<0.000000e+00> : vector<8x32xf32>
    %160 = tpu.matmul %159, %134, %cst_74 {dimension_numbers = #tpu.dot_dimension_numbers<[1], [0], [0], [1], [0, 0, 1, 1], [], []>} : vector<8x8xf32>, vector<8x32xf32>, vector<8x32xf32> -> vector<8x32xf32>
    %161 = vector.extract_strided_slice %133 {offsets = [40, 0], sizes = [8, 8], strides = [1, 1]} : vector<64x8xf32> to vector<8x8xf32>
    %162 = vector.extract_strided_slice %66 {offsets = [8, 0], sizes = [8, 8], strides = [1, 1]} : vector<16x8xf32> to vector<8x8xf32>
    %cst_75 = arith.constant dense<0.000000e+00> : vector<8x8xf32>
    %163 = tpu.matmul %161, %162, %cst_75 {dimension_numbers = #tpu.dot_dimension_numbers<[1], [0], [0], [1], [0, 0, 1, 1], [], []>} : vector<8x8xf32>, vector<8x8xf32>, vector<8x8xf32> -> vector<8x8xf32>
    %cst_76 = arith.constant dense<0.000000e+00> : vector<8x32xf32>
    %164 = tpu.matmul %163, %135, %cst_76 {dimension_numbers = #tpu.dot_dimension_numbers<[1], [0], [0], [1], [0, 0, 1, 1], [], []>} : vector<8x8xf32>, vector<8x32xf32>, vector<8x32xf32> -> vector<8x32xf32>
    %165 = arith.addf %160, %164 : vector<8x32xf32>
    %166 = vector.extract_strided_slice %133 {offsets = [48, 0], sizes = [8, 8], strides = [1, 1]} : vector<64x8xf32> to vector<8x8xf32>
    %167 = vector.extract_strided_slice %81 {offsets = [8, 0], sizes = [8, 8], strides = [1, 1]} : vector<16x8xf32> to vector<8x8xf32>
    %cst_77 = arith.constant dense<0.000000e+00> : vector<8x8xf32>
    %168 = tpu.matmul %166, %167, %cst_77 {dimension_numbers = #tpu.dot_dimension_numbers<[1], [0], [0], [1], [0, 0, 1, 1], [], []>} : vector<8x8xf32>, vector<8x8xf32>, vector<8x8xf32> -> vector<8x8xf32>
    %cst_78 = arith.constant dense<0.000000e+00> : vector<8x32xf32>
    %169 = tpu.matmul %168, %136, %cst_78 {dimension_numbers = #tpu.dot_dimension_numbers<[1], [0], [0], [1], [0, 0, 1, 1], [], []>} : vector<8x8xf32>, vector<8x32xf32>, vector<8x32xf32> -> vector<8x32xf32>
    %170 = arith.addf %165, %169 : vector<8x32xf32>
    %171 = vector.extract_strided_slice %133 {offsets = [56, 0], sizes = [8, 8], strides = [1, 1]} : vector<64x8xf32> to vector<8x8xf32>
    %172 = vector.extract_strided_slice %96 {offsets = [8, 0], sizes = [8, 8], strides = [1, 1]} : vector<16x8xf32> to vector<8x8xf32>
    %cst_79 = arith.constant dense<0.000000e+00> : vector<8x8xf32>
    %173 = tpu.matmul %171, %172, %cst_79 {dimension_numbers = #tpu.dot_dimension_numbers<[1], [0], [0], [1], [0, 0, 1, 1], [], []>} : vector<8x8xf32>, vector<8x8xf32>, vector<8x8xf32> -> vector<8x8xf32>
    %cst_80 = arith.constant dense<0.000000e+00> : vector<8x32xf32>
    %174 = tpu.matmul %173, %137, %cst_80 {dimension_numbers = #tpu.dot_dimension_numbers<[1], [0], [0], [1], [0, 0, 1, 1], [], []>} : vector<8x8xf32>, vector<8x32xf32>, vector<8x32xf32> -> vector<8x32xf32>
    %175 = arith.addf %170, %174 : vector<8x32xf32>
    %176 = tpu.concatenate %156, %175 in 0 : vector<8x32xf32>, vector<8x32xf32> -> vector<16x32xf32>
    %c14 = arith.constant 14 : index
    %c0_81 = arith.constant 0 : index
    %177 = vector.load %arg3[%c14, %c0_81] : memref<48x64xf32, #tpu.memory_space<vmem>>, vector<1x32xf32>
    %178 = vector.broadcast %177 : vector<1x32xf32> to vector<16x32xf32>
    %179 = arith.addf %176, %178 : vector<16x32xf32>
    %180 = arith.addf %24, %179 : vector<16x32xf32>
    %c15 = arith.constant 15 : index
    %c0_82 = arith.constant 0 : index
    %181 = vector.load %arg3[%c15, %c0_82] : memref<48x64xf32, #tpu.memory_space<vmem>>, vector<1x32xf32>
    %c16_83 = arith.constant 16 : index
    %c0_84 = arith.constant 0 : index
    %182 = vector.load %arg3[%c16_83, %c0_84] : memref<48x64xf32, #tpu.memory_space<vmem>>, vector<1x32xf32>
    %cst_85 = arith.constant dense<0.000000e+00> : vector<16xf32>
    %183 = vector.multi_reduction <add>, %180, %cst_85 [1] : vector<16x32xf32> to vector<16xf32>
    %184 = vector.shape_cast %183 : vector<16xf32> to vector<16x1xf32>
    %cst_86 = arith.constant 3.200000e+01 : f32
    %185 = vector.broadcast %cst_86 : f32 to vector<16x1xf32>
    %186 = arith.divf %184, %185 : vector<16x1xf32>
    %187 = vector.broadcast %186 : vector<16x1xf32> to vector<16x32xf32>
    %188 = arith.subf %180, %187 : vector<16x32xf32>
    %189 = arith.mulf %188, %188 : vector<16x32xf32>
    %cst_87 = arith.constant dense<0.000000e+00> : vector<16xf32>
    %190 = vector.multi_reduction <add>, %189, %cst_87 [1] : vector<16x32xf32> to vector<16xf32>
    %191 = vector.shape_cast %190 : vector<16xf32> to vector<16x1xf32>
    %cst_88 = arith.constant 3.200000e+01 : f32
    %192 = vector.broadcast %cst_88 : f32 to vector<16x1xf32>
    %193 = arith.divf %191, %192 : vector<16x1xf32>
    %194 = vector.broadcast %186 : vector<16x1xf32> to vector<16x32xf32>
    %195 = arith.subf %180, %194 : vector<16x32xf32>
    %cst_89 = arith.constant 9.99999996E-13 : f32
    %196 = vector.broadcast %cst_89 : f32 to vector<16x1xf32>
    %197 = arith.addf %193, %196 : vector<16x1xf32>
    %198 = math.rsqrt %197 : vector<16x1xf32>
    %199 = vector.broadcast %198 : vector<16x1xf32> to vector<16x32xf32>
    %200 = arith.mulf %195, %199 : vector<16x32xf32>
    %201 = vector.broadcast %181 : vector<1x32xf32> to vector<16x32xf32>
    %202 = arith.mulf %200, %201 : vector<16x32xf32>
    %203 = vector.broadcast %182 : vector<1x32xf32> to vector<16x32xf32>
    %204 = arith.addf %202, %203 : vector<16x32xf32>
    %c128 = arith.constant 128 : index
    %c0_90 = arith.constant 0 : index
    %205 = vector.load %arg2[%c128, %c0_90] : memref<544x32xf32, #tpu.memory_space<vmem>>, vector<64x32xf32>
    %cst_91 = arith.constant dense<0.000000e+00> : vector<16x64xf32>
    %206 = tpu.matmul %204, %205, %cst_91 {dimension_numbers = #tpu.dot_dimension_numbers<[1], [1], [0], [0], [0, 0, 1, 0], [], []>} : vector<16x32xf32>, vector<64x32xf32>, vector<16x64xf32> -> vector<16x64xf32>
    %c17 = arith.constant 17 : index
    %c0_92 = arith.constant 0 : index
    %207 = vector.load %arg3[%c17, %c0_92] : memref<48x64xf32, #tpu.memory_space<vmem>>, vector<1x64xf32>
    %208 = vector.broadcast %207 : vector<1x64xf32> to vector<16x64xf32>
    %209 = arith.addf %206, %208 : vector<16x64xf32>
    %cst_93 = arith.constant 5.000000e-01 : f32
    %210 = vector.broadcast %cst_93 : f32 to vector<16x64xf32>
    %211 = arith.mulf %210, %209 : vector<16x64xf32>
    %cst_94 = arith.constant 0.707106769 : f32
    %212 = vector.broadcast %cst_94 : f32 to vector<16x64xf32>
    %213 = arith.mulf %209, %212 : vector<16x64xf32>
    %cst_95 = arith.constant 0.000000e+00 : f32
    %214 = vector.broadcast %cst_95 : f32 to vector<16x64xf32>
    %215 = arith.cmpf oge, %213, %214 : vector<16x64xf32>
    %cst_96 = arith.constant 1.000000e+00 : f32
    %cst_97 = arith.constant -1.000000e+00 : f32
    %216 = vector.broadcast %cst_96 : f32 to vector<16x64xf32>
    %217 = vector.broadcast %cst_97 : f32 to vector<16x64xf32>
    %218 = arith.select %215, %216, %217 : vector<16x64xi1>, vector<16x64xf32>
    %219 = math.absf %213 : vector<16x64xf32>
    %cst_98 = arith.constant 0.327591091 : f32
    %220 = vector.broadcast %cst_98 : f32 to vector<16x64xf32>
    %221 = arith.mulf %220, %219 : vector<16x64xf32>
    %cst_99 = arith.constant 1.000000e+00 : f32
    %222 = vector.broadcast %cst_99 : f32 to vector<16x64xf32>
    %223 = arith.addf %222, %221 : vector<16x64xf32>
    %cst_100 = arith.constant 1.000000e+00 : f32
    %224 = vector.broadcast %cst_100 : f32 to vector<16x64xf32>
    %225 = arith.divf %224, %223 : vector<16x64xf32>
    %cst_101 = arith.constant 1.06140542 : f32
    %226 = vector.broadcast %cst_101 : f32 to vector<16x64xf32>
    %227 = arith.mulf %226, %225 : vector<16x64xf32>
    %cst_102 = arith.constant -1.45315206 : f32
    %228 = vector.broadcast %cst_102 : f32 to vector<16x64xf32>
    %229 = arith.addf %227, %228 : vector<16x64xf32>
    %230 = arith.mulf %229, %225 : vector<16x64xf32>
    %cst_103 = arith.constant 1.42141378 : f32
    %231 = vector.broadcast %cst_103 : f32 to vector<16x64xf32>
    %232 = arith.addf %230, %231 : vector<16x64xf32>
    %233 = arith.mulf %232, %225 : vector<16x64xf32>
    %cst_104 = arith.constant -0.284496725 : f32
    %234 = vector.broadcast %cst_104 : f32 to vector<16x64xf32>
    %235 = arith.addf %233, %234 : vector<16x64xf32>
    %236 = arith.mulf %235, %225 : vector<16x64xf32>
    %cst_105 = arith.constant 0.254829586 : f32
    %237 = vector.broadcast %cst_105 : f32 to vector<16x64xf32>
    %238 = arith.addf %236, %237 : vector<16x64xf32>
    %239 = arith.mulf %238, %225 : vector<16x64xf32>
    %cst_106 = arith.constant 0.000000e+00 : f32
    %240 = vector.broadcast %cst_106 : f32 to vector<16x64xf32>
    %241 = arith.subf %240, %219 : vector<16x64xf32>
    %242 = arith.mulf %241, %219 : vector<16x64xf32>
    %243 = math.exp %242 : vector<16x64xf32>
    %244 = arith.mulf %239, %243 : vector<16x64xf32>
    %cst_107 = arith.constant 1.000000e+00 : f32
    %245 = vector.broadcast %cst_107 : f32 to vector<16x64xf32>
    %246 = arith.subf %245, %244 : vector<16x64xf32>
    %247 = arith.mulf %218, %246 : vector<16x64xf32>
    %cst_108 = arith.constant 1.000000e+00 : f32
    %248 = vector.broadcast %cst_108 : f32 to vector<16x64xf32>
    %249 = arith.addf %248, %247 : vector<16x64xf32>
    %250 = arith.mulf %211, %249 : vector<16x64xf32>
    %c192 = arith.constant 192 : index
    %c0_109 = arith.constant 0 : index
    %251 = vector.load %arg2[%c192, %c0_109] : memref<544x32xf32, #tpu.memory_space<vmem>>, vector<64x32xf32>
    %cst_110 = arith.constant dense<0.000000e+00> : vector<16x32xf32>
    %252 = tpu.matmul %250, %251, %cst_110 {dimension_numbers = #tpu.dot_dimension_numbers<[1], [0], [0], [1], [0, 0, 1, 1], [], []>} : vector<16x64xf32>, vector<64x32xf32>, vector<16x32xf32> -> vector<16x32xf32>
    %c18 = arith.constant 18 : index
    %c0_111 = arith.constant 0 : index
    %253 = vector.load %arg3[%c18, %c0_111] : memref<48x64xf32, #tpu.memory_space<vmem>>, vector<1x32xf32>
    %254 = vector.broadcast %253 : vector<1x32xf32> to vector<16x32xf32>
    %255 = arith.addf %252, %254 : vector<16x32xf32>
    %256 = arith.addf %204, %255 : vector<16x32xf32>
    %c19 = arith.constant 19 : index
    %c0_112 = arith.constant 0 : index
    %257 = vector.load %arg3[%c19, %c0_112] : memref<48x64xf32, #tpu.memory_space<vmem>>, vector<1x32xf32>
    %c20 = arith.constant 20 : index
    %c0_113 = arith.constant 0 : index
    %258 = vector.load %arg3[%c20, %c0_113] : memref<48x64xf32, #tpu.memory_space<vmem>>, vector<1x32xf32>
    %cst_114 = arith.constant dense<0.000000e+00> : vector<16xf32>
    %259 = vector.multi_reduction <add>, %256, %cst_114 [1] : vector<16x32xf32> to vector<16xf32>
    %260 = vector.shape_cast %259 : vector<16xf32> to vector<16x1xf32>
    %cst_115 = arith.constant 3.200000e+01 : f32
    %261 = vector.broadcast %cst_115 : f32 to vector<16x1xf32>
    %262 = arith.divf %260, %261 : vector<16x1xf32>
    %263 = vector.broadcast %262 : vector<16x1xf32> to vector<16x32xf32>
    %264 = arith.subf %256, %263 : vector<16x32xf32>
    %265 = arith.mulf %264, %264 : vector<16x32xf32>
    %cst_116 = arith.constant dense<0.000000e+00> : vector<16xf32>
    %266 = vector.multi_reduction <add>, %265, %cst_116 [1] : vector<16x32xf32> to vector<16xf32>
    %267 = vector.shape_cast %266 : vector<16xf32> to vector<16x1xf32>
    %cst_117 = arith.constant 3.200000e+01 : f32
    %268 = vector.broadcast %cst_117 : f32 to vector<16x1xf32>
    %269 = arith.divf %267, %268 : vector<16x1xf32>
    %270 = vector.broadcast %262 : vector<16x1xf32> to vector<16x32xf32>
    %271 = arith.subf %256, %270 : vector<16x32xf32>
    %cst_118 = arith.constant 9.99999996E-13 : f32
    %272 = vector.broadcast %cst_118 : f32 to vector<16x1xf32>
    %273 = arith.addf %269, %272 : vector<16x1xf32>
    %274 = math.rsqrt %273 : vector<16x1xf32>
    %275 = vector.broadcast %274 : vector<16x1xf32> to vector<16x32xf32>
    %276 = arith.mulf %271, %275 : vector<16x32xf32>
    %277 = vector.broadcast %257 : vector<1x32xf32> to vector<16x32xf32>
    %278 = arith.mulf %276, %277 : vector<16x32xf32>
    %279 = vector.broadcast %258 : vector<1x32xf32> to vector<16x32xf32>
    %280 = arith.addf %278, %279 : vector<16x32xf32>
    %c256 = arith.constant 256 : index
    %c0_119 = arith.constant 0 : index
    %281 = vector.load %arg2[%c256, %c0_119] : memref<544x32xf32, #tpu.memory_space<vmem>>, vector<8x32xf32>
    %cst_120 = arith.constant dense<0.000000e+00> : vector<16x8xf32>
    %282 = tpu.matmul %280, %281, %cst_120 {dimension_numbers = #tpu.dot_dimension_numbers<[1], [1], [0], [0], [0, 0, 1, 0], [], []>} : vector<16x32xf32>, vector<8x32xf32>, vector<16x8xf32> -> vector<16x8xf32>
    %c21 = arith.constant 21 : index
    %c0_121 = arith.constant 0 : index
    %283 = vector.load %arg3[%c21, %c0_121] : memref<48x64xf32, #tpu.memory_space<vmem>>, vector<1x8xf32>
    %284 = vector.broadcast %283 : vector<1x8xf32> to vector<16x8xf32>
    %285 = arith.addf %282, %284 : vector<16x8xf32>
    %c264 = arith.constant 264 : index
    %c0_122 = arith.constant 0 : index
    %286 = vector.load %arg2[%c264, %c0_122] : memref<544x32xf32, #tpu.memory_space<vmem>>, vector<8x32xf32>
    %cst_123 = arith.constant dense<0.000000e+00> : vector<16x8xf32>
    %287 = tpu.matmul %280, %286, %cst_123 {dimension_numbers = #tpu.dot_dimension_numbers<[1], [1], [0], [0], [0, 0, 1, 0], [], []>} : vector<16x32xf32>, vector<8x32xf32>, vector<16x8xf32> -> vector<16x8xf32>
    %c22 = arith.constant 22 : index
    %c0_124 = arith.constant 0 : index
    %288 = vector.load %arg3[%c22, %c0_124] : memref<48x64xf32, #tpu.memory_space<vmem>>, vector<1x8xf32>
    %289 = vector.broadcast %288 : vector<1x8xf32> to vector<16x8xf32>
    %290 = arith.addf %287, %289 : vector<16x8xf32>
    %c272 = arith.constant 272 : index
    %c0_125 = arith.constant 0 : index
    %291 = vector.load %arg2[%c272, %c0_125] : memref<544x32xf32, #tpu.memory_space<vmem>>, vector<8x32xf32>
    %cst_126 = arith.constant dense<0.000000e+00> : vector<16x8xf32>
    %292 = tpu.matmul %280, %291, %cst_126 {dimension_numbers = #tpu.dot_dimension_numbers<[1], [1], [0], [0], [0, 0, 1, 0], [], []>} : vector<16x32xf32>, vector<8x32xf32>, vector<16x8xf32> -> vector<16x8xf32>
    %c23 = arith.constant 23 : index
    %c0_127 = arith.constant 0 : index
    %293 = vector.load %arg3[%c23, %c0_127] : memref<48x64xf32, #tpu.memory_space<vmem>>, vector<1x8xf32>
    %294 = vector.broadcast %293 : vector<1x8xf32> to vector<16x8xf32>
    %295 = arith.addf %292, %294 : vector<16x8xf32>
    %c280 = arith.constant 280 : index
    %c0_128 = arith.constant 0 : index
    %296 = vector.load %arg2[%c280, %c0_128] : memref<544x32xf32, #tpu.memory_space<vmem>>, vector<8x32xf32>
    %cst_129 = arith.constant dense<0.000000e+00> : vector<16x8xf32>
    %297 = tpu.matmul %280, %296, %cst_129 {dimension_numbers = #tpu.dot_dimension_numbers<[1], [1], [0], [0], [0, 0, 1, 0], [], []>} : vector<16x32xf32>, vector<8x32xf32>, vector<16x8xf32> -> vector<16x8xf32>
    %c24_130 = arith.constant 24 : index
    %c0_131 = arith.constant 0 : index
    %298 = vector.load %arg3[%c24_130, %c0_131] : memref<48x64xf32, #tpu.memory_space<vmem>>, vector<1x8xf32>
    %299 = vector.broadcast %298 : vector<1x8xf32> to vector<16x8xf32>
    %300 = arith.addf %297, %299 : vector<16x8xf32>
    %c288 = arith.constant 288 : index
    %c0_132 = arith.constant 0 : index
    %301 = vector.load %arg2[%c288, %c0_132] : memref<544x32xf32, #tpu.memory_space<vmem>>, vector<8x32xf32>
    %cst_133 = arith.constant dense<0.000000e+00> : vector<16x8xf32>
    %302 = tpu.matmul %280, %301, %cst_133 {dimension_numbers = #tpu.dot_dimension_numbers<[1], [1], [0], [0], [0, 0, 1, 0], [], []>} : vector<16x32xf32>, vector<8x32xf32>, vector<16x8xf32> -> vector<16x8xf32>
    %c25 = arith.constant 25 : index
    %c0_134 = arith.constant 0 : index
    %303 = vector.load %arg3[%c25, %c0_134] : memref<48x64xf32, #tpu.memory_space<vmem>>, vector<1x8xf32>
    %304 = vector.broadcast %303 : vector<1x8xf32> to vector<16x8xf32>
    %305 = arith.addf %302, %304 : vector<16x8xf32>
    %c296 = arith.constant 296 : index
    %c0_135 = arith.constant 0 : index
    %306 = vector.load %arg2[%c296, %c0_135] : memref<544x32xf32, #tpu.memory_space<vmem>>, vector<8x32xf32>
    %cst_136 = arith.constant dense<0.000000e+00> : vector<16x8xf32>
    %307 = tpu.matmul %280, %306, %cst_136 {dimension_numbers = #tpu.dot_dimension_numbers<[1], [1], [0], [0], [0, 0, 1, 0], [], []>} : vector<16x32xf32>, vector<8x32xf32>, vector<16x8xf32> -> vector<16x8xf32>
    %c26 = arith.constant 26 : index
    %c0_137 = arith.constant 0 : index
    %308 = vector.load %arg3[%c26, %c0_137] : memref<48x64xf32, #tpu.memory_space<vmem>>, vector<1x8xf32>
    %309 = vector.broadcast %308 : vector<1x8xf32> to vector<16x8xf32>
    %310 = arith.addf %307, %309 : vector<16x8xf32>
    %c304 = arith.constant 304 : index
    %c0_138 = arith.constant 0 : index
    %311 = vector.load %arg2[%c304, %c0_138] : memref<544x32xf32, #tpu.memory_space<vmem>>, vector<8x32xf32>
    %cst_139 = arith.constant dense<0.000000e+00> : vector<16x8xf32>
    %312 = tpu.matmul %280, %311, %cst_139 {dimension_numbers = #tpu.dot_dimension_numbers<[1], [1], [0], [0], [0, 0, 1, 0], [], []>} : vector<16x32xf32>, vector<8x32xf32>, vector<16x8xf32> -> vector<16x8xf32>
    %c27 = arith.constant 27 : index
    %c0_140 = arith.constant 0 : index
    %313 = vector.load %arg3[%c27, %c0_140] : memref<48x64xf32, #tpu.memory_space<vmem>>, vector<1x8xf32>
    %314 = vector.broadcast %313 : vector<1x8xf32> to vector<16x8xf32>
    %315 = arith.addf %312, %314 : vector<16x8xf32>
    %c312 = arith.constant 312 : index
    %c0_141 = arith.constant 0 : index
    %316 = vector.load %arg2[%c312, %c0_141] : memref<544x32xf32, #tpu.memory_space<vmem>>, vector<8x32xf32>
    %cst_142 = arith.constant dense<0.000000e+00> : vector<16x8xf32>
    %317 = tpu.matmul %280, %316, %cst_142 {dimension_numbers = #tpu.dot_dimension_numbers<[1], [1], [0], [0], [0, 0, 1, 0], [], []>} : vector<16x32xf32>, vector<8x32xf32>, vector<16x8xf32> -> vector<16x8xf32>
    %c28 = arith.constant 28 : index
    %c0_143 = arith.constant 0 : index
    %318 = vector.load %arg3[%c28, %c0_143] : memref<48x64xf32, #tpu.memory_space<vmem>>, vector<1x8xf32>
    %319 = vector.broadcast %318 : vector<1x8xf32> to vector<16x8xf32>
    %320 = arith.addf %317, %319 : vector<16x8xf32>
    %c320 = arith.constant 320 : index
    %c0_144 = arith.constant 0 : index
    %321 = vector.load %arg2[%c320, %c0_144] : memref<544x32xf32, #tpu.memory_space<vmem>>, vector<8x32xf32>
    %cst_145 = arith.constant dense<0.000000e+00> : vector<16x8xf32>
    %322 = tpu.matmul %280, %321, %cst_145 {dimension_numbers = #tpu.dot_dimension_numbers<[1], [1], [0], [0], [0, 0, 1, 0], [], []>} : vector<16x32xf32>, vector<8x32xf32>, vector<16x8xf32> -> vector<16x8xf32>
    %c29 = arith.constant 29 : index
    %c0_146 = arith.constant 0 : index
    %323 = vector.load %arg3[%c29, %c0_146] : memref<48x64xf32, #tpu.memory_space<vmem>>, vector<1x8xf32>
    %324 = vector.broadcast %323 : vector<1x8xf32> to vector<16x8xf32>
    %325 = arith.addf %322, %324 : vector<16x8xf32>
    %c328 = arith.constant 328 : index
    %c0_147 = arith.constant 0 : index
    %326 = vector.load %arg2[%c328, %c0_147] : memref<544x32xf32, #tpu.memory_space<vmem>>, vector<8x32xf32>
    %cst_148 = arith.constant dense<0.000000e+00> : vector<16x8xf32>
    %327 = tpu.matmul %280, %326, %cst_148 {dimension_numbers = #tpu.dot_dimension_numbers<[1], [1], [0], [0], [0, 0, 1, 0], [], []>} : vector<16x32xf32>, vector<8x32xf32>, vector<16x8xf32> -> vector<16x8xf32>
    %c30 = arith.constant 30 : index
    %c0_149 = arith.constant 0 : index
    %328 = vector.load %arg3[%c30, %c0_149] : memref<48x64xf32, #tpu.memory_space<vmem>>, vector<1x8xf32>
    %329 = vector.broadcast %328 : vector<1x8xf32> to vector<16x8xf32>
    %330 = arith.addf %327, %329 : vector<16x8xf32>
    %c336 = arith.constant 336 : index
    %c0_150 = arith.constant 0 : index
    %331 = vector.load %arg2[%c336, %c0_150] : memref<544x32xf32, #tpu.memory_space<vmem>>, vector<8x32xf32>
    %cst_151 = arith.constant dense<0.000000e+00> : vector<16x8xf32>
    %332 = tpu.matmul %280, %331, %cst_151 {dimension_numbers = #tpu.dot_dimension_numbers<[1], [1], [0], [0], [0, 0, 1, 0], [], []>} : vector<16x32xf32>, vector<8x32xf32>, vector<16x8xf32> -> vector<16x8xf32>
    %c31 = arith.constant 31 : index
    %c0_152 = arith.constant 0 : index
    %333 = vector.load %arg3[%c31, %c0_152] : memref<48x64xf32, #tpu.memory_space<vmem>>, vector<1x8xf32>
    %334 = vector.broadcast %333 : vector<1x8xf32> to vector<16x8xf32>
    %335 = arith.addf %332, %334 : vector<16x8xf32>
    %c344 = arith.constant 344 : index
    %c0_153 = arith.constant 0 : index
    %336 = vector.load %arg2[%c344, %c0_153] : memref<544x32xf32, #tpu.memory_space<vmem>>, vector<8x32xf32>
    %cst_154 = arith.constant dense<0.000000e+00> : vector<16x8xf32>
    %337 = tpu.matmul %280, %336, %cst_154 {dimension_numbers = #tpu.dot_dimension_numbers<[1], [1], [0], [0], [0, 0, 1, 0], [], []>} : vector<16x32xf32>, vector<8x32xf32>, vector<16x8xf32> -> vector<16x8xf32>
    %c32_155 = arith.constant 32 : index
    %c0_156 = arith.constant 0 : index
    %338 = vector.load %arg3[%c32_155, %c0_156] : memref<48x64xf32, #tpu.memory_space<vmem>>, vector<1x8xf32>
    %339 = vector.broadcast %338 : vector<1x8xf32> to vector<16x8xf32>
    %340 = arith.addf %337, %339 : vector<16x8xf32>
    %341 = vector.extract_strided_slice %285 {offsets = [0, 0], sizes = [8, 8], strides = [1, 1]} : vector<16x8xf32> to vector<8x8xf32>
    %342 = vector.extract_strided_slice %290 {offsets = [0, 0], sizes = [8, 8], strides = [1, 1]} : vector<16x8xf32> to vector<8x8xf32>
    %cst_157 = arith.constant dense<0.000000e+00> : vector<8x8xf32>
    %343 = tpu.matmul %341, %342, %cst_157 {dimension_numbers = #tpu.dot_dimension_numbers<[1], [1], [0], [0], [0, 0, 1, 0], [], []>} : vector<8x8xf32>, vector<8x8xf32>, vector<8x8xf32> -> vector<8x8xf32>
    %344 = vector.extract_strided_slice %300 {offsets = [0, 0], sizes = [8, 8], strides = [1, 1]} : vector<16x8xf32> to vector<8x8xf32>
    %345 = vector.extract_strided_slice %305 {offsets = [0, 0], sizes = [8, 8], strides = [1, 1]} : vector<16x8xf32> to vector<8x8xf32>
    %cst_158 = arith.constant dense<0.000000e+00> : vector<8x8xf32>
    %346 = tpu.matmul %344, %345, %cst_158 {dimension_numbers = #tpu.dot_dimension_numbers<[1], [1], [0], [0], [0, 0, 1, 0], [], []>} : vector<8x8xf32>, vector<8x8xf32>, vector<8x8xf32> -> vector<8x8xf32>
    %347 = vector.extract_strided_slice %315 {offsets = [0, 0], sizes = [8, 8], strides = [1, 1]} : vector<16x8xf32> to vector<8x8xf32>
    %348 = vector.extract_strided_slice %320 {offsets = [0, 0], sizes = [8, 8], strides = [1, 1]} : vector<16x8xf32> to vector<8x8xf32>
    %cst_159 = arith.constant dense<0.000000e+00> : vector<8x8xf32>
    %349 = tpu.matmul %347, %348, %cst_159 {dimension_numbers = #tpu.dot_dimension_numbers<[1], [1], [0], [0], [0, 0, 1, 0], [], []>} : vector<8x8xf32>, vector<8x8xf32>, vector<8x8xf32> -> vector<8x8xf32>
    %350 = vector.extract_strided_slice %330 {offsets = [0, 0], sizes = [8, 8], strides = [1, 1]} : vector<16x8xf32> to vector<8x8xf32>
    %351 = vector.extract_strided_slice %335 {offsets = [0, 0], sizes = [8, 8], strides = [1, 1]} : vector<16x8xf32> to vector<8x8xf32>
    %cst_160 = arith.constant dense<0.000000e+00> : vector<8x8xf32>
    %352 = tpu.matmul %350, %351, %cst_160 {dimension_numbers = #tpu.dot_dimension_numbers<[1], [1], [0], [0], [0, 0, 1, 0], [], []>} : vector<8x8xf32>, vector<8x8xf32>, vector<8x8xf32> -> vector<8x8xf32>
    %353 = vector.extract_strided_slice %285 {offsets = [8, 0], sizes = [8, 8], strides = [1, 1]} : vector<16x8xf32> to vector<8x8xf32>
    %354 = vector.extract_strided_slice %290 {offsets = [8, 0], sizes = [8, 8], strides = [1, 1]} : vector<16x8xf32> to vector<8x8xf32>
    %cst_161 = arith.constant dense<0.000000e+00> : vector<8x8xf32>
    %355 = tpu.matmul %353, %354, %cst_161 {dimension_numbers = #tpu.dot_dimension_numbers<[1], [1], [0], [0], [0, 0, 1, 0], [], []>} : vector<8x8xf32>, vector<8x8xf32>, vector<8x8xf32> -> vector<8x8xf32>
    %356 = vector.extract_strided_slice %300 {offsets = [8, 0], sizes = [8, 8], strides = [1, 1]} : vector<16x8xf32> to vector<8x8xf32>
    %357 = vector.extract_strided_slice %305 {offsets = [8, 0], sizes = [8, 8], strides = [1, 1]} : vector<16x8xf32> to vector<8x8xf32>
    %cst_162 = arith.constant dense<0.000000e+00> : vector<8x8xf32>
    %358 = tpu.matmul %356, %357, %cst_162 {dimension_numbers = #tpu.dot_dimension_numbers<[1], [1], [0], [0], [0, 0, 1, 0], [], []>} : vector<8x8xf32>, vector<8x8xf32>, vector<8x8xf32> -> vector<8x8xf32>
    %359 = vector.extract_strided_slice %315 {offsets = [8, 0], sizes = [8, 8], strides = [1, 1]} : vector<16x8xf32> to vector<8x8xf32>
    %360 = vector.extract_strided_slice %320 {offsets = [8, 0], sizes = [8, 8], strides = [1, 1]} : vector<16x8xf32> to vector<8x8xf32>
    %cst_163 = arith.constant dense<0.000000e+00> : vector<8x8xf32>
    %361 = tpu.matmul %359, %360, %cst_163 {dimension_numbers = #tpu.dot_dimension_numbers<[1], [1], [0], [0], [0, 0, 1, 0], [], []>} : vector<8x8xf32>, vector<8x8xf32>, vector<8x8xf32> -> vector<8x8xf32>
    %362 = vector.extract_strided_slice %330 {offsets = [8, 0], sizes = [8, 8], strides = [1, 1]} : vector<16x8xf32> to vector<8x8xf32>
    %363 = vector.extract_strided_slice %335 {offsets = [8, 0], sizes = [8, 8], strides = [1, 1]} : vector<16x8xf32> to vector<8x8xf32>
    %cst_164 = arith.constant dense<0.000000e+00> : vector<8x8xf32>
    %364 = tpu.matmul %362, %363, %cst_164 {dimension_numbers = #tpu.dot_dimension_numbers<[1], [1], [0], [0], [0, 0, 1, 0], [], []>} : vector<8x8xf32>, vector<8x8xf32>, vector<8x8xf32> -> vector<8x8xf32>
    %365 = tpu.concatenate %343, %346, %349, %352, %355, %358, %361, %364 in 0 : vector<8x8xf32>, vector<8x8xf32>, vector<8x8xf32>, vector<8x8xf32>, vector<8x8xf32>, vector<8x8xf32>, vector<8x8xf32>, vector<8x8xf32> -> vector<64x8xf32>
    %cst_165 = arith.constant 0.353553385 : f32
    %366 = vector.broadcast %cst_165 : f32 to vector<64x8xf32>
    %367 = arith.mulf %365, %366 : vector<64x8xf32>
    %368 = arith.addf %367, %36 : vector<64x8xf32>
    %cst_166 = arith.constant dense<0xFF800000> : vector<64xf32>
    %369 = vector.multi_reduction <maximumf>, %368, %cst_166 [1] : vector<64x8xf32> to vector<64xf32>
    %370 = vector.shape_cast %369 : vector<64xf32> to vector<64x1xf32>
    %371 = vector.broadcast %370 : vector<64x1xf32> to vector<64x8xf32>
    %372 = arith.subf %368, %371 : vector<64x8xf32>
    %373 = math.exp %372 : vector<64x8xf32>
    %cst_167 = arith.constant dense<0.000000e+00> : vector<64xf32>
    %374 = vector.multi_reduction <add>, %373, %cst_167 [1] : vector<64x8xf32> to vector<64xf32>
    %375 = vector.shape_cast %374 : vector<64xf32> to vector<64x1xf32>
    %376 = vector.broadcast %375 : vector<64x1xf32> to vector<64x8xf32>
    %377 = arith.divf %373, %376 : vector<64x8xf32>
    %c352 = arith.constant 352 : index
    %c0_168 = arith.constant 0 : index
    %378 = vector.load %arg2[%c352, %c0_168] : memref<544x32xf32, #tpu.memory_space<vmem>>, vector<8x32xf32>
    %c360 = arith.constant 360 : index
    %c0_169 = arith.constant 0 : index
    %379 = vector.load %arg2[%c360, %c0_169] : memref<544x32xf32, #tpu.memory_space<vmem>>, vector<8x32xf32>
    %c368 = arith.constant 368 : index
    %c0_170 = arith.constant 0 : index
    %380 = vector.load %arg2[%c368, %c0_170] : memref<544x32xf32, #tpu.memory_space<vmem>>, vector<8x32xf32>
    %c376 = arith.constant 376 : index
    %c0_171 = arith.constant 0 : index
    %381 = vector.load %arg2[%c376, %c0_171] : memref<544x32xf32, #tpu.memory_space<vmem>>, vector<8x32xf32>
    %382 = vector.extract_strided_slice %377 {offsets = [0, 0], sizes = [8, 8], strides = [1, 1]} : vector<64x8xf32> to vector<8x8xf32>
    %383 = vector.extract_strided_slice %295 {offsets = [0, 0], sizes = [8, 8], strides = [1, 1]} : vector<16x8xf32> to vector<8x8xf32>
    %cst_172 = arith.constant dense<0.000000e+00> : vector<8x8xf32>
    %384 = tpu.matmul %382, %383, %cst_172 {dimension_numbers = #tpu.dot_dimension_numbers<[1], [0], [0], [1], [0, 0, 1, 1], [], []>} : vector<8x8xf32>, vector<8x8xf32>, vector<8x8xf32> -> vector<8x8xf32>
    %cst_173 = arith.constant dense<0.000000e+00> : vector<8x32xf32>
    %385 = tpu.matmul %384, %378, %cst_173 {dimension_numbers = #tpu.dot_dimension_numbers<[1], [0], [0], [1], [0, 0, 1, 1], [], []>} : vector<8x8xf32>, vector<8x32xf32>, vector<8x32xf32> -> vector<8x32xf32>
    %386 = vector.extract_strided_slice %377 {offsets = [8, 0], sizes = [8, 8], strides = [1, 1]} : vector<64x8xf32> to vector<8x8xf32>
    %387 = vector.extract_strided_slice %310 {offsets = [0, 0], sizes = [8, 8], strides = [1, 1]} : vector<16x8xf32> to vector<8x8xf32>
    %cst_174 = arith.constant dense<0.000000e+00> : vector<8x8xf32>
    %388 = tpu.matmul %386, %387, %cst_174 {dimension_numbers = #tpu.dot_dimension_numbers<[1], [0], [0], [1], [0, 0, 1, 1], [], []>} : vector<8x8xf32>, vector<8x8xf32>, vector<8x8xf32> -> vector<8x8xf32>
    %cst_175 = arith.constant dense<0.000000e+00> : vector<8x32xf32>
    %389 = tpu.matmul %388, %379, %cst_175 {dimension_numbers = #tpu.dot_dimension_numbers<[1], [0], [0], [1], [0, 0, 1, 1], [], []>} : vector<8x8xf32>, vector<8x32xf32>, vector<8x32xf32> -> vector<8x32xf32>
    %390 = arith.addf %385, %389 : vector<8x32xf32>
    %391 = vector.extract_strided_slice %377 {offsets = [16, 0], sizes = [8, 8], strides = [1, 1]} : vector<64x8xf32> to vector<8x8xf32>
    %392 = vector.extract_strided_slice %325 {offsets = [0, 0], sizes = [8, 8], strides = [1, 1]} : vector<16x8xf32> to vector<8x8xf32>
    %cst_176 = arith.constant dense<0.000000e+00> : vector<8x8xf32>
    %393 = tpu.matmul %391, %392, %cst_176 {dimension_numbers = #tpu.dot_dimension_numbers<[1], [0], [0], [1], [0, 0, 1, 1], [], []>} : vector<8x8xf32>, vector<8x8xf32>, vector<8x8xf32> -> vector<8x8xf32>
    %cst_177 = arith.constant dense<0.000000e+00> : vector<8x32xf32>
    %394 = tpu.matmul %393, %380, %cst_177 {dimension_numbers = #tpu.dot_dimension_numbers<[1], [0], [0], [1], [0, 0, 1, 1], [], []>} : vector<8x8xf32>, vector<8x32xf32>, vector<8x32xf32> -> vector<8x32xf32>
    %395 = arith.addf %390, %394 : vector<8x32xf32>
    %396 = vector.extract_strided_slice %377 {offsets = [24, 0], sizes = [8, 8], strides = [1, 1]} : vector<64x8xf32> to vector<8x8xf32>
    %397 = vector.extract_strided_slice %340 {offsets = [0, 0], sizes = [8, 8], strides = [1, 1]} : vector<16x8xf32> to vector<8x8xf32>
    %cst_178 = arith.constant dense<0.000000e+00> : vector<8x8xf32>
    %398 = tpu.matmul %396, %397, %cst_178 {dimension_numbers = #tpu.dot_dimension_numbers<[1], [0], [0], [1], [0, 0, 1, 1], [], []>} : vector<8x8xf32>, vector<8x8xf32>, vector<8x8xf32> -> vector<8x8xf32>
    %cst_179 = arith.constant dense<0.000000e+00> : vector<8x32xf32>
    %399 = tpu.matmul %398, %381, %cst_179 {dimension_numbers = #tpu.dot_dimension_numbers<[1], [0], [0], [1], [0, 0, 1, 1], [], []>} : vector<8x8xf32>, vector<8x32xf32>, vector<8x32xf32> -> vector<8x32xf32>
    %400 = arith.addf %395, %399 : vector<8x32xf32>
    %401 = vector.extract_strided_slice %377 {offsets = [32, 0], sizes = [8, 8], strides = [1, 1]} : vector<64x8xf32> to vector<8x8xf32>
    %402 = vector.extract_strided_slice %295 {offsets = [8, 0], sizes = [8, 8], strides = [1, 1]} : vector<16x8xf32> to vector<8x8xf32>
    %cst_180 = arith.constant dense<0.000000e+00> : vector<8x8xf32>
    %403 = tpu.matmul %401, %402, %cst_180 {dimension_numbers = #tpu.dot_dimension_numbers<[1], [0], [0], [1], [0, 0, 1, 1], [], []>} : vector<8x8xf32>, vector<8x8xf32>, vector<8x8xf32> -> vector<8x8xf32>
    %cst_181 = arith.constant dense<0.000000e+00> : vector<8x32xf32>
    %404 = tpu.matmul %403, %378, %cst_181 {dimension_numbers = #tpu.dot_dimension_numbers<[1], [0], [0], [1], [0, 0, 1, 1], [], []>} : vector<8x8xf32>, vector<8x32xf32>, vector<8x32xf32> -> vector<8x32xf32>
    %405 = vector.extract_strided_slice %377 {offsets = [40, 0], sizes = [8, 8], strides = [1, 1]} : vector<64x8xf32> to vector<8x8xf32>
    %406 = vector.extract_strided_slice %310 {offsets = [8, 0], sizes = [8, 8], strides = [1, 1]} : vector<16x8xf32> to vector<8x8xf32>
    %cst_182 = arith.constant dense<0.000000e+00> : vector<8x8xf32>
    %407 = tpu.matmul %405, %406, %cst_182 {dimension_numbers = #tpu.dot_dimension_numbers<[1], [0], [0], [1], [0, 0, 1, 1], [], []>} : vector<8x8xf32>, vector<8x8xf32>, vector<8x8xf32> -> vector<8x8xf32>
    %cst_183 = arith.constant dense<0.000000e+00> : vector<8x32xf32>
    %408 = tpu.matmul %407, %379, %cst_183 {dimension_numbers = #tpu.dot_dimension_numbers<[1], [0], [0], [1], [0, 0, 1, 1], [], []>} : vector<8x8xf32>, vector<8x32xf32>, vector<8x32xf32> -> vector<8x32xf32>
    %409 = arith.addf %404, %408 : vector<8x32xf32>
    %410 = vector.extract_strided_slice %377 {offsets = [48, 0], sizes = [8, 8], strides = [1, 1]} : vector<64x8xf32> to vector<8x8xf32>
    %411 = vector.extract_strided_slice %325 {offsets = [8, 0], sizes = [8, 8], strides = [1, 1]} : vector<16x8xf32> to vector<8x8xf32>
    %cst_184 = arith.constant dense<0.000000e+00> : vector<8x8xf32>
    %412 = tpu.matmul %410, %411, %cst_184 {dimension_numbers = #tpu.dot_dimension_numbers<[1], [0], [0], [1], [0, 0, 1, 1], [], []>} : vector<8x8xf32>, vector<8x8xf32>, vector<8x8xf32> -> vector<8x8xf32>
    %cst_185 = arith.constant dense<0.000000e+00> : vector<8x32xf32>
    %413 = tpu.matmul %412, %380, %cst_185 {dimension_numbers = #tpu.dot_dimension_numbers<[1], [0], [0], [1], [0, 0, 1, 1], [], []>} : vector<8x8xf32>, vector<8x32xf32>, vector<8x32xf32> -> vector<8x32xf32>
    %414 = arith.addf %409, %413 : vector<8x32xf32>
    %415 = vector.extract_strided_slice %377 {offsets = [56, 0], sizes = [8, 8], strides = [1, 1]} : vector<64x8xf32> to vector<8x8xf32>
    %416 = vector.extract_strided_slice %340 {offsets = [8, 0], sizes = [8, 8], strides = [1, 1]} : vector<16x8xf32> to vector<8x8xf32>
    %cst_186 = arith.constant dense<0.000000e+00> : vector<8x8xf32>
    %417 = tpu.matmul %415, %416, %cst_186 {dimension_numbers = #tpu.dot_dimension_numbers<[1], [0], [0], [1], [0, 0, 1, 1], [], []>} : vector<8x8xf32>, vector<8x8xf32>, vector<8x8xf32> -> vector<8x8xf32>
    %cst_187 = arith.constant dense<0.000000e+00> : vector<8x32xf32>
    %418 = tpu.matmul %417, %381, %cst_187 {dimension_numbers = #tpu.dot_dimension_numbers<[1], [0], [0], [1], [0, 0, 1, 1], [], []>} : vector<8x8xf32>, vector<8x32xf32>, vector<8x32xf32> -> vector<8x32xf32>
    %419 = arith.addf %414, %418 : vector<8x32xf32>
    %420 = tpu.concatenate %400, %419 in 0 : vector<8x32xf32>, vector<8x32xf32> -> vector<16x32xf32>
    %c33 = arith.constant 33 : index
    %c0_188 = arith.constant 0 : index
    %421 = vector.load %arg3[%c33, %c0_188] : memref<48x64xf32, #tpu.memory_space<vmem>>, vector<1x32xf32>
    %422 = vector.broadcast %421 : vector<1x32xf32> to vector<16x32xf32>
    %423 = arith.addf %420, %422 : vector<16x32xf32>
    %424 = arith.addf %280, %423 : vector<16x32xf32>
    %c34 = arith.constant 34 : index
    %c0_189 = arith.constant 0 : index
    %425 = vector.load %arg3[%c34, %c0_189] : memref<48x64xf32, #tpu.memory_space<vmem>>, vector<1x32xf32>
    %c35 = arith.constant 35 : index
    %c0_190 = arith.constant 0 : index
    %426 = vector.load %arg3[%c35, %c0_190] : memref<48x64xf32, #tpu.memory_space<vmem>>, vector<1x32xf32>
    %cst_191 = arith.constant dense<0.000000e+00> : vector<16xf32>
    %427 = vector.multi_reduction <add>, %424, %cst_191 [1] : vector<16x32xf32> to vector<16xf32>
    %428 = vector.shape_cast %427 : vector<16xf32> to vector<16x1xf32>
    %cst_192 = arith.constant 3.200000e+01 : f32
    %429 = vector.broadcast %cst_192 : f32 to vector<16x1xf32>
    %430 = arith.divf %428, %429 : vector<16x1xf32>
    %431 = vector.broadcast %430 : vector<16x1xf32> to vector<16x32xf32>
    %432 = arith.subf %424, %431 : vector<16x32xf32>
    %433 = arith.mulf %432, %432 : vector<16x32xf32>
    %cst_193 = arith.constant dense<0.000000e+00> : vector<16xf32>
    %434 = vector.multi_reduction <add>, %433, %cst_193 [1] : vector<16x32xf32> to vector<16xf32>
    %435 = vector.shape_cast %434 : vector<16xf32> to vector<16x1xf32>
    %cst_194 = arith.constant 3.200000e+01 : f32
    %436 = vector.broadcast %cst_194 : f32 to vector<16x1xf32>
    %437 = arith.divf %435, %436 : vector<16x1xf32>
    %438 = vector.broadcast %430 : vector<16x1xf32> to vector<16x32xf32>
    %439 = arith.subf %424, %438 : vector<16x32xf32>
    %cst_195 = arith.constant 9.99999996E-13 : f32
    %440 = vector.broadcast %cst_195 : f32 to vector<16x1xf32>
    %441 = arith.addf %437, %440 : vector<16x1xf32>
    %442 = math.rsqrt %441 : vector<16x1xf32>
    %443 = vector.broadcast %442 : vector<16x1xf32> to vector<16x32xf32>
    %444 = arith.mulf %439, %443 : vector<16x32xf32>
    %445 = vector.broadcast %425 : vector<1x32xf32> to vector<16x32xf32>
    %446 = arith.mulf %444, %445 : vector<16x32xf32>
    %447 = vector.broadcast %426 : vector<1x32xf32> to vector<16x32xf32>
    %448 = arith.addf %446, %447 : vector<16x32xf32>
    %c384 = arith.constant 384 : index
    %c0_196 = arith.constant 0 : index
    %449 = vector.load %arg2[%c384, %c0_196] : memref<544x32xf32, #tpu.memory_space<vmem>>, vector<64x32xf32>
    %cst_197 = arith.constant dense<0.000000e+00> : vector<16x64xf32>
    %450 = tpu.matmul %448, %449, %cst_197 {dimension_numbers = #tpu.dot_dimension_numbers<[1], [1], [0], [0], [0, 0, 1, 0], [], []>} : vector<16x32xf32>, vector<64x32xf32>, vector<16x64xf32> -> vector<16x64xf32>
    %c36 = arith.constant 36 : index
    %c0_198 = arith.constant 0 : index
    %451 = vector.load %arg3[%c36, %c0_198] : memref<48x64xf32, #tpu.memory_space<vmem>>, vector<1x64xf32>
    %452 = vector.broadcast %451 : vector<1x64xf32> to vector<16x64xf32>
    %453 = arith.addf %450, %452 : vector<16x64xf32>
    %cst_199 = arith.constant 5.000000e-01 : f32
    %454 = vector.broadcast %cst_199 : f32 to vector<16x64xf32>
    %455 = arith.mulf %454, %453 : vector<16x64xf32>
    %cst_200 = arith.constant 0.707106769 : f32
    %456 = vector.broadcast %cst_200 : f32 to vector<16x64xf32>
    %457 = arith.mulf %453, %456 : vector<16x64xf32>
    %cst_201 = arith.constant 0.000000e+00 : f32
    %458 = vector.broadcast %cst_201 : f32 to vector<16x64xf32>
    %459 = arith.cmpf oge, %457, %458 : vector<16x64xf32>
    %cst_202 = arith.constant 1.000000e+00 : f32
    %cst_203 = arith.constant -1.000000e+00 : f32
    %460 = vector.broadcast %cst_202 : f32 to vector<16x64xf32>
    %461 = vector.broadcast %cst_203 : f32 to vector<16x64xf32>
    %462 = arith.select %459, %460, %461 : vector<16x64xi1>, vector<16x64xf32>
    %463 = math.absf %457 : vector<16x64xf32>
    %cst_204 = arith.constant 0.327591091 : f32
    %464 = vector.broadcast %cst_204 : f32 to vector<16x64xf32>
    %465 = arith.mulf %464, %463 : vector<16x64xf32>
    %cst_205 = arith.constant 1.000000e+00 : f32
    %466 = vector.broadcast %cst_205 : f32 to vector<16x64xf32>
    %467 = arith.addf %466, %465 : vector<16x64xf32>
    %cst_206 = arith.constant 1.000000e+00 : f32
    %468 = vector.broadcast %cst_206 : f32 to vector<16x64xf32>
    %469 = arith.divf %468, %467 : vector<16x64xf32>
    %cst_207 = arith.constant 1.06140542 : f32
    %470 = vector.broadcast %cst_207 : f32 to vector<16x64xf32>
    %471 = arith.mulf %470, %469 : vector<16x64xf32>
    %cst_208 = arith.constant -1.45315206 : f32
    %472 = vector.broadcast %cst_208 : f32 to vector<16x64xf32>
    %473 = arith.addf %471, %472 : vector<16x64xf32>
    %474 = arith.mulf %473, %469 : vector<16x64xf32>
    %cst_209 = arith.constant 1.42141378 : f32
    %475 = vector.broadcast %cst_209 : f32 to vector<16x64xf32>
    %476 = arith.addf %474, %475 : vector<16x64xf32>
    %477 = arith.mulf %476, %469 : vector<16x64xf32>
    %cst_210 = arith.constant -0.284496725 : f32
    %478 = vector.broadcast %cst_210 : f32 to vector<16x64xf32>
    %479 = arith.addf %477, %478 : vector<16x64xf32>
    %480 = arith.mulf %479, %469 : vector<16x64xf32>
    %cst_211 = arith.constant 0.254829586 : f32
    %481 = vector.broadcast %cst_211 : f32 to vector<16x64xf32>
    %482 = arith.addf %480, %481 : vector<16x64xf32>
    %483 = arith.mulf %482, %469 : vector<16x64xf32>
    %cst_212 = arith.constant 0.000000e+00 : f32
    %484 = vector.broadcast %cst_212 : f32 to vector<16x64xf32>
    %485 = arith.subf %484, %463 : vector<16x64xf32>
    %486 = arith.mulf %485, %463 : vector<16x64xf32>
    %487 = math.exp %486 : vector<16x64xf32>
    %488 = arith.mulf %483, %487 : vector<16x64xf32>
    %cst_213 = arith.constant 1.000000e+00 : f32
    %489 = vector.broadcast %cst_213 : f32 to vector<16x64xf32>
    %490 = arith.subf %489, %488 : vector<16x64xf32>
    %491 = arith.mulf %462, %490 : vector<16x64xf32>
    %cst_214 = arith.constant 1.000000e+00 : f32
    %492 = vector.broadcast %cst_214 : f32 to vector<16x64xf32>
    %493 = arith.addf %492, %491 : vector<16x64xf32>
    %494 = arith.mulf %455, %493 : vector<16x64xf32>
    %c448 = arith.constant 448 : index
    %c0_215 = arith.constant 0 : index
    %495 = vector.load %arg2[%c448, %c0_215] : memref<544x32xf32, #tpu.memory_space<vmem>>, vector<64x32xf32>
    %cst_216 = arith.constant dense<0.000000e+00> : vector<16x32xf32>
    %496 = tpu.matmul %494, %495, %cst_216 {dimension_numbers = #tpu.dot_dimension_numbers<[1], [0], [0], [1], [0, 0, 1, 1], [], []>} : vector<16x64xf32>, vector<64x32xf32>, vector<16x32xf32> -> vector<16x32xf32>
    %c37 = arith.constant 37 : index
    %c0_217 = arith.constant 0 : index
    %497 = vector.load %arg3[%c37, %c0_217] : memref<48x64xf32, #tpu.memory_space<vmem>>, vector<1x32xf32>
    %498 = vector.broadcast %497 : vector<1x32xf32> to vector<16x32xf32>
    %499 = arith.addf %496, %498 : vector<16x32xf32>
    %500 = arith.addf %448, %499 : vector<16x32xf32>
    %c38 = arith.constant 38 : index
    %c0_218 = arith.constant 0 : index
    %501 = vector.load %arg3[%c38, %c0_218] : memref<48x64xf32, #tpu.memory_space<vmem>>, vector<1x32xf32>
    %c39 = arith.constant 39 : index
    %c0_219 = arith.constant 0 : index
    %502 = vector.load %arg3[%c39, %c0_219] : memref<48x64xf32, #tpu.memory_space<vmem>>, vector<1x32xf32>
    %cst_220 = arith.constant dense<0.000000e+00> : vector<16xf32>
    %503 = vector.multi_reduction <add>, %500, %cst_220 [1] : vector<16x32xf32> to vector<16xf32>
    %504 = vector.shape_cast %503 : vector<16xf32> to vector<16x1xf32>
    %cst_221 = arith.constant 3.200000e+01 : f32
    %505 = vector.broadcast %cst_221 : f32 to vector<16x1xf32>
    %506 = arith.divf %504, %505 : vector<16x1xf32>
    %507 = vector.broadcast %506 : vector<16x1xf32> to vector<16x32xf32>
    %508 = arith.subf %500, %507 : vector<16x32xf32>
    %509 = arith.mulf %508, %508 : vector<16x32xf32>
    %cst_222 = arith.constant dense<0.000000e+00> : vector<16xf32>
    %510 = vector.multi_reduction <add>, %509, %cst_222 [1] : vector<16x32xf32> to vector<16xf32>
    %511 = vector.shape_cast %510 : vector<16xf32> to vector<16x1xf32>
    %cst_223 = arith.constant 3.200000e+01 : f32
    %512 = vector.broadcast %cst_223 : f32 to vector<16x1xf32>
    %513 = arith.divf %511, %512 : vector<16x1xf32>
    %514 = vector.broadcast %506 : vector<16x1xf32> to vector<16x32xf32>
    %515 = arith.subf %500, %514 : vector<16x32xf32>
    %cst_224 = arith.constant 9.99999996E-13 : f32
    %516 = vector.broadcast %cst_224 : f32 to vector<16x1xf32>
    %517 = arith.addf %513, %516 : vector<16x1xf32>
    %518 = math.rsqrt %517 : vector<16x1xf32>
    %519 = vector.broadcast %518 : vector<16x1xf32> to vector<16x32xf32>
    %520 = arith.mulf %515, %519 : vector<16x32xf32>
    %521 = vector.broadcast %501 : vector<1x32xf32> to vector<16x32xf32>
    %522 = arith.mulf %520, %521 : vector<16x32xf32>
    %523 = vector.broadcast %502 : vector<1x32xf32> to vector<16x32xf32>
    %524 = arith.addf %522, %523 : vector<16x32xf32>
    %525 = vector.extract_strided_slice %524 {offsets = [0, 0], sizes = [1, 32], strides = [1, 1]} : vector<16x32xf32> to vector<1x32xf32>
    %526 = vector.extract_strided_slice %524 {offsets = [8, 0], sizes = [1, 32], strides = [1, 1]} : vector<16x32xf32> to vector<1x32xf32>
    %527 = tpu.concatenate %525, %526 in 0 : vector<1x32xf32>, vector<1x32xf32> -> vector<2x32xf32>
    %c512 = arith.constant 512 : index
    %c0_225 = arith.constant 0 : index
    %528 = vector.load %arg2[%c512, %c0_225] : memref<544x32xf32, #tpu.memory_space<vmem>>, vector<32x32xf32>
    %cst_226 = arith.constant dense<0.000000e+00> : vector<2x32xf32>
    %529 = tpu.matmul %527, %528, %cst_226 {dimension_numbers = #tpu.dot_dimension_numbers<[1], [0], [0], [1], [0, 0, 1, 1], [], []>} : vector<2x32xf32>, vector<32x32xf32>, vector<2x32xf32> -> vector<2x32xf32>
    %c40_227 = arith.constant 40 : index
    %c0_228 = arith.constant 0 : index
    %530 = vector.load %arg3[%c40_227, %c0_228] : memref<48x64xf32, #tpu.memory_space<vmem>>, vector<1x32xf32>
    %531 = vector.broadcast %530 : vector<1x32xf32> to vector<2x32xf32>
    %532 = arith.addf %529, %531 : vector<2x32xf32>
    %533 = math.tanh %532 : vector<2x32xf32>
    %c0_229 = arith.constant 0 : index
    %c0_230 = arith.constant 0 : index
    %534 = vector.load %arg4[%c0_229, %c0_230] : memref<2x32xf32, #tpu.memory_space<vmem>>, vector<2x32xf32>
    tpu.vector_store %arg4[%c0_229, %c0_230], %533 {strides = array<i32>} : memref<2x32xf32, #tpu.memory_space<vmem>>, vector<2x32xf32>,
    return
  }
}

</mosaic_0001>

<llo_original>
// kernel: bm25_network_forward.1
$region0: #{bm25_network_forward.1}
  #allocation0 [shape = 'u32[]', space=smem, size = 0x4, offset = 0x4, fixed_abs, tag = 'smem constant byte address 0x4 - core index']
  #allocation1 [shape = 'u32[144,128]{1,0:T(1,128)}', space=vmem, size = 0x12000, scoped, tag = 'internal scratch']
  %s0 = inlined_call_operand.vmem [shape: f32[16,32], index: 0, kind: input, shape index: {}]
  %s1 = inlined_call_operand.vmem [shape: f32[2,8], index: 1, kind: input, shape index: {}]
  %s2 = inlined_call_operand.vmem [shape: f32[544,32], index: 2, kind: input, shape index: {}]
  %s3 = inlined_call_operand.vmem [shape: f32[48,64], index: 3, kind: input, shape index: {}]
  %s4 = inlined_call_operand.hbm [shape: f32[2,32], index: 4, kind: output, shape index: {}]
  %s5 = sld [smem:[#allocation0]]
  $region26: #{bm25_network_forward.1} parent=0
    _
  %s7 = ssub.s32 1, %s5
  %s8 = scalar_select 0, %s7, %s5
  $region1: #{bm25_network_forward.1} parent=0
    #allocation2 [shape = 'u8[1024]{0}', space=vmem, size = 0x400, scoped, tag = 'output window, operand 0, single buffered']
    #allocation3 [shape = 's32[1]{0}', space=sflag, size = 0x4, scoped, tag = 'scoped memory for bm25_network_forward.1']
    %9 = vsyncpa [#allocation3], 0
    // Predicated region
    $region2: #{bm25_network_forward.1} parent=1 // pred_check
      _
    $region3: #{bm25_network_forward.1} parent=1 // pred_check_branch
      %11 = sbr.rel (0) target = $region5
    $region4: #{bm25_network_forward.1} parent=1 // pred_region
      _
    $region5: #{bm25_network_forward.1} parent=1 // pred_fallthru
      _
    // Predicated region
    $region6: #{bm25_network_forward.1} parent=1 // pred_check
      _
    $region7: #{bm25_network_forward.1} parent=1 // pred_check_branch
      %13 = sbr.rel (0) target = $region9
    $region8: #{bm25_network_forward.1} parent=1 // pred_region
      _
    $region9: #{bm25_network_forward.1} parent=1 // pred_fallthru
      _
    // Predicated region
    $region10: #{bm25_network_forward.1} parent=1 // pred_check
      _
    $region11: #{bm25_network_forward.1} parent=1 // pred_check_branch
      %15 = sbr.rel (0) target = $region13
    $region12: #{bm25_network_forward.1} parent=1 // pred_region
      _
    $region13: #{bm25_network_forward.1} parent=1 // pred_fallthru
      _
    // Predicated region
    $region14: #{bm25_network_forward.1} parent=1 // pred_check
      _
    $region15: #{bm25_network_forward.1} parent=1 // pred_check_branch
      %17 = sbr.rel (0) target = $region17
    $region16: #{bm25_network_forward.1} parent=1 // pred_region
      _
    $region17: #{bm25_network_forward.1} parent=1 // pred_fallthru
      _
    %v18 = vld [vmem:[%s0] sm:$0xff]
    %v19 = vld [vmem:[%s0 + $0x8] sm:$0xff]
    %v20 = vld [vmem:[%s3] sm:$0x1]
    %v21 = vld [vmem:[%s3 + $0x1] sm:$0x1]
    %vm22 = vcmask 261120
    %v23 = vsel %vm22, %v18, 0.0
    %24 = vadd.xlane.f32.xlu0 %v23
    %v25 = vpop.xlane.xlu0 %24
    %v26 = vsel %vm22, %v19, 0.0
    %27 = vadd.xlane.f32.xlu0 %v26
    %v28 = vpop.xlane.xlu0 %27
    %v29 = vrcp.pop 32.0
    %v30 = vmul.f32 %v25, %v29
    %v31 = vmul.f32 %v28, %v29
    %v32 = vsub.f32 %v18, %v30
    %v33 = vsub.f32 %v19, %v31
    %v34 = vmul.f32 %v32, %v32
    %v35 = vmul.f32 %v33, %v33
    %v36 = vsel %vm22, %v34, 0.0
    %37 = vadd.xlane.f32.xlu0 %v36
    %v38 = vpop.xlane.xlu0 %37
    %v39 = vsel %vm22, %v35, 0.0
    %40 = vadd.xlane.f32.xlu0 %v39
    %v41 = vpop.xlane.xlu0 %40
    %v42 = vmul.f32 %v38, %v29
    %v43 = vmul.f32 %v41, %v29
    %v44 = vadd.f32 %v42, 1e-12
    %v45 = vadd.f32 %v43, 1e-12
    %v46 = vrsqrt.pop %v44
    %v47 = vrsqrt.pop %v45
    %v48 = vmul.f32 %v32, %v46
    %v49 = vmul.f32 %v33, %v47
    %v50 = vlaneseq
    %v51 = vshrl.u32 %v50, 7
    %v52 = vsub.s32 0, %v51
    %v53 = vrot.slane %v20, %v52
    %v54 = vmul.f32 %v48, %v53
    %v55 = vmul.f32 %v49, %v53
    %v56 = vlaneseq
    %v57 = vshrl.u32 %v56, 7
    %v58 = vsub.s32 0, %v57
    %v59 = vrot.slane %v21, %v58
    %v60 = vadd.f32 %v54, %v59
    %v61 = vadd.f32 %v55, %v59
    %v62 = vld [vmem:[%s1] sm:$0x3]
    %v63 = vsub.f32 1.0, %v62
    %v64 = vmul.f32 %v63, -1e+09
    %v65 = vlaneseq
    %v66 = vshrl.u32 %v65, 7
    %v67 = vsub.s32 0, %v66
    %v68 = vrot.slane %v64, %v67
    %v69 = vlaneseq
    %v70 = vshrl.u32 %v69, 7
    %v71 = vsub.s32 1, %v70
    %v72 = vrot.slane %v64, %v71
    %v73 = vld [vmem:[%s2] sm:$0xff]
    %v74 = vld [vmem:[%s3 + $0x2] sm:$0x1]
    %v75 = vlaneseq
    %v76 = vshrl.u32 %v75, 7
    %v77 = vsub.s32 0, %v76
    %v78 = vrot.slane %v74, %v77
    %v80 = vsel %vm22, %v60, 0
    %v83 = vsel %vm22, %v61, 0
    %v86 = vsel %vm22, %v73, 0
    %88 = vmatprep.subr.mxu0 0.0
    %89 = vmatpush1.xpose.msra.mxu0 %v86
    %90 = vmatprep.subr.mxu0 0.0
    %91 = vmatpush1.xpose.msra.mxu0 0.0
    %92 = vmatprep.subr.mxu0 0.0
    %93 = vmatpush1.xpose.msra.mxu0 0.0
    %94 = vmatprep.subr.mxu0 0.0
    %95 = vmatpush1.xpose.msra.mxu0 0.0
    %96 = vmatprep.subr.mxu0 0.0
    %97 = vmatpush1.xpose.msra.mxu0 0.0
    %98 = vmatprep.subr.mxu0 0.0
    %99 = vmatpush1.xpose.msra.mxu0 0.0
    %100 = vmatprep.subr.mxu0 0.0
    %101 = vmatpush1.xpose.msra.mxu0 0.0
    %102 = vmatprep.subr.mxu0 0.0
    %103 = vmatpush1.xpose.msra.mxu0 0.0
    %104 = vmatprep.subr.mxu0 0.0
    %105 = vmatpush1.xpose.msra.mxu0 0.0
    %106 = vmatprep.subr.mxu0 0.0
    %107 = vmatpush1.xpose.msra.mxu0 0.0
    %108 = vmatprep.subr.mxu0 0.0
    %109 = vmatpush1.xpose.msra.mxu0 0.0
    %110 = vmatprep.subr.mxu0 0.0
    %111 = vmatpush1.xpose.msra.mxu0 0.0
    %112 = vmatprep.subr.mxu0 0.0
    %113 = vmatpush1.xpose.msra.mxu0 0.0
    %114 = vmatprep.subr.mxu0 0.0
    %115 = vmatpush1.xpose.msra.mxu0 0.0
    %116 = vmatprep.subr.mxu0 0.0
    %117 = vmatpush1.xpose.msra.mxu0 0.0
    %118 = vmatprep.subr.mxu0 0.0
    %119 = vmatpush1.xpose.msra.mxu0 0.0
    %120 = vmatprep.subr.mxu0 0.0
    %121 = vmatpush1.xpose.msra.mxu0 0.0
    %122 = vmatprep.subr.mxu0 0.0
    %123 = vmatpush1.xpose.msra.mxu0 0.0
    %124 = vmatprep.subr.mxu0 0.0
    %125 = vmatpush1.xpose.msra.mxu0 0.0
    %126 = vmatprep.subr.mxu0 0.0
    %127 = vmatpush1.xpose.msra.mxu0 0.0
    %128 = vmatprep.subr.mxu0 0.0
    %129 = vmatpush1.xpose.msra.mxu0 0.0
    %130 = vmatprep.subr.mxu0 0.0
    %131 = vmatpush1.xpose.msra.mxu0 0.0
    %132 = vmatprep.subr.mxu0 0.0
    %133 = vmatpush1.xpose.msra.mxu0 0.0
    %134 = vmatprep.subr.mxu0 0.0
    %135 = vmatpush1.xpose.msra.mxu0 0.0
    %136 = vmatprep.subr.mxu0 0.0
    %137 = vmatpush1.xpose.msra.mxu0 0.0
    %138 = vmatprep.subr.mxu0 0.0
    %139 = vmatpush1.xpose.msra.mxu0 0.0
    %140 = vmatprep.subr.mxu0 0.0
    %141 = vmatpush1.xpose.msra.mxu0 0.0
    %142 = vmatprep.subr.mxu0 0.0
    %143 = vmatpush1.xpose.msra.mxu0 0.0
    %144 = vmatprep.subr.mxu0 0.0
    %145 = vmatpush1.xpose.msra.mxu0 0.0
    %146 = vmatprep.subr.mxu0 0.0
    %147 = vmatpush1.xpose.msra.mxu0 0.0
    %148 = vmatprep.subr.mxu0 0.0
    %149 = vmatpush1.xpose.msra.mxu0 0.0
    %150 = vmatprep.subr.mxu0 0.0
    %151 = vmatpush1.xpose.msra.mxu0 0.0
    %152 = vmatprep.mubr.f32.mxu0 0.0
    %153 = vmatmul.mubr.f32.gmra.mrb[0].mxu0 %v80
    %v154 = vpop.f32.mrb[0].mxu0
    %v155 = vadd.f32 %v78, %v154
    %v156 = vpop.f32.mrb[0].mxu0
    %157 = vmatprep.mubr.f32.mxu0 0.0
    %158 = vmatmul.mubr.f32.gmra.mrb[0].mxu0 %v83
    %v159 = vpop.f32.mrb[0].mxu0
    %v160 = vadd.f32 %v78, %v159
    %v161 = vpop.f32.mrb[0].mxu0
    %162 = vdwg.mxu0
    %v163 = vld [vmem:[%s2 + $0x8] sm:$0xff]
    %v164 = vld [vmem:[%s3 + $0x3] sm:$0x1]
    %v165 = vlaneseq
    %v166 = vshrl.u32 %v165, 7
    %v167 = vsub.s32 0, %v166
    %v168 = vrot.slane %v164, %v167
    %v170 = vsel %vm22, %v163, 0
    %172 = vmatprep.subr.mxu0 0.0
    %173 = vmatpush1.xpose.msra.mxu0 %v170
    %174 = vmatprep.subr.mxu0 0.0
    %175 = vmatpush1.xpose.msra.mxu0 0.0
    %176 = vmatprep.subr.mxu0 0.0
    %177 = vmatpush1.xpose.msra.mxu0 0.0
    %178 = vmatprep.subr.mxu0 0.0
    %179 = vmatpush1.xpose.msra.mxu0 0.0
    %180 = vmatprep.subr.mxu0 0.0
    %181 = vmatpush1.xpose.msra.mxu0 0.0
    %182 = vmatprep.subr.mxu0 0.0
    %183 = vmatpush1.xpose.msra.mxu0 0.0
    %184 = vmatprep.subr.mxu0 0.0
    %185 = vmatpush1.xpose.msra.mxu0 0.0
    %186 = vmatprep.subr.mxu0 0.0
    %187 = vmatpush1.xpose.msra.mxu0 0.0
    %188 = vmatprep.subr.mxu0 0.0
    %189 = vmatpush1.xpose.msra.mxu0 0.0
    %190 = vmatprep.subr.mxu0 0.0
    %191 = vmatpush1.xpose.msra.mxu0 0.0
    %192 = vmatprep.subr.mxu0 0.0
    %193 = vmatpush1.xpose.msra.mxu0 0.0
    %194 = vmatprep.subr.mxu0 0.0
    %195 = vmatpush1.xpose.msra.mxu0 0.0
    %196 = vmatprep.subr.mxu0 0.0
    %197 = vmatpush1.xpose.msra.mxu0 0.0
    %198 = vmatprep.subr.mxu0 0.0
    %199 = vmatpush1.xpose.msra.mxu0 0.0
    %200 = vmatprep.subr.mxu0 0.0
    %201 = vmatpush1.xpose.msra.mxu0 0.0
    %202 = vmatprep.subr.mxu0 0.0
    %203 = vmatpush1.xpose.msra.mxu0 0.0
    %204 = vmatprep.subr.mxu0 0.0
    %205 = vmatpush1.xpose.msra.mxu0 0.0
    %206 = vmatprep.subr.mxu0 0.0
    %207 = vmatpush1.xpose.msra.mxu0 0.0
    %208 = vmatprep.subr.mxu0 0.0
    %209 = vmatpush1.xpose.msra.mxu0 0.0
    %210 = vmatprep.subr.mxu0 0.0
    %211 = vmatpush1.xpose.msra.mxu0 0.0
    %212 = vmatprep.subr.mxu0 0.0
    %213 = vmatpush1.xpose.msra.mxu0 0.0
    %214 = vmatprep.subr.mxu0 0.0
    %215 = vmatpush1.xpose.msra.mxu0 0.0
    %216 = vmatprep.subr.mxu0 0.0
    %217 = vmatpush1.xpose.msra.mxu0 0.0
    %218 = vmatprep.subr.mxu0 0.0
    %219 = vmatpush1.xpose.msra.mxu0 0.0
    %220 = vmatprep.subr.mxu0 0.0
    %221 = vmatpush1.xpose.msra.mxu0 0.0
    %222 = vmatprep.subr.mxu0 0.0
    %223 = vmatpush1.xpose.msra.mxu0 0.0
    %224 = vmatprep.subr.mxu0 0.0
    %225 = vmatpush1.xpose.msra.mxu0 0.0
    %226 = vmatprep.subr.mxu0 0.0
    %227 = vmatpush1.xpose.msra.mxu0 0.0
    %228 = vmatprep.subr.mxu0 0.0
    %229 = vmatpush1.xpose.msra.mxu0 0.0
    %230 = vmatprep.subr.mxu0 0.0
    %231 = vmatpush1.xpose.msra.mxu0 0.0
    %232 = vmatprep.subr.mxu0 0.0
    %233 = vmatpush1.xpose.msra.mxu0 0.0
    %234 = vmatprep.subr.mxu0 0.0
    %235 = vmatpush1.xpose.msra.mxu0 0.0
    %236 = vmatprep.mubr.f32.mxu0 0.0
    %237 = vmatmul.mubr.f32.gmra.mrb[0].mxu0 %v80
    %v238 = vpop.f32.mrb[0].mxu0
    %v239 = vadd.f32 %v168, %v238
    %v240 = vpop.f32.mrb[0].mxu0
    %241 = vmatprep.mubr.f32.mxu0 0.0
    %242 = vmatmul.mubr.f32.gmra.mrb[0].mxu0 %v83
    %v243 = vpop.f32.mrb[0].mxu0
    %v244 = vadd.f32 %v168, %v243
    %v245 = vpop.f32.mrb[0].mxu0
    %246 = vdwg.mxu0
    %v247 = vld [vmem:[%s2 + $0x10] sm:$0xff]
    %v248 = vld [vmem:[%s3 + $0x4] sm:$0x1]
    %v249 = vlaneseq
    %v250 = vshrl.u32 %v249, 7
    %v251 = vsub.s32 0, %v250
    %v252 = vrot.slane %v248, %v251
    %v254 = vsel %vm22, %v247, 0
    %256 = vmatprep.subr.mxu0 0.0
    %257 = vmatpush1.xpose.msra.mxu0 %v254
    %258 = vmatprep.subr.mxu0 0.0
    %259 = vmatpush1.xpose.msra.mxu0 0.0
    %260 = vmatprep.subr.mxu0 0.0
    %261 = vmatpush1.xpose.msra.mxu0 0.0
    %262 = vmatprep.subr.mxu0 0.0
    %263 = vmatpush1.xpose.msra.mxu0 0.0
    %264 = vmatprep.subr.mxu0 0.0
    %265 = vmatpush1.xpose.msra.mxu0 0.0
    %266 = vmatprep.subr.mxu0 0.0
    %267 = vmatpush1.xpose.msra.mxu0 0.0
    %268 = vmatprep.subr.mxu0 0.0
    %269 = vmatpush1.xpose.msra.mxu0 0.0
    %270 = vmatprep.subr.mxu0 0.0
    %271 = vmatpush1.xpose.msra.mxu0 0.0
    %272 = vmatprep.subr.mxu0 0.0
    %273 = vmatpush1.xpose.msra.mxu0 0.0
    %274 = vmatprep.subr.mxu0 0.0
    %275 = vmatpush1.xpose.msra.mxu0 0.0
    %276 = vmatprep.subr.mxu0 0.0
    %277 = vmatpush1.xpose.msra.mxu0 0.0
    %278 = vmatprep.subr.mxu0 0.0
    %279 = vmatpush1.xpose.msra.mxu0 0.0
    %280 = vmatprep.subr.mxu0 0.0
    %281 = vmatpush1.xpose.msra.mxu0 0.0
    %282 = vmatprep.subr.mxu0 0.0
    %283 = vmatpush1.xpose.msra.mxu0 0.0
    %284 = vmatprep.subr.mxu0 0.0
    %285 = vmatpush1.xpose.msra.mxu0 0.0
    %286 = vmatprep.subr.mxu0 0.0
    %287 = vmatpush1.xpose.msra.mxu0 0.0
    %288 = vmatprep.subr.mxu0 0.0
    %289 = vmatpush1.xpose.msra.mxu0 0.0
    %290 = vmatprep.subr.mxu0 0.0
    %291 = vmatpush1.xpose.msra.mxu0 0.0
    %292 = vmatprep.subr.mxu0 0.0
    %293 = vmatpush1.xpose.msra.mxu0 0.0
    %294 = vmatprep.subr.mxu0 0.0
    %295 = vmatpush1.xpose.msra.mxu0 0.0
    %296 = vmatprep.subr.mxu0 0.0
    %297 = vmatpush1.xpose.msra.mxu0 0.0
    %298 = vmatprep.subr.mxu0 0.0
    %299 = vmatpush1.xpose.msra.mxu0 0.0
    %300 = vmatprep.subr.mxu0 0.0
    %301 = vmatpush1.xpose.msra.mxu0 0.0
    %302 = vmatprep.subr.mxu0 0.0
    %303 = vmatpush1.xpose.msra.mxu0 0.0
    %304 = vmatprep.subr.mxu0 0.0
    %305 = vmatpush1.xpose.msra.mxu0 0.0
    %306 = vmatprep.subr.mxu0 0.0
    %307 = vmatpush1.xpose.msra.mxu0 0.0
    %308 = vmatprep.subr.mxu0 0.0
    %309 = vmatpush1.xpose.msra.mxu0 0.0
    %310 = vmatprep.subr.mxu0 0.0
    %311 = vmatpush1.xpose.msra.mxu0 0.0
    %312 = vmatprep.subr.mxu0 0.0
    %313 = vmatpush1.xpose.msra.mxu0 0.0
    %314 = vmatprep.subr.mxu0 0.0
    %315 = vmatpush1.xpose.msra.mxu0 0.0
    %316 = vmatprep.subr.mxu0 0.0
    %317 = vmatpush1.xpose.msra.mxu0 0.0
    %318 = vmatprep.subr.mxu0 0.0
    %319 = vmatpush1.xpose.msra.mxu0 0.0
    %320 = vmatprep.mubr.f32.mxu0 0.0
    %321 = vmatmul.mubr.f32.gmra.mrb[0].mxu0 %v80
    %v322 = vpop.f32.mrb[0].mxu0
    %v323 = vadd.f32 %v252, %v322
    %v324 = vpop.f32.mrb[0].mxu0
    %325 = vmatprep.mubr.f32.mxu0 0.0
    %326 = vmatmul.mubr.f32.gmra.mrb[0].mxu0 %v83
    %v327 = vpop.f32.mrb[0].mxu0
    %v328 = vadd.f32 %v252, %v327
    %v329 = vpop.f32.mrb[0].mxu0
    %330 = vdwg.mxu0
    %v331 = vld [vmem:[%s2 + $0x18] sm:$0xff]
    %v332 = vld [vmem:[%s3 + $0x5] sm:$0x1]
    %v333 = vlaneseq
    %v334 = vshrl.u32 %v333, 7
    %v335 = vsub.s32 0, %v334
    %v336 = vrot.slane %v332, %v335
    %v338 = vsel %vm22, %v331, 0
    %340 = vmatprep.subr.mxu0 0.0
    %341 = vmatpush1.xpose.msra.mxu0 %v338
    %342 = vmatprep.subr.mxu0 0.0
    %343 = vmatpush1.xpose.msra.mxu0 0.0
    %344 = vmatprep.subr.mxu0 0.0
    %345 = vmatpush1.xpose.msra.mxu0 0.0
    %346 = vmatprep.subr.mxu0 0.0
    %347 = vmatpush1.xpose.msra.mxu0 0.0
    %348 = vmatprep.subr.mxu0 0.0
    %349 = vmatpush1.xpose.msra.mxu0 0.0
    %350 = vmatprep.subr.mxu0 0.0
    %351 = vmatpush1.xpose.msra.mxu0 0.0
    %352 = vmatprep.subr.mxu0 0.0
    %353 = vmatpush1.xpose.msra.mxu0 0.0
    %354 = vmatprep.subr.mxu0 0.0
    %355 = vmatpush1.xpose.msra.mxu0 0.0
    %356 = vmatprep.subr.mxu0 0.0
    %357 = vmatpush1.xpose.msra.mxu0 0.0
    %358 = vmatprep.subr.mxu0 0.0
    %359 = vmatpush1.xpose.msra.mxu0 0.0
    %360 = vmatprep.subr.mxu0 0.0
    %361 = vmatpush1.xpose.msra.mxu0 0.0
    %362 = vmatprep.subr.mxu0 0.0
    %363 = vmatpush1.xpose.msra.mxu0 0.0
    %364 = vmatprep.subr.mxu0 0.0
    %365 = vmatpush1.xpose.msra.mxu0 0.0
    %366 = vmatprep.subr.mxu0 0.0
    %367 = vmatpush1.xpose.msra.mxu0 0.0
    %368 = vmatprep.subr.mxu0 0.0
    %369 = vmatpush1.xpose.msra.mxu0 0.0
    %370 = vmatprep.subr.mxu0 0.0
    %371 = vmatpush1.xpose.msra.mxu0 0.0
    %372 = vmatprep.subr.mxu0 0.0
    %373 = vmatpush1.xpose.msra.mxu0 0.0
    %374 = vmatprep.subr.mxu0 0.0
    %375 = vmatpush1.xpose.msra.mxu0 0.0
    %376 = vmatprep.subr.mxu0 0.0
    %377 = vmatpush1.xpose.msra.mxu0 0.0
    %378 = vmatprep.subr.mxu0 0.0
    %379 = vmatpush1.xpose.msra.mxu0 0.0
    %380 = vmatprep.subr.mxu0 0.0
    %381 = vmatpush1.xpose.msra.mxu0 0.0
    %382 = vmatprep.subr.mxu0 0.0
    %383 = vmatpush1.xpose.msra.mxu0 0.0
    %384 = vmatprep.subr.mxu0 0.0
    %385 = vmatpush1.xpose.msra.mxu0 0.0
    %386 = vmatprep.subr.mxu0 0.0
    %387 = vmatpush1.xpose.msra.mxu0 0.0
    %388 = vmatprep.subr.mxu0 0.0
    %389 = vmatpush1.xpose.msra.mxu0 0.0
    %390 = vmatprep.subr.mxu0 0.0
    %391 = vmatpush1.xpose.msra.mxu0 0.0
    %392 = vmatprep.subr.mxu0 0.0
    %393 = vmatpush1.xpose.msra.mxu0 0.0
    %394 = vmatprep.subr.mxu0 0.0
    %395 = vmatpush1.xpose.msra.mxu0 0.0
    %396 = vmatprep.subr.mxu0 0.0
    %397 = vmatpush1.xpose.msra.mxu0 0.0
    %398 = vmatprep.subr.mxu0 0.0
    %399 = vmatpush1.xpose.msra.mxu0 0.0
    %400 = vmatprep.subr.mxu0 0.0
    %401 = vmatpush1.xpose.msra.mxu0 0.0
    %402 = vmatprep.subr.mxu0 0.0
    %403 = vmatpush1.xpose.msra.mxu0 0.0
    %404 = vmatprep.mubr.f32.mxu0 0.0
    %405 = vmatmul.mubr.f32.gmra.mrb[0].mxu0 %v80
    %v406 = vpop.f32.mrb[0].mxu0
    %v407 = vadd.f32 %v336, %v406
    %v408 = vpop.f32.mrb[0].mxu0
    %409 = vmatprep.mubr.f32.mxu0 0.0
    %410 = vmatmul.mubr.f32.gmra.mrb[0].mxu0 %v83
    %v411 = vpop.f32.mrb[0].mxu0
    %v412 = vadd.f32 %v336, %v411
    %v413 = vpop.f32.mrb[0].mxu0
    %414 = vdwg.mxu0
    %v415 = vld [vmem:[%s2 + $0x20] sm:$0xff]
    %v416 = vld [vmem:[%s3 + $0x6] sm:$0x1]
    %v417 = vlaneseq
    %v418 = vshrl.u32 %v417, 7
    %v419 = vsub.s32 0, %v418
    %v420 = vrot.slane %v416, %v419
    %v422 = vsel %vm22, %v415, 0
    %424 = vmatprep.subr.mxu0 0.0
    %425 = vmatpush1.xpose.msra.mxu0 %v422
    %426 = vmatprep.subr.mxu0 0.0
    %427 = vmatpush1.xpose.msra.mxu0 0.0
    %428 = vmatprep.subr.mxu0 0.0
    %429 = vmatpush1.xpose.msra.mxu0 0.0
    %430 = vmatprep.subr.mxu0 0.0
    %431 = vmatpush1.xpose.msra.mxu0 0.0
    %432 = vmatprep.subr.mxu0 0.0
    %433 = vmatpush1.xpose.msra.mxu0 0.0
    %434 = vmatprep.subr.mxu0 0.0
    %435 = vmatpush1.xpose.msra.mxu0 0.0
    %436 = vmatprep.subr.mxu0 0.0
    %437 = vmatpush1.xpose.msra.mxu0 0.0
    %438 = vmatprep.subr.mxu0 0.0
    %439 = vmatpush1.xpose.msra.mxu0 0.0
    %440 = vmatprep.subr.mxu0 0.0
    %441 = vmatpush1.xpose.msra.mxu0 0.0
    %442 = vmatprep.subr.mxu0 0.0
    %443 = vmatpush1.xpose.msra.mxu0 0.0
    %444 = vmatprep.subr.mxu0 0.0
    %445 = vmatpush1.xpose.msra.mxu0 0.0
    %446 = vmatprep.subr.mxu0 0.0
    %447 = vmatpush1.xpose.msra.mxu0 0.0
    %448 = vmatprep.subr.mxu0 0.0
    %449 = vmatpush1.xpose.msra.mxu0 0.0
    %450 = vmatprep.subr.mxu0 0.0
    %451 = vmatpush1.xpose.msra.mxu0 0.0
    %452 = vmatprep.subr.mxu0 0.0
    %453 = vmatpush1.xpose.msra.mxu0 0.0
    %454 = vmatprep.subr.mxu0 0.0
    %455 = vmatpush1.xpose.msra.mxu0 0.0
    %456 = vmatprep.subr.mxu0 0.0
    %457 = vmatpush1.xpose.msra.mxu0 0.0
    %458 = vmatprep.subr.mxu0 0.0
    %459 = vmatpush1.xpose.msra.mxu0 0.0
    %460 = vmatprep.subr.mxu0 0.0
    %461 = vmatpush1.xpose.msra.mxu0 0.0
    %462 = vmatprep.subr.mxu0 0.0
    %463 = vmatpush1.xpose.msra.mxu0 0.0
    %464 = vmatprep.subr.mxu0 0.0
    %465 = vmatpush1.xpose.msra.mxu0 0.0
    %466 = vmatprep.subr.mxu0 0.0
    %467 = vmatpush1.xpose.msra.mxu0 0.0
    %468 = vmatprep.subr.mxu0 0.0
    %469 = vmatpush1.xpose.msra.mxu0 0.0
    %470 = vmatprep.subr.mxu0 0.0
    %471 = vmatpush1.xpose.msra.mxu0 0.0
    %472 = vmatprep.subr.mxu0 0.0
    %473 = vmatpush1.xpose.msra.mxu0 0.0
    %474 = vmatprep.subr.mxu0 0.0
    %475 = vmatpush1.xpose.msra.mxu0 0.0
    %476 = vmatprep.subr.mxu0 0.0
    %477 = vmatpush1.xpose.msra.mxu0 0.0
    %478 = vmatprep.subr.mxu0 0.0
    %479 = vmatpush1.xpose.msra.mxu0 0.0
    %480 = vmatprep.subr.mxu0 0.0
    %481 = vmatpush1.xpose.msra.mxu0 0.0
    %482 = vmatprep.subr.mxu0 0.0
    %483 = vmatpush1.xpose.msra.mxu0 0.0
    %484 = vmatprep.subr.mxu0 0.0
    %485 = vmatpush1.xpose.msra.mxu0 0.0
    %486 = vmatprep.subr.mxu0 0.0
    %487 = vmatpush1.xpose.msra.mxu0 0.0
    %488 = vmatprep.mubr.f32.mxu0 0.0
    %489 = vmatmul.mubr.f32.gmra.mrb[0].mxu0 %v80
    %v490 = vpop.f32.mrb[0].mxu0
    %v491 = vadd.f32 %v420, %v490
    %v492 = vpop.f32.mrb[0].mxu0
    %493 = vmatprep.mubr.f32.mxu0 0.0
    %494 = vmatmul.mubr.f32.gmra.mrb[0].mxu0 %v83
    %v495 = vpop.f32.mrb[0].mxu0
    %v496 = vadd.f32 %v420, %v495
    %v497 = vpop.f32.mrb[0].mxu0
    %498 = vdwg.mxu0
    %v499 = vld [vmem:[%s2 + $0x28] sm:$0xff]
    %v500 = vld [vmem:[%s3 + $0x7] sm:$0x1]
    %v501 = vlaneseq
    %v502 = vshrl.u32 %v501, 7
    %v503 = vsub.s32 0, %v502
    %v504 = vrot.slane %v500, %v503
    %v506 = vsel %vm22, %v499, 0
    %508 = vmatprep.subr.mxu0 0.0
    %509 = vmatpush1.xpose.msra.mxu0 %v506
    %510 = vmatprep.subr.mxu0 0.0
    %511 = vmatpush1.xpose.msra.mxu0 0.0
    %512 = vmatprep.subr.mxu0 0.0
    %513 = vmatpush1.xpose.msra.mxu0 0.0
    %514 = vmatprep.subr.mxu0 0.0
    %515 = vmatpush1.xpose.msra.mxu0 0.0
    %516 = vmatprep.subr.mxu0 0.0
    %517 = vmatpush1.xpose.msra.mxu0 0.0
    %518 = vmatprep.subr.mxu0 0.0
    %519 = vmatpush1.xpose.msra.mxu0 0.0
    %520 = vmatprep.subr.mxu0 0.0
    %521 = vmatpush1.xpose.msra.mxu0 0.0
    %522 = vmatprep.subr.mxu0 0.0
    %523 = vmatpush1.xpose.msra.mxu0 0.0
    %524 = vmatprep.subr.mxu0 0.0
    %525 = vmatpush1.xpose.msra.mxu0 0.0
    %526 = vmatprep.subr.mxu0 0.0
    %527 = vmatpush1.xpose.msra.mxu0 0.0
    %528 = vmatprep.subr.mxu0 0.0
    %529 = vmatpush1.xpose.msra.mxu0 0.0
    %530 = vmatprep.subr.mxu0 0.0
    %531 = vmatpush1.xpose.msra.mxu0 0.0
    %532 = vmatprep.subr.mxu0 0.0
    %533 = vmatpush1.xpose.msra.mxu0 0.0
    %534 = vmatprep.subr.mxu0 0.0
    %535 = vmatpush1.xpose.msra.mxu0 0.0
    %536 = vmatprep.subr.mxu0 0.0
    %537 = vmatpush1.xpose.msra.mxu0 0.0
    %538 = vmatprep.subr.mxu0 0.0
    %539 = vmatpush1.xpose.msra.mxu0 0.0
    %540 = vmatprep.subr.mxu0 0.0
    %541 = vmatpush1.xpose.msra.mxu0 0.0
    %542 = vmatprep.subr.mxu0 0.0
    %543 = vmatpush1.xpose.msra.mxu0 0.0
    %544 = vmatprep.subr.mxu0 0.0
    %545 = vmatpush1.xpose.msra.mxu0 0.0
    %546 = vmatprep.subr.mxu0 0.0
    %547 = vmatpush1.xpose.msra.mxu0 0.0
    %548 = vmatprep.subr.mxu0 0.0
    %549 = vmatpush1.xpose.msra.mxu0 0.0
    %550 = vmatprep.subr.mxu0 0.0
    %551 = vmatpush1.xpose.msra.mxu0 0.0
    %552 = vmatprep.subr.mxu0 0.0
    %553 = vmatpush1.xpose.msra.mxu0 0.0
    %554 = vmatprep.subr.mxu0 0.0
    %555 = vmatpush1.xpose.msra.mxu0 0.0
    %556 = vmatprep.subr.mxu0 0.0
    %557 = vmatpush1.xpose.msra.mxu0 0.0
    %558 = vmatprep.subr.mxu0 0.0
    %559 = vmatpush1.xpose.msra.mxu0 0.0
    %560 = vmatprep.subr.mxu0 0.0
    %561 = vmatpush1.xpose.msra.mxu0 0.0
    %562 = vmatprep.subr.mxu0 0.0
    %563 = vmatpush1.xpose.msra.mxu0 0.0
    %564 = vmatprep.subr.mxu0 0.0
    %565 = vmatpush1.xpose.msra.mxu0 0.0
    %566 = vmatprep.subr.mxu0 0.0
    %567 = vmatpush1.xpose.msra.mxu0 0.0
    %568 = vmatprep.subr.mxu0 0.0
    %569 = vmatpush1.xpose.msra.mxu0 0.0
    %570 = vmatprep.subr.mxu0 0.0
    %571 = vmatpush1.xpose.msra.mxu0 0.0
    %572 = vmatprep.mubr.f32.mxu0 0.0
    %573 = vmatmul.mubr.f32.gmra.mrb[0].mxu0 %v80
    %v574 = vpop.f32.mrb[0].mxu0
    %v575 = vadd.f32 %v504, %v574
    %v576 = vpop.f32.mrb[0].mxu0
    %577 = vmatprep.mubr.f32.mxu0 0.0
    %578 = vmatmul.mubr.f32.gmra.mrb[0].mxu0 %v83
    %v579 = vpop.f32.mrb[0].mxu0
    %v580 = vadd.f32 %v504, %v579
    %v581 = vpop.f32.mrb[0].mxu0
    %582 = vdwg.mxu0
    %v583 = vld [vmem:[%s2 + $0x30] sm:$0xff]
    %v584 = vld [vmem:[%s3 + $0x8] sm:$0x1]
    %v585 = vlaneseq
    %v586 = vshrl.u32 %v585, 7
    %v587 = vsub.s32 0, %v586
    %v588 = vrot.slane %v584, %v587
    %v590 = vsel %vm22, %v583, 0
    %592 = vmatprep.subr.mxu0 0.0
    %593 = vmatpush1.xpose.msra.mxu0 %v590
    %594 = vmatprep.subr.mxu0 0.0
    %595 = vmatpush1.xpose.msra.mxu0 0.0
    %596 = vmatprep.subr.mxu0 0.0
    %597 = vmatpush1.xpose.msra.mxu0 0.0
    %598 = vmatprep.subr.mxu0 0.0
    %599 = vmatpush1.xpose.msra.mxu0 0.0
    %600 = vmatprep.subr.mxu0 0.0
    %601 = vmatpush1.xpose.msra.mxu0 0.0
    %602 = vmatprep.subr.mxu0 0.0
    %603 = vmatpush1.xpose.msra.mxu0 0.0
    %604 = vmatprep.subr.mxu0 0.0
    %605 = vmatpush1.xpose.msra.mxu0 0.0
    %606 = vmatprep.subr.mxu0 0.0
    %607 = vmatpush1.xpose.msra.mxu0 0.0
    %608 = vmatprep.subr.mxu0 0.0
    %609 = vmatpush1.xpose.msra.mxu0 0.0
    %610 = vmatprep.subr.mxu0 0.0
    %611 = vmatpush1.xpose.msra.mxu0 0.0
    %612 = vmatprep.subr.mxu0 0.0
    %613 = vmatpush1.xpose.msra.mxu0 0.0
    %614 = vmatprep.subr.mxu0 0.0
    %615 = vmatpush1.xpose.msra.mxu0 0.0
    %616 = vmatprep.subr.mxu0 0.0
    %617 = vmatpush1.xpose.msra.mxu0 0.0
    %618 = vmatprep.subr.mxu0 0.0
    %619 = vmatpush1.xpose.msra.mxu0 0.0
    %620 = vmatprep.subr.mxu0 0.0
    %621 = vmatpush1.xpose.msra.mxu0 0.0
    %622 = vmatprep.subr.mxu0 0.0
    %623 = vmatpush1.xpose.msra.mxu0 0.0
    %624 = vmatprep.subr.mxu0 0.0
    %625 = vmatpush1.xpose.msra.mxu0 0.0
    %626 = vmatprep.subr.mxu0 0.0
    %627 = vmatpush1.xpose.msra.mxu0 0.0
    %628 = vmatprep.subr.mxu0 0.0
    %629 = vmatpush1.xpose.msra.mxu0 0.0
    %630 = vmatprep.subr.mxu0 0.0
    %631 = vmatpush1.xpose.msra.mxu0 0.0
    %632 = vmatprep.subr.mxu0 0.0
    %633 = vmatpush1.xpose.msra.mxu0 0.0
    %634 = vmatprep.subr.mxu0 0.0
    %635 = vmatpush1.xpose.msra.mxu0 0.0
    %636 = vmatprep.subr.mxu0 0.0
    %637 = vmatpush1.xpose.msra.mxu0 0.0
    %638 = vmatprep.subr.mxu0 0.0
    %639 = vmatpush1.xpose.msra.mxu0 0.0
    %640 = vmatprep.subr.mxu0 0.0
    %641 = vmatpush1.xpose.msra.mxu0 0.0
    %642 = vmatprep.subr.mxu0 0.0
    %643 = vmatpush1.xpose.msra.mxu0 0.0
    %644 = vmatprep.subr.mxu0 0.0
    %645 = vmatpush1.xpose.msra.mxu0 0.0
    %646 = vmatprep.subr.mxu0 0.0
    %647 = vmatpush1.xpose.msra.mxu0 0.0
    %648 = vmatprep.subr.mxu0 0.0
    %649 = vmatpush1.xpose.msra.mxu0 0.0
    %650 = vmatprep.subr.mxu0 0.0
    %651 = vmatpush1.xpose.msra.mxu0 0.0
    %652 = vmatprep.subr.mxu0 0.0
    %653 = vmatpush1.xpose.msra.mxu0 0.0
    %654 = vmatprep.subr.mxu0 0.0
    %655 = vmatpush1.xpose.msra.mxu0 0.0
    %656 = vmatprep.mubr.f32.mxu0 0.0
    %657 = vmatmul.mubr.f32.gmra.mrb[0].mxu0 %v80
    %v658 = vpop.f32.mrb[0].mxu0
    %v659 = vadd.f32 %v588, %v658
    %v660 = vpop.f32.mrb[0].mxu0
    %661 = vmatprep.mubr.f32.mxu0 0.0
    %662 = vmatmul.mubr.f32.gmra.mrb[0].mxu0 %v83
    %v663 = vpop.f32.mrb[0].mxu0
    %v664 = vadd.f32 %v588, %v663
    %v665 = vpop.f32.mrb[0].mxu0
    %666 = vdwg.mxu0
    %v667 = vld [vmem:[%s2 + $0x38] sm:$0xff]
    %v668 = vld [vmem:[%s3 + $0x9] sm:$0x1]
    %v669 = vlaneseq
    %v670 = vshrl.u32 %v669, 7
    %v671 = vsub.s32 0, %v670
    %v672 = vrot.slane %v668, %v671
    %v674 = vsel %vm22, %v667, 0
    %676 = vmatprep.subr.mxu0 0.0
    %677 = vmatpush1.xpose.msra.mxu0 %v674
    %678 = vmatprep.subr.mxu0 0.0
    %679 = vmatpush1.xpose.msra.mxu0 0.0
    %680 = vmatprep.subr.mxu0 0.0
    %681 = vmatpush1.xpose.msra.mxu0 0.0
    %682 = vmatprep.subr.mxu0 0.0
    %683 = vmatpush1.xpose.msra.mxu0 0.0
    %684 = vmatprep.subr.mxu0 0.0
    %685 = vmatpush1.xpose.msra.mxu0 0.0
    %686 = vmatprep.subr.mxu0 0.0
    %687 = vmatpush1.xpose.msra.mxu0 0.0
    %688 = vmatprep.subr.mxu0 0.0
    %689 = vmatpush1.xpose.msra.mxu0 0.0
    %690 = vmatprep.subr.mxu0 0.0
    %691 = vmatpush1.xpose.msra.mxu0 0.0
    %692 = vmatprep.subr.mxu0 0.0
    %693 = vmatpush1.xpose.msra.mxu0 0.0
    %694 = vmatprep.subr.mxu0 0.0
    %695 = vmatpush1.xpose.msra.mxu0 0.0
    %696 = vmatprep.subr.mxu0 0.0
    %697 = vmatpush1.xpose.msra.mxu0 0.0
    %698 = vmatprep.subr.mxu0 0.0
    %699 = vmatpush1.xpose.msra.mxu0 0.0
    %700 = vmatprep.subr.mxu0 0.0
    %701 = vmatpush1.xpose.msra.mxu0 0.0
    %702 = vmatprep.subr.mxu0 0.0
    %703 = vmatpush1.xpose.msra.mxu0 0.0
    %704 = vmatprep.subr.mxu0 0.0
    %705 = vmatpush1.xpose.msra.mxu0 0.0
    %706 = vmatprep.subr.mxu0 0.0
    %707 = vmatpush1.xpose.msra.mxu0 0.0
    %708 = vmatprep.subr.mxu0 0.0
    %709 = vmatpush1.xpose.msra.mxu0 0.0
    %710 = vmatprep.subr.mxu0 0.0
    %711 = vmatpush1.xpose.msra.mxu0 0.0
    %712 = vmatprep.subr.mxu0 0.0
    %713 = vmatpush1.xpose.msra.mxu0 0.0
    %714 = vmatprep.subr.mxu0 0.0
    %715 = vmatpush1.xpose.msra.mxu0 0.0
    %716 = vmatprep.subr.mxu0 0.0
    %717 = vmatpush1.xpose.msra.mxu0 0.0
    %718 = vmatprep.subr.mxu0 0.0
    %719 = vmatpush1.xpose.msra.mxu0 0.0
    %720 = vmatprep.subr.mxu0 0.0
    %721 = vmatpush1.xpose.msra.mxu0 0.0
    %722 = vmatprep.subr.mxu0 0.0
    %723 = vmatpush1.xpose.msra.mxu0 0.0
    %724 = vmatprep.subr.mxu0 0.0
    %725 = vmatpush1.xpose.msra.mxu0 0.0
    %726 = vmatprep.subr.mxu0 0.0
    %727 = vmatpush1.xpose.msra.mxu0 0.0
    %728 = vmatprep.subr.mxu0 0.0
    %729 = vmatpush1.xpose.msra.mxu0 0.0
    %730 = vmatprep.subr.mxu0 0.0
    %731 = vmatpush1.xpose.msra.mxu0 0.0
    %732 = vmatprep.subr.mxu0 0.0
    %733 = vmatpush1.xpose.msra.mxu0 0.0
    %734 = vmatprep.subr.mxu0 0.0
    %735 = vmatpush1.xpose.msra.mxu0 0.0
    %736 = vmatprep.subr.mxu0 0.0
    %737 = vmatpush1.xpose.msra.mxu0 0.0
    %738 = vmatprep.subr.mxu0 0.0
    %739 = vmatpush1.xpose.msra.mxu0 0.0
    %740 = vmatprep.mubr.f32.mxu0 0.0
    %741 = vmatmul.mubr.f32.gmra.mrb[0].mxu0 %v80
    %v742 = vpop.f32.mrb[0].mxu0
    %v743 = vadd.f32 %v672, %v742
    %v744 = vpop.f32.mrb[0].mxu0
    %745 = vmatprep.mubr.f32.mxu0 0.0
    %746 = vmatmul.mubr.f32.gmra.mrb[0].mxu0 %v83
    %v747 = vpop.f32.mrb[0].mxu0
    %v748 = vadd.f32 %v672, %v747
    %v749 = vpop.f32.mrb[0].mxu0
    %750 = vdwg.mxu0
    %v751 = vld [vmem:[%s2 + $0x40] sm:$0xff]
    %v752 = vld [vmem:[%s3 + $0xa] sm:$0x1]
    %v753 = vlaneseq
    %v754 = vshrl.u32 %v753, 7
    %v755 = vsub.s32 0, %v754
    %v756 = vrot.slane %v752, %v755
    %v758 = vsel %vm22, %v751, 0
    %760 = vmatprep.subr.mxu0 0.0
    %761 = vmatpush1.xpose.msra.mxu0 %v758
    %762 = vmatprep.subr.mxu0 0.0
    %763 = vmatpush1.xpose.msra.mxu0 0.0
    %764 = vmatprep.subr.mxu0 0.0
    %765 = vmatpush1.xpose.msra.mxu0 0.0
    %766 = vmatprep.subr.mxu0 0.0
    %767 = vmatpush1.xpose.msra.mxu0 0.0
    %768 = vmatprep.subr.mxu0 0.0
    %769 = vmatpush1.xpose.msra.mxu0 0.0
    %770 = vmatprep.subr.mxu0 0.0
    %771 = vmatpush1.xpose.msra.mxu0 0.0
    %772 = vmatprep.subr.mxu0 0.0
    %773 = vmatpush1.xpose.msra.mxu0 0.0
    %774 = vmatprep.subr.mxu0 0.0
    %775 = vmatpush1.xpose.msra.mxu0 0.0
    %776 = vmatprep.subr.mxu0 0.0
    %777 = vmatpush1.xpose.msra.mxu0 0.0
    %778 = vmatprep.subr.mxu0 0.0
    %779 = vmatpush1.xpose.msra.mxu0 0.0
    %780 = vmatprep.subr.mxu0 0.0
    %781 = vmatpush1.xpose.msra.mxu0 0.0
    %782 = vmatprep.subr.mxu0 0.0
    %783 = vmatpush1.xpose.msra.mxu0 0.0
    %784 = vmatprep.subr.mxu0 0.0
    %785 = vmatpush1.xpose.msra.mxu0 0.0
    %786 = vmatprep.subr.mxu0 0.0
    %787 = vmatpush1.xpose.msra.mxu0 0.0
    %788 = vmatprep.subr.mxu0 0.0
    %789 = vmatpush1.xpose.msra.mxu0 0.0
    %790 = vmatprep.subr.mxu0 0.0
    %791 = vmatpush1.xpose.msra.mxu0 0.0
    %792 = vmatprep.subr.mxu0 0.0
    %793 = vmatpush1.xpose.msra.mxu0 0.0
    %794 = vmatprep.subr.mxu0 0.0
    %795 = vmatpush1.xpose.msra.mxu0 0.0
    %796 = vmatprep.subr.mxu0 0.0
    %797 = vmatpush1.xpose.msra.mxu0 0.0
    %798 = vmatprep.subr.mxu0 0.0
    %799 = vmatpush1.xpose.msra.mxu0 0.0
    %800 = vmatprep.subr.mxu0 0.0
    %801 = vmatpush1.xpose.msra.mxu0 0.0
    %802 = vmatprep.subr.mxu0 0.0
    %803 = vmatpush1.xpose.msra.mxu0 0.0
    %804 = vmatprep.subr.mxu0 0.0
    %805 = vmatpush1.xpose.msra.mxu0 0.0
    %806 = vmatprep.subr.mxu0 0.0
    %807 = vmatpush1.xpose.msra.mxu0 0.0
    %808 = vmatprep.subr.mxu0 0.0
    %809 = vmatpush1.xpose.msra.mxu0 0.0
    %810 = vmatprep.subr.mxu0 0.0
    %811 = vmatpush1.xpose.msra.mxu0 0.0
    %812 = vmatprep.subr.mxu0 0.0
    %813 = vmatpush1.xpose.msra.mxu0 0.0
    %814 = vmatprep.subr.mxu0 0.0
    %815 = vmatpush1.xpose.msra.mxu0 0.0
    %816 = vmatprep.subr.mxu0 0.0
    %817 = vmatpush1.xpose.msra.mxu0 0.0
    %818 = vmatprep.subr.mxu0 0.0
    %819 = vmatpush1.xpose.msra.mxu0 0.0
    %820 = vmatprep.subr.mxu0 0.0
    %821 = vmatpush1.xpose.msra.mxu0 0.0
    %822 = vmatprep.subr.mxu0 0.0
    %823 = vmatpush1.xpose.msra.mxu0 0.0
    %824 = vmatprep.mubr.f32.mxu0 0.0
    %825 = vmatmul.mubr.f32.gmra.mrb[0].mxu0 %v80
    %v826 = vpop.f32.mrb[0].mxu0
    %v827 = vadd.f32 %v756, %v826
    %v828 = vpop.f32.mrb[0].mxu0
    %829 = vmatprep.mubr.f32.mxu0 0.0
    %830 = vmatmul.mubr.f32.gmra.mrb[0].mxu0 %v83
    %v831 = vpop.f32.mrb[0].mxu0
    %v832 = vadd.f32 %v756, %v831
    %v833 = vpop.f32.mrb[0].mxu0
    %834 = vdwg.mxu0
    %v835 = vld [vmem:[%s2 + $0x48] sm:$0xff]
    %v836 = vld [vmem:[%s3 + $0xb] sm:$0x1]
    %v837 = vlaneseq
    %v838 = vshrl.u32 %v837, 7
    %v839 = vsub.s32 0, %v838
    %v840 = vrot.slane %v836, %v839
    %v842 = vsel %vm22, %v835, 0
    %844 = vmatprep.subr.mxu0 0.0
    %845 = vmatpush1.xpose.msra.mxu0 %v842
    %846 = vmatprep.subr.mxu0 0.0
    %847 = vmatpush1.xpose.msra.mxu0 0.0
    %848 = vmatprep.subr.mxu0 0.0
    %849 = vmatpush1.xpose.msra.mxu0 0.0
    %850 = vmatprep.subr.mxu0 0.0
    %851 = vmatpush1.xpose.msra.mxu0 0.0
    %852 = vmatprep.subr.mxu0 0.0
    %853 = vmatpush1.xpose.msra.mxu0 0.0
    %854 = vmatprep.subr.mxu0 0.0
    %855 = vmatpush1.xpose.msra.mxu0 0.0
    %856 = vmatprep.subr.mxu0 0.0
    %857 = vmatpush1.xpose.msra.mxu0 0.0
    %858 = vmatprep.subr.mxu0 0.0
    %859 = vmatpush1.xpose.msra.mxu0 0.0
    %860 = vmatprep.subr.mxu0 0.0
    %861 = vmatpush1.xpose.msra.mxu0 0.0
    %862 = vmatprep.subr.mxu0 0.0
    %863 = vmatpush1.xpose.msra.mxu0 0.0
    %864 = vmatprep.subr.mxu0 0.0
    %865 = vmatpush1.xpose.msra.mxu0 0.0
    %866 = vmatprep.subr.mxu0 0.0
    %867 = vmatpush1.xpose.msra.mxu0 0.0
    %868 = vmatprep.subr.mxu0 0.0
    %869 = vmatpush1.xpose.msra.mxu0 0.0
    %870 = vmatprep.subr.mxu0 0.0
    %871 = vmatpush1.xpose.msra.mxu0 0.0
    %872 = vmatprep.subr.mxu0 0.0
    %873 = vmatpush1.xpose.msra.mxu0 0.0
    %874 = vmatprep.subr.mxu0 0.0
    %875 = vmatpush1.xpose.msra.mxu0 0.0
    %876 = vmatprep.subr.mxu0 0.0
    %877 = vmatpush1.xpose.msra.mxu0 0.0
    %878 = vmatprep.subr.mxu0 0.0
    %879 = vmatpush1.xpose.msra.mxu0 0.0
    %880 = vmatprep.subr.mxu0 0.0
    %881 = vmatpush1.xpose.msra.mxu0 0.0
    %882 = vmatprep.subr.mxu0 0.0
    %883 = vmatpush1.xpose.msra.mxu0 0.0
    %884 = vmatprep.subr.mxu0 0.0
    %885 = vmatpush1.xpose.msra.mxu0 0.0
    %886 = vmatprep.subr.mxu0 0.0
    %887 = vmatpush1.xpose.msra.mxu0 0.0
    %888 = vmatprep.subr.mxu0 0.0
    %889 = vmatpush1.xpose.msra.mxu0 0.0
    %890 = vmatprep.subr.mxu0 0.0
    %891 = vmatpush1.xpose.msra.mxu0 0.0
    %892 = vmatprep.subr.mxu0 0.0
    %893 = vmatpush1.xpose.msra.mxu0 0.0
    %894 = vmatprep.subr.mxu0 0.0
    %895 = vmatpush1.xpose.msra.mxu0 0.0
    %896 = vmatprep.subr.mxu0 0.0
    %897 = vmatpush1.xpose.msra.mxu0 0.0
    %898 = vmatprep.subr.mxu0 0.0
    %899 = vmatpush1.xpose.msra.mxu0 0.0
    %900 = vmatprep.subr.mxu0 0.0
    %901 = vmatpush1.xpose.msra.mxu0 0.0
    %902 = vmatprep.subr.mxu0 0.0
    %903 = vmatpush1.xpose.msra.mxu0 0.0
    %904 = vmatprep.subr.mxu0 0.0
    %905 = vmatpush1.xpose.msra.mxu0 0.0
    %906 = vmatprep.subr.mxu0 0.0
    %907 = vmatpush1.xpose.msra.mxu0 0.0
    %908 = vmatprep.mubr.f32.mxu0 0.0
    %909 = vmatmul.mubr.f32.gmra.mrb[0].mxu0 %v80
    %v910 = vpop.f32.mrb[0].mxu0
    %v911 = vadd.f32 %v840, %v910
    %v912 = vpop.f32.mrb[0].mxu0
    %913 = vmatprep.mubr.f32.mxu0 0.0
    %914 = vmatmul.mubr.f32.gmra.mrb[0].mxu0 %v83
    %v915 = vpop.f32.mrb[0].mxu0
    %v916 = vadd.f32 %v840, %v915
    %v917 = vpop.f32.mrb[0].mxu0
    %918 = vdwg.mxu0
    %v919 = vld [vmem:[%s2 + $0x50] sm:$0xff]
    %v920 = vld [vmem:[%s3 + $0xc] sm:$0x1]
    %v921 = vlaneseq
    %v922 = vshrl.u32 %v921, 7
    %v923 = vsub.s32 0, %v922
    %v924 = vrot.slane %v920, %v923
    %v926 = vsel %vm22, %v919, 0
    %928 = vmatprep.subr.mxu0 0.0
    %929 = vmatpush1.xpose.msra.mxu0 %v926
    %930 = vmatprep.subr.mxu0 0.0
    %931 = vmatpush1.xpose.msra.mxu0 0.0
    %932 = vmatprep.subr.mxu0 0.0
    %933 = vmatpush1.xpose.msra.mxu0 0.0
    %934 = vmatprep.subr.mxu0 0.0
    %935 = vmatpush1.xpose.msra.mxu0 0.0
    %936 = vmatprep.subr.mxu0 0.0
    %937 = vmatpush1.xpose.msra.mxu0 0.0
    %938 = vmatprep.subr.mxu0 0.0
    %939 = vmatpush1.xpose.msra.mxu0 0.0
    %940 = vmatprep.subr.mxu0 0.0
    %941 = vmatpush1.xpose.msra.mxu0 0.0
    %942 = vmatprep.subr.mxu0 0.0
    %943 = vmatpush1.xpose.msra.mxu0 0.0
    %944 = vmatprep.subr.mxu0 0.0
    %945 = vmatpush1.xpose.msra.mxu0 0.0
    %946 = vmatprep.subr.mxu0 0.0
    %947 = vmatpush1.xpose.msra.mxu0 0.0
    %948 = vmatprep.subr.mxu0 0.0
    %949 = vmatpush1.xpose.msra.mxu0 0.0
    %950 = vmatprep.subr.mxu0 0.0
    %951 = vmatpush1.xpose.msra.mxu0 0.0
    %952 = vmatprep.subr.mxu0 0.0
    %953 = vmatpush1.xpose.msra.mxu0 0.0
    %954 = vmatprep.subr.mxu0 0.0
    %955 = vmatpush1.xpose.msra.mxu0 0.0
    %956 = vmatprep.subr.mxu0 0.0
    %957 = vmatpush1.xpose.msra.mxu0 0.0
    %958 = vmatprep.subr.mxu0 0.0
    %959 = vmatpush1.xpose.msra.mxu0 0.0
    %960 = vmatprep.subr.mxu0 0.0
    %961 = vmatpush1.xpose.msra.mxu0 0.0
    %962 = vmatprep.subr.mxu0 0.0
    %963 = vmatpush1.xpose.msra.mxu0 0.0
    %964 = vmatprep.subr.mxu0 0.0
    %965 = vmatpush1.xpose.msra.mxu0 0.0
    %966 = vmatprep.subr.mxu0 0.0
    %967 = vmatpush1.xpose.msra.mxu0 0.0
    %968 = vmatprep.subr.mxu0 0.0
    %969 = vmatpush1.xpose.msra.mxu0 0.0
    %970 = vmatprep.subr.mxu0 0.0
    %971 = vmatpush1.xpose.msra.mxu0 0.0
    %972 = vmatprep.subr.mxu0 0.0
    %973 = vmatpush1.xpose.msra.mxu0 0.0
    %974 = vmatprep.subr.mxu0 0.0
    %975 = vmatpush1.xpose.msra.mxu0 0.0
    %976 = vmatprep.subr.mxu0 0.0
    %977 = vmatpush1.xpose.msra.mxu0 0.0
    %978 = vmatprep.subr.mxu0 0.0
    %979 = vmatpush1.xpose.msra.mxu0 0.0
    %980 = vmatprep.subr.mxu0 0.0
    %981 = vmatpush1.xpose.msra.mxu0 0.0
    %982 = vmatprep.subr.mxu0 0.0
    %983 = vmatpush1.xpose.msra.mxu0 0.0
    %984 = vmatprep.subr.mxu0 0.0
    %985 = vmatpush1.xpose.msra.mxu0 0.0
    %986 = vmatprep.subr.mxu0 0.0
    %987 = vmatpush1.xpose.msra.mxu0 0.0
    %988 = vmatprep.subr.mxu0 0.0
    %989 = vmatpush1.xpose.msra.mxu0 0.0
    %990 = vmatprep.subr.mxu0 0.0
    %991 = vmatpush1.xpose.msra.mxu0 0.0
    %992 = vmatprep.mubr.f32.mxu0 0.0
    %993 = vmatmul.mubr.f32.gmra.mrb[0].mxu0 %v80
    %v994 = vpop.f32.mrb[0].mxu0
    %v995 = vadd.f32 %v924, %v994
    %v996 = vpop.f32.mrb[0].mxu0
    %997 = vmatprep.mubr.f32.mxu0 0.0
    %998 = vmatmul.mubr.f32.gmra.mrb[0].mxu0 %v83
    %v999 = vpop.f32.mrb[0].mxu0
    %v1000 = vadd.f32 %v924, %v999
    %v1001 = vpop.f32.mrb[0].mxu0
    %1002 = vdwg.mxu0
    %v1003 = vld [vmem:[%s2 + $0x58] sm:$0xff]
    %v1004 = vld [vmem:[%s3 + $0xd] sm:$0x1]
    %v1005 = vlaneseq
    %v1006 = vshrl.u32 %v1005, 7
    %v1007 = vsub.s32 0, %v1006
    %v1008 = vrot.slane %v1004, %v1007
    %v1010 = vsel %vm22, %v1003, 0
    %1012 = vmatprep.subr.mxu0 0.0
    %1013 = vmatpush1.xpose.msra.mxu0 %v1010
    %1014 = vmatprep.subr.mxu0 0.0
    %1015 = vmatpush1.xpose.msra.mxu0 0.0
    %1016 = vmatprep.subr.mxu0 0.0
    %1017 = vmatpush1.xpose.msra.mxu0 0.0
    %1018 = vmatprep.subr.mxu0 0.0
    %1019 = vmatpush1.xpose.msra.mxu0 0.0
    %1020 = vmatprep.subr.mxu0 0.0
    %1021 = vmatpush1.xpose.msra.mxu0 0.0
    %1022 = vmatprep.subr.mxu0 0.0
    %1023 = vmatpush1.xpose.msra.mxu0 0.0
    %1024 = vmatprep.subr.mxu0 0.0
    %1025 = vmatpush1.xpose.msra.mxu0 0.0
    %1026 = vmatprep.subr.mxu0 0.0
    %1027 = vmatpush1.xpose.msra.mxu0 0.0
    %1028 = vmatprep.subr.mxu0 0.0
    %1029 = vmatpush1.xpose.msra.mxu0 0.0
    %1030 = vmatprep.subr.mxu0 0.0
    %1031 = vmatpush1.xpose.msra.mxu0 0.0
    %1032 = vmatprep.subr.mxu0 0.0
    %1033 = vmatpush1.xpose.msra.mxu0 0.0
    %1034 = vmatprep.subr.mxu0 0.0
    %1035 = vmatpush1.xpose.msra.mxu0 0.0
    %1036 = vmatprep.subr.mxu0 0.0
    %1037 = vmatpush1.xpose.msra.mxu0 0.0
    %1038 = vmatprep.subr.mxu0 0.0
    %1039 = vmatpush1.xpose.msra.mxu0 0.0
    %1040 = vmatprep.subr.mxu0 0.0
    %1041 = vmatpush1.xpose.msra.mxu0 0.0
    %1042 = vmatprep.subr.mxu0 0.0
    %1043 = vmatpush1.xpose.msra.mxu0 0.0
    %1044 = vmatprep.subr.mxu0 0.0
    %1045 = vmatpush1.xpose.msra.mxu0 0.0
    %1046 = vmatprep.subr.mxu0 0.0
    %1047 = vmatpush1.xpose.msra.mxu0 0.0
    %1048 = vmatprep.subr.mxu0 0.0
    %1049 = vmatpush1.xpose.msra.mxu0 0.0
    %1050 = vmatprep.subr.mxu0 0.0
    %1051 = vmatpush1.xpose.msra.mxu0 0.0
    %1052 = vmatprep.subr.mxu0 0.0
    %1053 = vmatpush1.xpose.msra.mxu0 0.0
    %1054 = vmatprep.subr.mxu0 0.0
    %1055 = vmatpush1.xpose.msra.mxu0 0.0
    %1056 = vmatprep.subr.mxu0 0.0
    %1057 = vmatpush1.xpose.msra.mxu0 0.0
    %1058 = vmatprep.subr.mxu0 0.0
    %1059 = vmatpush1.xpose.msra.mxu0 0.0
    %1060 = vmatprep.subr.mxu0 0.0
    %1061 = vmatpush1.xpose.msra.mxu0 0.0
    %1062 = vmatprep.subr.mxu0 0.0
    %1063 = vmatpush1.xpose.msra.mxu0 0.0
    %1064 = vmatprep.subr.mxu0 0.0
    %1065 = vmatpush1.xpose.msra.mxu0 0.0
    %1066 = vmatprep.subr.mxu0 0.0
    %1067 = vmatpush1.xpose.msra.mxu0 0.0
    %1068 = vmatprep.subr.mxu0 0.0
    %1069 = vmatpush1.xpose.msra.mxu0 0.0
    %1070 = vmatprep.subr.mxu0 0.0
    %1071 = vmatpush1.xpose.msra.mxu0 0.0
    %1072 = vmatprep.subr.mxu0 0.0
    %1073 = vmatpush1.xpose.msra.mxu0 0.0
    %1074 = vmatprep.subr.mxu0 0.0
    %1075 = vmatpush1.xpose.msra.mxu0 0.0
    %1076 = vmatprep.mubr.f32.mxu0 0.0
    %1077 = vmatmul.mubr.f32.gmra.mrb[0].mxu0 %v80
    %v1078 = vpop.f32.mrb[0].mxu0
    %v1079 = vadd.f32 %v1008, %v1078
    %v1080 = vpop.f32.mrb[0].mxu0
    %1081 = vmatprep.mubr.f32.mxu0 0.0
    %1082 = vmatmul.mubr.f32.gmra.mrb[0].mxu0 %v83
    %v1083 = vpop.f32.mrb[0].mxu0
    %v1084 = vadd.f32 %v1008, %v1083
    %v1085 = vpop.f32.mrb[0].mxu0
    %1086 = vdwg.mxu0
    %vm1087 = vcmask 64512
    %v1089 = vsel %vm1087, %v155, 0
    %v1092 = vsel %vm1087, %v239, 0
    %1094 = vmatprep.subr.mxu0 0.0
    %1095 = vmatpush1.xpose.msra.mxu0 %v1092
    %1096 = vmatprep.subr.mxu0 0.0
    %1097 = vmatpush1.xpose.msra.mxu0 0.0
    %1098 = vmatprep.subr.mxu0 0.0
    %1099 = vmatpush1.xpose.msra.mxu0 0.0
    %1100 = vmatprep.subr.mxu0 0.0
    %1101 = vmatpush1.xpose.msra.mxu0 0.0
    %1102 = vmatprep.subr.mxu0 0.0
    %1103 = vmatpush1.xpose.msra.mxu0 0.0
    %1104 = vmatprep.subr.mxu0 0.0
    %1105 = vmatpush1.xpose.msra.mxu0 0.0
    %1106 = vmatprep.subr.mxu0 0.0
    %1107 = vmatpush1.xpose.msra.mxu0 0.0
    %1108 = vmatprep.subr.mxu0 0.0
    %1109 = vmatpush1.xpose.msra.mxu0 0.0
    %1110 = vmatprep.subr.mxu0 0.0
    %1111 = vmatpush1.xpose.msra.mxu0 0.0
    %1112 = vmatprep.subr.mxu0 0.0
    %1113 = vmatpush1.xpose.msra.mxu0 0.0
    %1114 = vmatprep.subr.mxu0 0.0
    %1115 = vmatpush1.xpose.msra.mxu0 0.0
    %1116 = vmatprep.subr.mxu0 0.0
    %1117 = vmatpush1.xpose.msra.mxu0 0.0
    %1118 = vmatprep.subr.mxu0 0.0
    %1119 = vmatpush1.xpose.msra.mxu0 0.0
    %1120 = vmatprep.subr.mxu0 0.0
    %1121 = vmatpush1.xpose.msra.mxu0 0.0
    %1122 = vmatprep.subr.mxu0 0.0
    %1123 = vmatpush1.xpose.msra.mxu0 0.0
    %1124 = vmatprep.subr.mxu0 0.0
    %1125 = vmatpush1.xpose.msra.mxu0 0.0
    %1126 = vmatprep.subr.mxu0 0.0
    %1127 = vmatpush1.xpose.msra.mxu0 0.0
    %1128 = vmatprep.subr.mxu0 0.0
    %1129 = vmatpush1.xpose.msra.mxu0 0.0
    %1130 = vmatprep.subr.mxu0 0.0
    %1131 = vmatpush1.xpose.msra.mxu0 0.0
    %1132 = vmatprep.subr.mxu0 0.0
    %1133 = vmatpush1.xpose.msra.mxu0 0.0
    %1134 = vmatprep.subr.mxu0 0.0
    %1135 = vmatpush1.xpose.msra.mxu0 0.0
    %1136 = vmatprep.subr.mxu0 0.0
    %1137 = vmatpush1.xpose.msra.mxu0 0.0
    %1138 = vmatprep.subr.mxu0 0.0
    %1139 = vmatpush1.xpose.msra.mxu0 0.0
    %1140 = vmatprep.subr.mxu0 0.0
    %1141 = vmatpush1.xpose.msra.mxu0 0.0
    %1142 = vmatprep.subr.mxu0 0.0
    %1143 = vmatpush1.xpose.msra.mxu0 0.0
    %1144 = vmatprep.subr.mxu0 0.0
    %1145 = vmatpush1.xpose.msra.mxu0 0.0
    %1146 = vmatprep.subr.mxu0 0.0
    %1147 = vmatpush1.xpose.msra.mxu0 0.0
    %1148 = vmatprep.subr.mxu0 0.0
    %1149 = vmatpush1.xpose.msra.mxu0 0.0
    %1150 = vmatprep.subr.mxu0 0.0
    %1151 = vmatpush1.xpose.msra.mxu0 0.0
    %1152 = vmatprep.subr.mxu0 0.0
    %1153 = vmatpush1.xpose.msra.mxu0 0.0
    %1154 = vmatprep.subr.mxu0 0.0
    %1155 = vmatpush1.xpose.msra.mxu0 0.0
    %1156 = vmatprep.subr.mxu0 0.0
    %1157 = vmatpush1.xpose.msra.mxu0 0.0
    %1158 = vmatprep.mubr.f32.mxu0 0.0
    %1159 = vmatmul.mubr.f32.gmra.mrb[0].mxu0 %v1089
    %v1160 = vpop.f32.mrb[0].mxu0
    %v1161 = vadd.f32 0.0, %v1160
    %v1162 = vpop.f32.mrb[0].mxu0
    %1163 = vdwg.mxu0
    %v1165 = vsel %vm1087, %v407, 0
    %v1168 = vsel %vm1087, %v491, 0
    %1170 = vmatprep.subr.mxu0 0.0
    %1171 = vmatpush1.xpose.msra.mxu0 %v1168
    %1172 = vmatprep.subr.mxu0 0.0
    %1173 = vmatpush1.xpose.msra.mxu0 0.0
    %1174 = vmatprep.subr.mxu0 0.0
    %1175 = vmatpush1.xpose.msra.mxu0 0.0
    %1176 = vmatprep.subr.mxu0 0.0
    %1177 = vmatpush1.xpose.msra.mxu0 0.0
    %1178 = vmatprep.subr.mxu0 0.0
    %1179 = vmatpush1.xpose.msra.mxu0 0.0
    %1180 = vmatprep.subr.mxu0 0.0
    %1181 = vmatpush1.xpose.msra.mxu0 0.0
    %1182 = vmatprep.subr.mxu0 0.0
    %1183 = vmatpush1.xpose.msra.mxu0 0.0
    %1184 = vmatprep.subr.mxu0 0.0
    %1185 = vmatpush1.xpose.msra.mxu0 0.0
    %1186 = vmatprep.subr.mxu0 0.0
    %1187 = vmatpush1.xpose.msra.mxu0 0.0
    %1188 = vmatprep.subr.mxu0 0.0
    %1189 = vmatpush1.xpose.msra.mxu0 0.0
    %1190 = vmatprep.subr.mxu0 0.0
    %1191 = vmatpush1.xpose.msra.mxu0 0.0
    %1192 = vmatprep.subr.mxu0 0.0
    %1193 = vmatpush1.xpose.msra.mxu0 0.0
    %1194 = vmatprep.subr.mxu0 0.0
    %1195 = vmatpush1.xpose.msra.mxu0 0.0
    %1196 = vmatprep.subr.mxu0 0.0
    %1197 = vmatpush1.xpose.msra.mxu0 0.0
    %1198 = vmatprep.subr.mxu0 0.0
    %1199 = vmatpush1.xpose.msra.mxu0 0.0
    %1200 = vmatprep.subr.mxu0 0.0
    %1201 = vmatpush1.xpose.msra.mxu0 0.0
    %1202 = vmatprep.subr.mxu0 0.0
    %1203 = vmatpush1.xpose.msra.mxu0 0.0
    %1204 = vmatprep.subr.mxu0 0.0
    %1205 = vmatpush1.xpose.msra.mxu0 0.0
    %1206 = vmatprep.subr.mxu0 0.0
    %1207 = vmatpush1.xpose.msra.mxu0 0.0
    %1208 = vmatprep.subr.mxu0 0.0
    %1209 = vmatpush1.xpose.msra.mxu0 0.0
    %1210 = vmatprep.subr.mxu0 0.0
    %1211 = vmatpush1.xpose.msra.mxu0 0.0
    %1212 = vmatprep.subr.mxu0 0.0
    %1213 = vmatpush1.xpose.msra.mxu0 0.0
    %1214 = vmatprep.subr.mxu0 0.0
    %1215 = vmatpush1.xpose.msra.mxu0 0.0
    %1216 = vmatprep.subr.mxu0 0.0
    %1217 = vmatpush1.xpose.msra.mxu0 0.0
    %1218 = vmatprep.subr.mxu0 0.0
    %1219 = vmatpush1.xpose.msra.mxu0 0.0
    %1220 = vmatprep.subr.mxu0 0.0
    %1221 = vmatpush1.xpose.msra.mxu0 0.0
    %1222 = vmatprep.subr.mxu0 0.0
    %1223 = vmatpush1.xpose.msra.mxu0 0.0
    %1224 = vmatprep.subr.mxu0 0.0
    %1225 = vmatpush1.xpose.msra.mxu0 0.0
    %1226 = vmatprep.subr.mxu0 0.0
    %1227 = vmatpush1.xpose.msra.mxu0 0.0
    %1228 = vmatprep.subr.mxu0 0.0
    %1229 = vmatpush1.xpose.msra.mxu0 0.0
    %1230 = vmatprep.subr.mxu0 0.0
    %1231 = vmatpush1.xpose.msra.mxu0 0.0
    %1232 = vmatprep.subr.mxu0 0.0
    %1233 = vmatpush1.xpose.msra.mxu0 0.0
    %1234 = vmatprep.mubr.f32.mxu0 0.0
    %1235 = vmatmul.mubr.f32.gmra.mrb[0].mxu0 %v1165
    %v1236 = vpop.f32.mrb[0].mxu0
    %v1237 = vadd.f32 0.0, %v1236
    %v1238 = vpop.f32.mrb[0].mxu0
    %1239 = vdwg.mxu0
    %v1241 = vsel %vm1087, %v659, 0
    %v1244 = vsel %vm1087, %v743, 0
    %1246 = vmatprep.subr.mxu0 0.0
    %1247 = vmatpush1.xpose.msra.mxu0 %v1244
    %1248 = vmatprep.subr.mxu0 0.0
    %1249 = vmatpush1.xpose.msra.mxu0 0.0
    %1250 = vmatprep.subr.mxu0 0.0
    %1251 = vmatpush1.xpose.msra.mxu0 0.0
    %1252 = vmatprep.subr.mxu0 0.0
    %1253 = vmatpush1.xpose.msra.mxu0 0.0
    %1254 = vmatprep.subr.mxu0 0.0
    %1255 = vmatpush1.xpose.msra.mxu0 0.0
    %1256 = vmatprep.subr.mxu0 0.0
    %1257 = vmatpush1.xpose.msra.mxu0 0.0
    %1258 = vmatprep.subr.mxu0 0.0
    %1259 = vmatpush1.xpose.msra.mxu0 0.0
    %1260 = vmatprep.subr.mxu0 0.0
    %1261 = vmatpush1.xpose.msra.mxu0 0.0
    %1262 = vmatprep.subr.mxu0 0.0
    %1263 = vmatpush1.xpose.msra.mxu0 0.0
    %1264 = vmatprep.subr.mxu0 0.0
    %1265 = vmatpush1.xpose.msra.mxu0 0.0
    %1266 = vmatprep.subr.mxu0 0.0
    %1267 = vmatpush1.xpose.msra.mxu0 0.0
    %1268 = vmatprep.subr.mxu0 0.0
    %1269 = vmatpush1.xpose.msra.mxu0 0.0
    %1270 = vmatprep.subr.mxu0 0.0
    %1271 = vmatpush1.xpose.msra.mxu0 0.0
    %1272 = vmatprep.subr.mxu0 0.0
    %1273 = vmatpush1.xpose.msra.mxu0 0.0
    %1274 = vmatprep.subr.mxu0 0.0
    %1275 = vmatpush1.xpose.msra.mxu0 0.0
    %1276 = vmatprep.subr.mxu0 0.0
    %1277 = vmatpush1.xpose.msra.mxu0 0.0
    %1278 = vmatprep.subr.mxu0 0.0
    %1279 = vmatpush1.xpose.msra.mxu0 0.0
    %1280 = vmatprep.subr.mxu0 0.0
    %1281 = vmatpush1.xpose.msra.mxu0 0.0
    %1282 = vmatprep.subr.mxu0 0.0
    %1283 = vmatpush1.xpose.msra.mxu0 0.0
    %1284 = vmatprep.subr.mxu0 0.0
    %1285 = vmatpush1.xpose.msra.mxu0 0.0
    %1286 = vmatprep.subr.mxu0 0.0
    %1287 = vmatpush1.xpose.msra.mxu0 0.0
    %1288 = vmatprep.subr.mxu0 0.0
    %1289 = vmatpush1.xpose.msra.mxu0 0.0
    %1290 = vmatprep.subr.mxu0 0.0
    %1291 = vmatpush1.xpose.msra.mxu0 0.0
    %1292 = vmatprep.subr.mxu0 0.0
    %1293 = vmatpush1.xpose.msra.mxu0 0.0
    %1294 = vmatprep.subr.mxu0 0.0
    %1295 = vmatpush1.xpose.msra.mxu0 0.0
    %1296 = vmatprep.subr.mxu0 0.0
    %1297 = vmatpush1.xpose.msra.mxu0 0.0
    %1298 = vmatprep.subr.mxu0 0.0
    %1299 = vmatpush1.xpose.msra.mxu0 0.0
    %1300 = vmatprep.subr.mxu0 0.0
    %1301 = vmatpush1.xpose.msra.mxu0 0.0
    %1302 = vmatprep.subr.mxu0 0.0
    %1303 = vmatpush1.xpose.msra.mxu0 0.0
    %1304 = vmatprep.subr.mxu0 0.0
    %1305 = vmatpush1.xpose.msra.mxu0 0.0
    %1306 = vmatprep.subr.mxu0 0.0
    %1307 = vmatpush1.xpose.msra.mxu0 0.0
    %1308 = vmatprep.subr.mxu0 0.0
    %1309 = vmatpush1.xpose.msra.mxu0 0.0
    %1310 = vmatprep.mubr.f32.mxu0 0.0
    %1311 = vmatmul.mubr.f32.gmra.mrb[0].mxu0 %v1241
    %v1312 = vpop.f32.mrb[0].mxu0
    %v1313 = vadd.f32 0.0, %v1312
    %v1314 = vpop.f32.mrb[0].mxu0
    %1315 = vdwg.mxu0
    %v1317 = vsel %vm1087, %v911, 0
    %v1320 = vsel %vm1087, %v995, 0
    %1322 = vmatprep.subr.mxu0 0.0
    %1323 = vmatpush1.xpose.msra.mxu0 %v1320
    %1324 = vmatprep.subr.mxu0 0.0
    %1325 = vmatpush1.xpose.msra.mxu0 0.0
    %1326 = vmatprep.subr.mxu0 0.0
    %1327 = vmatpush1.xpose.msra.mxu0 0.0
    %1328 = vmatprep.subr.mxu0 0.0
    %1329 = vmatpush1.xpose.msra.mxu0 0.0
    %1330 = vmatprep.subr.mxu0 0.0
    %1331 = vmatpush1.xpose.msra.mxu0 0.0
    %1332 = vmatprep.subr.mxu0 0.0
    %1333 = vmatpush1.xpose.msra.mxu0 0.0
    %1334 = vmatprep.subr.mxu0 0.0
    %1335 = vmatpush1.xpose.msra.mxu0 0.0
    %1336 = vmatprep.subr.mxu0 0.0
    %1337 = vmatpush1.xpose.msra.mxu0 0.0
    %1338 = vmatprep.subr.mxu0 0.0
    %1339 = vmatpush1.xpose.msra.mxu0 0.0
    %1340 = vmatprep.subr.mxu0 0.0
    %1341 = vmatpush1.xpose.msra.mxu0 0.0
    %1342 = vmatprep.subr.mxu0 0.0
    %1343 = vmatpush1.xpose.msra.mxu0 0.0
    %1344 = vmatprep.subr.mxu0 0.0
    %1345 = vmatpush1.xpose.msra.mxu0 0.0
    %1346 = vmatprep.subr.mxu0 0.0
    %1347 = vmatpush1.xpose.msra.mxu0 0.0
    %1348 = vmatprep.subr.mxu0 0.0
    %1349 = vmatpush1.xpose.msra.mxu0 0.0
    %1350 = vmatprep.subr.mxu0 0.0
    %1351 = vmatpush1.xpose.msra.mxu0 0.0
    %1352 = vmatprep.subr.mxu0 0.0
    %1353 = vmatpush1.xpose.msra.mxu0 0.0
    %1354 = vmatprep.subr.mxu0 0.0
    %1355 = vmatpush1.xpose.msra.mxu0 0.0
    %1356 = vmatprep.subr.mxu0 0.0
    %1357 = vmatpush1.xpose.msra.mxu0 0.0
    %1358 = vmatprep.subr.mxu0 0.0
    %1359 = vmatpush1.xpose.msra.mxu0 0.0
    %1360 = vmatprep.subr.mxu0 0.0
    %1361 = vmatpush1.xpose.msra.mxu0 0.0
    %1362 = vmatprep.subr.mxu0 0.0
    %1363 = vmatpush1.xpose.msra.mxu0 0.0
    %1364 = vmatprep.subr.mxu0 0.0
    %1365 = vmatpush1.xpose.msra.mxu0 0.0
    %1366 = vmatprep.subr.mxu0 0.0
    %1367 = vmatpush1.xpose.msra.mxu0 0.0
    %1368 = vmatprep.subr.mxu0 0.0
    %1369 = vmatpush1.xpose.msra.mxu0 0.0
    %1370 = vmatprep.subr.mxu0 0.0
    %1371 = vmatpush1.xpose.msra.mxu0 0.0
    %1372 = vmatprep.subr.mxu0 0.0
    %1373 = vmatpush1.xpose.msra.mxu0 0.0
    %1374 = vmatprep.subr.mxu0 0.0
    %1375 = vmatpush1.xpose.msra.mxu0 0.0
    %1376 = vmatprep.subr.mxu0 0.0
    %1377 = vmatpush1.xpose.msra.mxu0 0.0
    %1378 = vmatprep.subr.mxu0 0.0
    %1379 = vmatpush1.xpose.msra.mxu0 0.0
    %1380 = vmatprep.subr.mxu0 0.0
    %1381 = vmatpush1.xpose.msra.mxu0 0.0
    %1382 = vmatprep.subr.mxu0 0.0
    %1383 = vmatpush1.xpose.msra.mxu0 0.0
    %1384 = vmatprep.subr.mxu0 0.0
    %1385 = vmatpush1.xpose.msra.mxu0 0.0
    %1386 = vmatprep.mubr.f32.mxu0 0.0
    %1387 = vmatmul.mubr.f32.gmra.mrb[0].mxu0 %v1317
    %v1388 = vpop.f32.mrb[0].mxu0
    %v1389 = vadd.f32 0.0, %v1388
    %v1390 = vpop.f32.mrb[0].mxu0
    %1391 = vdwg.mxu0
    %v1393 = vsel %vm1087, %v160, 0
    %v1396 = vsel %vm1087, %v244, 0
    %1398 = vmatprep.subr.mxu0 0.0
    %1399 = vmatpush1.xpose.msra.mxu0 %v1396
    %1400 = vmatprep.subr.mxu0 0.0
    %1401 = vmatpush1.xpose.msra.mxu0 0.0
    %1402 = vmatprep.subr.mxu0 0.0
    %1403 = vmatpush1.xpose.msra.mxu0 0.0
    %1404 = vmatprep.subr.mxu0 0.0
    %1405 = vmatpush1.xpose.msra.mxu0 0.0
    %1406 = vmatprep.subr.mxu0 0.0
    %1407 = vmatpush1.xpose.msra.mxu0 0.0
    %1408 = vmatprep.subr.mxu0 0.0
    %1409 = vmatpush1.xpose.msra.mxu0 0.0
    %1410 = vmatprep.subr.mxu0 0.0
    %1411 = vmatpush1.xpose.msra.mxu0 0.0
    %1412 = vmatprep.subr.mxu0 0.0
    %1413 = vmatpush1.xpose.msra.mxu0 0.0
    %1414 = vmatprep.subr.mxu0 0.0
    %1415 = vmatpush1.xpose.msra.mxu0 0.0
    %1416 = vmatprep.subr.mxu0 0.0
    %1417 = vmatpush1.xpose.msra.mxu0 0.0
    %1418 = vmatprep.subr.mxu0 0.0
    %1419 = vmatpush1.xpose.msra.mxu0 0.0
    %1420 = vmatprep.subr.mxu0 0.0
    %1421 = vmatpush1.xpose.msra.mxu0 0.0
    %1422 = vmatprep.subr.mxu0 0.0
    %1423 = vmatpush1.xpose.msra.mxu0 0.0
    %1424 = vmatprep.subr.mxu0 0.0
    %1425 = vmatpush1.xpose.msra.mxu0 0.0
    %1426 = vmatprep.subr.mxu0 0.0
    %1427 = vmatpush1.xpose.msra.mxu0 0.0
    %1428 = vmatprep.subr.mxu0 0.0
    %1429 = vmatpush1.xpose.msra.mxu0 0.0
    %1430 = vmatprep.subr.mxu0 0.0
    %1431 = vmatpush1.xpose.msra.mxu0 0.0
    %1432 = vmatprep.subr.mxu0 0.0
    %1433 = vmatpush1.xpose.msra.mxu0 0.0
    %1434 = vmatprep.subr.mxu0 0.0
    %1435 = vmatpush1.xpose.msra.mxu0 0.0
    %1436 = vmatprep.subr.mxu0 0.0
    %1437 = vmatpush1.xpose.msra.mxu0 0.0
    %1438 = vmatprep.subr.mxu0 0.0
    %1439 = vmatpush1.xpose.msra.mxu0 0.0
    %1440 = vmatprep.subr.mxu0 0.0
    %1441 = vmatpush1.xpose.msra.mxu0 0.0
    %1442 = vmatprep.subr.mxu0 0.0
    %1443 = vmatpush1.xpose.msra.mxu0 0.0
    %1444 = vmatprep.subr.mxu0 0.0
    %1445 = vmatpush1.xpose.msra.mxu0 0.0
    %1446 = vmatprep.subr.mxu0 0.0
    %1447 = vmatpush1.xpose.msra.mxu0 0.0
    %1448 = vmatprep.subr.mxu0 0.0
    %1449 = vmatpush1.xpose.msra.mxu0 0.0
    %1450 = vmatprep.subr.mxu0 0.0
    %1451 = vmatpush1.xpose.msra.mxu0 0.0
    %1452 = vmatprep.subr.mxu0 0.0
    %1453 = vmatpush1.xpose.msra.mxu0 0.0
    %1454 = vmatprep.subr.mxu0 0.0
    %1455 = vmatpush1.xpose.msra.mxu0 0.0
    %1456 = vmatprep.subr.mxu0 0.0
    %1457 = vmatpush1.xpose.msra.mxu0 0.0
    %1458 = vmatprep.subr.mxu0 0.0
    %1459 = vmatpush1.xpose.msra.mxu0 0.0
    %1460 = vmatprep.subr.mxu0 0.0
    %1461 = vmatpush1.xpose.msra.mxu0 0.0
    %1462 = vmatprep.mubr.f32.mxu0 0.0
    %1463 = vmatmul.mubr.f32.gmra.mrb[0].mxu0 %v1393
    %v1464 = vpop.f32.mrb[0].mxu0
    %v1465 = vadd.f32 0.0, %v1464
    %v1466 = vpop.f32.mrb[0].mxu0
    %1467 = vdwg.mxu0
    %v1469 = vsel %vm1087, %v412, 0
    %v1472 = vsel %vm1087, %v496, 0
    %1474 = vmatprep.subr.mxu0 0.0
    %1475 = vmatpush1.xpose.msra.mxu0 %v1472
    %1476 = vmatprep.subr.mxu0 0.0
    %1477 = vmatpush1.xpose.msra.mxu0 0.0
    %1478 = vmatprep.subr.mxu0 0.0
    %1479 = vmatpush1.xpose.msra.mxu0 0.0
    %1480 = vmatprep.subr.mxu0 0.0
    %1481 = vmatpush1.xpose.msra.mxu0 0.0
    %1482 = vmatprep.subr.mxu0 0.0
    %1483 = vmatpush1.xpose.msra.mxu0 0.0
    %1484 = vmatprep.subr.mxu0 0.0
    %1485 = vmatpush1.xpose.msra.mxu0 0.0
    %1486 = vmatprep.subr.mxu0 0.0
    %1487 = vmatpush1.xpose.msra.mxu0 0.0
    %1488 = vmatprep.subr.mxu0 0.0
    %1489 = vmatpush1.xpose.msra.mxu0 0.0
    %1490 = vmatprep.subr.mxu0 0.0
    %1491 = vmatpush1.xpose.msra.mxu0 0.0
    %1492 = vmatprep.subr.mxu0 0.0
    %1493 = vmatpush1.xpose.msra.mxu0 0.0
    %1494 = vmatprep.subr.mxu0 0.0
    %1495 = vmatpush1.xpose.msra.mxu0 0.0
    %1496 = vmatprep.subr.mxu0 0.0
    %1497 = vmatpush1.xpose.msra.mxu0 0.0
    %1498 = vmatprep.subr.mxu0 0.0
    %1499 = vmatpush1.xpose.msra.mxu0 0.0
    %1500 = vmatprep.subr.mxu0 0.0
    %1501 = vmatpush1.xpose.msra.mxu0 0.0
    %1502 = vmatprep.subr.mxu0 0.0
    %1503 = vmatpush1.xpose.msra.mxu0 0.0
    %1504 = vmatprep.subr.mxu0 0.0
    %1505 = vmatpush1.xpose.msra.mxu0 0.0
    %1506 = vmatprep.subr.mxu0 0.0
    %1507 = vmatpush1.xpose.msra.mxu0 0.0
    %1508 = vmatprep.subr.mxu0 0.0
    %1509 = vmatpush1.xpose.msra.mxu0 0.0
    %1510 = vmatprep.subr.mxu0 0.0
    %1511 = vmatpush1.xpose.msra.mxu0 0.0
    %1512 = vmatprep.subr.mxu0 0.0
    %1513 = vmatpush1.xpose.msra.mxu0 0.0
    %1514 = vmatprep.subr.mxu0 0.0
    %1515 = vmatpush1.xpose.msra.mxu0 0.0
    %1516 = vmatprep.subr.mxu0 0.0
    %1517 = vmatpush1.xpose.msra.mxu0 0.0
    %1518 = vmatprep.subr.mxu0 0.0
    %1519 = vmatpush1.xpose.msra.mxu0 0.0
    %1520 = vmatprep.subr.mxu0 0.0
    %1521 = vmatpush1.xpose.msra.mxu0 0.0
    %1522 = vmatprep.subr.mxu0 0.0
    %1523 = vmatpush1.xpose.msra.mxu0 0.0
    %1524 = vmatprep.subr.mxu0 0.0
    %1525 = vmatpush1.xpose.msra.mxu0 0.0
    %1526 = vmatprep.subr.mxu0 0.0
    %1527 = vmatpush1.xpose.msra.mxu0 0.0
    %1528 = vmatprep.subr.mxu0 0.0
    %1529 = vmatpush1.xpose.msra.mxu0 0.0
    %1530 = vmatprep.subr.mxu0 0.0
    %1531 = vmatpush1.xpose.msra.mxu0 0.0
    %1532 = vmatprep.subr.mxu0 0.0
    %1533 = vmatpush1.xpose.msra.mxu0 0.0
    %1534 = vmatprep.subr.mxu0 0.0
    %1535 = vmatpush1.xpose.msra.mxu0 0.0
    %1536 = vmatprep.subr.mxu0 0.0
    %1537 = vmatpush1.xpose.msra.mxu0 0.0
    %1538 = vmatprep.mubr.f32.mxu0 0.0
    %1539 = vmatmul.mubr.f32.gmra.mrb[0].mxu0 %v1469
    %v1540 = vpop.f32.mrb[0].mxu0
    %v1541 = vadd.f32 0.0, %v1540
    %v1542 = vpop.f32.mrb[0].mxu0
    %1543 = vdwg.mxu0
    %v1545 = vsel %vm1087, %v664, 0
    %v1548 = vsel %vm1087, %v748, 0
    %1550 = vmatprep.subr.mxu0 0.0
    %1551 = vmatpush1.xpose.msra.mxu0 %v1548
    %1552 = vmatprep.subr.mxu0 0.0
    %1553 = vmatpush1.xpose.msra.mxu0 0.0
    %1554 = vmatprep.subr.mxu0 0.0
    %1555 = vmatpush1.xpose.msra.mxu0 0.0
    %1556 = vmatprep.subr.mxu0 0.0
    %1557 = vmatpush1.xpose.msra.mxu0 0.0
    %1558 = vmatprep.subr.mxu0 0.0
    %1559 = vmatpush1.xpose.msra.mxu0 0.0
    %1560 = vmatprep.subr.mxu0 0.0
    %1561 = vmatpush1.xpose.msra.mxu0 0.0
    %1562 = vmatprep.subr.mxu0 0.0
    %1563 = vmatpush1.xpose.msra.mxu0 0.0
    %1564 = vmatprep.subr.mxu0 0.0
    %1565 = vmatpush1.xpose.msra.mxu0 0.0
    %1566 = vmatprep.subr.mxu0 0.0
    %1567 = vmatpush1.xpose.msra.mxu0 0.0
    %1568 = vmatprep.subr.mxu0 0.0
    %1569 = vmatpush1.xpose.msra.mxu0 0.0
    %1570 = vmatprep.subr.mxu0 0.0
    %1571 = vmatpush1.xpose.msra.mxu0 0.0
    %1572 = vmatprep.subr.mxu0 0.0
    %1573 = vmatpush1.xpose.msra.mxu0 0.0
    %1574 = vmatprep.subr.mxu0 0.0
    %1575 = vmatpush1.xpose.msra.mxu0 0.0
    %1576 = vmatprep.subr.mxu0 0.0
    %1577 = vmatpush1.xpose.msra.mxu0 0.0
    %1578 = vmatprep.subr.mxu0 0.0
    %1579 = vmatpush1.xpose.msra.mxu0 0.0
    %1580 = vmatprep.subr.mxu0 0.0
    %1581 = vmatpush1.xpose.msra.mxu0 0.0
    %1582 = vmatprep.subr.mxu0 0.0
    %1583 = vmatpush1.xpose.msra.mxu0 0.0
    %1584 = vmatprep.subr.mxu0 0.0
    %1585 = vmatpush1.xpose.msra.mxu0 0.0
    %1586 = vmatprep.subr.mxu0 0.0
    %1587 = vmatpush1.xpose.msra.mxu0 0.0
    %1588 = vmatprep.subr.mxu0 0.0
    %1589 = vmatpush1.xpose.msra.mxu0 0.0
    %1590 = vmatprep.subr.mxu0 0.0
    %1591 = vmatpush1.xpose.msra.mxu0 0.0
    %1592 = vmatprep.subr.mxu0 0.0
    %1593 = vmatpush1.xpose.msra.mxu0 0.0
    %1594 = vmatprep.subr.mxu0 0.0
    %1595 = vmatpush1.xpose.msra.mxu0 0.0
    %1596 = vmatprep.subr.mxu0 0.0
    %1597 = vmatpush1.xpose.msra.mxu0 0.0
    %1598 = vmatprep.subr.mxu0 0.0
    %1599 = vmatpush1.xpose.msra.mxu0 0.0
    %1600 = vmatprep.subr.mxu0 0.0
    %1601 = vmatpush1.xpose.msra.mxu0 0.0
    %1602 = vmatprep.subr.mxu0 0.0
    %1603 = vmatpush1.xpose.msra.mxu0 0.0
    %1604 = vmatprep.subr.mxu0 0.0
    %1605 = vmatpush1.xpose.msra.mxu0 0.0
    %1606 = vmatprep.subr.mxu0 0.0
    %1607 = vmatpush1.xpose.msra.mxu0 0.0
    %1608 = vmatprep.subr.mxu0 0.0
    %1609 = vmatpush1.xpose.msra.mxu0 0.0
    %1610 = vmatprep.subr.mxu0 0.0
    %1611 = vmatpush1.xpose.msra.mxu0 0.0
    %1612 = vmatprep.subr.mxu0 0.0
    %1613 = vmatpush1.xpose.msra.mxu0 0.0
    %1614 = vmatprep.mubr.f32.mxu0 0.0
    %1615 = vmatmul.mubr.f32.gmra.mrb[0].mxu0 %v1545
    %v1616 = vpop.f32.mrb[0].mxu0
    %v1617 = vadd.f32 0.0, %v1616
    %v1618 = vpop.f32.mrb[0].mxu0
    %1619 = vdwg.mxu0
    %v1621 = vsel %vm1087, %v916, 0
    %v1624 = vsel %vm1087, %v1000, 0
    %1626 = vmatprep.subr.mxu0 0.0
    %1627 = vmatpush1.xpose.msra.mxu0 %v1624
    %1628 = vmatprep.subr.mxu0 0.0
    %1629 = vmatpush1.xpose.msra.mxu0 0.0
    %1630 = vmatprep.subr.mxu0 0.0
    %1631 = vmatpush1.xpose.msra.mxu0 0.0
    %1632 = vmatprep.subr.mxu0 0.0
    %1633 = vmatpush1.xpose.msra.mxu0 0.0
    %1634 = vmatprep.subr.mxu0 0.0
    %1635 = vmatpush1.xpose.msra.mxu0 0.0
    %1636 = vmatprep.subr.mxu0 0.0
    %1637 = vmatpush1.xpose.msra.mxu0 0.0
    %1638 = vmatprep.subr.mxu0 0.0
    %1639 = vmatpush1.xpose.msra.mxu0 0.0
    %1640 = vmatprep.subr.mxu0 0.0
    %1641 = vmatpush1.xpose.msra.mxu0 0.0
    %1642 = vmatprep.subr.mxu0 0.0
    %1643 = vmatpush1.xpose.msra.mxu0 0.0
    %1644 = vmatprep.subr.mxu0 0.0
    %1645 = vmatpush1.xpose.msra.mxu0 0.0
    %1646 = vmatprep.subr.mxu0 0.0
    %1647 = vmatpush1.xpose.msra.mxu0 0.0
    %1648 = vmatprep.subr.mxu0 0.0
    %1649 = vmatpush1.xpose.msra.mxu0 0.0
    %1650 = vmatprep.subr.mxu0 0.0
    %1651 = vmatpush1.xpose.msra.mxu0 0.0
    %1652 = vmatprep.subr.mxu0 0.0
    %1653 = vmatpush1.xpose.msra.mxu0 0.0
    %1654 = vmatprep.subr.mxu0 0.0
    %1655 = vmatpush1.xpose.msra.mxu0 0.0
    %1656 = vmatprep.subr.mxu0 0.0
    %1657 = vmatpush1.xpose.msra.mxu0 0.0
    %1658 = vmatprep.subr.mxu0 0.0
    %1659 = vmatpush1.xpose.msra.mxu0 0.0
    %1660 = vmatprep.subr.mxu0 0.0
    %1661 = vmatpush1.xpose.msra.mxu0 0.0
    %1662 = vmatprep.subr.mxu0 0.0
    %1663 = vmatpush1.xpose.msra.mxu0 0.0
    %1664 = vmatprep.subr.mxu0 0.0
    %1665 = vmatpush1.xpose.msra.mxu0 0.0
    %1666 = vmatprep.subr.mxu0 0.0
    %1667 = vmatpush1.xpose.msra.mxu0 0.0
    %1668 = vmatprep.subr.mxu0 0.0
    %1669 = vmatpush1.xpose.msra.mxu0 0.0
    %1670 = vmatprep.subr.mxu0 0.0
    %1671 = vmatpush1.xpose.msra.mxu0 0.0
    %1672 = vmatprep.subr.mxu0 0.0
    %1673 = vmatpush1.xpose.msra.mxu0 0.0
    %1674 = vmatprep.subr.mxu0 0.0
    %1675 = vmatpush1.xpose.msra.mxu0 0.0
    %1676 = vmatprep.subr.mxu0 0.0
    %1677 = vmatpush1.xpose.msra.mxu0 0.0
    %1678 = vmatprep.subr.mxu0 0.0
    %1679 = vmatpush1.xpose.msra.mxu0 0.0
    %1680 = vmatprep.subr.mxu0 0.0
    %1681 = vmatpush1.xpose.msra.mxu0 0.0
    %1682 = vmatprep.subr.mxu0 0.0
    %1683 = vmatpush1.xpose.msra.mxu0 0.0
    %1684 = vmatprep.subr.mxu0 0.0
    %1685 = vmatpush1.xpose.msra.mxu0 0.0
    %1686 = vmatprep.subr.mxu0 0.0
    %1687 = vmatpush1.xpose.msra.mxu0 0.0
    %1688 = vmatprep.subr.mxu0 0.0
    %1689 = vmatpush1.xpose.msra.mxu0 0.0
    %1690 = vmatprep.mubr.f32.mxu0 0.0
    %1691 = vmatmul.mubr.f32.gmra.mrb[0].mxu0 %v1621
    %v1692 = vpop.f32.mrb[0].mxu0
    %v1693 = vadd.f32 0.0, %v1692
    %v1694 = vpop.f32.mrb[0].mxu0
    %1695 = vdwg.mxu0
    %v1696 = vmul.f32 %v1161, 0.35355338
    %v1697 = vmul.f32 %v1237, 0.35355338
    %v1698 = vmul.f32 %v1313, 0.35355338
    %v1699 = vmul.f32 %v1389, 0.35355338
    %v1700 = vmul.f32 %v1465, 0.35355338
    %v1701 = vmul.f32 %v1541, 0.35355338
    %v1702 = vmul.f32 %v1617, 0.35355338
    %v1703 = vmul.f32 %v1693, 0.35355338
    %v1704 = vadd.f32 %v1696, %v68
    %v1705 = vadd.f32 %v1697, %v68
    %v1706 = vadd.f32 %v1698, %v68
    %v1707 = vadd.f32 %v1699, %v68
    %v1708 = vadd.f32 %v1700, %v72
    %v1709 = vadd.f32 %v1701, %v72
    %v1710 = vadd.f32 %v1702, %v72
    %v1711 = vadd.f32 %v1703, %v72
    %v1712 = vsel %vm1087, %v1704, -inf
    %1713 = vmax.xlane.f32.xlu0 %v1712
    %v1714 = vpop.xlane.xlu0 %1713
    %v1715 = vsel %vm1087, %v1705, -inf
    %1716 = vmax.xlane.f32.xlu0 %v1715
    %v1717 = vpop.xlane.xlu0 %1716
    %v1718 = vsel %vm1087, %v1706, -inf
    %1719 = vmax.xlane.f32.xlu0 %v1718
    %v1720 = vpop.xlane.xlu0 %1719
    %v1721 = vsel %vm1087, %v1707, -inf
    %1722 = vmax.xlane.f32.xlu0 %v1721
    %v1723 = vpop.xlane.xlu0 %1722
    %v1724 = vsel %vm1087, %v1708, -inf
    %1725 = vmax.xlane.f32.xlu0 %v1724
    %v1726 = vpop.xlane.xlu0 %1725
    %v1727 = vsel %vm1087, %v1709, -inf
    %1728 = vmax.xlane.f32.xlu0 %v1727
    %v1729 = vpop.xlane.xlu0 %1728
    %v1730 = vsel %vm1087, %v1710, -inf
    %1731 = vmax.xlane.f32.xlu0 %v1730
    %v1732 = vpop.xlane.xlu0 %1731
    %v1733 = vsel %vm1087, %v1711, -inf
    %1734 = vmax.xlane.f32.xlu0 %v1733
    %v1735 = vpop.xlane.xlu0 %1734
    %v1736 = vsub.f32 %v1704, %v1714
    %v1737 = vsub.f32 %v1705, %v1717
    %v1738 = vsub.f32 %v1706, %v1720
    %v1739 = vsub.f32 %v1707, %v1723
    %v1740 = vsub.f32 %v1708, %v1726
    %v1741 = vsub.f32 %v1709, %v1729
    %v1742 = vsub.f32 %v1710, %v1732
    %v1743 = vsub.f32 %v1711, %v1735
    %v1744 = vmul.f32 %v1736, 1.442695
    %v1745 = vpow.pop %v1744
    %v1746 = vmul.f32 %v1737, 1.442695
    %v1747 = vpow.pop %v1746
    %v1748 = vmul.f32 %v1738, 1.442695
    %v1749 = vpow.pop %v1748
    %v1750 = vmul.f32 %v1739, 1.442695
    %v1751 = vpow.pop %v1750
    %v1752 = vmul.f32 %v1740, 1.442695
    %v1753 = vpow.pop %v1752
    %v1754 = vmul.f32 %v1741, 1.442695
    %v1755 = vpow.pop %v1754
    %v1756 = vmul.f32 %v1742, 1.442695
    %v1757 = vpow.pop %v1756
    %v1758 = vmul.f32 %v1743, 1.442695
    %v1759 = vpow.pop %v1758
    %v1760 = vsel %vm1087, %v1745, 0.0
    %1761 = vadd.xlane.f32.xlu0 %v1760
    %v1762 = vpop.xlane.xlu0 %1761
    %v1763 = vsel %vm1087, %v1747, 0.0
    %1764 = vadd.xlane.f32.xlu0 %v1763
    %v1765 = vpop.xlane.xlu0 %1764
    %v1766 = vsel %vm1087, %v1749, 0.0
    %1767 = vadd.xlane.f32.xlu0 %v1766
    %v1768 = vpop.xlane.xlu0 %1767
    %v1769 = vsel %vm1087, %v1751, 0.0
    %1770 = vadd.xlane.f32.xlu0 %v1769
    %v1771 = vpop.xlane.xlu0 %1770
    %v1772 = vsel %vm1087, %v1753, 0.0
    %1773 = vadd.xlane.f32.xlu0 %v1772
    %v1774 = vpop.xlane.xlu0 %1773
    %v1775 = vsel %vm1087, %v1755, 0.0
    %1776 = vadd.xlane.f32.xlu0 %v1775
    %v1777 = vpop.xlane.xlu0 %1776
    %v1778 = vsel %vm1087, %v1757, 0.0
    %1779 = vadd.xlane.f32.xlu0 %v1778
    %v1780 = vpop.xlane.xlu0 %1779
    %v1781 = vsel %vm1087, %v1759, 0.0
    %1782 = vadd.xlane.f32.xlu0 %v1781
    %v1783 = vpop.xlane.xlu0 %1782
    %v1784 = vrcp.pop %v1762
    %v1785 = vmul.f32 %v1745, %v1784
    %v1786 = vrcp.pop %v1765
    %v1787 = vmul.f32 %v1747, %v1786
    %v1788 = vrcp.pop %v1768
    %v1789 = vmul.f32 %v1749, %v1788
    %v1790 = vrcp.pop %v1771
    %v1791 = vmul.f32 %v1751, %v1790
    %v1792 = vrcp.pop %v1774
    %v1793 = vmul.f32 %v1753, %v1792
    %v1794 = vrcp.pop %v1777
    %v1795 = vmul.f32 %v1755, %v1794
    %v1796 = vrcp.pop %v1780
    %v1797 = vmul.f32 %v1757, %v1796
    %v1798 = vrcp.pop %v1783
    %v1799 = vmul.f32 %v1759, %v1798
    %v1800 = vld [vmem:[%s2 + $0x60] sm:$0xff]
    %v1801 = vld [vmem:[%s2 + $0x68] sm:$0xff]
    %v1802 = vld [vmem:[%s2 + $0x70] sm:$0xff]
    %v1803 = vld [vmem:[%s2 + $0x78] sm:$0xff]
    %v1805 = vsel %vm1087, %v1785, 0
    %1807 = vmatprep.subr.mxu0 0.0
    %1808 = vmatpush1.msra.mxu0 %v323
    %1809 = vmatprep.subr.mxu0 0.0
    %1810 = vmatpush1.msra.mxu0 0.0
    %1811 = vmatprep.subr.mxu0 0.0
    %1812 = vmatpush1.msra.mxu0 0.0
    %1813 = vmatprep.subr.mxu0 0.0
    %1814 = vmatpush1.msra.mxu0 0.0
    %1815 = vmatprep.subr.mxu0 0.0
    %1816 = vmatpush1.msra.mxu0 0.0
    %1817 = vmatprep.subr.mxu0 0.0
    %1818 = vmatpush1.msra.mxu0 0.0
    %1819 = vmatprep.subr.mxu0 0.0
    %1820 = vmatpush1.msra.mxu0 0.0
    %1821 = vmatprep.subr.mxu0 0.0
    %1822 = vmatpush1.msra.mxu0 0.0
    %1823 = vmatprep.subr.mxu0 0.0
    %1824 = vmatpush1.msra.mxu0 0.0
    %1825 = vmatprep.subr.mxu0 0.0
    %1826 = vmatpush1.msra.mxu0 0.0
    %1827 = vmatprep.subr.mxu0 0.0
    %1828 = vmatpush1.msra.mxu0 0.0
    %1829 = vmatprep.subr.mxu0 0.0
    %1830 = vmatpush1.msra.mxu0 0.0
    %1831 = vmatprep.subr.mxu0 0.0
    %1832 = vmatpush1.msra.mxu0 0.0
    %1833 = vmatprep.subr.mxu0 0.0
    %1834 = vmatpush1.msra.mxu0 0.0
    %1835 = vmatprep.subr.mxu0 0.0
    %1836 = vmatpush1.msra.mxu0 0.0
    %1837 = vmatprep.subr.mxu0 0.0
    %1838 = vmatpush1.msra.mxu0 0.0
    %1839 = vmatprep.subr.mxu0 0.0
    %1840 = vmatpush1.msra.mxu0 0.0
    %1841 = vmatprep.subr.mxu0 0.0
    %1842 = vmatpush1.msra.mxu0 0.0
    %1843 = vmatprep.subr.mxu0 0.0
    %1844 = vmatpush1.msra.mxu0 0.0
    %1845 = vmatprep.subr.mxu0 0.0
    %1846 = vmatpush1.msra.mxu0 0.0
    %1847 = vmatprep.subr.mxu0 0.0
    %1848 = vmatpush1.msra.mxu0 0.0
    %1849 = vmatprep.subr.mxu0 0.0
    %1850 = vmatpush1.msra.mxu0 0.0
    %1851 = vmatprep.subr.mxu0 0.0
    %1852 = vmatpush1.msra.mxu0 0.0
    %1853 = vmatprep.subr.mxu0 0.0
    %1854 = vmatpush1.msra.mxu0 0.0
    %1855 = vmatprep.subr.mxu0 0.0
    %1856 = vmatpush1.msra.mxu0 0.0
    %1857 = vmatprep.subr.mxu0 0.0
    %1858 = vmatpush1.msra.mxu0 0.0
    %1859 = vmatprep.subr.mxu0 0.0
    %1860 = vmatpush1.msra.mxu0 0.0
    %1861 = vmatprep.subr.mxu0 0.0
    %1862 = vmatpush1.msra.mxu0 0.0
    %1863 = vmatprep.subr.mxu0 0.0
    %1864 = vmatpush1.msra.mxu0 0.0
    %1865 = vmatprep.subr.mxu0 0.0
    %1866 = vmatpush1.msra.mxu0 0.0
    %1867 = vmatprep.subr.mxu0 0.0
    %1868 = vmatpush1.msra.mxu0 0.0
    %1869 = vmatprep.subr.mxu0 0.0
    %1870 = vmatpush1.msra.mxu0 0.0
    %1871 = vmatprep.mubr.f32.mxu0 0.0
    %1872 = vmatmul.mubr.f32.gmra.mrb[0].mxu0 %v1805
    %v1873 = vpop.f32.mrb[0].mxu0
    %v1874 = vadd.f32 0.0, %v1873
    %v1875 = vpop.f32.mrb[0].mxu0
    %1876 = vdwg.mxu0
    %v1878 = vsel %vm1087, %v1787, 0
    %1880 = vmatprep.subr.mxu0 0.0
    %1881 = vmatpush1.msra.mxu0 %v575
    %1882 = vmatprep.subr.mxu0 0.0
    %1883 = vmatpush1.msra.mxu0 0.0
    %1884 = vmatprep.subr.mxu0 0.0
    %1885 = vmatpush1.msra.mxu0 0.0
    %1886 = vmatprep.subr.mxu0 0.0
    %1887 = vmatpush1.msra.mxu0 0.0
    %1888 = vmatprep.subr.mxu0 0.0
    %1889 = vmatpush1.msra.mxu0 0.0
    %1890 = vmatprep.subr.mxu0 0.0
    %1891 = vmatpush1.msra.mxu0 0.0
    %1892 = vmatprep.subr.mxu0 0.0
    %1893 = vmatpush1.msra.mxu0 0.0
    %1894 = vmatprep.subr.mxu0 0.0
    %1895 = vmatpush1.msra.mxu0 0.0
    %1896 = vmatprep.subr.mxu0 0.0
    %1897 = vmatpush1.msra.mxu0 0.0
    %1898 = vmatprep.subr.mxu0 0.0
    %1899 = vmatpush1.msra.mxu0 0.0
    %1900 = vmatprep.subr.mxu0 0.0
    %1901 = vmatpush1.msra.mxu0 0.0
    %1902 = vmatprep.subr.mxu0 0.0
    %1903 = vmatpush1.msra.mxu0 0.0
    %1904 = vmatprep.subr.mxu0 0.0
    %1905 = vmatpush1.msra.mxu0 0.0
    %1906 = vmatprep.subr.mxu0 0.0
    %1907 = vmatpush1.msra.mxu0 0.0
    %1908 = vmatprep.subr.mxu0 0.0
    %1909 = vmatpush1.msra.mxu0 0.0
    %1910 = vmatprep.subr.mxu0 0.0
    %1911 = vmatpush1.msra.mxu0 0.0
    %1912 = vmatprep.subr.mxu0 0.0
    %1913 = vmatpush1.msra.mxu0 0.0
    %1914 = vmatprep.subr.mxu0 0.0
    %1915 = vmatpush1.msra.mxu0 0.0
    %1916 = vmatprep.subr.mxu0 0.0
    %1917 = vmatpush1.msra.mxu0 0.0
    %1918 = vmatprep.subr.mxu0 0.0
    %1919 = vmatpush1.msra.mxu0 0.0
    %1920 = vmatprep.subr.mxu0 0.0
    %1921 = vmatpush1.msra.mxu0 0.0
    %1922 = vmatprep.subr.mxu0 0.0
    %1923 = vmatpush1.msra.mxu0 0.0
    %1924 = vmatprep.subr.mxu0 0.0
    %1925 = vmatpush1.msra.mxu0 0.0
    %1926 = vmatprep.subr.mxu0 0.0
    %1927 = vmatpush1.msra.mxu0 0.0
    %1928 = vmatprep.subr.mxu0 0.0
    %1929 = vmatpush1.msra.mxu0 0.0
    %1930 = vmatprep.subr.mxu0 0.0
    %1931 = vmatpush1.msra.mxu0 0.0
    %1932 = vmatprep.subr.mxu0 0.0
    %1933 = vmatpush1.msra.mxu0 0.0
    %1934 = vmatprep.subr.mxu0 0.0
    %1935 = vmatpush1.msra.mxu0 0.0
    %1936 = vmatprep.subr.mxu0 0.0
    %1937 = vmatpush1.msra.mxu0 0.0
    %1938 = vmatprep.subr.mxu0 0.0
    %1939 = vmatpush1.msra.mxu0 0.0
    %1940 = vmatprep.subr.mxu0 0.0
    %1941 = vmatpush1.msra.mxu0 0.0
    %1942 = vmatprep.subr.mxu0 0.0
    %1943 = vmatpush1.msra.mxu0 0.0
    %1944 = vmatprep.mubr.f32.mxu0 0.0
    %1945 = vmatmul.mubr.f32.gmra.mrb[0].mxu0 %v1878
    %v1946 = vpop.f32.mrb[0].mxu0
    %v1947 = vadd.f32 0.0, %v1946
    %v1948 = vpop.f32.mrb[0].mxu0
    %1949 = vdwg.mxu0
    %v1951 = vsel %vm1087, %v1947, 0
    %1953 = vmatprep.subr.mxu0 0.0
    %1954 = vmatpush1.msra.mxu0 %v1801
    %1955 = vmatprep.subr.mxu0 0.0
    %1956 = vmatpush1.msra.mxu0 0.0
    %1957 = vmatprep.subr.mxu0 0.0
    %1958 = vmatpush1.msra.mxu0 0.0
    %1959 = vmatprep.subr.mxu0 0.0
    %1960 = vmatpush1.msra.mxu0 0.0
    %1961 = vmatprep.subr.mxu0 0.0
    %1962 = vmatpush1.msra.mxu0 0.0
    %1963 = vmatprep.subr.mxu0 0.0
    %1964 = vmatpush1.msra.mxu0 0.0
    %1965 = vmatprep.subr.mxu0 0.0
    %1966 = vmatpush1.msra.mxu0 0.0
    %1967 = vmatprep.subr.mxu0 0.0
    %1968 = vmatpush1.msra.mxu0 0.0
    %1969 = vmatprep.subr.mxu0 0.0
    %1970 = vmatpush1.msra.mxu0 0.0
    %1971 = vmatprep.subr.mxu0 0.0
    %1972 = vmatpush1.msra.mxu0 0.0
    %1973 = vmatprep.subr.mxu0 0.0
    %1974 = vmatpush1.msra.mxu0 0.0
    %1975 = vmatprep.subr.mxu0 0.0
    %1976 = vmatpush1.msra.mxu0 0.0
    %1977 = vmatprep.subr.mxu0 0.0
    %1978 = vmatpush1.msra.mxu0 0.0
    %1979 = vmatprep.subr.mxu0 0.0
    %1980 = vmatpush1.msra.mxu0 0.0
    %1981 = vmatprep.subr.mxu0 0.0
    %1982 = vmatpush1.msra.mxu0 0.0
    %1983 = vmatprep.subr.mxu0 0.0
    %1984 = vmatpush1.msra.mxu0 0.0
    %1985 = vmatprep.subr.mxu0 0.0
    %1986 = vmatpush1.msra.mxu0 0.0
    %1987 = vmatprep.subr.mxu0 0.0
    %1988 = vmatpush1.msra.mxu0 0.0
    %1989 = vmatprep.subr.mxu0 0.0
    %1990 = vmatpush1.msra.mxu0 0.0
    %1991 = vmatprep.subr.mxu0 0.0
    %1992 = vmatpush1.msra.mxu0 0.0
    %1993 = vmatprep.subr.mxu0 0.0
    %1994 = vmatpush1.msra.mxu0 0.0
    %1995 = vmatprep.subr.mxu0 0.0
    %1996 = vmatpush1.msra.mxu0 0.0
    %1997 = vmatprep.subr.mxu0 0.0
    %1998 = vmatpush1.msra.mxu0 0.0
    %1999 = vmatprep.subr.mxu0 0.0
    %2000 = vmatpush1.msra.mxu0 0.0
    %2001 = vmatprep.subr.mxu0 0.0
    %2002 = vmatpush1.msra.mxu0 0.0
    %2003 = vmatprep.subr.mxu0 0.0
    %2004 = vmatpush1.msra.mxu0 0.0
    %2005 = vmatprep.subr.mxu0 0.0
    %2006 = vmatpush1.msra.mxu0 0.0
    %2007 = vmatprep.subr.mxu0 0.0
    %2008 = vmatpush1.msra.mxu0 0.0
    %2009 = vmatprep.subr.mxu0 0.0
    %2010 = vmatpush1.msra.mxu0 0.0
    %2011 = vmatprep.subr.mxu0 0.0
    %2012 = vmatpush1.msra.mxu0 0.0
    %2013 = vmatprep.subr.mxu0 0.0
    %2014 = vmatpush1.msra.mxu0 0.0
    %2015 = vmatprep.subr.mxu0 0.0
    %2016 = vmatpush1.msra.mxu0 0.0
    %2017 = vmatprep.mubr.f32.mxu0 0.0
    %2018 = vmatmul.mubr.f32.gmra.mrb[0].mxu0 %v1951
    %v2019 = vpop.f32.mrb[0].mxu0
    %v2020 = vadd.f32 0.0, %v2019
    %v2021 = vpop.f32.mrb[0].mxu0
    %2022 = vdwg.mxu0
    %v2024 = vsel %vm1087, %v1874, 0
    %2026 = vmatprep.subr.mxu0 0.0
    %2027 = vmatpush1.msra.mxu0 %v1800
    %2028 = vmatprep.subr.mxu0 0.0
    %2029 = vmatpush1.msra.mxu0 0.0
    %2030 = vmatprep.subr.mxu0 0.0
    %2031 = vmatpush1.msra.mxu0 0.0
    %2032 = vmatprep.subr.mxu0 0.0
    %2033 = vmatpush1.msra.mxu0 0.0
    %2034 = vmatprep.subr.mxu0 0.0
    %2035 = vmatpush1.msra.mxu0 0.0
    %2036 = vmatprep.subr.mxu0 0.0
    %2037 = vmatpush1.msra.mxu0 0.0
    %2038 = vmatprep.subr.mxu0 0.0
    %2039 = vmatpush1.msra.mxu0 0.0
    %2040 = vmatprep.subr.mxu0 0.0
    %2041 = vmatpush1.msra.mxu0 0.0
    %2042 = vmatprep.subr.mxu0 0.0
    %2043 = vmatpush1.msra.mxu0 0.0
    %2044 = vmatprep.subr.mxu0 0.0
    %2045 = vmatpush1.msra.mxu0 0.0
    %2046 = vmatprep.subr.mxu0 0.0
    %2047 = vmatpush1.msra.mxu0 0.0
    %2048 = vmatprep.subr.mxu0 0.0
    %2049 = vmatpush1.msra.mxu0 0.0
    %2050 = vmatprep.subr.mxu0 0.0
    %2051 = vmatpush1.msra.mxu0 0.0
    %2052 = vmatprep.subr.mxu0 0.0
    %2053 = vmatpush1.msra.mxu0 0.0
    %2054 = vmatprep.subr.mxu0 0.0
    %2055 = vmatpush1.msra.mxu0 0.0
    %2056 = vmatprep.subr.mxu0 0.0
    %2057 = vmatpush1.msra.mxu0 0.0
    %2058 = vmatprep.subr.mxu0 0.0
    %2059 = vmatpush1.msra.mxu0 0.0
    %2060 = vmatprep.subr.mxu0 0.0
    %2061 = vmatpush1.msra.mxu0 0.0
    %2062 = vmatprep.subr.mxu0 0.0
    %2063 = vmatpush1.msra.mxu0 0.0
    %2064 = vmatprep.subr.mxu0 0.0
    %2065 = vmatpush1.msra.mxu0 0.0
    %2066 = vmatprep.subr.mxu0 0.0
    %2067 = vmatpush1.msra.mxu0 0.0
    %2068 = vmatprep.subr.mxu0 0.0
    %2069 = vmatpush1.msra.mxu0 0.0
    %2070 = vmatprep.subr.mxu0 0.0
    %2071 = vmatpush1.msra.mxu0 0.0
    %2072 = vmatprep.subr.mxu0 0.0
    %2073 = vmatpush1.msra.mxu0 0.0
    %2074 = vmatprep.subr.mxu0 0.0
    %2075 = vmatpush1.msra.mxu0 0.0
    %2076 = vmatprep.subr.mxu0 0.0
    %2077 = vmatpush1.msra.mxu0 0.0
    %2078 = vmatprep.subr.mxu0 0.0
    %2079 = vmatpush1.msra.mxu0 0.0
    %2080 = vmatprep.subr.mxu0 0.0
    %2081 = vmatpush1.msra.mxu0 0.0
    %2082 = vmatprep.subr.mxu0 0.0
    %2083 = vmatpush1.msra.mxu0 0.0
    %2084 = vmatprep.subr.mxu0 0.0
    %2085 = vmatpush1.msra.mxu0 0.0
    %2086 = vmatprep.subr.mxu0 0.0
    %2087 = vmatpush1.msra.mxu0 0.0
    %2088 = vmatprep.subr.mxu0 0.0
    %2089 = vmatpush1.msra.mxu0 0.0
    %2090 = vmatprep.mubr.f32.mxu0 0.0
    %2091 = vmatmul.mubr.f32.gmra.mrb[0].mxu0 %v2024
    %v2092 = vpop.f32.mrb[0].mxu0
    %v2093 = vadd.f32 %v2020, %v2092
    %v2094 = vpop.f32.mrb[0].mxu0
    %2095 = vdwg.mxu0
    %v2097 = vsel %vm1087, %v1789, 0
    %2099 = vmatprep.subr.mxu0 0.0
    %2100 = vmatpush1.msra.mxu0 %v827
    %2101 = vmatprep.subr.mxu0 0.0
    %2102 = vmatpush1.msra.mxu0 0.0
    %2103 = vmatprep.subr.mxu0 0.0
    %2104 = vmatpush1.msra.mxu0 0.0
    %2105 = vmatprep.subr.mxu0 0.0
    %2106 = vmatpush1.msra.mxu0 0.0
    %2107 = vmatprep.subr.mxu0 0.0
    %2108 = vmatpush1.msra.mxu0 0.0
    %2109 = vmatprep.subr.mxu0 0.0
    %2110 = vmatpush1.msra.mxu0 0.0
    %2111 = vmatprep.subr.mxu0 0.0
    %2112 = vmatpush1.msra.mxu0 0.0
    %2113 = vmatprep.subr.mxu0 0.0
    %2114 = vmatpush1.msra.mxu0 0.0
    %2115 = vmatprep.subr.mxu0 0.0
    %2116 = vmatpush1.msra.mxu0 0.0
    %2117 = vmatprep.subr.mxu0 0.0
    %2118 = vmatpush1.msra.mxu0 0.0
    %2119 = vmatprep.subr.mxu0 0.0
    %2120 = vmatpush1.msra.mxu0 0.0
    %2121 = vmatprep.subr.mxu0 0.0
    %2122 = vmatpush1.msra.mxu0 0.0
    %2123 = vmatprep.subr.mxu0 0.0
    %2124 = vmatpush1.msra.mxu0 0.0
    %2125 = vmatprep.subr.mxu0 0.0
    %2126 = vmatpush1.msra.mxu0 0.0
    %2127 = vmatprep.subr.mxu0 0.0
    %2128 = vmatpush1.msra.mxu0 0.0
    %2129 = vmatprep.subr.mxu0 0.0
    %2130 = vmatpush1.msra.mxu0 0.0
    %2131 = vmatprep.subr.mxu0 0.0
    %2132 = vmatpush1.msra.mxu0 0.0
    %2133 = vmatprep.subr.mxu0 0.0
    %2134 = vmatpush1.msra.mxu0 0.0
    %2135 = vmatprep.subr.mxu0 0.0
    %2136 = vmatpush1.msra.mxu0 0.0
    %2137 = vmatprep.subr.mxu0 0.0
    %2138 = vmatpush1.msra.mxu0 0.0
    %2139 = vmatprep.subr.mxu0 0.0
    %2140 = vmatpush1.msra.mxu0 0.0
    %2141 = vmatprep.subr.mxu0 0.0
    %2142 = vmatpush1.msra.mxu0 0.0
    %2143 = vmatprep.subr.mxu0 0.0
    %2144 = vmatpush1.msra.mxu0 0.0
    %2145 = vmatprep.subr.mxu0 0.0
    %2146 = vmatpush1.msra.mxu0 0.0
    %2147 = vmatprep.subr.mxu0 0.0
    %2148 = vmatpush1.msra.mxu0 0.0
    %2149 = vmatprep.subr.mxu0 0.0
    %2150 = vmatpush1.msra.mxu0 0.0
    %2151 = vmatprep.subr.mxu0 0.0
    %2152 = vmatpush1.msra.mxu0 0.0
    %2153 = vmatprep.subr.mxu0 0.0
    %2154 = vmatpush1.msra.mxu0 0.0
    %2155 = vmatprep.subr.mxu0 0.0
    %2156 = vmatpush1.msra.mxu0 0.0
    %2157 = vmatprep.subr.mxu0 0.0
    %2158 = vmatpush1.msra.mxu0 0.0
    %2159 = vmatprep.subr.mxu0 0.0
    %2160 = vmatpush1.msra.mxu0 0.0
    %2161 = vmatprep.subr.mxu0 0.0
    %2162 = vmatpush1.msra.mxu0 0.0
    %2163 = vmatprep.mubr.f32.mxu0 0.0
    %2164 = vmatmul.mubr.f32.gmra.mrb[0].mxu0 %v2097
    %v2165 = vpop.f32.mrb[0].mxu0
    %v2166 = vadd.f32 0.0, %v2165
    %v2167 = vpop.f32.mrb[0].mxu0
    %2168 = vdwg.mxu0
    %v2170 = vsel %vm1087, %v2166, 0
    %2172 = vmatprep.subr.mxu0 0.0
    %2173 = vmatpush1.msra.mxu0 %v1802
    %2174 = vmatprep.subr.mxu0 0.0
    %2175 = vmatpush1.msra.mxu0 0.0
    %2176 = vmatprep.subr.mxu0 0.0
    %2177 = vmatpush1.msra.mxu0 0.0
    %2178 = vmatprep.subr.mxu0 0.0
    %2179 = vmatpush1.msra.mxu0 0.0
    %2180 = vmatprep.subr.mxu0 0.0
    %2181 = vmatpush1.msra.mxu0 0.0
    %2182 = vmatprep.subr.mxu0 0.0
    %2183 = vmatpush1.msra.mxu0 0.0
    %2184 = vmatprep.subr.mxu0 0.0
    %2185 = vmatpush1.msra.mxu0 0.0
    %2186 = vmatprep.subr.mxu0 0.0
    %2187 = vmatpush1.msra.mxu0 0.0
    %2188 = vmatprep.subr.mxu0 0.0
    %2189 = vmatpush1.msra.mxu0 0.0
    %2190 = vmatprep.subr.mxu0 0.0
    %2191 = vmatpush1.msra.mxu0 0.0
    %2192 = vmatprep.subr.mxu0 0.0
    %2193 = vmatpush1.msra.mxu0 0.0
    %2194 = vmatprep.subr.mxu0 0.0
    %2195 = vmatpush1.msra.mxu0 0.0
    %2196 = vmatprep.subr.mxu0 0.0
    %2197 = vmatpush1.msra.mxu0 0.0
    %2198 = vmatprep.subr.mxu0 0.0
    %2199 = vmatpush1.msra.mxu0 0.0
    %2200 = vmatprep.subr.mxu0 0.0
    %2201 = vmatpush1.msra.mxu0 0.0
    %2202 = vmatprep.subr.mxu0 0.0
    %2203 = vmatpush1.msra.mxu0 0.0
    %2204 = vmatprep.subr.mxu0 0.0
    %2205 = vmatpush1.msra.mxu0 0.0
    %2206 = vmatprep.subr.mxu0 0.0
    %2207 = vmatpush1.msra.mxu0 0.0
    %2208 = vmatprep.subr.mxu0 0.0
    %2209 = vmatpush1.msra.mxu0 0.0
    %2210 = vmatprep.subr.mxu0 0.0
    %2211 = vmatpush1.msra.mxu0 0.0
    %2212 = vmatprep.subr.mxu0 0.0
    %2213 = vmatpush1.msra.mxu0 0.0
    %2214 = vmatprep.subr.mxu0 0.0
    %2215 = vmatpush1.msra.mxu0 0.0
    %2216 = vmatprep.subr.mxu0 0.0
    %2217 = vmatpush1.msra.mxu0 0.0
    %2218 = vmatprep.subr.mxu0 0.0
    %2219 = vmatpush1.msra.mxu0 0.0
    %2220 = vmatprep.subr.mxu0 0.0
    %2221 = vmatpush1.msra.mxu0 0.0
    %2222 = vmatprep.subr.mxu0 0.0
    %2223 = vmatpush1.msra.mxu0 0.0
    %2224 = vmatprep.subr.mxu0 0.0
    %2225 = vmatpush1.msra.mxu0 0.0
    %2226 = vmatprep.subr.mxu0 0.0
    %2227 = vmatpush1.msra.mxu0 0.0
    %2228 = vmatprep.subr.mxu0 0.0
    %2229 = vmatpush1.msra.mxu0 0.0
    %2230 = vmatprep.subr.mxu0 0.0
    %2231 = vmatpush1.msra.mxu0 0.0
    %2232 = vmatprep.subr.mxu0 0.0
    %2233 = vmatpush1.msra.mxu0 0.0
    %2234 = vmatprep.subr.mxu0 0.0
    %2235 = vmatpush1.msra.mxu0 0.0
    %2236 = vmatprep.mubr.f32.mxu0 0.0
    %2237 = vmatmul.mubr.f32.gmra.mrb[0].mxu0 %v2170
    %v2238 = vpop.f32.mrb[0].mxu0
    %v2239 = vadd.f32 0.0, %v2238
    %v2240 = vpop.f32.mrb[0].mxu0
    %2241 = vdwg.mxu0
    %v2242 = vadd.f32 %v2093, %v2239
    %v2244 = vsel %vm1087, %v1791, 0
    %2246 = vmatprep.subr.mxu0 0.0
    %2247 = vmatpush1.msra.mxu0 %v1079
    %2248 = vmatprep.subr.mxu0 0.0
    %2249 = vmatpush1.msra.mxu0 0.0
    %2250 = vmatprep.subr.mxu0 0.0
    %2251 = vmatpush1.msra.mxu0 0.0
    %2252 = vmatprep.subr.mxu0 0.0
    %2253 = vmatpush1.msra.mxu0 0.0
    %2254 = vmatprep.subr.mxu0 0.0
    %2255 = vmatpush1.msra.mxu0 0.0
    %2256 = vmatprep.subr.mxu0 0.0
    %2257 = vmatpush1.msra.mxu0 0.0
    %2258 = vmatprep.subr.mxu0 0.0
    %2259 = vmatpush1.msra.mxu0 0.0
    %2260 = vmatprep.subr.mxu0 0.0
    %2261 = vmatpush1.msra.mxu0 0.0
    %2262 = vmatprep.subr.mxu0 0.0
    %2263 = vmatpush1.msra.mxu0 0.0
    %2264 = vmatprep.subr.mxu0 0.0
    %2265 = vmatpush1.msra.mxu0 0.0
    %2266 = vmatprep.subr.mxu0 0.0
    %2267 = vmatpush1.msra.mxu0 0.0
    %2268 = vmatprep.subr.mxu0 0.0
    %2269 = vmatpush1.msra.mxu0 0.0
    %2270 = vmatprep.subr.mxu0 0.0
    %2271 = vmatpush1.msra.mxu0 0.0
    %2272 = vmatprep.subr.mxu0 0.0
    %2273 = vmatpush1.msra.mxu0 0.0
    %2274 = vmatprep.subr.mxu0 0.0
    %2275 = vmatpush1.msra.mxu0 0.0
    %2276 = vmatprep.subr.mxu0 0.0
    %2277 = vmatpush1.msra.mxu0 0.0
    %2278 = vmatprep.subr.mxu0 0.0
    %2279 = vmatpush1.msra.mxu0 0.0
    %2280 = vmatprep.subr.mxu0 0.0
    %2281 = vmatpush1.msra.mxu0 0.0
    %2282 = vmatprep.subr.mxu0 0.0
    %2283 = vmatpush1.msra.mxu0 0.0
    %2284 = vmatprep.subr.mxu0 0.0
    %2285 = vmatpush1.msra.mxu0 0.0
    %2286 = vmatprep.subr.mxu0 0.0
    %2287 = vmatpush1.msra.mxu0 0.0
    %2288 = vmatprep.subr.mxu0 0.0
    %2289 = vmatpush1.msra.mxu0 0.0
    %2290 = vmatprep.subr.mxu0 0.0
    %2291 = vmatpush1.msra.mxu0 0.0
    %2292 = vmatprep.subr.mxu0 0.0
    %2293 = vmatpush1.msra.mxu0 0.0
    %2294 = vmatprep.subr.mxu0 0.0
    %2295 = vmatpush1.msra.mxu0 0.0
    %2296 = vmatprep.subr.mxu0 0.0
    %2297 = vmatpush1.msra.mxu0 0.0
    %2298 = vmatprep.subr.mxu0 0.0
    %2299 = vmatpush1.msra.mxu0 0.0
    %2300 = vmatprep.subr.mxu0 0.0
    %2301 = vmatpush1.msra.mxu0 0.0
    %2302 = vmatprep.subr.mxu0 0.0
    %2303 = vmatpush1.msra.mxu0 0.0
    %2304 = vmatprep.subr.mxu0 0.0
    %2305 = vmatpush1.msra.mxu0 0.0
    %2306 = vmatprep.subr.mxu0 0.0
    %2307 = vmatpush1.msra.mxu0 0.0
    %2308 = vmatprep.subr.mxu0 0.0
    %2309 = vmatpush1.msra.mxu0 0.0
    %2310 = vmatprep.mubr.f32.mxu0 0.0
    %2311 = vmatmul.mubr.f32.gmra.mrb[0].mxu0 %v2244
    %v2312 = vpop.f32.mrb[0].mxu0
    %v2313 = vadd.f32 0.0, %v2312
    %v2314 = vpop.f32.mrb[0].mxu0
    %2315 = vdwg.mxu0
    %v2317 = vsel %vm1087, %v2313, 0
    %2319 = vmatprep.subr.mxu0 0.0
    %2320 = vmatpush1.msra.mxu0 %v1803
    %2321 = vmatprep.subr.mxu0 0.0
    %2322 = vmatpush1.msra.mxu0 0.0
    %2323 = vmatprep.subr.mxu0 0.0
    %2324 = vmatpush1.msra.mxu0 0.0
    %2325 = vmatprep.subr.mxu0 0.0
    %2326 = vmatpush1.msra.mxu0 0.0
    %2327 = vmatprep.subr.mxu0 0.0
    %2328 = vmatpush1.msra.mxu0 0.0
    %2329 = vmatprep.subr.mxu0 0.0
    %2330 = vmatpush1.msra.mxu0 0.0
    %2331 = vmatprep.subr.mxu0 0.0
    %2332 = vmatpush1.msra.mxu0 0.0
    %2333 = vmatprep.subr.mxu0 0.0
    %2334 = vmatpush1.msra.mxu0 0.0
    %2335 = vmatprep.subr.mxu0 0.0
    %2336 = vmatpush1.msra.mxu0 0.0
    %2337 = vmatprep.subr.mxu0 0.0
    %2338 = vmatpush1.msra.mxu0 0.0
    %2339 = vmatprep.subr.mxu0 0.0
    %2340 = vmatpush1.msra.mxu0 0.0
    %2341 = vmatprep.subr.mxu0 0.0
    %2342 = vmatpush1.msra.mxu0 0.0
    %2343 = vmatprep.subr.mxu0 0.0
    %2344 = vmatpush1.msra.mxu0 0.0
    %2345 = vmatprep.subr.mxu0 0.0
    %2346 = vmatpush1.msra.mxu0 0.0
    %2347 = vmatprep.subr.mxu0 0.0
    %2348 = vmatpush1.msra.mxu0 0.0
    %2349 = vmatprep.subr.mxu0 0.0
    %2350 = vmatpush1.msra.mxu0 0.0
    %2351 = vmatprep.subr.mxu0 0.0
    %2352 = vmatpush1.msra.mxu0 0.0
    %2353 = vmatprep.subr.mxu0 0.0
    %2354 = vmatpush1.msra.mxu0 0.0
    %2355 = vmatprep.subr.mxu0 0.0
    %2356 = vmatpush1.msra.mxu0 0.0
    %2357 = vmatprep.subr.mxu0 0.0
    %2358 = vmatpush1.msra.mxu0 0.0
    %2359 = vmatprep.subr.mxu0 0.0
    %2360 = vmatpush1.msra.mxu0 0.0
    %2361 = vmatprep.subr.mxu0 0.0
    %2362 = vmatpush1.msra.mxu0 0.0
    %2363 = vmatprep.subr.mxu0 0.0
    %2364 = vmatpush1.msra.mxu0 0.0
    %2365 = vmatprep.subr.mxu0 0.0
    %2366 = vmatpush1.msra.mxu0 0.0
    %2367 = vmatprep.subr.mxu0 0.0
    %2368 = vmatpush1.msra.mxu0 0.0
    %2369 = vmatprep.subr.mxu0 0.0
    %2370 = vmatpush1.msra.mxu0 0.0
    %2371 = vmatprep.subr.mxu0 0.0
    %2372 = vmatpush1.msra.mxu0 0.0
    %2373 = vmatprep.subr.mxu0 0.0
    %2374 = vmatpush1.msra.mxu0 0.0
    %2375 = vmatprep.subr.mxu0 0.0
    %2376 = vmatpush1.msra.mxu0 0.0
    %2377 = vmatprep.subr.mxu0 0.0
    %2378 = vmatpush1.msra.mxu0 0.0
    %2379 = vmatprep.subr.mxu0 0.0
    %2380 = vmatpush1.msra.mxu0 0.0
    %2381 = vmatprep.subr.mxu0 0.0
    %2382 = vmatpush1.msra.mxu0 0.0
    %2383 = vmatprep.mubr.f32.mxu0 0.0
    %2384 = vmatmul.mubr.f32.gmra.mrb[0].mxu0 %v2317
    %v2385 = vpop.f32.mrb[0].mxu0
    %v2386 = vadd.f32 0.0, %v2385
    %v2387 = vpop.f32.mrb[0].mxu0
    %2388 = vdwg.mxu0
    %v2389 = vadd.f32 %v2242, %v2386
    %v2391 = vsel %vm1087, %v1793, 0
    %2393 = vmatprep.subr.mxu0 0.0
    %2394 = vmatpush1.msra.mxu0 %v328
    %2395 = vmatprep.subr.mxu0 0.0
    %2396 = vmatpush1.msra.mxu0 0.0
    %2397 = vmatprep.subr.mxu0 0.0
    %2398 = vmatpush1.msra.mxu0 0.0
    %2399 = vmatprep.subr.mxu0 0.0
    %2400 = vmatpush1.msra.mxu0 0.0
    %2401 = vmatprep.subr.mxu0 0.0
    %2402 = vmatpush1.msra.mxu0 0.0
    %2403 = vmatprep.subr.mxu0 0.0
    %2404 = vmatpush1.msra.mxu0 0.0
    %2405 = vmatprep.subr.mxu0 0.0
    %2406 = vmatpush1.msra.mxu0 0.0
    %2407 = vmatprep.subr.mxu0 0.0
    %2408 = vmatpush1.msra.mxu0 0.0
    %2409 = vmatprep.subr.mxu0 0.0
    %2410 = vmatpush1.msra.mxu0 0.0
    %2411 = vmatprep.subr.mxu0 0.0
    %2412 = vmatpush1.msra.mxu0 0.0
    %2413 = vmatprep.subr.mxu0 0.0
    %2414 = vmatpush1.msra.mxu0 0.0
    %2415 = vmatprep.subr.mxu0 0.0
    %2416 = vmatpush1.msra.mxu0 0.0
    %2417 = vmatprep.subr.mxu0 0.0
    %2418 = vmatpush1.msra.mxu0 0.0
    %2419 = vmatprep.subr.mxu0 0.0
    %2420 = vmatpush1.msra.mxu0 0.0
    %2421 = vmatprep.subr.mxu0 0.0
    %2422 = vmatpush1.msra.mxu0 0.0
    %2423 = vmatprep.subr.mxu0 0.0
    %2424 = vmatpush1.msra.mxu0 0.0
    %2425 = vmatprep.subr.mxu0 0.0
    %2426 = vmatpush1.msra.mxu0 0.0
    %2427 = vmatprep.subr.mxu0 0.0
    %2428 = vmatpush1.msra.mxu0 0.0
    %2429 = vmatprep.subr.mxu0 0.0
    %2430 = vmatpush1.msra.mxu0 0.0
    %2431 = vmatprep.subr.mxu0 0.0
    %2432 = vmatpush1.msra.mxu0 0.0
    %2433 = vmatprep.subr.mxu0 0.0
    %2434 = vmatpush1.msra.mxu0 0.0
    %2435 = vmatprep.subr.mxu0 0.0
    %2436 = vmatpush1.msra.mxu0 0.0
    %2437 = vmatprep.subr.mxu0 0.0
    %2438 = vmatpush1.msra.mxu0 0.0
    %2439 = vmatprep.subr.mxu0 0.0
    %2440 = vmatpush1.msra.mxu0 0.0
    %2441 = vmatprep.subr.mxu0 0.0
    %2442 = vmatpush1.msra.mxu0 0.0
    %2443 = vmatprep.subr.mxu0 0.0
    %2444 = vmatpush1.msra.mxu0 0.0
    %2445 = vmatprep.subr.mxu0 0.0
    %2446 = vmatpush1.msra.mxu0 0.0
    %2447 = vmatprep.subr.mxu0 0.0
    %2448 = vmatpush1.msra.mxu0 0.0
    %2449 = vmatprep.subr.mxu0 0.0
    %2450 = vmatpush1.msra.mxu0 0.0
    %2451 = vmatprep.subr.mxu0 0.0
    %2452 = vmatpush1.msra.mxu0 0.0
    %2453 = vmatprep.subr.mxu0 0.0
    %2454 = vmatpush1.msra.mxu0 0.0
    %2455 = vmatprep.subr.mxu0 0.0
    %2456 = vmatpush1.msra.mxu0 0.0
    %2457 = vmatprep.mubr.f32.mxu0 0.0
    %2458 = vmatmul.mubr.f32.gmra.mrb[0].mxu0 %v2391
    %v2459 = vpop.f32.mrb[0].mxu0
    %v2460 = vadd.f32 0.0, %v2459
    %v2461 = vpop.f32.mrb[0].mxu0
    %2462 = vdwg.mxu0
    %v2464 = vsel %vm1087, %v1795, 0
    %2466 = vmatprep.subr.mxu0 0.0
    %2467 = vmatpush1.msra.mxu0 %v580
    %2468 = vmatprep.subr.mxu0 0.0
    %2469 = vmatpush1.msra.mxu0 0.0
    %2470 = vmatprep.subr.mxu0 0.0
    %2471 = vmatpush1.msra.mxu0 0.0
    %2472 = vmatprep.subr.mxu0 0.0
    %2473 = vmatpush1.msra.mxu0 0.0
    %2474 = vmatprep.subr.mxu0 0.0
    %2475 = vmatpush1.msra.mxu0 0.0
    %2476 = vmatprep.subr.mxu0 0.0
    %2477 = vmatpush1.msra.mxu0 0.0
    %2478 = vmatprep.subr.mxu0 0.0
    %2479 = vmatpush1.msra.mxu0 0.0
    %2480 = vmatprep.subr.mxu0 0.0
    %2481 = vmatpush1.msra.mxu0 0.0
    %2482 = vmatprep.subr.mxu0 0.0
    %2483 = vmatpush1.msra.mxu0 0.0
    %2484 = vmatprep.subr.mxu0 0.0
    %2485 = vmatpush1.msra.mxu0 0.0
    %2486 = vmatprep.subr.mxu0 0.0
    %2487 = vmatpush1.msra.mxu0 0.0
    %2488 = vmatprep.subr.mxu0 0.0
    %2489 = vmatpush1.msra.mxu0 0.0
    %2490 = vmatprep.subr.mxu0 0.0
    %2491 = vmatpush1.msra.mxu0 0.0
    %2492 = vmatprep.subr.mxu0 0.0
    %2493 = vmatpush1.msra.mxu0 0.0
    %2494 = vmatprep.subr.mxu0 0.0
    %2495 = vmatpush1.msra.mxu0 0.0
    %2496 = vmatprep.subr.mxu0 0.0
    %2497 = vmatpush1.msra.mxu0 0.0
    %2498 = vmatprep.subr.mxu0 0.0
    %2499 = vmatpush1.msra.mxu0 0.0
    %2500 = vmatprep.subr.mxu0 0.0
    %2501 = vmatpush1.msra.mxu0 0.0
    %2502 = vmatprep.subr.mxu0 0.0
    %2503 = vmatpush1.msra.mxu0 0.0
    %2504 = vmatprep.subr.mxu0 0.0
    %2505 = vmatpush1.msra.mxu0 0.0
    %2506 = vmatprep.subr.mxu0 0.0
    %2507 = vmatpush1.msra.mxu0 0.0
    %2508 = vmatprep.subr.mxu0 0.0
    %2509 = vmatpush1.msra.mxu0 0.0
    %2510 = vmatprep.subr.mxu0 0.0
    %2511 = vmatpush1.msra.mxu0 0.0
    %2512 = vmatprep.subr.mxu0 0.0
    %2513 = vmatpush1.msra.mxu0 0.0
    %2514 = vmatprep.subr.mxu0 0.0
    %2515 = vmatpush1.msra.mxu0 0.0
    %2516 = vmatprep.subr.mxu0 0.0
    %2517 = vmatpush1.msra.mxu0 0.0
    %2518 = vmatprep.subr.mxu0 0.0
    %2519 = vmatpush1.msra.mxu0 0.0
    %2520 = vmatprep.subr.mxu0 0.0
    %2521 = vmatpush1.msra.mxu0 0.0
    %2522 = vmatprep.subr.mxu0 0.0
    %2523 = vmatpush1.msra.mxu0 0.0
    %2524 = vmatprep.subr.mxu0 0.0
    %2525 = vmatpush1.msra.mxu0 0.0
    %2526 = vmatprep.subr.mxu0 0.0
    %2527 = vmatpush1.msra.mxu0 0.0
    %2528 = vmatprep.subr.mxu0 0.0
    %2529 = vmatpush1.msra.mxu0 0.0
    %2530 = vmatprep.mubr.f32.mxu0 0.0
    %2531 = vmatmul.mubr.f32.gmra.mrb[0].mxu0 %v2464
    %v2532 = vpop.f32.mrb[0].mxu0
    %v2533 = vadd.f32 0.0, %v2532
    %v2534 = vpop.f32.mrb[0].mxu0
    %2535 = vdwg.mxu0
    %v2537 = vsel %vm1087, %v2533, 0
    %2539 = vmatprep.subr.mxu0 0.0
    %2540 = vmatpush1.msra.mxu0 %v1801
    %2541 = vmatprep.subr.mxu0 0.0
    %2542 = vmatpush1.msra.mxu0 0.0
    %2543 = vmatprep.subr.mxu0 0.0
    %2544 = vmatpush1.msra.mxu0 0.0
    %2545 = vmatprep.subr.mxu0 0.0
    %2546 = vmatpush1.msra.mxu0 0.0
    %2547 = vmatprep.subr.mxu0 0.0
    %2548 = vmatpush1.msra.mxu0 0.0
    %2549 = vmatprep.subr.mxu0 0.0
    %2550 = vmatpush1.msra.mxu0 0.0
    %2551 = vmatprep.subr.mxu0 0.0
    %2552 = vmatpush1.msra.mxu0 0.0
    %2553 = vmatprep.subr.mxu0 0.0
    %2554 = vmatpush1.msra.mxu0 0.0
    %2555 = vmatprep.subr.mxu0 0.0
    %2556 = vmatpush1.msra.mxu0 0.0
    %2557 = vmatprep.subr.mxu0 0.0
    %2558 = vmatpush1.msra.mxu0 0.0
    %2559 = vmatprep.subr.mxu0 0.0
    %2560 = vmatpush1.msra.mxu0 0.0
    %2561 = vmatprep.subr.mxu0 0.0
    %2562 = vmatpush1.msra.mxu0 0.0
    %2563 = vmatprep.subr.mxu0 0.0
    %2564 = vmatpush1.msra.mxu0 0.0
    %2565 = vmatprep.subr.mxu0 0.0
    %2566 = vmatpush1.msra.mxu0 0.0
    %2567 = vmatprep.subr.mxu0 0.0
    %2568 = vmatpush1.msra.mxu0 0.0
    %2569 = vmatprep.subr.mxu0 0.0
    %2570 = vmatpush1.msra.mxu0 0.0
    %2571 = vmatprep.subr.mxu0 0.0
    %2572 = vmatpush1.msra.mxu0 0.0
    %2573 = vmatprep.subr.mxu0 0.0
    %2574 = vmatpush1.msra.mxu0 0.0
    %2575 = vmatprep.subr.mxu0 0.0
    %2576 = vmatpush1.msra.mxu0 0.0
    %2577 = vmatprep.subr.mxu0 0.0
    %2578 = vmatpush1.msra.mxu0 0.0
    %2579 = vmatprep.subr.mxu0 0.0
    %2580 = vmatpush1.msra.mxu0 0.0
    %2581 = vmatprep.subr.mxu0 0.0
    %2582 = vmatpush1.msra.mxu0 0.0
    %2583 = vmatprep.subr.mxu0 0.0
    %2584 = vmatpush1.msra.mxu0 0.0
    %2585 = vmatprep.subr.mxu0 0.0
    %2586 = vmatpush1.msra.mxu0 0.0
    %2587 = vmatprep.subr.mxu0 0.0
    %2588 = vmatpush1.msra.mxu0 0.0
    %2589 = vmatprep.subr.mxu0 0.0
    %2590 = vmatpush1.msra.mxu0 0.0
    %2591 = vmatprep.subr.mxu0 0.0
    %2592 = vmatpush1.msra.mxu0 0.0
    %2593 = vmatprep.subr.mxu0 0.0
    %2594 = vmatpush1.msra.mxu0 0.0
    %2595 = vmatprep.subr.mxu0 0.0
    %2596 = vmatpush1.msra.mxu0 0.0
    %2597 = vmatprep.subr.mxu0 0.0
    %2598 = vmatpush1.msra.mxu0 0.0
    %2599 = vmatprep.subr.mxu0 0.0
    %2600 = vmatpush1.msra.mxu0 0.0
    %2601 = vmatprep.subr.mxu0 0.0
    %2602 = vmatpush1.msra.mxu0 0.0
    %2603 = vmatprep.mubr.f32.mxu0 0.0
    %2604 = vmatmul.mubr.f32.gmra.mrb[0].mxu0 %v2537
    %v2605 = vpop.f32.mrb[0].mxu0
    %v2606 = vadd.f32 0.0, %v2605
    %v2607 = vpop.f32.mrb[0].mxu0
    %2608 = vdwg.mxu0
    %v2610 = vsel %vm1087, %v2460, 0
    %2612 = vmatprep.subr.mxu0 0.0
    %2613 = vmatpush1.msra.mxu0 %v1800
    %2614 = vmatprep.subr.mxu0 0.0
    %2615 = vmatpush1.msra.mxu0 0.0
    %2616 = vmatprep.subr.mxu0 0.0
    %2617 = vmatpush1.msra.mxu0 0.0
    %2618 = vmatprep.subr.mxu0 0.0
    %2619 = vmatpush1.msra.mxu0 0.0
    %2620 = vmatprep.subr.mxu0 0.0
    %2621 = vmatpush1.msra.mxu0 0.0
    %2622 = vmatprep.subr.mxu0 0.0
    %2623 = vmatpush1.msra.mxu0 0.0
    %2624 = vmatprep.subr.mxu0 0.0
    %2625 = vmatpush1.msra.mxu0 0.0
    %2626 = vmatprep.subr.mxu0 0.0
    %2627 = vmatpush1.msra.mxu0 0.0
    %2628 = vmatprep.subr.mxu0 0.0
    %2629 = vmatpush1.msra.mxu0 0.0
    %2630 = vmatprep.subr.mxu0 0.0
    %2631 = vmatpush1.msra.mxu0 0.0
    %2632 = vmatprep.subr.mxu0 0.0
    %2633 = vmatpush1.msra.mxu0 0.0
    %2634 = vmatprep.subr.mxu0 0.0
    %2635 = vmatpush1.msra.mxu0 0.0
    %2636 = vmatprep.subr.mxu0 0.0
    %2637 = vmatpush1.msra.mxu0 0.0
    %2638 = vmatprep.subr.mxu0 0.0
    %2639 = vmatpush1.msra.mxu0 0.0
    %2640 = vmatprep.subr.mxu0 0.0
    %2641 = vmatpush1.msra.mxu0 0.0
    %2642 = vmatprep.subr.mxu0 0.0
    %2643 = vmatpush1.msra.mxu0 0.0
    %2644 = vmatprep.subr.mxu0 0.0
    %2645 = vmatpush1.msra.mxu0 0.0
    %2646 = vmatprep.subr.mxu0 0.0
    %2647 = vmatpush1.msra.mxu0 0.0
    %2648 = vmatprep.subr.mxu0 0.0
    %2649 = vmatpush1.msra.mxu0 0.0
    %2650 = vmatprep.subr.mxu0 0.0
    %2651 = vmatpush1.msra.mxu0 0.0
    %2652 = vmatprep.subr.mxu0 0.0
    %2653 = vmatpush1.msra.mxu0 0.0
    %2654 = vmatprep.subr.mxu0 0.0
    %2655 = vmatpush1.msra.mxu0 0.0
    %2656 = vmatprep.subr.mxu0 0.0
    %2657 = vmatpush1.msra.mxu0 0.0
    %2658 = vmatprep.subr.mxu0 0.0
    %2659 = vmatpush1.msra.mxu0 0.0
    %2660 = vmatprep.subr.mxu0 0.0
    %2661 = vmatpush1.msra.mxu0 0.0
    %2662 = vmatprep.subr.mxu0 0.0
    %2663 = vmatpush1.msra.mxu0 0.0
    %2664 = vmatprep.subr.mxu0 0.0
    %2665 = vmatpush1.msra.mxu0 0.0
    %2666 = vmatprep.subr.mxu0 0.0
    %2667 = vmatpush1.msra.mxu0 0.0
    %2668 = vmatprep.subr.mxu0 0.0
    %2669 = vmatpush1.msra.mxu0 0.0
    %2670 = vmatprep.subr.mxu0 0.0
    %2671 = vmatpush1.msra.mxu0 0.0
    %2672 = vmatprep.subr.mxu0 0.0
    %2673 = vmatpush1.msra.mxu0 0.0
    %2674 = vmatprep.subr.mxu0 0.0
    %2675 = vmatpush1.msra.mxu0 0.0
    %2676 = vmatprep.mubr.f32.mxu0 0.0
    %2677 = vmatmul.mubr.f32.gmra.mrb[0].mxu0 %v2610
    %v2678 = vpop.f32.mrb[0].mxu0
    %v2679 = vadd.f32 %v2606, %v2678
    %v2680 = vpop.f32.mrb[0].mxu0
    %2681 = vdwg.mxu0
    %v2683 = vsel %vm1087, %v1797, 0
    %2685 = vmatprep.subr.mxu0 0.0
    %2686 = vmatpush1.msra.mxu0 %v832
    %2687 = vmatprep.subr.mxu0 0.0
    %2688 = vmatpush1.msra.mxu0 0.0
    %2689 = vmatprep.subr.mxu0 0.0
    %2690 = vmatpush1.msra.mxu0 0.0
    %2691 = vmatprep.subr.mxu0 0.0
    %2692 = vmatpush1.msra.mxu0 0.0
    %2693 = vmatprep.subr.mxu0 0.0
    %2694 = vmatpush1.msra.mxu0 0.0
    %2695 = vmatprep.subr.mxu0 0.0
    %2696 = vmatpush1.msra.mxu0 0.0
    %2697 = vmatprep.subr.mxu0 0.0
    %2698 = vmatpush1.msra.mxu0 0.0
    %2699 = vmatprep.subr.mxu0 0.0
    %2700 = vmatpush1.msra.mxu0 0.0
    %2701 = vmatprep.subr.mxu0 0.0
    %2702 = vmatpush1.msra.mxu0 0.0
    %2703 = vmatprep.subr.mxu0 0.0
    %2704 = vmatpush1.msra.mxu0 0.0
    %2705 = vmatprep.subr.mxu0 0.0
    %2706 = vmatpush1.msra.mxu0 0.0
    %2707 = vmatprep.subr.mxu0 0.0
    %2708 = vmatpush1.msra.mxu0 0.0
    %2709 = vmatprep.subr.mxu0 0.0
    %2710 = vmatpush1.msra.mxu0 0.0
    %2711 = vmatprep.subr.mxu0 0.0
    %2712 = vmatpush1.msra.mxu0 0.0
    %2713 = vmatprep.subr.mxu0 0.0
    %2714 = vmatpush1.msra.mxu0 0.0
    %2715 = vmatprep.subr.mxu0 0.0
    %2716 = vmatpush1.msra.mxu0 0.0
    %2717 = vmatprep.subr.mxu0 0.0
    %2718 = vmatpush1.msra.mxu0 0.0
    %2719 = vmatprep.subr.mxu0 0.0
    %2720 = vmatpush1.msra.mxu0 0.0
    %2721 = vmatprep.subr.mxu0 0.0
    %2722 = vmatpush1.msra.mxu0 0.0
    %2723 = vmatprep.subr.mxu0 0.0
    %2724 = vmatpush1.msra.mxu0 0.0
    %2725 = vmatprep.subr.mxu0 0.0
    %2726 = vmatpush1.msra.mxu0 0.0
    %2727 = vmatprep.subr.mxu0 0.0
    %2728 = vmatpush1.msra.mxu0 0.0
    %2729 = vmatprep.subr.mxu0 0.0
    %2730 = vmatpush1.msra.mxu0 0.0
    %2731 = vmatprep.subr.mxu0 0.0
    %2732 = vmatpush1.msra.mxu0 0.0
    %2733 = vmatprep.subr.mxu0 0.0
    %2734 = vmatpush1.msra.mxu0 0.0
    %2735 = vmatprep.subr.mxu0 0.0
    %2736 = vmatpush1.msra.mxu0 0.0
    %2737 = vmatprep.subr.mxu0 0.0
    %2738 = vmatpush1.msra.mxu0 0.0
    %2739 = vmatprep.subr.mxu0 0.0
    %2740 = vmatpush1.msra.mxu0 0.0
    %2741 = vmatprep.subr.mxu0 0.0
    %2742 = vmatpush1.msra.mxu0 0.0
    %2743 = vmatprep.subr.mxu0 0.0
    %2744 = vmatpush1.msra.mxu0 0.0
    %2745 = vmatprep.subr.mxu0 0.0
    %2746 = vmatpush1.msra.mxu0 0.0
    %2747 = vmatprep.subr.mxu0 0.0
    %2748 = vmatpush1.msra.mxu0 0.0
    %2749 = vmatprep.mubr.f32.mxu0 0.0
    %2750 = vmatmul.mubr.f32.gmra.mrb[0].mxu0 %v2683
    %v2751 = vpop.f32.mrb[0].mxu0
    %v2752 = vadd.f32 0.0, %v2751
    %v2753 = vpop.f32.mrb[0].mxu0
    %2754 = vdwg.mxu0
    %v2756 = vsel %vm1087, %v2752, 0
    %2758 = vmatprep.subr.mxu0 0.0
    %2759 = vmatpush1.msra.mxu0 %v1802
    %2760 = vmatprep.subr.mxu0 0.0
    %2761 = vmatpush1.msra.mxu0 0.0
    %2762 = vmatprep.subr.mxu0 0.0
    %2763 = vmatpush1.msra.mxu0 0.0
    %2764 = vmatprep.subr.mxu0 0.0
    %2765 = vmatpush1.msra.mxu0 0.0
    %2766 = vmatprep.subr.mxu0 0.0
    %2767 = vmatpush1.msra.mxu0 0.0
    %2768 = vmatprep.subr.mxu0 0.0
    %2769 = vmatpush1.msra.mxu0 0.0
    %2770 = vmatprep.subr.mxu0 0.0
    %2771 = vmatpush1.msra.mxu0 0.0
    %2772 = vmatprep.subr.mxu0 0.0
    %2773 = vmatpush1.msra.mxu0 0.0
    %2774 = vmatprep.subr.mxu0 0.0
    %2775 = vmatpush1.msra.mxu0 0.0
    %2776 = vmatprep.subr.mxu0 0.0
    %2777 = vmatpush1.msra.mxu0 0.0
    %2778 = vmatprep.subr.mxu0 0.0
    %2779 = vmatpush1.msra.mxu0 0.0
    %2780 = vmatprep.subr.mxu0 0.0
    %2781 = vmatpush1.msra.mxu0 0.0
    %2782 = vmatprep.subr.mxu0 0.0
    %2783 = vmatpush1.msra.mxu0 0.0
    %2784 = vmatprep.subr.mxu0 0.0
    %2785 = vmatpush1.msra.mxu0 0.0
    %2786 = vmatprep.subr.mxu0 0.0
    %2787 = vmatpush1.msra.mxu0 0.0
    %2788 = vmatprep.subr.mxu0 0.0
    %2789 = vmatpush1.msra.mxu0 0.0
    %2790 = vmatprep.subr.mxu0 0.0
    %2791 = vmatpush1.msra.mxu0 0.0
    %2792 = vmatprep.subr.mxu0 0.0
    %2793 = vmatpush1.msra.mxu0 0.0
    %2794 = vmatprep.subr.mxu0 0.0
    %2795 = vmatpush1.msra.mxu0 0.0
    %2796 = vmatprep.subr.mxu0 0.0
    %2797 = vmatpush1.msra.mxu0 0.0
    %2798 = vmatprep.subr.mxu0 0.0
    %2799 = vmatpush1.msra.mxu0 0.0
    %2800 = vmatprep.subr.mxu0 0.0
    %2801 = vmatpush1.msra.mxu0 0.0
    %2802 = vmatprep.subr.mxu0 0.0
    %2803 = vmatpush1.msra.mxu0 0.0
    %2804 = vmatprep.subr.mxu0 0.0
    %2805 = vmatpush1.msra.mxu0 0.0
    %2806 = vmatprep.subr.mxu0 0.0
    %2807 = vmatpush1.msra.mxu0 0.0
    %2808 = vmatprep.subr.mxu0 0.0
    %2809 = vmatpush1.msra.mxu0 0.0
    %2810 = vmatprep.subr.mxu0 0.0
    %2811 = vmatpush1.msra.mxu0 0.0
    %2812 = vmatprep.subr.mxu0 0.0
    %2813 = vmatpush1.msra.mxu0 0.0
    %2814 = vmatprep.subr.mxu0 0.0
    %2815 = vmatpush1.msra.mxu0 0.0
    %2816 = vmatprep.subr.mxu0 0.0
    %2817 = vmatpush1.msra.mxu0 0.0
    %2818 = vmatprep.subr.mxu0 0.0
    %2819 = vmatpush1.msra.mxu0 0.0
    %2820 = vmatprep.subr.mxu0 0.0
    %2821 = vmatpush1.msra.mxu0 0.0
    %2822 = vmatprep.mubr.f32.mxu0 0.0
    %2823 = vmatmul.mubr.f32.gmra.mrb[0].mxu0 %v2756
    %v2824 = vpop.f32.mrb[0].mxu0
    %v2825 = vadd.f32 0.0, %v2824
    %v2826 = vpop.f32.mrb[0].mxu0
    %2827 = vdwg.mxu0
    %v2828 = vadd.f32 %v2679, %v2825
    %v2830 = vsel %vm1087, %v1799, 0
    %2832 = vmatprep.subr.mxu0 0.0
    %2833 = vmatpush1.msra.mxu0 %v1084
    %2834 = vmatprep.subr.mxu0 0.0
    %2835 = vmatpush1.msra.mxu0 0.0
    %2836 = vmatprep.subr.mxu0 0.0
    %2837 = vmatpush1.msra.mxu0 0.0
    %2838 = vmatprep.subr.mxu0 0.0
    %2839 = vmatpush1.msra.mxu0 0.0
    %2840 = vmatprep.subr.mxu0 0.0
    %2841 = vmatpush1.msra.mxu0 0.0
    %2842 = vmatprep.subr.mxu0 0.0
    %2843 = vmatpush1.msra.mxu0 0.0
    %2844 = vmatprep.subr.mxu0 0.0
    %2845 = vmatpush1.msra.mxu0 0.0
    %2846 = vmatprep.subr.mxu0 0.0
    %2847 = vmatpush1.msra.mxu0 0.0
    %2848 = vmatprep.subr.mxu0 0.0
    %2849 = vmatpush1.msra.mxu0 0.0
    %2850 = vmatprep.subr.mxu0 0.0
    %2851 = vmatpush1.msra.mxu0 0.0
    %2852 = vmatprep.subr.mxu0 0.0
    %2853 = vmatpush1.msra.mxu0 0.0
    %2854 = vmatprep.subr.mxu0 0.0
    %2855 = vmatpush1.msra.mxu0 0.0
    %2856 = vmatprep.subr.mxu0 0.0
    %2857 = vmatpush1.msra.mxu0 0.0
    %2858 = vmatprep.subr.mxu0 0.0
    %2859 = vmatpush1.msra.mxu0 0.0
    %2860 = vmatprep.subr.mxu0 0.0
    %2861 = vmatpush1.msra.mxu0 0.0
    %2862 = vmatprep.subr.mxu0 0.0
    %2863 = vmatpush1.msra.mxu0 0.0
    %2864 = vmatprep.subr.mxu0 0.0
    %2865 = vmatpush1.msra.mxu0 0.0
    %2866 = vmatprep.subr.mxu0 0.0
    %2867 = vmatpush1.msra.mxu0 0.0
    %2868 = vmatprep.subr.mxu0 0.0
    %2869 = vmatpush1.msra.mxu0 0.0
    %2870 = vmatprep.subr.mxu0 0.0
    %2871 = vmatpush1.msra.mxu0 0.0
    %2872 = vmatprep.subr.mxu0 0.0
    %2873 = vmatpush1.msra.mxu0 0.0
    %2874 = vmatprep.subr.mxu0 0.0
    %2875 = vmatpush1.msra.mxu0 0.0
    %2876 = vmatprep.subr.mxu0 0.0
    %2877 = vmatpush1.msra.mxu0 0.0
    %2878 = vmatprep.subr.mxu0 0.0
    %2879 = vmatpush1.msra.mxu0 0.0
    %2880 = vmatprep.subr.mxu0 0.0
    %2881 = vmatpush1.msra.mxu0 0.0
    %2882 = vmatprep.subr.mxu0 0.0
    %2883 = vmatpush1.msra.mxu0 0.0
    %2884 = vmatprep.subr.mxu0 0.0
    %2885 = vmatpush1.msra.mxu0 0.0
    %2886 = vmatprep.subr.mxu0 0.0
    %2887 = vmatpush1.msra.mxu0 0.0
    %2888 = vmatprep.subr.mxu0 0.0
    %2889 = vmatpush1.msra.mxu0 0.0
    %2890 = vmatprep.subr.mxu0 0.0
    %2891 = vmatpush1.msra.mxu0 0.0
    %2892 = vmatprep.subr.mxu0 0.0
    %2893 = vmatpush1.msra.mxu0 0.0
    %2894 = vmatprep.subr.mxu0 0.0
    %2895 = vmatpush1.msra.mxu0 0.0
    %2896 = vmatprep.mubr.f32.mxu0 0.0
    %2897 = vmatmul.mubr.f32.gmra.mrb[0].mxu0 %v2830
    %v2898 = vpop.f32.mrb[0].mxu0
    %v2899 = vadd.f32 0.0, %v2898
    %v2900 = vpop.f32.mrb[0].mxu0
    %2901 = vdwg.mxu0
    %v2903 = vsel %vm1087, %v2899, 0
    %2905 = vmatprep.subr.mxu0 0.0
    %2906 = vmatpush1.msra.mxu0 %v1803
    %2907 = vmatprep.subr.mxu0 0.0
    %2908 = vmatpush1.msra.mxu0 0.0
    %2909 = vmatprep.subr.mxu0 0.0
    %2910 = vmatpush1.msra.mxu0 0.0
    %2911 = vmatprep.subr.mxu0 0.0
    %2912 = vmatpush1.msra.mxu0 0.0
    %2913 = vmatprep.subr.mxu0 0.0
    %2914 = vmatpush1.msra.mxu0 0.0
    %2915 = vmatprep.subr.mxu0 0.0
    %2916 = vmatpush1.msra.mxu0 0.0
    %2917 = vmatprep.subr.mxu0 0.0
    %2918 = vmatpush1.msra.mxu0 0.0
    %2919 = vmatprep.subr.mxu0 0.0
    %2920 = vmatpush1.msra.mxu0 0.0
    %2921 = vmatprep.subr.mxu0 0.0
    %2922 = vmatpush1.msra.mxu0 0.0
    %2923 = vmatprep.subr.mxu0 0.0
    %2924 = vmatpush1.msra.mxu0 0.0
    %2925 = vmatprep.subr.mxu0 0.0
    %2926 = vmatpush1.msra.mxu0 0.0
    %2927 = vmatprep.subr.mxu0 0.0
    %2928 = vmatpush1.msra.mxu0 0.0
    %2929 = vmatprep.subr.mxu0 0.0
    %2930 = vmatpush1.msra.mxu0 0.0
    %2931 = vmatprep.subr.mxu0 0.0
    %2932 = vmatpush1.msra.mxu0 0.0
    %2933 = vmatprep.subr.mxu0 0.0
    %2934 = vmatpush1.msra.mxu0 0.0
    %2935 = vmatprep.subr.mxu0 0.0
    %2936 = vmatpush1.msra.mxu0 0.0
    %2937 = vmatprep.subr.mxu0 0.0
    %2938 = vmatpush1.msra.mxu0 0.0
    %2939 = vmatprep.subr.mxu0 0.0
    %2940 = vmatpush1.msra.mxu0 0.0
    %2941 = vmatprep.subr.mxu0 0.0
    %2942 = vmatpush1.msra.mxu0 0.0
    %2943 = vmatprep.subr.mxu0 0.0
    %2944 = vmatpush1.msra.mxu0 0.0
    %2945 = vmatprep.subr.mxu0 0.0
    %2946 = vmatpush1.msra.mxu0 0.0
    %2947 = vmatprep.subr.mxu0 0.0
    %2948 = vmatpush1.msra.mxu0 0.0
    %2949 = vmatprep.subr.mxu0 0.0
    %2950 = vmatpush1.msra.mxu0 0.0
    %2951 = vmatprep.subr.mxu0 0.0
    %2952 = vmatpush1.msra.mxu0 0.0
    %2953 = vmatprep.subr.mxu0 0.0
    %2954 = vmatpush1.msra.mxu0 0.0
    %2955 = vmatprep.subr.mxu0 0.0
    %2956 = vmatpush1.msra.mxu0 0.0
    %2957 = vmatprep.subr.mxu0 0.0
    %2958 = vmatpush1.msra.mxu0 0.0
    %2959 = vmatprep.subr.mxu0 0.0
    %2960 = vmatpush1.msra.mxu0 0.0
    %2961 = vmatprep.subr.mxu0 0.0
    %2962 = vmatpush1.msra.mxu0 0.0
    %2963 = vmatprep.subr.mxu0 0.0
    %2964 = vmatpush1.msra.mxu0 0.0
    %2965 = vmatprep.subr.mxu0 0.0
    %2966 = vmatpush1.msra.mxu0 0.0
    %2967 = vmatprep.subr.mxu0 0.0
    %2968 = vmatpush1.msra.mxu0 0.0
    %2969 = vmatprep.mubr.f32.mxu0 0.0
    %2970 = vmatmul.mubr.f32.gmra.mrb[0].mxu0 %v2903
    %v2971 = vpop.f32.mrb[0].mxu0
    %v2972 = vadd.f32 0.0, %v2971
    %v2973 = vpop.f32.mrb[0].mxu0
    %2974 = vdwg.mxu0
    %v2975 = vadd.f32 %v2828, %v2972
    %v2976 = vld [vmem:[%s3 + $0xe] sm:$0x1]
    %v2977 = vlaneseq
    %v2978 = vshrl.u32 %v2977, 7
    %v2979 = vsub.s32 0, %v2978
    %v2980 = vrot.slane %v2976, %v2979
    %v2981 = vadd.f32 %v2389, %v2980
    %v2982 = vadd.f32 %v2975, %v2980
    %v2983 = vadd.f32 %v60, %v2981
    %v2984 = vadd.f32 %v61, %v2982
    %v2985 = vld [vmem:[%s3 + $0xf] sm:$0x1]
    %v2986 = vld [vmem:[%s3 + $0x10] sm:$0x1]
    %v2987 = vsel %vm22, %v2983, 0.0
    %2988 = vadd.xlane.f32.xlu0 %v2987
    %v2989 = vpop.xlane.xlu0 %2988
    %v2990 = vsel %vm22, %v2984, 0.0
    %2991 = vadd.xlane.f32.xlu0 %v2990
    %v2992 = vpop.xlane.xlu0 %2991
    %v2993 = vmul.f32 %v2989, %v29
    %v2994 = vmul.f32 %v2992, %v29
    %v2995 = vsub.f32 %v2983, %v2993
    %v2996 = vsub.f32 %v2984, %v2994
    %v2997 = vmul.f32 %v2995, %v2995
    %v2998 = vmul.f32 %v2996, %v2996
    %v2999 = vsel %vm22, %v2997, 0.0
    %3000 = vadd.xlane.f32.xlu0 %v2999
    %v3001 = vpop.xlane.xlu0 %3000
    %v3002 = vsel %vm22, %v2998, 0.0
    %3003 = vadd.xlane.f32.xlu0 %v3002
    %v3004 = vpop.xlane.xlu0 %3003
    %v3005 = vmul.f32 %v3001, %v29
    %v3006 = vmul.f32 %v3004, %v29
    %v3007 = vadd.f32 %v3005, 1e-12
    %v3008 = vadd.f32 %v3006, 1e-12
    %v3009 = vrsqrt.pop %v3007
    %v3010 = vrsqrt.pop %v3008
    %v3011 = vmul.f32 %v2995, %v3009
    %v3012 = vmul.f32 %v2996, %v3010
    %v3013 = vlaneseq
    %v3014 = vshrl.u32 %v3013, 7
    %v3015 = vsub.s32 0, %v3014
    %v3016 = vrot.slane %v2985, %v3015
    %v3017 = vmul.f32 %v3011, %v3016
    %v3018 = vmul.f32 %v3012, %v3016
    %v3019 = vlaneseq
    %v3020 = vshrl.u32 %v3019, 7
    %v3021 = vsub.s32 0, %v3020
    %v3022 = vrot.slane %v2986, %v3021
    %v3023 = vadd.f32 %v3017, %v3022
    %v3024 = vadd.f32 %v3018, %v3022
    %v3025 = vld [vmem:[%s2 + $0x80] sm:$0xff]
    %v3026 = vld [vmem:[%s2 + $0x88] sm:$0xff]
    %v3027 = vld [vmem:[%s2 + $0x90] sm:$0xff]
    %v3028 = vld [vmem:[%s2 + $0x98] sm:$0xff]
    %v3029 = vld [vmem:[%s2 + $0xa0] sm:$0xff]
    %v3030 = vld [vmem:[%s2 + $0xa8] sm:$0xff]
    %v3031 = vld [vmem:[%s2 + $0xb0] sm:$0xff]
    %v3032 = vld [vmem:[%s2 + $0xb8] sm:$0xff]
    %v3033 = vld [vmem:[%s3 + $0x11] sm:$0x1]
    %v3034 = vlaneseq
    %v3035 = vshrl.u32 %v3034, 7
    %v3036 = vsub.s32 0, %v3035
    %v3037 = vrot.slane %v3033, %v3036
    %v3039 = vsel %vm22, %v3023, 0
    %v3042 = vsel %vm22, %v3024, 0
    %v3045 = vsel %vm22, %v3025, 0
    %v3048 = vsel %vm22, %v3026, 0
    %v3051 = vsel %vm22, %v3027, 0
    %v3054 = vsel %vm22, %v3028, 0
    %v3057 = vsel %vm22, %v3029, 0
    %v3060 = vsel %vm22, %v3030, 0
    %v3063 = vsel %vm22, %v3031, 0
    %v3066 = vsel %vm22, %v3032, 0
    %3068 = vmatprep.subr.mxu0 0.0
    %3069 = vmatpush1.xpose.msra.mxu0 %v3045
    %3070 = vmatprep.subr.mxu0 0.0
    %3071 = vmatpush1.xpose.msra.mxu0 %v3048
    %3072 = vmatprep.subr.mxu0 0.0
    %3073 = vmatpush1.xpose.msra.mxu0 %v3051
    %3074 = vmatprep.subr.mxu0 0.0
    %3075 = vmatpush1.xpose.msra.mxu0 %v3054
    %3076 = vmatprep.subr.mxu0 0.0
    %3077 = vmatpush1.xpose.msra.mxu0 %v3057
    %3078 = vmatprep.subr.mxu0 0.0
    %3079 = vmatpush1.xpose.msra.mxu0 %v3060
    %3080 = vmatprep.subr.mxu0 0.0
    %3081 = vmatpush1.xpose.msra.mxu0 %v3063
    %3082 = vmatprep.subr.mxu0 0.0
    %3083 = vmatpush1.xpose.msra.mxu0 %v3066
    %3084 = vmatprep.subr.mxu0 0.0
    %3085 = vmatpush1.xpose.msra.mxu0 0.0
    %3086 = vmatprep.subr.mxu0 0.0
    %3087 = vmatpush1.xpose.msra.mxu0 0.0
    %3088 = vmatprep.subr.mxu0 0.0
    %3089 = vmatpush1.xpose.msra.mxu0 0.0
    %3090 = vmatprep.subr.mxu0 0.0
    %3091 = vmatpush1.xpose.msra.mxu0 0.0
    %3092 = vmatprep.subr.mxu0 0.0
    %3093 = vmatpush1.xpose.msra.mxu0 0.0
    %3094 = vmatprep.subr.mxu0 0.0
    %3095 = vmatpush1.xpose.msra.mxu0 0.0
    %3096 = vmatprep.subr.mxu0 0.0
    %3097 = vmatpush1.xpose.msra.mxu0 0.0
    %3098 = vmatprep.subr.mxu0 0.0
    %3099 = vmatpush1.xpose.msra.mxu0 0.0
    %3100 = vmatprep.subr.mxu0 0.0
    %3101 = vmatpush1.xpose.msra.mxu0 0.0
    %3102 = vmatprep.subr.mxu0 0.0
    %3103 = vmatpush1.xpose.msra.mxu0 0.0
    %3104 = vmatprep.subr.mxu0 0.0
    %3105 = vmatpush1.xpose.msra.mxu0 0.0
    %3106 = vmatprep.subr.mxu0 0.0
    %3107 = vmatpush1.xpose.msra.mxu0 0.0
    %3108 = vmatprep.subr.mxu0 0.0
    %3109 = vmatpush1.xpose.msra.mxu0 0.0
    %3110 = vmatprep.subr.mxu0 0.0
    %3111 = vmatpush1.xpose.msra.mxu0 0.0
    %3112 = vmatprep.subr.mxu0 0.0
    %3113 = vmatpush1.xpose.msra.mxu0 0.0
    %3114 = vmatprep.subr.mxu0 0.0
    %3115 = vmatpush1.xpose.msra.mxu0 0.0
    %3116 = vmatprep.subr.mxu0 0.0
    %3117 = vmatpush1.xpose.msra.mxu0 0.0
    %3118 = vmatprep.subr.mxu0 0.0
    %3119 = vmatpush1.xpose.msra.mxu0 0.0
    %3120 = vmatprep.subr.mxu0 0.0
    %3121 = vmatpush1.xpose.msra.mxu0 0.0
    %3122 = vmatprep.subr.mxu0 0.0
    %3123 = vmatpush1.xpose.msra.mxu0 0.0
    %3124 = vmatprep.subr.mxu0 0.0
    %3125 = vmatpush1.xpose.msra.mxu0 0.0
    %3126 = vmatprep.subr.mxu0 0.0
    %3127 = vmatpush1.xpose.msra.mxu0 0.0
    %3128 = vmatprep.subr.mxu0 0.0
    %3129 = vmatpush1.xpose.msra.mxu0 0.0
    %3130 = vmatprep.subr.mxu0 0.0
    %3131 = vmatpush1.xpose.msra.mxu0 0.0
    %3132 = vmatprep.mubr.f32.mxu0 0.0
    %3133 = vmatmul.mubr.f32.gmra.mrb[0].mxu0 %v3039
    %v3134 = vpop.f32.mrb[0].mxu0
    %v3135 = vadd.f32 %v3037, %v3134
    %v3136 = vpop.f32.mrb[0].mxu0
    %3137 = vmatprep.mubr.f32.mxu0 0.0
    %3138 = vmatmul.mubr.f32.gmra.mrb[0].mxu0 %v3042
    %v3139 = vpop.f32.mrb[0].mxu0
    %v3140 = vadd.f32 %v3037, %v3139
    %v3141 = vpop.f32.mrb[0].mxu0
    %3142 = vdwg.mxu0
    %v3143 = vmul.f32 %v3135, 0.5
    %v3144 = vmul.f32 %v3140, 0.5
    %v3145 = vmul.f32 %v3135, 0.70710677
    %v3146 = vmul.f32 %v3140, 0.70710677
    %vm3147 = vcmp.ge.f32.partialorder %v3145, 0.0
    %vm3148 = vcmp.ge.f32.partialorder %v3146, 0.0
    %v3149 = vsel %vm3147, 1.0, -1.0
    %v3150 = vsel %vm3148, 1.0, -1.0
    %v3151 = vand.u32 2147483647, %v3145
    %v3152 = vand.u32 2147483647, %v3146
    %v3153 = vmul.f32 %v3151, 0.3275911
    %v3154 = vmul.f32 %v3152, 0.3275911
    %v3155 = vadd.f32 %v3153, 1.0
    %v3156 = vadd.f32 %v3154, 1.0
    %v3157 = vrcp.pop %v3155
    %v3158 = vmul.f32 1.0, %v3157
    %v3159 = vrcp.pop %v3156
    %v3160 = vmul.f32 1.0, %v3159
    %v3161 = vmul.f32 %v3158, 1.0614054
    %v3162 = vmul.f32 %v3160, 1.0614054
    %v3163 = vadd.f32 %v3161, -1.4531521
    %v3164 = vadd.f32 %v3162, -1.4531521
    %v3165 = vmul.f32 %v3163, %v3158
    %v3166 = vmul.f32 %v3164, %v3160
    %v3167 = vadd.f32 %v3165, 1.4214138
    %v3168 = vadd.f32 %v3166, 1.4214138
    %v3169 = vmul.f32 %v3167, %v3158
    %v3170 = vmul.f32 %v3168, %v3160
    %v3171 = vadd.f32 %v3169, -0.28449672
    %v3172 = vadd.f32 %v3170, -0.28449672
    %v3173 = vmul.f32 %v3171, %v3158
    %v3174 = vmul.f32 %v3172, %v3160
    %v3175 = vadd.f32 %v3173, 0.2548296
    %v3176 = vadd.f32 %v3174, 0.2548296
    %v3177 = vmul.f32 %v3175, %v3158
    %v3178 = vmul.f32 %v3176, %v3160
    %v3179 = vsub.f32 0.0, %v3151
    %v3180 = vsub.f32 0.0, %v3152
    %v3181 = vmul.f32 %v3179, %v3151
    %v3182 = vmul.f32 %v3180, %v3152
    %v3183 = vmul.f32 %v3181, 1.442695
    %v3184 = vpow.pop %v3183
    %v3185 = vmul.f32 %v3182, 1.442695
    %v3186 = vpow.pop %v3185
    %v3187 = vmul.f32 %v3177, %v3184
    %v3188 = vmul.f32 %v3178, %v3186
    %v3189 = vsub.f32 1.0, %v3187
    %v3190 = vsub.f32 1.0, %v3188
    %v3191 = vmul.f32 %v3149, %v3189
    %v3192 = vmul.f32 %v3150, %v3190
    %v3193 = vadd.f32 %v3191, 1.0
    %v3194 = vadd.f32 %v3192, 1.0
    %v3195 = vmul.f32 %v3143, %v3193
    %v3196 = vmul.f32 %v3144, %v3194
    %v3197 = vld [vmem:[%s2 + $0xc0] sm:$0xff]
    %v3198 = vld [vmem:[%s2 + $0xc8] sm:$0xff]
    %v3199 = vld [vmem:[%s2 + $0xd0] sm:$0xff]
    %v3200 = vld [vmem:[%s2 + $0xd8] sm:$0xff]
    %v3201 = vld [vmem:[%s2 + $0xe0] sm:$0xff]
    %v3202 = vld [vmem:[%s2 + $0xe8] sm:$0xff]
    %v3203 = vld [vmem:[%s2 + $0xf0] sm:$0xff]
    %v3204 = vld [vmem:[%s2 + $0xf8] sm:$0xff]
    %v3205 = vld [vmem:[%s3 + $0x12] sm:$0x1]
    %v3206 = vlaneseq
    %v3207 = vshrl.u32 %v3206, 7
    %v3208 = vsub.s32 0, %v3207
    %v3209 = vrot.slane %v3205, %v3208
    %vm3210 = vcmask 523264
    %v3212 = vsel %vm3210, %v3195, 0
    %v3215 = vsel %vm3210, %v3196, 0
    %3217 = vmatprep.subr.mxu0 0.0
    %3218 = vmatpush1.msra.mxu0 %v3197
    %3219 = vmatprep.subr.mxu0 0.0
    %3220 = vmatpush1.msra.mxu0 %v3198
    %3221 = vmatprep.subr.mxu0 0.0
    %3222 = vmatpush1.msra.mxu0 %v3199
    %3223 = vmatprep.subr.mxu0 0.0
    %3224 = vmatpush1.msra.mxu0 %v3200
    %3225 = vmatprep.subr.mxu0 0.0
    %3226 = vmatpush1.msra.mxu0 %v3201
    %3227 = vmatprep.subr.mxu0 0.0
    %3228 = vmatpush1.msra.mxu0 %v3202
    %3229 = vmatprep.subr.mxu0 0.0
    %3230 = vmatpush1.msra.mxu0 %v3203
    %3231 = vmatprep.subr.mxu0 0.0
    %3232 = vmatpush1.msra.mxu0 %v3204
    %3233 = vmatprep.subr.mxu0 0.0
    %3234 = vmatpush1.msra.mxu0 0.0
    %3235 = vmatprep.subr.mxu0 0.0
    %3236 = vmatpush1.msra.mxu0 0.0
    %3237 = vmatprep.subr.mxu0 0.0
    %3238 = vmatpush1.msra.mxu0 0.0
    %3239 = vmatprep.subr.mxu0 0.0
    %3240 = vmatpush1.msra.mxu0 0.0
    %3241 = vmatprep.subr.mxu0 0.0
    %3242 = vmatpush1.msra.mxu0 0.0
    %3243 = vmatprep.subr.mxu0 0.0
    %3244 = vmatpush1.msra.mxu0 0.0
    %3245 = vmatprep.subr.mxu0 0.0
    %3246 = vmatpush1.msra.mxu0 0.0
    %3247 = vmatprep.subr.mxu0 0.0
    %3248 = vmatpush1.msra.mxu0 0.0
    %3249 = vmatprep.subr.mxu0 0.0
    %3250 = vmatpush1.msra.mxu0 0.0
    %3251 = vmatprep.subr.mxu0 0.0
    %3252 = vmatpush1.msra.mxu0 0.0
    %3253 = vmatprep.subr.mxu0 0.0
    %3254 = vmatpush1.msra.mxu0 0.0
    %3255 = vmatprep.subr.mxu0 0.0
    %3256 = vmatpush1.msra.mxu0 0.0
    %3257 = vmatprep.subr.mxu0 0.0
    %3258 = vmatpush1.msra.mxu0 0.0
    %3259 = vmatprep.subr.mxu0 0.0
    %3260 = vmatpush1.msra.mxu0 0.0
    %3261 = vmatprep.subr.mxu0 0.0
    %3262 = vmatpush1.msra.mxu0 0.0
    %3263 = vmatprep.subr.mxu0 0.0
    %3264 = vmatpush1.msra.mxu0 0.0
    %3265 = vmatprep.subr.mxu0 0.0
    %3266 = vmatpush1.msra.mxu0 0.0
    %3267 = vmatprep.subr.mxu0 0.0
    %3268 = vmatpush1.msra.mxu0 0.0
    %3269 = vmatprep.subr.mxu0 0.0
    %3270 = vmatpush1.msra.mxu0 0.0
    %3271 = vmatprep.subr.mxu0 0.0
    %3272 = vmatpush1.msra.mxu0 0.0
    %3273 = vmatprep.subr.mxu0 0.0
    %3274 = vmatpush1.msra.mxu0 0.0
    %3275 = vmatprep.subr.mxu0 0.0
    %3276 = vmatpush1.msra.mxu0 0.0
    %3277 = vmatprep.subr.mxu0 0.0
    %3278 = vmatpush1.msra.mxu0 0.0
    %3279 = vmatprep.subr.mxu0 0.0
    %3280 = vmatpush1.msra.mxu0 0.0
    %3281 = vmatprep.mubr.f32.mxu0 0.0
    %3282 = vmatmul.mubr.f32.gmra.mrb[0].mxu0 %v3212
    %v3283 = vpop.f32.mrb[0].mxu0
    %v3284 = vadd.f32 %v3209, %v3283
    %v3285 = vpop.f32.mrb[0].mxu0
    %3286 = vmatprep.mubr.f32.mxu0 0.0
    %3287 = vmatmul.mubr.f32.gmra.mrb[0].mxu0 %v3215
    %v3288 = vpop.f32.mrb[0].mxu0
    %v3289 = vadd.f32 %v3209, %v3288
    %v3290 = vpop.f32.mrb[0].mxu0
    %3291 = vdwg.mxu0
    %v3292 = vadd.f32 %v3023, %v3284
    %v3293 = vadd.f32 %v3024, %v3289
    %v3294 = vld [vmem:[%s3 + $0x13] sm:$0x1]
    %v3295 = vld [vmem:[%s3 + $0x14] sm:$0x1]
    %v3296 = vsel %vm22, %v3292, 0.0
    %3297 = vadd.xlane.f32.xlu0 %v3296
    %v3298 = vpop.xlane.xlu0 %3297
    %v3299 = vsel %vm22, %v3293, 0.0
    %3300 = vadd.xlane.f32.xlu0 %v3299
    %v3301 = vpop.xlane.xlu0 %3300
    %v3302 = vmul.f32 %v3298, %v29
    %v3303 = vmul.f32 %v3301, %v29
    %v3304 = vsub.f32 %v3292, %v3302
    %v3305 = vsub.f32 %v3293, %v3303
    %v3306 = vmul.f32 %v3304, %v3304
    %v3307 = vmul.f32 %v3305, %v3305
    %v3308 = vsel %vm22, %v3306, 0.0
    %3309 = vadd.xlane.f32.xlu0 %v3308
    %v3310 = vpop.xlane.xlu0 %3309
    %v3311 = vsel %vm22, %v3307, 0.0
    %3312 = vadd.xlane.f32.xlu0 %v3311
    %v3313 = vpop.xlane.xlu0 %3312
    %v3314 = vmul.f32 %v3310, %v29
    %v3315 = vmul.f32 %v3313, %v29
    %v3316 = vadd.f32 %v3314, 1e-12
    %v3317 = vadd.f32 %v3315, 1e-12
    %v3318 = vrsqrt.pop %v3316
    %v3319 = vrsqrt.pop %v3317
    %v3320 = vmul.f32 %v3304, %v3318
    %v3321 = vmul.f32 %v3305, %v3319
    %v3322 = vlaneseq
    %v3323 = vshrl.u32 %v3322, 7
    %v3324 = vsub.s32 0, %v3323
    %v3325 = vrot.slane %v3294, %v3324
    %v3326 = vmul.f32 %v3320, %v3325
    %v3327 = vmul.f32 %v3321, %v3325
    %v3328 = vlaneseq
    %v3329 = vshrl.u32 %v3328, 7
    %v3330 = vsub.s32 0, %v3329
    %v3331 = vrot.slane %v3295, %v3330
    %v3332 = vadd.f32 %v3326, %v3331
    %v3333 = vadd.f32 %v3327, %v3331
    %v3334 = vld [vmem:[%s2 + $0x100] sm:$0xff]
    %v3335 = vld [vmem:[%s3 + $0x15] sm:$0x1]
    %v3336 = vlaneseq
    %v3337 = vshrl.u32 %v3336, 7
    %v3338 = vsub.s32 0, %v3337
    %v3339 = vrot.slane %v3335, %v3338
    %v3341 = vsel %vm22, %v3332, 0
    %v3344 = vsel %vm22, %v3333, 0
    %v3347 = vsel %vm22, %v3334, 0
    %3349 = vmatprep.subr.mxu0 0.0
    %3350 = vmatpush1.xpose.msra.mxu0 %v3347
    %3351 = vmatprep.subr.mxu0 0.0
    %3352 = vmatpush1.xpose.msra.mxu0 0.0
    %3353 = vmatprep.subr.mxu0 0.0
    %3354 = vmatpush1.xpose.msra.mxu0 0.0
    %3355 = vmatprep.subr.mxu0 0.0
    %3356 = vmatpush1.xpose.msra.mxu0 0.0
    %3357 = vmatprep.subr.mxu0 0.0
    %3358 = vmatpush1.xpose.msra.mxu0 0.0
    %3359 = vmatprep.subr.mxu0 0.0
    %3360 = vmatpush1.xpose.msra.mxu0 0.0
    %3361 = vmatprep.subr.mxu0 0.0
    %3362 = vmatpush1.xpose.msra.mxu0 0.0
    %3363 = vmatprep.subr.mxu0 0.0
    %3364 = vmatpush1.xpose.msra.mxu0 0.0
    %3365 = vmatprep.subr.mxu0 0.0
    %3366 = vmatpush1.xpose.msra.mxu0 0.0
    %3367 = vmatprep.subr.mxu0 0.0
    %3368 = vmatpush1.xpose.msra.mxu0 0.0
    %3369 = vmatprep.subr.mxu0 0.0
    %3370 = vmatpush1.xpose.msra.mxu0 0.0
    %3371 = vmatprep.subr.mxu0 0.0
    %3372 = vmatpush1.xpose.msra.mxu0 0.0
    %3373 = vmatprep.subr.mxu0 0.0
    %3374 = vmatpush1.xpose.msra.mxu0 0.0
    %3375 = vmatprep.subr.mxu0 0.0
    %3376 = vmatpush1.xpose.msra.mxu0 0.0
    %3377 = vmatprep.subr.mxu0 0.0
    %3378 = vmatpush1.xpose.msra.mxu0 0.0
    %3379 = vmatprep.subr.mxu0 0.0
    %3380 = vmatpush1.xpose.msra.mxu0 0.0
    %3381 = vmatprep.subr.mxu0 0.0
    %3382 = vmatpush1.xpose.msra.mxu0 0.0
    %3383 = vmatprep.subr.mxu0 0.0
    %3384 = vmatpush1.xpose.msra.mxu0 0.0
    %3385 = vmatprep.subr.mxu0 0.0
    %3386 = vmatpush1.xpose.msra.mxu0 0.0
    %3387 = vmatprep.subr.mxu0 0.0
    %3388 = vmatpush1.xpose.msra.mxu0 0.0
    %3389 = vmatprep.subr.mxu0 0.0
    %3390 = vmatpush1.xpose.msra.mxu0 0.0
    %3391 = vmatprep.subr.mxu0 0.0
    %3392 = vmatpush1.xpose.msra.mxu0 0.0
    %3393 = vmatprep.subr.mxu0 0.0
    %3394 = vmatpush1.xpose.msra.mxu0 0.0
    %3395 = vmatprep.subr.mxu0 0.0
    %3396 = vmatpush1.xpose.msra.mxu0 0.0
    %3397 = vmatprep.subr.mxu0 0.0
    %3398 = vmatpush1.xpose.msra.mxu0 0.0
    %3399 = vmatprep.subr.mxu0 0.0
    %3400 = vmatpush1.xpose.msra.mxu0 0.0
    %3401 = vmatprep.subr.mxu0 0.0
    %3402 = vmatpush1.xpose.msra.mxu0 0.0
    %3403 = vmatprep.subr.mxu0 0.0
    %3404 = vmatpush1.xpose.msra.mxu0 0.0
    %3405 = vmatprep.subr.mxu0 0.0
    %3406 = vmatpush1.xpose.msra.mxu0 0.0
    %3407 = vmatprep.subr.mxu0 0.0
    %3408 = vmatpush1.xpose.msra.mxu0 0.0
    %3409 = vmatprep.subr.mxu0 0.0
    %3410 = vmatpush1.xpose.msra.mxu0 0.0
    %3411 = vmatprep.subr.mxu0 0.0
    %3412 = vmatpush1.xpose.msra.mxu0 0.0
    %3413 = vmatprep.mubr.f32.mxu0 0.0
    %3414 = vmatmul.mubr.f32.gmra.mrb[0].mxu0 %v3341
    %v3415 = vpop.f32.mrb[0].mxu0
    %v3416 = vadd.f32 %v3339, %v3415
    %v3417 = vpop.f32.mrb[0].mxu0
    %3418 = vmatprep.mubr.f32.mxu0 0.0
    %3419 = vmatmul.mubr.f32.gmra.mrb[0].mxu0 %v3344
    %v3420 = vpop.f32.mrb[0].mxu0
    %v3421 = vadd.f32 %v3339, %v3420
    %v3422 = vpop.f32.mrb[0].mxu0
    %3423 = vdwg.mxu0
    %v3424 = vld [vmem:[%s2 + $0x108] sm:$0xff]
    %v3425 = vld [vmem:[%s3 + $0x16] sm:$0x1]
    %v3426 = vlaneseq
    %v3427 = vshrl.u32 %v3426, 7
    %v3428 = vsub.s32 0, %v3427
    %v3429 = vrot.slane %v3425, %v3428
    %v3431 = vsel %vm22, %v3424, 0
    %3433 = vmatprep.subr.mxu0 0.0
    %3434 = vmatpush1.xpose.msra.mxu0 %v3431
    %3435 = vmatprep.subr.mxu0 0.0
    %3436 = vmatpush1.xpose.msra.mxu0 0.0
    %3437 = vmatprep.subr.mxu0 0.0
    %3438 = vmatpush1.xpose.msra.mxu0 0.0
    %3439 = vmatprep.subr.mxu0 0.0
    %3440 = vmatpush1.xpose.msra.mxu0 0.0
    %3441 = vmatprep.subr.mxu0 0.0
    %3442 = vmatpush1.xpose.msra.mxu0 0.0
    %3443 = vmatprep.subr.mxu0 0.0
    %3444 = vmatpush1.xpose.msra.mxu0 0.0
    %3445 = vmatprep.subr.mxu0 0.0
    %3446 = vmatpush1.xpose.msra.mxu0 0.0
    %3447 = vmatprep.subr.mxu0 0.0
    %3448 = vmatpush1.xpose.msra.mxu0 0.0
    %3449 = vmatprep.subr.mxu0 0.0
    %3450 = vmatpush1.xpose.msra.mxu0 0.0
    %3451 = vmatprep.subr.mxu0 0.0
    %3452 = vmatpush1.xpose.msra.mxu0 0.0
    %3453 = vmatprep.subr.mxu0 0.0
    %3454 = vmatpush1.xpose.msra.mxu0 0.0
    %3455 = vmatprep.subr.mxu0 0.0
    %3456 = vmatpush1.xpose.msra.mxu0 0.0
    %3457 = vmatprep.subr.mxu0 0.0
    %3458 = vmatpush1.xpose.msra.mxu0 0.0
    %3459 = vmatprep.subr.mxu0 0.0
    %3460 = vmatpush1.xpose.msra.mxu0 0.0
    %3461 = vmatprep.subr.mxu0 0.0
    %3462 = vmatpush1.xpose.msra.mxu0 0.0
    %3463 = vmatprep.subr.mxu0 0.0
    %3464 = vmatpush1.xpose.msra.mxu0 0.0
    %3465 = vmatprep.subr.mxu0 0.0
    %3466 = vmatpush1.xpose.msra.mxu0 0.0
    %3467 = vmatprep.subr.mxu0 0.0
    %3468 = vmatpush1.xpose.msra.mxu0 0.0
    %3469 = vmatprep.subr.mxu0 0.0
    %3470 = vmatpush1.xpose.msra.mxu0 0.0
    %3471 = vmatprep.subr.mxu0 0.0
    %3472 = vmatpush1.xpose.msra.mxu0 0.0
    %3473 = vmatprep.subr.mxu0 0.0
    %3474 = vmatpush1.xpose.msra.mxu0 0.0
    %3475 = vmatprep.subr.mxu0 0.0
    %3476 = vmatpush1.xpose.msra.mxu0 0.0
    %3477 = vmatprep.subr.mxu0 0.0
    %3478 = vmatpush1.xpose.msra.mxu0 0.0
    %3479 = vmatprep.subr.mxu0 0.0
    %3480 = vmatpush1.xpose.msra.mxu0 0.0
    %3481 = vmatprep.subr.mxu0 0.0
    %3482 = vmatpush1.xpose.msra.mxu0 0.0
    %3483 = vmatprep.subr.mxu0 0.0
    %3484 = vmatpush1.xpose.msra.mxu0 0.0
    %3485 = vmatprep.subr.mxu0 0.0
    %3486 = vmatpush1.xpose.msra.mxu0 0.0
    %3487 = vmatprep.subr.mxu0 0.0
    %3488 = vmatpush1.xpose.msra.mxu0 0.0
    %3489 = vmatprep.subr.mxu0 0.0
    %3490 = vmatpush1.xpose.msra.mxu0 0.0
    %3491 = vmatprep.subr.mxu0 0.0
    %3492 = vmatpush1.xpose.msra.mxu0 0.0
    %3493 = vmatprep.subr.mxu0 0.0
    %3494 = vmatpush1.xpose.msra.mxu0 0.0
    %3495 = vmatprep.subr.mxu0 0.0
    %3496 = vmatpush1.xpose.msra.mxu0 0.0
    %3497 = vmatprep.mubr.f32.mxu0 0.0
    %3498 = vmatmul.mubr.f32.gmra.mrb[0].mxu0 %v3341
    %v3499 = vpop.f32.mrb[0].mxu0
    %v3500 = vadd.f32 %v3429, %v3499
    %v3501 = vpop.f32.mrb[0].mxu0
    %3502 = vmatprep.mubr.f32.mxu0 0.0
    %3503 = vmatmul.mubr.f32.gmra.mrb[0].mxu0 %v3344
    %v3504 = vpop.f32.mrb[0].mxu0
    %v3505 = vadd.f32 %v3429, %v3504
    %v3506 = vpop.f32.mrb[0].mxu0
    %3507 = vdwg.mxu0
    %v3508 = vld [vmem:[%s2 + $0x110] sm:$0xff]
    %v3509 = vld [vmem:[%s3 + $0x17] sm:$0x1]
    %v3510 = vlaneseq
    %v3511 = vshrl.u32 %v3510, 7
    %v3512 = vsub.s32 0, %v3511
    %v3513 = vrot.slane %v3509, %v3512
    %v3515 = vsel %vm22, %v3508, 0
    %3517 = vmatprep.subr.mxu0 0.0
    %3518 = vmatpush1.xpose.msra.mxu0 %v3515
    %3519 = vmatprep.subr.mxu0 0.0
    %3520 = vmatpush1.xpose.msra.mxu0 0.0
    %3521 = vmatprep.subr.mxu0 0.0
    %3522 = vmatpush1.xpose.msra.mxu0 0.0
    %3523 = vmatprep.subr.mxu0 0.0
    %3524 = vmatpush1.xpose.msra.mxu0 0.0
    %3525 = vmatprep.subr.mxu0 0.0
    %3526 = vmatpush1.xpose.msra.mxu0 0.0
    %3527 = vmatprep.subr.mxu0 0.0
    %3528 = vmatpush1.xpose.msra.mxu0 0.0
    %3529 = vmatprep.subr.mxu0 0.0
    %3530 = vmatpush1.xpose.msra.mxu0 0.0
    %3531 = vmatprep.subr.mxu0 0.0
    %3532 = vmatpush1.xpose.msra.mxu0 0.0
    %3533 = vmatprep.subr.mxu0 0.0
    %3534 = vmatpush1.xpose.msra.mxu0 0.0
    %3535 = vmatprep.subr.mxu0 0.0
    %3536 = vmatpush1.xpose.msra.mxu0 0.0
    %3537 = vmatprep.subr.mxu0 0.0
    %3538 = vmatpush1.xpose.msra.mxu0 0.0
    %3539 = vmatprep.subr.mxu0 0.0
    %3540 = vmatpush1.xpose.msra.mxu0 0.0
    %3541 = vmatprep.subr.mxu0 0.0
    %3542 = vmatpush1.xpose.msra.mxu0 0.0
    %3543 = vmatprep.subr.mxu0 0.0
    %3544 = vmatpush1.xpose.msra.mxu0 0.0
    %3545 = vmatprep.subr.mxu0 0.0
    %3546 = vmatpush1.xpose.msra.mxu0 0.0
    %3547 = vmatprep.subr.mxu0 0.0
    %3548 = vmatpush1.xpose.msra.mxu0 0.0
    %3549 = vmatprep.subr.mxu0 0.0
    %3550 = vmatpush1.xpose.msra.mxu0 0.0
    %3551 = vmatprep.subr.mxu0 0.0
    %3552 = vmatpush1.xpose.msra.mxu0 0.0
    %3553 = vmatprep.subr.mxu0 0.0
    %3554 = vmatpush1.xpose.msra.mxu0 0.0
    %3555 = vmatprep.subr.mxu0 0.0
    %3556 = vmatpush1.xpose.msra.mxu0 0.0
    %3557 = vmatprep.subr.mxu0 0.0
    %3558 = vmatpush1.xpose.msra.mxu0 0.0
    %3559 = vmatprep.subr.mxu0 0.0
    %3560 = vmatpush1.xpose.msra.mxu0 0.0
    %3561 = vmatprep.subr.mxu0 0.0
    %3562 = vmatpush1.xpose.msra.mxu0 0.0
    %3563 = vmatprep.subr.mxu0 0.0
    %3564 = vmatpush1.xpose.msra.mxu0 0.0
    %3565 = vmatprep.subr.mxu0 0.0
    %3566 = vmatpush1.xpose.msra.mxu0 0.0
    %3567 = vmatprep.subr.mxu0 0.0
    %3568 = vmatpush1.xpose.msra.mxu0 0.0
    %3569 = vmatprep.subr.mxu0 0.0
    %3570 = vmatpush1.xpose.msra.mxu0 0.0
    %3571 = vmatprep.subr.mxu0 0.0
    %3572 = vmatpush1.xpose.msra.mxu0 0.0
    %3573 = vmatprep.subr.mxu0 0.0
    %3574 = vmatpush1.xpose.msra.mxu0 0.0
    %3575 = vmatprep.subr.mxu0 0.0
    %3576 = vmatpush1.xpose.msra.mxu0 0.0
    %3577 = vmatprep.subr.mxu0 0.0
    %3578 = vmatpush1.xpose.msra.mxu0 0.0
    %3579 = vmatprep.subr.mxu0 0.0
    %3580 = vmatpush1.xpose.msra.mxu0 0.0
    %3581 = vmatprep.mubr.f32.mxu0 0.0
    %3582 = vmatmul.mubr.f32.gmra.mrb[0].mxu0 %v3341
    %v3583 = vpop.f32.mrb[0].mxu0
    %v3584 = vadd.f32 %v3513, %v3583
    %v3585 = vpop.f32.mrb[0].mxu0
    %3586 = vmatprep.mubr.f32.mxu0 0.0
    %3587 = vmatmul.mubr.f32.gmra.mrb[0].mxu0 %v3344
    %v3588 = vpop.f32.mrb[0].mxu0
    %v3589 = vadd.f32 %v3513, %v3588
    %v3590 = vpop.f32.mrb[0].mxu0
    %3591 = vdwg.mxu0
    %v3592 = vld [vmem:[%s2 + $0x118] sm:$0xff]
    %v3593 = vld [vmem:[%s3 + $0x18] sm:$0x1]
    %v3594 = vlaneseq
    %v3595 = vshrl.u32 %v3594, 7
    %v3596 = vsub.s32 0, %v3595
    %v3597 = vrot.slane %v3593, %v3596
    %v3599 = vsel %vm22, %v3592, 0
    %3601 = vmatprep.subr.mxu0 0.0
    %3602 = vmatpush1.xpose.msra.mxu0 %v3599
    %3603 = vmatprep.subr.mxu0 0.0
    %3604 = vmatpush1.xpose.msra.mxu0 0.0
    %3605 = vmatprep.subr.mxu0 0.0
    %3606 = vmatpush1.xpose.msra.mxu0 0.0
    %3607 = vmatprep.subr.mxu0 0.0
    %3608 = vmatpush1.xpose.msra.mxu0 0.0
    %3609 = vmatprep.subr.mxu0 0.0
    %3610 = vmatpush1.xpose.msra.mxu0 0.0
    %3611 = vmatprep.subr.mxu0 0.0
    %3612 = vmatpush1.xpose.msra.mxu0 0.0
    %3613 = vmatprep.subr.mxu0 0.0
    %3614 = vmatpush1.xpose.msra.mxu0 0.0
    %3615 = vmatprep.subr.mxu0 0.0
    %3616 = vmatpush1.xpose.msra.mxu0 0.0
    %3617 = vmatprep.subr.mxu0 0.0
    %3618 = vmatpush1.xpose.msra.mxu0 0.0
    %3619 = vmatprep.subr.mxu0 0.0
    %3620 = vmatpush1.xpose.msra.mxu0 0.0
    %3621 = vmatprep.subr.mxu0 0.0
    %3622 = vmatpush1.xpose.msra.mxu0 0.0
    %3623 = vmatprep.subr.mxu0 0.0
    %3624 = vmatpush1.xpose.msra.mxu0 0.0
    %3625 = vmatprep.subr.mxu0 0.0
    %3626 = vmatpush1.xpose.msra.mxu0 0.0
    %3627 = vmatprep.subr.mxu0 0.0
    %3628 = vmatpush1.xpose.msra.mxu0 0.0
    %3629 = vmatprep.subr.mxu0 0.0
    %3630 = vmatpush1.xpose.msra.mxu0 0.0
    %3631 = vmatprep.subr.mxu0 0.0
    %3632 = vmatpush1.xpose.msra.mxu0 0.0
    %3633 = vmatprep.subr.mxu0 0.0
    %3634 = vmatpush1.xpose.msra.mxu0 0.0
    %3635 = vmatprep.subr.mxu0 0.0
    %3636 = vmatpush1.xpose.msra.mxu0 0.0
    %3637 = vmatprep.subr.mxu0 0.0
    %3638 = vmatpush1.xpose.msra.mxu0 0.0
    %3639 = vmatprep.subr.mxu0 0.0
    %3640 = vmatpush1.xpose.msra.mxu0 0.0
    %3641 = vmatprep.subr.mxu0 0.0
    %3642 = vmatpush1.xpose.msra.mxu0 0.0
    %3643 = vmatprep.subr.mxu0 0.0
    %3644 = vmatpush1.xpose.msra.mxu0 0.0
    %3645 = vmatprep.subr.mxu0 0.0
    %3646 = vmatpush1.xpose.msra.mxu0 0.0
    %3647 = vmatprep.subr.mxu0 0.0
    %3648 = vmatpush1.xpose.msra.mxu0 0.0
    %3649 = vmatprep.subr.mxu0 0.0
    %3650 = vmatpush1.xpose.msra.mxu0 0.0
    %3651 = vmatprep.subr.mxu0 0.0
    %3652 = vmatpush1.xpose.msra.mxu0 0.0
    %3653 = vmatprep.subr.mxu0 0.0
    %3654 = vmatpush1.xpose.msra.mxu0 0.0
    %3655 = vmatprep.subr.mxu0 0.0
    %3656 = vmatpush1.xpose.msra.mxu0 0.0
    %3657 = vmatprep.subr.mxu0 0.0
    %3658 = vmatpush1.xpose.msra.mxu0 0.0
    %3659 = vmatprep.subr.mxu0 0.0
    %3660 = vmatpush1.xpose.msra.mxu0 0.0
    %3661 = vmatprep.subr.mxu0 0.0
    %3662 = vmatpush1.xpose.msra.mxu0 0.0
    %3663 = vmatprep.subr.mxu0 0.0
    %3664 = vmatpush1.xpose.msra.mxu0 0.0
    %3665 = vmatprep.mubr.f32.mxu0 0.0
    %3666 = vmatmul.mubr.f32.gmra.mrb[0].mxu0 %v3341
    %v3667 = vpop.f32.mrb[0].mxu0
    %v3668 = vadd.f32 %v3597, %v3667
    %v3669 = vpop.f32.mrb[0].mxu0
    %3670 = vmatprep.mubr.f32.mxu0 0.0
    %3671 = vmatmul.mubr.f32.gmra.mrb[0].mxu0 %v3344
    %v3672 = vpop.f32.mrb[0].mxu0
    %v3673 = vadd.f32 %v3597, %v3672
    %v3674 = vpop.f32.mrb[0].mxu0
    %3675 = vdwg.mxu0
    %v3676 = vld [vmem:[%s2 + $0x120] sm:$0xff]
    %v3677 = vld [vmem:[%s3 + $0x19] sm:$0x1]
    %v3678 = vlaneseq
    %v3679 = vshrl.u32 %v3678, 7
    %v3680 = vsub.s32 0, %v3679
    %v3681 = vrot.slane %v3677, %v3680
    %v3683 = vsel %vm22, %v3676, 0
    %3685 = vmatprep.subr.mxu0 0.0
    %3686 = vmatpush1.xpose.msra.mxu0 %v3683
    %3687 = vmatprep.subr.mxu0 0.0
    %3688 = vmatpush1.xpose.msra.mxu0 0.0
    %3689 = vmatprep.subr.mxu0 0.0
    %3690 = vmatpush1.xpose.msra.mxu0 0.0
    %3691 = vmatprep.subr.mxu0 0.0
    %3692 = vmatpush1.xpose.msra.mxu0 0.0
    %3693 = vmatprep.subr.mxu0 0.0
    %3694 = vmatpush1.xpose.msra.mxu0 0.0
    %3695 = vmatprep.subr.mxu0 0.0
    %3696 = vmatpush1.xpose.msra.mxu0 0.0
    %3697 = vmatprep.subr.mxu0 0.0
    %3698 = vmatpush1.xpose.msra.mxu0 0.0
    %3699 = vmatprep.subr.mxu0 0.0
    %3700 = vmatpush1.xpose.msra.mxu0 0.0
    %3701 = vmatprep.subr.mxu0 0.0
    %3702 = vmatpush1.xpose.msra.mxu0 0.0
    %3703 = vmatprep.subr.mxu0 0.0
    %3704 = vmatpush1.xpose.msra.mxu0 0.0
    %3705 = vmatprep.subr.mxu0 0.0
    %3706 = vmatpush1.xpose.msra.mxu0 0.0
    %3707 = vmatprep.subr.mxu0 0.0
    %3708 = vmatpush1.xpose.msra.mxu0 0.0
    %3709 = vmatprep.subr.mxu0 0.0
    %3710 = vmatpush1.xpose.msra.mxu0 0.0
    %3711 = vmatprep.subr.mxu0 0.0
    %3712 = vmatpush1.xpose.msra.mxu0 0.0
    %3713 = vmatprep.subr.mxu0 0.0
    %3714 = vmatpush1.xpose.msra.mxu0 0.0
    %3715 = vmatprep.subr.mxu0 0.0
    %3716 = vmatpush1.xpose.msra.mxu0 0.0
    %3717 = vmatprep.subr.mxu0 0.0
    %3718 = vmatpush1.xpose.msra.mxu0 0.0
    %3719 = vmatprep.subr.mxu0 0.0
    %3720 = vmatpush1.xpose.msra.mxu0 0.0
    %3721 = vmatprep.subr.mxu0 0.0
    %3722 = vmatpush1.xpose.msra.mxu0 0.0
    %3723 = vmatprep.subr.mxu0 0.0
    %3724 = vmatpush1.xpose.msra.mxu0 0.0
    %3725 = vmatprep.subr.mxu0 0.0
    %3726 = vmatpush1.xpose.msra.mxu0 0.0
    %3727 = vmatprep.subr.mxu0 0.0
    %3728 = vmatpush1.xpose.msra.mxu0 0.0
    %3729 = vmatprep.subr.mxu0 0.0
    %3730 = vmatpush1.xpose.msra.mxu0 0.0
    %3731 = vmatprep.subr.mxu0 0.0
    %3732 = vmatpush1.xpose.msra.mxu0 0.0
    %3733 = vmatprep.subr.mxu0 0.0
    %3734 = vmatpush1.xpose.msra.mxu0 0.0
    %3735 = vmatprep.subr.mxu0 0.0
    %3736 = vmatpush1.xpose.msra.mxu0 0.0
    %3737 = vmatprep.subr.mxu0 0.0
    %3738 = vmatpush1.xpose.msra.mxu0 0.0
    %3739 = vmatprep.subr.mxu0 0.0
    %3740 = vmatpush1.xpose.msra.mxu0 0.0
    %3741 = vmatprep.subr.mxu0 0.0
    %3742 = vmatpush1.xpose.msra.mxu0 0.0
    %3743 = vmatprep.subr.mxu0 0.0
    %3744 = vmatpush1.xpose.msra.mxu0 0.0
    %3745 = vmatprep.subr.mxu0 0.0
    %3746 = vmatpush1.xpose.msra.mxu0 0.0
    %3747 = vmatprep.subr.mxu0 0.0
    %3748 = vmatpush1.xpose.msra.mxu0 0.0
    %3749 = vmatprep.mubr.f32.mxu0 0.0
    %3750 = vmatmul.mubr.f32.gmra.mrb[0].mxu0 %v3341
    %v3751 = vpop.f32.mrb[0].mxu0
    %v3752 = vadd.f32 %v3681, %v3751
    %v3753 = vpop.f32.mrb[0].mxu0
    %3754 = vmatprep.mubr.f32.mxu0 0.0
    %3755 = vmatmul.mubr.f32.gmra.mrb[0].mxu0 %v3344
    %v3756 = vpop.f32.mrb[0].mxu0
    %v3757 = vadd.f32 %v3681, %v3756
    %v3758 = vpop.f32.mrb[0].mxu0
    %3759 = vdwg.mxu0
    %v3760 = vld [vmem:[%s2 + $0x128] sm:$0xff]
    %v3761 = vld [vmem:[%s3 + $0x1a] sm:$0x1]
    %v3762 = vlaneseq
    %v3763 = vshrl.u32 %v3762, 7
    %v3764 = vsub.s32 0, %v3763
    %v3765 = vrot.slane %v3761, %v3764
    %v3767 = vsel %vm22, %v3760, 0
    %3769 = vmatprep.subr.mxu0 0.0
    %3770 = vmatpush1.xpose.msra.mxu0 %v3767
    %3771 = vmatprep.subr.mxu0 0.0
    %3772 = vmatpush1.xpose.msra.mxu0 0.0
    %3773 = vmatprep.subr.mxu0 0.0
    %3774 = vmatpush1.xpose.msra.mxu0 0.0
    %3775 = vmatprep.subr.mxu0 0.0
    %3776 = vmatpush1.xpose.msra.mxu0 0.0
    %3777 = vmatprep.subr.mxu0 0.0
    %3778 = vmatpush1.xpose.msra.mxu0 0.0
    %3779 = vmatprep.subr.mxu0 0.0
    %3780 = vmatpush1.xpose.msra.mxu0 0.0
    %3781 = vmatprep.subr.mxu0 0.0
    %3782 = vmatpush1.xpose.msra.mxu0 0.0
    %3783 = vmatprep.subr.mxu0 0.0
    %3784 = vmatpush1.xpose.msra.mxu0 0.0
    %3785 = vmatprep.subr.mxu0 0.0
    %3786 = vmatpush1.xpose.msra.mxu0 0.0
    %3787 = vmatprep.subr.mxu0 0.0
    %3788 = vmatpush1.xpose.msra.mxu0 0.0
    %3789 = vmatprep.subr.mxu0 0.0
    %3790 = vmatpush1.xpose.msra.mxu0 0.0
    %3791 = vmatprep.subr.mxu0 0.0
    %3792 = vmatpush1.xpose.msra.mxu0 0.0
    %3793 = vmatprep.subr.mxu0 0.0
    %3794 = vmatpush1.xpose.msra.mxu0 0.0
    %3795 = vmatprep.subr.mxu0 0.0
    %3796 = vmatpush1.xpose.msra.mxu0 0.0
    %3797 = vmatprep.subr.mxu0 0.0
    %3798 = vmatpush1.xpose.msra.mxu0 0.0
    %3799 = vmatprep.subr.mxu0 0.0
    %3800 = vmatpush1.xpose.msra.mxu0 0.0
    %3801 = vmatprep.subr.mxu0 0.0
    %3802 = vmatpush1.xpose.msra.mxu0 0.0
    %3803 = vmatprep.subr.mxu0 0.0
    %3804 = vmatpush1.xpose.msra.mxu0 0.0
    %3805 = vmatprep.subr.mxu0 0.0
    %3806 = vmatpush1.xpose.msra.mxu0 0.0
    %3807 = vmatprep.subr.mxu0 0.0
    %3808 = vmatpush1.xpose.msra.mxu0 0.0
    %3809 = vmatprep.subr.mxu0 0.0
    %3810 = vmatpush1.xpose.msra.mxu0 0.0
    %3811 = vmatprep.subr.mxu0 0.0
    %3812 = vmatpush1.xpose.msra.mxu0 0.0
    %3813 = vmatprep.subr.mxu0 0.0
    %3814 = vmatpush1.xpose.msra.mxu0 0.0
    %3815 = vmatprep.subr.mxu0 0.0
    %3816 = vmatpush1.xpose.msra.mxu0 0.0
    %3817 = vmatprep.subr.mxu0 0.0
    %3818 = vmatpush1.xpose.msra.mxu0 0.0
    %3819 = vmatprep.subr.mxu0 0.0
    %3820 = vmatpush1.xpose.msra.mxu0 0.0
    %3821 = vmatprep.subr.mxu0 0.0
    %3822 = vmatpush1.xpose.msra.mxu0 0.0
    %3823 = vmatprep.subr.mxu0 0.0
    %3824 = vmatpush1.xpose.msra.mxu0 0.0
    %3825 = vmatprep.subr.mxu0 0.0
    %3826 = vmatpush1.xpose.msra.mxu0 0.0
    %3827 = vmatprep.subr.mxu0 0.0
    %3828 = vmatpush1.xpose.msra.mxu0 0.0
    %3829 = vmatprep.subr.mxu0 0.0
    %3830 = vmatpush1.xpose.msra.mxu0 0.0
    %3831 = vmatprep.subr.mxu0 0.0
    %3832 = vmatpush1.xpose.msra.mxu0 0.0
    %3833 = vmatprep.mubr.f32.mxu0 0.0
    %3834 = vmatmul.mubr.f32.gmra.mrb[0].mxu0 %v3341
    %v3835 = vpop.f32.mrb[0].mxu0
    %v3836 = vadd.f32 %v3765, %v3835
    %v3837 = vpop.f32.mrb[0].mxu0
    %3838 = vmatprep.mubr.f32.mxu0 0.0
    %3839 = vmatmul.mubr.f32.gmra.mrb[0].mxu0 %v3344
    %v3840 = vpop.f32.mrb[0].mxu0
    %v3841 = vadd.f32 %v3765, %v3840
    %v3842 = vpop.f32.mrb[0].mxu0
    %3843 = vdwg.mxu0
    %v3844 = vld [vmem:[%s2 + $0x130] sm:$0xff]
    %v3845 = vld [vmem:[%s3 + $0x1b] sm:$0x1]
    %v3846 = vlaneseq
    %v3847 = vshrl.u32 %v3846, 7
    %v3848 = vsub.s32 0, %v3847
    %v3849 = vrot.slane %v3845, %v3848
    %v3851 = vsel %vm22, %v3844, 0
    %3853 = vmatprep.subr.mxu0 0.0
    %3854 = vmatpush1.xpose.msra.mxu0 %v3851
    %3855 = vmatprep.subr.mxu0 0.0
    %3856 = vmatpush1.xpose.msra.mxu0 0.0
    %3857 = vmatprep.subr.mxu0 0.0
    %3858 = vmatpush1.xpose.msra.mxu0 0.0
    %3859 = vmatprep.subr.mxu0 0.0
    %3860 = vmatpush1.xpose.msra.mxu0 0.0
    %3861 = vmatprep.subr.mxu0 0.0
    %3862 = vmatpush1.xpose.msra.mxu0 0.0
    %3863 = vmatprep.subr.mxu0 0.0
    %3864 = vmatpush1.xpose.msra.mxu0 0.0
    %3865 = vmatprep.subr.mxu0 0.0
    %3866 = vmatpush1.xpose.msra.mxu0 0.0
    %3867 = vmatprep.subr.mxu0 0.0
    %3868 = vmatpush1.xpose.msra.mxu0 0.0
    %3869 = vmatprep.subr.mxu0 0.0
    %3870 = vmatpush1.xpose.msra.mxu0 0.0
    %3871 = vmatprep.subr.mxu0 0.0
    %3872 = vmatpush1.xpose.msra.mxu0 0.0
    %3873 = vmatprep.subr.mxu0 0.0
    %3874 = vmatpush1.xpose.msra.mxu0 0.0
    %3875 = vmatprep.subr.mxu0 0.0
    %3876 = vmatpush1.xpose.msra.mxu0 0.0
    %3877 = vmatprep.subr.mxu0 0.0
    %3878 = vmatpush1.xpose.msra.mxu0 0.0
    %3879 = vmatprep.subr.mxu0 0.0
    %3880 = vmatpush1.xpose.msra.mxu0 0.0
    %3881 = vmatprep.subr.mxu0 0.0
    %3882 = vmatpush1.xpose.msra.mxu0 0.0
    %3883 = vmatprep.subr.mxu0 0.0
    %3884 = vmatpush1.xpose.msra.mxu0 0.0
    %3885 = vmatprep.subr.mxu0 0.0
    %3886 = vmatpush1.xpose.msra.mxu0 0.0
    %3887 = vmatprep.subr.mxu0 0.0
    %3888 = vmatpush1.xpose.msra.mxu0 0.0
    %3889 = vmatprep.subr.mxu0 0.0
    %3890 = vmatpush1.xpose.msra.mxu0 0.0
    %3891 = vmatprep.subr.mxu0 0.0
    %3892 = vmatpush1.xpose.msra.mxu0 0.0
    %3893 = vmatprep.subr.mxu0 0.0
    %3894 = vmatpush1.xpose.msra.mxu0 0.0
    %3895 = vmatprep.subr.mxu0 0.0
    %3896 = vmatpush1.xpose.msra.mxu0 0.0
    %3897 = vmatprep.subr.mxu0 0.0
    %3898 = vmatpush1.xpose.msra.mxu0 0.0
    %3899 = vmatprep.subr.mxu0 0.0
    %3900 = vmatpush1.xpose.msra.mxu0 0.0
    %3901 = vmatprep.subr.mxu0 0.0
    %3902 = vmatpush1.xpose.msra.mxu0 0.0
    %3903 = vmatprep.subr.mxu0 0.0
    %3904 = vmatpush1.xpose.msra.mxu0 0.0
    %3905 = vmatprep.subr.mxu0 0.0
    %3906 = vmatpush1.xpose.msra.mxu0 0.0
    %3907 = vmatprep.subr.mxu0 0.0
    %3908 = vmatpush1.xpose.msra.mxu0 0.0
    %3909 = vmatprep.subr.mxu0 0.0
    %3910 = vmatpush1.xpose.msra.mxu0 0.0
    %3911 = vmatprep.subr.mxu0 0.0
    %3912 = vmatpush1.xpose.msra.mxu0 0.0
    %3913 = vmatprep.subr.mxu0 0.0
    %3914 = vmatpush1.xpose.msra.mxu0 0.0
    %3915 = vmatprep.subr.mxu0 0.0
    %3916 = vmatpush1.xpose.msra.mxu0 0.0
    %3917 = vmatprep.mubr.f32.mxu0 0.0
    %3918 = vmatmul.mubr.f32.gmra.mrb[0].mxu0 %v3341
    %v3919 = vpop.f32.mrb[0].mxu0
    %v3920 = vadd.f32 %v3849, %v3919
    %v3921 = vpop.f32.mrb[0].mxu0
    %3922 = vmatprep.mubr.f32.mxu0 0.0
    %3923 = vmatmul.mubr.f32.gmra.mrb[0].mxu0 %v3344
    %v3924 = vpop.f32.mrb[0].mxu0
    %v3925 = vadd.f32 %v3849, %v3924
    %v3926 = vpop.f32.mrb[0].mxu0
    %3927 = vdwg.mxu0
    %v3928 = vld [vmem:[%s2 + $0x138] sm:$0xff]
    %v3929 = vld [vmem:[%s3 + $0x1c] sm:$0x1]
    %v3930 = vlaneseq
    %v3931 = vshrl.u32 %v3930, 7
    %v3932 = vsub.s32 0, %v3931
    %v3933 = vrot.slane %v3929, %v3932
    %v3935 = vsel %vm22, %v3928, 0
    %3937 = vmatprep.subr.mxu0 0.0
    %3938 = vmatpush1.xpose.msra.mxu0 %v3935
    %3939 = vmatprep.subr.mxu0 0.0
    %3940 = vmatpush1.xpose.msra.mxu0 0.0
    %3941 = vmatprep.subr.mxu0 0.0
    %3942 = vmatpush1.xpose.msra.mxu0 0.0
    %3943 = vmatprep.subr.mxu0 0.0
    %3944 = vmatpush1.xpose.msra.mxu0 0.0
    %3945 = vmatprep.subr.mxu0 0.0
    %3946 = vmatpush1.xpose.msra.mxu0 0.0
    %3947 = vmatprep.subr.mxu0 0.0
    %3948 = vmatpush1.xpose.msra.mxu0 0.0
    %3949 = vmatprep.subr.mxu0 0.0
    %3950 = vmatpush1.xpose.msra.mxu0 0.0
    %3951 = vmatprep.subr.mxu0 0.0
    %3952 = vmatpush1.xpose.msra.mxu0 0.0
    %3953 = vmatprep.subr.mxu0 0.0
    %3954 = vmatpush1.xpose.msra.mxu0 0.0
    %3955 = vmatprep.subr.mxu0 0.0
    %3956 = vmatpush1.xpose.msra.mxu0 0.0
    %3957 = vmatprep.subr.mxu0 0.0
    %3958 = vmatpush1.xpose.msra.mxu0 0.0
    %3959 = vmatprep.subr.mxu0 0.0
    %3960 = vmatpush1.xpose.msra.mxu0 0.0
    %3961 = vmatprep.subr.mxu0 0.0
    %3962 = vmatpush1.xpose.msra.mxu0 0.0
    %3963 = vmatprep.subr.mxu0 0.0
    %3964 = vmatpush1.xpose.msra.mxu0 0.0
    %3965 = vmatprep.subr.mxu0 0.0
    %3966 = vmatpush1.xpose.msra.mxu0 0.0
    %3967 = vmatprep.subr.mxu0 0.0
    %3968 = vmatpush1.xpose.msra.mxu0 0.0
    %3969 = vmatprep.subr.mxu0 0.0
    %3970 = vmatpush1.xpose.msra.mxu0 0.0
    %3971 = vmatprep.subr.mxu0 0.0
    %3972 = vmatpush1.xpose.msra.mxu0 0.0
    %3973 = vmatprep.subr.mxu0 0.0
    %3974 = vmatpush1.xpose.msra.mxu0 0.0
    %3975 = vmatprep.subr.mxu0 0.0
    %3976 = vmatpush1.xpose.msra.mxu0 0.0
    %3977 = vmatprep.subr.mxu0 0.0
    %3978 = vmatpush1.xpose.msra.mxu0 0.0
    %3979 = vmatprep.subr.mxu0 0.0
    %3980 = vmatpush1.xpose.msra.mxu0 0.0
    %3981 = vmatprep.subr.mxu0 0.0
    %3982 = vmatpush1.xpose.msra.mxu0 0.0
    %3983 = vmatprep.subr.mxu0 0.0
    %3984 = vmatpush1.xpose.msra.mxu0 0.0
    %3985 = vmatprep.subr.mxu0 0.0
    %3986 = vmatpush1.xpose.msra.mxu0 0.0
    %3987 = vmatprep.subr.mxu0 0.0
    %3988 = vmatpush1.xpose.msra.mxu0 0.0
    %3989 = vmatprep.subr.mxu0 0.0
    %3990 = vmatpush1.xpose.msra.mxu0 0.0
    %3991 = vmatprep.subr.mxu0 0.0
    %3992 = vmatpush1.xpose.msra.mxu0 0.0
    %3993 = vmatprep.subr.mxu0 0.0
    %3994 = vmatpush1.xpose.msra.mxu0 0.0
    %3995 = vmatprep.subr.mxu0 0.0
    %3996 = vmatpush1.xpose.msra.mxu0 0.0
    %3997 = vmatprep.subr.mxu0 0.0
    %3998 = vmatpush1.xpose.msra.mxu0 0.0
    %3999 = vmatprep.subr.mxu0 0.0
    %4000 = vmatpush1.xpose.msra.mxu0 0.0
    %4001 = vmatprep.mubr.f32.mxu0 0.0
    %4002 = vmatmul.mubr.f32.gmra.mrb[0].mxu0 %v3341
    %v4003 = vpop.f32.mrb[0].mxu0
    %v4004 = vadd.f32 %v3933, %v4003
    %v4005 = vpop.f32.mrb[0].mxu0
    %4006 = vmatprep.mubr.f32.mxu0 0.0
    %4007 = vmatmul.mubr.f32.gmra.mrb[0].mxu0 %v3344
    %v4008 = vpop.f32.mrb[0].mxu0
    %v4009 = vadd.f32 %v3933, %v4008
    %v4010 = vpop.f32.mrb[0].mxu0
    %4011 = vdwg.mxu0
    %v4012 = vld [vmem:[%s2 + $0x140] sm:$0xff]
    %v4013 = vld [vmem:[%s3 + $0x1d] sm:$0x1]
    %v4014 = vlaneseq
    %v4015 = vshrl.u32 %v4014, 7
    %v4016 = vsub.s32 0, %v4015
    %v4017 = vrot.slane %v4013, %v4016
    %v4019 = vsel %vm22, %v4012, 0
    %4021 = vmatprep.subr.mxu0 0.0
    %4022 = vmatpush1.xpose.msra.mxu0 %v4019
    %4023 = vmatprep.subr.mxu0 0.0
    %4024 = vmatpush1.xpose.msra.mxu0 0.0
    %4025 = vmatprep.subr.mxu0 0.0
    %4026 = vmatpush1.xpose.msra.mxu0 0.0
    %4027 = vmatprep.subr.mxu0 0.0
    %4028 = vmatpush1.xpose.msra.mxu0 0.0
    %4029 = vmatprep.subr.mxu0 0.0
    %4030 = vmatpush1.xpose.msra.mxu0 0.0
    %4031 = vmatprep.subr.mxu0 0.0
    %4032 = vmatpush1.xpose.msra.mxu0 0.0
    %4033 = vmatprep.subr.mxu0 0.0
    %4034 = vmatpush1.xpose.msra.mxu0 0.0
    %4035 = vmatprep.subr.mxu0 0.0
    %4036 = vmatpush1.xpose.msra.mxu0 0.0
    %4037 = vmatprep.subr.mxu0 0.0
    %4038 = vmatpush1.xpose.msra.mxu0 0.0
    %4039 = vmatprep.subr.mxu0 0.0
    %4040 = vmatpush1.xpose.msra.mxu0 0.0
    %4041 = vmatprep.subr.mxu0 0.0
    %4042 = vmatpush1.xpose.msra.mxu0 0.0
    %4043 = vmatprep.subr.mxu0 0.0
    %4044 = vmatpush1.xpose.msra.mxu0 0.0
    %4045 = vmatprep.subr.mxu0 0.0
    %4046 = vmatpush1.xpose.msra.mxu0 0.0
    %4047 = vmatprep.subr.mxu0 0.0
    %4048 = vmatpush1.xpose.msra.mxu0 0.0
    %4049 = vmatprep.subr.mxu0 0.0
    %4050 = vmatpush1.xpose.msra.mxu0 0.0
    %4051 = vmatprep.subr.mxu0 0.0
    %4052 = vmatpush1.xpose.msra.mxu0 0.0
    %4053 = vmatprep.subr.mxu0 0.0
    %4054 = vmatpush1.xpose.msra.mxu0 0.0
    %4055 = vmatprep.subr.mxu0 0.0
    %4056 = vmatpush1.xpose.msra.mxu0 0.0
    %4057 = vmatprep.subr.mxu0 0.0
    %4058 = vmatpush1.xpose.msra.mxu0 0.0
    %4059 = vmatprep.subr.mxu0 0.0
    %4060 = vmatpush1.xpose.msra.mxu0 0.0
    %4061 = vmatprep.subr.mxu0 0.0
    %4062 = vmatpush1.xpose.msra.mxu0 0.0
    %4063 = vmatprep.subr.mxu0 0.0
    %4064 = vmatpush1.xpose.msra.mxu0 0.0
    %4065 = vmatprep.subr.mxu0 0.0
    %4066 = vmatpush1.xpose.msra.mxu0 0.0
    %4067 = vmatprep.subr.mxu0 0.0
    %4068 = vmatpush1.xpose.msra.mxu0 0.0
    %4069 = vmatprep.subr.mxu0 0.0
    %4070 = vmatpush1.xpose.msra.mxu0 0.0
    %4071 = vmatprep.subr.mxu0 0.0
    %4072 = vmatpush1.xpose.msra.mxu0 0.0
    %4073 = vmatprep.subr.mxu0 0.0
    %4074 = vmatpush1.xpose.msra.mxu0 0.0
    %4075 = vmatprep.subr.mxu0 0.0
    %4076 = vmatpush1.xpose.msra.mxu0 0.0
    %4077 = vmatprep.subr.mxu0 0.0
    %4078 = vmatpush1.xpose.msra.mxu0 0.0
    %4079 = vmatprep.subr.mxu0 0.0
    %4080 = vmatpush1.xpose.msra.mxu0 0.0
    %4081 = vmatprep.subr.mxu0 0.0
    %4082 = vmatpush1.xpose.msra.mxu0 0.0
    %4083 = vmatprep.subr.mxu0 0.0
    %4084 = vmatpush1.xpose.msra.mxu0 0.0
    %4085 = vmatprep.mubr.f32.mxu0 0.0
    %4086 = vmatmul.mubr.f32.gmra.mrb[0].mxu0 %v3341
    %v4087 = vpop.f32.mrb[0].mxu0
    %v4088 = vadd.f32 %v4017, %v4087
    %v4089 = vpop.f32.mrb[0].mxu0
    %4090 = vmatprep.mubr.f32.mxu0 0.0
    %4091 = vmatmul.mubr.f32.gmra.mrb[0].mxu0 %v3344
    %v4092 = vpop.f32.mrb[0].mxu0
    %v4093 = vadd.f32 %v4017, %v4092
    %v4094 = vpop.f32.mrb[0].mxu0
    %4095 = vdwg.mxu0
    %v4096 = vld [vmem:[%s2 + $0x148] sm:$0xff]
    %v4097 = vld [vmem:[%s3 + $0x1e] sm:$0x1]
    %v4098 = vlaneseq
    %v4099 = vshrl.u32 %v4098, 7
    %v4100 = vsub.s32 0, %v4099
    %v4101 = vrot.slane %v4097, %v4100
    %v4103 = vsel %vm22, %v4096, 0
    %4105 = vmatprep.subr.mxu0 0.0
    %4106 = vmatpush1.xpose.msra.mxu0 %v4103
    %4107 = vmatprep.subr.mxu0 0.0
    %4108 = vmatpush1.xpose.msra.mxu0 0.0
    %4109 = vmatprep.subr.mxu0 0.0
    %4110 = vmatpush1.xpose.msra.mxu0 0.0
    %4111 = vmatprep.subr.mxu0 0.0
    %4112 = vmatpush1.xpose.msra.mxu0 0.0
    %4113 = vmatprep.subr.mxu0 0.0
    %4114 = vmatpush1.xpose.msra.mxu0 0.0
    %4115 = vmatprep.subr.mxu0 0.0
    %4116 = vmatpush1.xpose.msra.mxu0 0.0
    %4117 = vmatprep.subr.mxu0 0.0
    %4118 = vmatpush1.xpose.msra.mxu0 0.0
    %4119 = vmatprep.subr.mxu0 0.0
    %4120 = vmatpush1.xpose.msra.mxu0 0.0
    %4121 = vmatprep.subr.mxu0 0.0
    %4122 = vmatpush1.xpose.msra.mxu0 0.0
    %4123 = vmatprep.subr.mxu0 0.0
    %4124 = vmatpush1.xpose.msra.mxu0 0.0
    %4125 = vmatprep.subr.mxu0 0.0
    %4126 = vmatpush1.xpose.msra.mxu0 0.0
    %4127 = vmatprep.subr.mxu0 0.0
    %4128 = vmatpush1.xpose.msra.mxu0 0.0
    %4129 = vmatprep.subr.mxu0 0.0
    %4130 = vmatpush1.xpose.msra.mxu0 0.0
    %4131 = vmatprep.subr.mxu0 0.0
    %4132 = vmatpush1.xpose.msra.mxu0 0.0
    %4133 = vmatprep.subr.mxu0 0.0
    %4134 = vmatpush1.xpose.msra.mxu0 0.0
    %4135 = vmatprep.subr.mxu0 0.0
    %4136 = vmatpush1.xpose.msra.mxu0 0.0
    %4137 = vmatprep.subr.mxu0 0.0
    %4138 = vmatpush1.xpose.msra.mxu0 0.0
    %4139 = vmatprep.subr.mxu0 0.0
    %4140 = vmatpush1.xpose.msra.mxu0 0.0
    %4141 = vmatprep.subr.mxu0 0.0
    %4142 = vmatpush1.xpose.msra.mxu0 0.0
    %4143 = vmatprep.subr.mxu0 0.0
    %4144 = vmatpush1.xpose.msra.mxu0 0.0
    %4145 = vmatprep.subr.mxu0 0.0
    %4146 = vmatpush1.xpose.msra.mxu0 0.0
    %4147 = vmatprep.subr.mxu0 0.0
    %4148 = vmatpush1.xpose.msra.mxu0 0.0
    %4149 = vmatprep.subr.mxu0 0.0
    %4150 = vmatpush1.xpose.msra.mxu0 0.0
    %4151 = vmatprep.subr.mxu0 0.0
    %4152 = vmatpush1.xpose.msra.mxu0 0.0
    %4153 = vmatprep.subr.mxu0 0.0
    %4154 = vmatpush1.xpose.msra.mxu0 0.0
    %4155 = vmatprep.subr.mxu0 0.0
    %4156 = vmatpush1.xpose.msra.mxu0 0.0
    %4157 = vmatprep.subr.mxu0 0.0
    %4158 = vmatpush1.xpose.msra.mxu0 0.0
    %4159 = vmatprep.subr.mxu0 0.0
    %4160 = vmatpush1.xpose.msra.mxu0 0.0
    %4161 = vmatprep.subr.mxu0 0.0
    %4162 = vmatpush1.xpose.msra.mxu0 0.0
    %4163 = vmatprep.subr.mxu0 0.0
    %4164 = vmatpush1.xpose.msra.mxu0 0.0
    %4165 = vmatprep.subr.mxu0 0.0
    %4166 = vmatpush1.xpose.msra.mxu0 0.0
    %4167 = vmatprep.subr.mxu0 0.0
    %4168 = vmatpush1.xpose.msra.mxu0 0.0
    %4169 = vmatprep.mubr.f32.mxu0 0.0
    %4170 = vmatmul.mubr.f32.gmra.mrb[0].mxu0 %v3341
    %v4171 = vpop.f32.mrb[0].mxu0
    %v4172 = vadd.f32 %v4101, %v4171
    %v4173 = vpop.f32.mrb[0].mxu0
    %4174 = vmatprep.mubr.f32.mxu0 0.0
    %4175 = vmatmul.mubr.f32.gmra.mrb[0].mxu0 %v3344
    %v4176 = vpop.f32.mrb[0].mxu0
    %v4177 = vadd.f32 %v4101, %v4176
    %v4178 = vpop.f32.mrb[0].mxu0
    %4179 = vdwg.mxu0
    %v4180 = vld [vmem:[%s2 + $0x150] sm:$0xff]
    %v4181 = vld [vmem:[%s3 + $0x1f] sm:$0x1]
    %v4182 = vlaneseq
    %v4183 = vshrl.u32 %v4182, 7
    %v4184 = vsub.s32 0, %v4183
    %v4185 = vrot.slane %v4181, %v4184
    %v4187 = vsel %vm22, %v4180, 0
    %4189 = vmatprep.subr.mxu0 0.0
    %4190 = vmatpush1.xpose.msra.mxu0 %v4187
    %4191 = vmatprep.subr.mxu0 0.0
    %4192 = vmatpush1.xpose.msra.mxu0 0.0
    %4193 = vmatprep.subr.mxu0 0.0
    %4194 = vmatpush1.xpose.msra.mxu0 0.0
    %4195 = vmatprep.subr.mxu0 0.0
    %4196 = vmatpush1.xpose.msra.mxu0 0.0
    %4197 = vmatprep.subr.mxu0 0.0
    %4198 = vmatpush1.xpose.msra.mxu0 0.0
    %4199 = vmatprep.subr.mxu0 0.0
    %4200 = vmatpush1.xpose.msra.mxu0 0.0
    %4201 = vmatprep.subr.mxu0 0.0
    %4202 = vmatpush1.xpose.msra.mxu0 0.0
    %4203 = vmatprep.subr.mxu0 0.0
    %4204 = vmatpush1.xpose.msra.mxu0 0.0
    %4205 = vmatprep.subr.mxu0 0.0
    %4206 = vmatpush1.xpose.msra.mxu0 0.0
    %4207 = vmatprep.subr.mxu0 0.0
    %4208 = vmatpush1.xpose.msra.mxu0 0.0
    %4209 = vmatprep.subr.mxu0 0.0
    %4210 = vmatpush1.xpose.msra.mxu0 0.0
    %4211 = vmatprep.subr.mxu0 0.0
    %4212 = vmatpush1.xpose.msra.mxu0 0.0
    %4213 = vmatprep.subr.mxu0 0.0
    %4214 = vmatpush1.xpose.msra.mxu0 0.0
    %4215 = vmatprep.subr.mxu0 0.0
    %4216 = vmatpush1.xpose.msra.mxu0 0.0
    %4217 = vmatprep.subr.mxu0 0.0
    %4218 = vmatpush1.xpose.msra.mxu0 0.0
    %4219 = vmatprep.subr.mxu0 0.0
    %4220 = vmatpush1.xpose.msra.mxu0 0.0
    %4221 = vmatprep.subr.mxu0 0.0
    %4222 = vmatpush1.xpose.msra.mxu0 0.0
    %4223 = vmatprep.subr.mxu0 0.0
    %4224 = vmatpush1.xpose.msra.mxu0 0.0
    %4225 = vmatprep.subr.mxu0 0.0
    %4226 = vmatpush1.xpose.msra.mxu0 0.0
    %4227 = vmatprep.subr.mxu0 0.0
    %4228 = vmatpush1.xpose.msra.mxu0 0.0
    %4229 = vmatprep.subr.mxu0 0.0
    %4230 = vmatpush1.xpose.msra.mxu0 0.0
    %4231 = vmatprep.subr.mxu0 0.0
    %4232 = vmatpush1.xpose.msra.mxu0 0.0
    %4233 = vmatprep.subr.mxu0 0.0
    %4234 = vmatpush1.xpose.msra.mxu0 0.0
    %4235 = vmatprep.subr.mxu0 0.0
    %4236 = vmatpush1.xpose.msra.mxu0 0.0
    %4237 = vmatprep.subr.mxu0 0.0
    %4238 = vmatpush1.xpose.msra.mxu0 0.0
    %4239 = vmatprep.subr.mxu0 0.0
    %4240 = vmatpush1.xpose.msra.mxu0 0.0
    %4241 = vmatprep.subr.mxu0 0.0
    %4242 = vmatpush1.xpose.msra.mxu0 0.0
    %4243 = vmatprep.subr.mxu0 0.0
    %4244 = vmatpush1.xpose.msra.mxu0 0.0
    %4245 = vmatprep.subr.mxu0 0.0
    %4246 = vmatpush1.xpose.msra.mxu0 0.0
    %4247 = vmatprep.subr.mxu0 0.0
    %4248 = vmatpush1.xpose.msra.mxu0 0.0
    %4249 = vmatprep.subr.mxu0 0.0
    %4250 = vmatpush1.xpose.msra.mxu0 0.0
    %4251 = vmatprep.subr.mxu0 0.0
    %4252 = vmatpush1.xpose.msra.mxu0 0.0
    %4253 = vmatprep.mubr.f32.mxu0 0.0
    %4254 = vmatmul.mubr.f32.gmra.mrb[0].mxu0 %v3341
    %v4255 = vpop.f32.mrb[0].mxu0
    %v4256 = vadd.f32 %v4185, %v4255
    %v4257 = vpop.f32.mrb[0].mxu0
    %4258 = vmatprep.mubr.f32.mxu0 0.0
    %4259 = vmatmul.mubr.f32.gmra.mrb[0].mxu0 %v3344
    %v4260 = vpop.f32.mrb[0].mxu0
    %v4261 = vadd.f32 %v4185, %v4260
    %v4262 = vpop.f32.mrb[0].mxu0
    %4263 = vdwg.mxu0
    %v4264 = vld [vmem:[%s2 + $0x158] sm:$0xff]
    %v4265 = vld [vmem:[%s3 + $0x20] sm:$0x1]
    %v4266 = vlaneseq
    %v4267 = vshrl.u32 %v4266, 7
    %v4268 = vsub.s32 0, %v4267
    %v4269 = vrot.slane %v4265, %v4268
    %v4271 = vsel %vm22, %v4264, 0
    %4273 = vmatprep.subr.mxu0 0.0
    %4274 = vmatpush1.xpose.msra.mxu0 %v4271
    %4275 = vmatprep.subr.mxu0 0.0
    %4276 = vmatpush1.xpose.msra.mxu0 0.0
    %4277 = vmatprep.subr.mxu0 0.0
    %4278 = vmatpush1.xpose.msra.mxu0 0.0
    %4279 = vmatprep.subr.mxu0 0.0
    %4280 = vmatpush1.xpose.msra.mxu0 0.0
    %4281 = vmatprep.subr.mxu0 0.0
    %4282 = vmatpush1.xpose.msra.mxu0 0.0
    %4283 = vmatprep.subr.mxu0 0.0
    %4284 = vmatpush1.xpose.msra.mxu0 0.0
    %4285 = vmatprep.subr.mxu0 0.0
    %4286 = vmatpush1.xpose.msra.mxu0 0.0
    %4287 = vmatprep.subr.mxu0 0.0
    %4288 = vmatpush1.xpose.msra.mxu0 0.0
    %4289 = vmatprep.subr.mxu0 0.0
    %4290 = vmatpush1.xpose.msra.mxu0 0.0
    %4291 = vmatprep.subr.mxu0 0.0
    %4292 = vmatpush1.xpose.msra.mxu0 0.0
    %4293 = vmatprep.subr.mxu0 0.0
    %4294 = vmatpush1.xpose.msra.mxu0 0.0
    %4295 = vmatprep.subr.mxu0 0.0
    %4296 = vmatpush1.xpose.msra.mxu0 0.0
    %4297 = vmatprep.subr.mxu0 0.0
    %4298 = vmatpush1.xpose.msra.mxu0 0.0
    %4299 = vmatprep.subr.mxu0 0.0
    %4300 = vmatpush1.xpose.msra.mxu0 0.0
    %4301 = vmatprep.subr.mxu0 0.0
    %4302 = vmatpush1.xpose.msra.mxu0 0.0
    %4303 = vmatprep.subr.mxu0 0.0
    %4304 = vmatpush1.xpose.msra.mxu0 0.0
    %4305 = vmatprep.subr.mxu0 0.0
    %4306 = vmatpush1.xpose.msra.mxu0 0.0
    %4307 = vmatprep.subr.mxu0 0.0
    %4308 = vmatpush1.xpose.msra.mxu0 0.0
    %4309 = vmatprep.subr.mxu0 0.0
    %4310 = vmatpush1.xpose.msra.mxu0 0.0
    %4311 = vmatprep.subr.mxu0 0.0
    %4312 = vmatpush1.xpose.msra.mxu0 0.0
    %4313 = vmatprep.subr.mxu0 0.0
    %4314 = vmatpush1.xpose.msra.mxu0 0.0
    %4315 = vmatprep.subr.mxu0 0.0
    %4316 = vmatpush1.xpose.msra.mxu0 0.0
    %4317 = vmatprep.subr.mxu0 0.0
    %4318 = vmatpush1.xpose.msra.mxu0 0.0
    %4319 = vmatprep.subr.mxu0 0.0
    %4320 = vmatpush1.xpose.msra.mxu0 0.0
    %4321 = vmatprep.subr.mxu0 0.0
    %4322 = vmatpush1.xpose.msra.mxu0 0.0
    %4323 = vmatprep.subr.mxu0 0.0
    %4324 = vmatpush1.xpose.msra.mxu0 0.0
    %4325 = vmatprep.subr.mxu0 0.0
    %4326 = vmatpush1.xpose.msra.mxu0 0.0
    %4327 = vmatprep.subr.mxu0 0.0
    %4328 = vmatpush1.xpose.msra.mxu0 0.0
    %4329 = vmatprep.subr.mxu0 0.0
    %4330 = vmatpush1.xpose.msra.mxu0 0.0
    %4331 = vmatprep.subr.mxu0 0.0
    %4332 = vmatpush1.xpose.msra.mxu0 0.0
    %4333 = vmatprep.subr.mxu0 0.0
    %4334 = vmatpush1.xpose.msra.mxu0 0.0
    %4335 = vmatprep.subr.mxu0 0.0
    %4336 = vmatpush1.xpose.msra.mxu0 0.0
    %4337 = vmatprep.mubr.f32.mxu0 0.0
    %4338 = vmatmul.mubr.f32.gmra.mrb[0].mxu0 %v3341
    %v4339 = vpop.f32.mrb[0].mxu0
    %v4340 = vadd.f32 %v4269, %v4339
    %v4341 = vpop.f32.mrb[0].mxu0
    %4342 = vmatprep.mubr.f32.mxu0 0.0
    %4343 = vmatmul.mubr.f32.gmra.mrb[0].mxu0 %v3344
    %v4344 = vpop.f32.mrb[0].mxu0
    %v4345 = vadd.f32 %v4269, %v4344
    %v4346 = vpop.f32.mrb[0].mxu0
    %4347 = vdwg.mxu0
    %v4349 = vsel %vm1087, %v3416, 0
    %v4352 = vsel %vm1087, %v3500, 0
    %4354 = vmatprep.subr.mxu0 0.0
    %4355 = vmatpush1.xpose.msra.mxu0 %v4352
    %4356 = vmatprep.subr.mxu0 0.0
    %4357 = vmatpush1.xpose.msra.mxu0 0.0
    %4358 = vmatprep.subr.mxu0 0.0
    %4359 = vmatpush1.xpose.msra.mxu0 0.0
    %4360 = vmatprep.subr.mxu0 0.0
    %4361 = vmatpush1.xpose.msra.mxu0 0.0
    %4362 = vmatprep.subr.mxu0 0.0
    %4363 = vmatpush1.xpose.msra.mxu0 0.0
    %4364 = vmatprep.subr.mxu0 0.0
    %4365 = vmatpush1.xpose.msra.mxu0 0.0
    %4366 = vmatprep.subr.mxu0 0.0
    %4367 = vmatpush1.xpose.msra.mxu0 0.0
    %4368 = vmatprep.subr.mxu0 0.0
    %4369 = vmatpush1.xpose.msra.mxu0 0.0
    %4370 = vmatprep.subr.mxu0 0.0
    %4371 = vmatpush1.xpose.msra.mxu0 0.0
    %4372 = vmatprep.subr.mxu0 0.0
    %4373 = vmatpush1.xpose.msra.mxu0 0.0
    %4374 = vmatprep.subr.mxu0 0.0
    %4375 = vmatpush1.xpose.msra.mxu0 0.0
    %4376 = vmatprep.subr.mxu0 0.0
    %4377 = vmatpush1.xpose.msra.mxu0 0.0
    %4378 = vmatprep.subr.mxu0 0.0
    %4379 = vmatpush1.xpose.msra.mxu0 0.0
    %4380 = vmatprep.subr.mxu0 0.0
    %4381 = vmatpush1.xpose.msra.mxu0 0.0
    %4382 = vmatprep.subr.mxu0 0.0
    %4383 = vmatpush1.xpose.msra.mxu0 0.0
    %4384 = vmatprep.subr.mxu0 0.0
    %4385 = vmatpush1.xpose.msra.mxu0 0.0
    %4386 = vmatprep.subr.mxu0 0.0
    %4387 = vmatpush1.xpose.msra.mxu0 0.0
    %4388 = vmatprep.subr.mxu0 0.0
    %4389 = vmatpush1.xpose.msra.mxu0 0.0
    %4390 = vmatprep.subr.mxu0 0.0
    %4391 = vmatpush1.xpose.msra.mxu0 0.0
    %4392 = vmatprep.subr.mxu0 0.0
    %4393 = vmatpush1.xpose.msra.mxu0 0.0
    %4394 = vmatprep.subr.mxu0 0.0
    %4395 = vmatpush1.xpose.msra.mxu0 0.0
    %4396 = vmatprep.subr.mxu0 0.0
    %4397 = vmatpush1.xpose.msra.mxu0 0.0
    %4398 = vmatprep.subr.mxu0 0.0
    %4399 = vmatpush1.xpose.msra.mxu0 0.0
    %4400 = vmatprep.subr.mxu0 0.0
    %4401 = vmatpush1.xpose.msra.mxu0 0.0
    %4402 = vmatprep.subr.mxu0 0.0
    %4403 = vmatpush1.xpose.msra.mxu0 0.0
    %4404 = vmatprep.subr.mxu0 0.0
    %4405 = vmatpush1.xpose.msra.mxu0 0.0
    %4406 = vmatprep.subr.mxu0 0.0
    %4407 = vmatpush1.xpose.msra.mxu0 0.0
    %4408 = vmatprep.subr.mxu0 0.0
    %4409 = vmatpush1.xpose.msra.mxu0 0.0
    %4410 = vmatprep.subr.mxu0 0.0
    %4411 = vmatpush1.xpose.msra.mxu0 0.0
    %4412 = vmatprep.subr.mxu0 0.0
    %4413 = vmatpush1.xpose.msra.mxu0 0.0
    %4414 = vmatprep.subr.mxu0 0.0
    %4415 = vmatpush1.xpose.msra.mxu0 0.0
    %4416 = vmatprep.subr.mxu0 0.0
    %4417 = vmatpush1.xpose.msra.mxu0 0.0
    %4418 = vmatprep.mubr.f32.mxu0 0.0
    %4419 = vmatmul.mubr.f32.gmra.mrb[0].mxu0 %v4349
    %v4420 = vpop.f32.mrb[0].mxu0
    %v4421 = vadd.f32 0.0, %v4420
    %v4422 = vpop.f32.mrb[0].mxu0
    %4423 = vdwg.mxu0
    %v4425 = vsel %vm1087, %v3668, 0
    %v4428 = vsel %vm1087, %v3752, 0
    %4430 = vmatprep.subr.mxu0 0.0
    %4431 = vmatpush1.xpose.msra.mxu0 %v4428
    %4432 = vmatprep.subr.mxu0 0.0
    %4433 = vmatpush1.xpose.msra.mxu0 0.0
    %4434 = vmatprep.subr.mxu0 0.0
    %4435 = vmatpush1.xpose.msra.mxu0 0.0
    %4436 = vmatprep.subr.mxu0 0.0
    %4437 = vmatpush1.xpose.msra.mxu0 0.0
    %4438 = vmatprep.subr.mxu0 0.0
    %4439 = vmatpush1.xpose.msra.mxu0 0.0
    %4440 = vmatprep.subr.mxu0 0.0
    %4441 = vmatpush1.xpose.msra.mxu0 0.0
    %4442 = vmatprep.subr.mxu0 0.0
    %4443 = vmatpush1.xpose.msra.mxu0 0.0
    %4444 = vmatprep.subr.mxu0 0.0
    %4445 = vmatpush1.xpose.msra.mxu0 0.0
    %4446 = vmatprep.subr.mxu0 0.0
    %4447 = vmatpush1.xpose.msra.mxu0 0.0
    %4448 = vmatprep.subr.mxu0 0.0
    %4449 = vmatpush1.xpose.msra.mxu0 0.0
    %4450 = vmatprep.subr.mxu0 0.0
    %4451 = vmatpush1.xpose.msra.mxu0 0.0
    %4452 = vmatprep.subr.mxu0 0.0
    %4453 = vmatpush1.xpose.msra.mxu0 0.0
    %4454 = vmatprep.subr.mxu0 0.0
    %4455 = vmatpush1.xpose.msra.mxu0 0.0
    %4456 = vmatprep.subr.mxu0 0.0
    %4457 = vmatpush1.xpose.msra.mxu0 0.0
    %4458 = vmatprep.subr.mxu0 0.0
    %4459 = vmatpush1.xpose.msra.mxu0 0.0
    %4460 = vmatprep.subr.mxu0 0.0
    %4461 = vmatpush1.xpose.msra.mxu0 0.0
    %4462 = vmatprep.subr.mxu0 0.0
    %4463 = vmatpush1.xpose.msra.mxu0 0.0
    %4464 = vmatprep.subr.mxu0 0.0
    %4465 = vmatpush1.xpose.msra.mxu0 0.0
    %4466 = vmatprep.subr.mxu0 0.0
    %4467 = vmatpush1.xpose.msra.mxu0 0.0
    %4468 = vmatprep.subr.mxu0 0.0
    %4469 = vmatpush1.xpose.msra.mxu0 0.0
    %4470 = vmatprep.subr.mxu0 0.0
    %4471 = vmatpush1.xpose.msra.mxu0 0.0
    %4472 = vmatprep.subr.mxu0 0.0
    %4473 = vmatpush1.xpose.msra.mxu0 0.0
    %4474 = vmatprep.subr.mxu0 0.0
    %4475 = vmatpush1.xpose.msra.mxu0 0.0
    %4476 = vmatprep.subr.mxu0 0.0
    %4477 = vmatpush1.xpose.msra.mxu0 0.0
    %4478 = vmatprep.subr.mxu0 0.0
    %4479 = vmatpush1.xpose.msra.mxu0 0.0
    %4480 = vmatprep.subr.mxu0 0.0
    %4481 = vmatpush1.xpose.msra.mxu0 0.0
    %4482 = vmatprep.subr.mxu0 0.0
    %4483 = vmatpush1.xpose.msra.mxu0 0.0
    %4484 = vmatprep.subr.mxu0 0.0
    %4485 = vmatpush1.xpose.msra.mxu0 0.0
    %4486 = vmatprep.subr.mxu0 0.0
    %4487 = vmatpush1.xpose.msra.mxu0 0.0
    %4488 = vmatprep.subr.mxu0 0.0
    %4489 = vmatpush1.xpose.msra.mxu0 0.0
    %4490 = vmatprep.subr.mxu0 0.0
    %4491 = vmatpush1.xpose.msra.mxu0 0.0
    %4492 = vmatprep.subr.mxu0 0.0
    %4493 = vmatpush1.xpose.msra.mxu0 0.0
    %4494 = vmatprep.mubr.f32.mxu0 0.0
    %4495 = vmatmul.mubr.f32.gmra.mrb[0].mxu0 %v4425
    %v4496 = vpop.f32.mrb[0].mxu0
    %v4497 = vadd.f32 0.0, %v4496
    %v4498 = vpop.f32.mrb[0].mxu0
    %4499 = vdwg.mxu0
    %v4501 = vsel %vm1087, %v3920, 0
    %v4504 = vsel %vm1087, %v4004, 0
    %4506 = vmatprep.subr.mxu0 0.0
    %4507 = vmatpush1.xpose.msra.mxu0 %v4504
    %4508 = vmatprep.subr.mxu0 0.0
    %4509 = vmatpush1.xpose.msra.mxu0 0.0
    %4510 = vmatprep.subr.mxu0 0.0
    %4511 = vmatpush1.xpose.msra.mxu0 0.0
    %4512 = vmatprep.subr.mxu0 0.0
    %4513 = vmatpush1.xpose.msra.mxu0 0.0
    %4514 = vmatprep.subr.mxu0 0.0
    %4515 = vmatpush1.xpose.msra.mxu0 0.0
    %4516 = vmatprep.subr.mxu0 0.0
    %4517 = vmatpush1.xpose.msra.mxu0 0.0
    %4518 = vmatprep.subr.mxu0 0.0
    %4519 = vmatpush1.xpose.msra.mxu0 0.0
    %4520 = vmatprep.subr.mxu0 0.0
    %4521 = vmatpush1.xpose.msra.mxu0 0.0
    %4522 = vmatprep.subr.mxu0 0.0
    %4523 = vmatpush1.xpose.msra.mxu0 0.0
    %4524 = vmatprep.subr.mxu0 0.0
    %4525 = vmatpush1.xpose.msra.mxu0 0.0
    %4526 = vmatprep.subr.mxu0 0.0
    %4527 = vmatpush1.xpose.msra.mxu0 0.0
    %4528 = vmatprep.subr.mxu0 0.0
    %4529 = vmatpush1.xpose.msra.mxu0 0.0
    %4530 = vmatprep.subr.mxu0 0.0
    %4531 = vmatpush1.xpose.msra.mxu0 0.0
    %4532 = vmatprep.subr.mxu0 0.0
    %4533 = vmatpush1.xpose.msra.mxu0 0.0
    %4534 = vmatprep.subr.mxu0 0.0
    %4535 = vmatpush1.xpose.msra.mxu0 0.0
    %4536 = vmatprep.subr.mxu0 0.0
    %4537 = vmatpush1.xpose.msra.mxu0 0.0
    %4538 = vmatprep.subr.mxu0 0.0
    %4539 = vmatpush1.xpose.msra.mxu0 0.0
    %4540 = vmatprep.subr.mxu0 0.0
    %4541 = vmatpush1.xpose.msra.mxu0 0.0
    %4542 = vmatprep.subr.mxu0 0.0
    %4543 = vmatpush1.xpose.msra.mxu0 0.0
    %4544 = vmatprep.subr.mxu0 0.0
    %4545 = vmatpush1.xpose.msra.mxu0 0.0
    %4546 = vmatprep.subr.mxu0 0.0
    %4547 = vmatpush1.xpose.msra.mxu0 0.0
    %4548 = vmatprep.subr.mxu0 0.0
    %4549 = vmatpush1.xpose.msra.mxu0 0.0
    %4550 = vmatprep.subr.mxu0 0.0
    %4551 = vmatpush1.xpose.msra.mxu0 0.0
    %4552 = vmatprep.subr.mxu0 0.0
    %4553 = vmatpush1.xpose.msra.mxu0 0.0
    %4554 = vmatprep.subr.mxu0 0.0
    %4555 = vmatpush1.xpose.msra.mxu0 0.0
    %4556 = vmatprep.subr.mxu0 0.0
    %4557 = vmatpush1.xpose.msra.mxu0 0.0
    %4558 = vmatprep.subr.mxu0 0.0
    %4559 = vmatpush1.xpose.msra.mxu0 0.0
    %4560 = vmatprep.subr.mxu0 0.0
    %4561 = vmatpush1.xpose.msra.mxu0 0.0
    %4562 = vmatprep.subr.mxu0 0.0
    %4563 = vmatpush1.xpose.msra.mxu0 0.0
    %4564 = vmatprep.subr.mxu0 0.0
    %4565 = vmatpush1.xpose.msra.mxu0 0.0
    %4566 = vmatprep.subr.mxu0 0.0
    %4567 = vmatpush1.xpose.msra.mxu0 0.0
    %4568 = vmatprep.subr.mxu0 0.0
    %4569 = vmatpush1.xpose.msra.mxu0 0.0
    %4570 = vmatprep.mubr.f32.mxu0 0.0
    %4571 = vmatmul.mubr.f32.gmra.mrb[0].mxu0 %v4501
    %v4572 = vpop.f32.mrb[0].mxu0
    %v4573 = vadd.f32 0.0, %v4572
    %v4574 = vpop.f32.mrb[0].mxu0
    %4575 = vdwg.mxu0
    %v4577 = vsel %vm1087, %v4172, 0
    %v4580 = vsel %vm1087, %v4256, 0
    %4582 = vmatprep.subr.mxu0 0.0
    %4583 = vmatpush1.xpose.msra.mxu0 %v4580
    %4584 = vmatprep.subr.mxu0 0.0
    %4585 = vmatpush1.xpose.msra.mxu0 0.0
    %4586 = vmatprep.subr.mxu0 0.0
    %4587 = vmatpush1.xpose.msra.mxu0 0.0
    %4588 = vmatprep.subr.mxu0 0.0
    %4589 = vmatpush1.xpose.msra.mxu0 0.0
    %4590 = vmatprep.subr.mxu0 0.0
    %4591 = vmatpush1.xpose.msra.mxu0 0.0
    %4592 = vmatprep.subr.mxu0 0.0
    %4593 = vmatpush1.xpose.msra.mxu0 0.0
    %4594 = vmatprep.subr.mxu0 0.0
    %4595 = vmatpush1.xpose.msra.mxu0 0.0
    %4596 = vmatprep.subr.mxu0 0.0
    %4597 = vmatpush1.xpose.msra.mxu0 0.0
    %4598 = vmatprep.subr.mxu0 0.0
    %4599 = vmatpush1.xpose.msra.mxu0 0.0
    %4600 = vmatprep.subr.mxu0 0.0
    %4601 = vmatpush1.xpose.msra.mxu0 0.0
    %4602 = vmatprep.subr.mxu0 0.0
    %4603 = vmatpush1.xpose.msra.mxu0 0.0
    %4604 = vmatprep.subr.mxu0 0.0
    %4605 = vmatpush1.xpose.msra.mxu0 0.0
    %4606 = vmatprep.subr.mxu0 0.0
    %4607 = vmatpush1.xpose.msra.mxu0 0.0
    %4608 = vmatprep.subr.mxu0 0.0
    %4609 = vmatpush1.xpose.msra.mxu0 0.0
    %4610 = vmatprep.subr.mxu0 0.0
    %4611 = vmatpush1.xpose.msra.mxu0 0.0
    %4612 = vmatprep.subr.mxu0 0.0
    %4613 = vmatpush1.xpose.msra.mxu0 0.0
    %4614 = vmatprep.subr.mxu0 0.0
    %4615 = vmatpush1.xpose.msra.mxu0 0.0
    %4616 = vmatprep.subr.mxu0 0.0
    %4617 = vmatpush1.xpose.msra.mxu0 0.0
    %4618 = vmatprep.subr.mxu0 0.0
    %4619 = vmatpush1.xpose.msra.mxu0 0.0
    %4620 = vmatprep.subr.mxu0 0.0
    %4621 = vmatpush1.xpose.msra.mxu0 0.0
    %4622 = vmatprep.subr.mxu0 0.0
    %4623 = vmatpush1.xpose.msra.mxu0 0.0
    %4624 = vmatprep.subr.mxu0 0.0
    %4625 = vmatpush1.xpose.msra.mxu0 0.0
    %4626 = vmatprep.subr.mxu0 0.0
    %4627 = vmatpush1.xpose.msra.mxu0 0.0
    %4628 = vmatprep.subr.mxu0 0.0
    %4629 = vmatpush1.xpose.msra.mxu0 0.0
    %4630 = vmatprep.subr.mxu0 0.0
    %4631 = vmatpush1.xpose.msra.mxu0 0.0
    %4632 = vmatprep.subr.mxu0 0.0
    %4633 = vmatpush1.xpose.msra.mxu0 0.0
    %4634 = vmatprep.subr.mxu0 0.0
    %4635 = vmatpush1.xpose.msra.mxu0 0.0
    %4636 = vmatprep.subr.mxu0 0.0
    %4637 = vmatpush1.xpose.msra.mxu0 0.0
    %4638 = vmatprep.subr.mxu0 0.0
    %4639 = vmatpush1.xpose.msra.mxu0 0.0
    %4640 = vmatprep.subr.mxu0 0.0
    %4641 = vmatpush1.xpose.msra.mxu0 0.0
    %4642 = vmatprep.subr.mxu0 0.0
    %4643 = vmatpush1.xpose.msra.mxu0 0.0
    %4644 = vmatprep.subr.mxu0 0.0
    %4645 = vmatpush1.xpose.msra.mxu0 0.0
    %4646 = vmatprep.mubr.f32.mxu0 0.0
    %4647 = vmatmul.mubr.f32.gmra.mrb[0].mxu0 %v4577
    %v4648 = vpop.f32.mrb[0].mxu0
    %v4649 = vadd.f32 0.0, %v4648
    %v4650 = vpop.f32.mrb[0].mxu0
    %4651 = vdwg.mxu0
    %v4653 = vsel %vm1087, %v3421, 0
    %v4656 = vsel %vm1087, %v3505, 0
    %4658 = vmatprep.subr.mxu0 0.0
    %4659 = vmatpush1.xpose.msra.mxu0 %v4656
    %4660 = vmatprep.subr.mxu0 0.0
    %4661 = vmatpush1.xpose.msra.mxu0 0.0
    %4662 = vmatprep.subr.mxu0 0.0
    %4663 = vmatpush1.xpose.msra.mxu0 0.0
    %4664 = vmatprep.subr.mxu0 0.0
    %4665 = vmatpush1.xpose.msra.mxu0 0.0
    %4666 = vmatprep.subr.mxu0 0.0
    %4667 = vmatpush1.xpose.msra.mxu0 0.0
    %4668 = vmatprep.subr.mxu0 0.0
    %4669 = vmatpush1.xpose.msra.mxu0 0.0
    %4670 = vmatprep.subr.mxu0 0.0
    %4671 = vmatpush1.xpose.msra.mxu0 0.0
    %4672 = vmatprep.subr.mxu0 0.0
    %4673 = vmatpush1.xpose.msra.mxu0 0.0
    %4674 = vmatprep.subr.mxu0 0.0
    %4675 = vmatpush1.xpose.msra.mxu0 0.0
    %4676 = vmatprep.subr.mxu0 0.0
    %4677 = vmatpush1.xpose.msra.mxu0 0.0
    %4678 = vmatprep.subr.mxu0 0.0
    %4679 = vmatpush1.xpose.msra.mxu0 0.0
    %4680 = vmatprep.subr.mxu0 0.0
    %4681 = vmatpush1.xpose.msra.mxu0 0.0
    %4682 = vmatprep.subr.mxu0 0.0
    %4683 = vmatpush1.xpose.msra.mxu0 0.0
    %4684 = vmatprep.subr.mxu0 0.0
    %4685 = vmatpush1.xpose.msra.mxu0 0.0
    %4686 = vmatprep.subr.mxu0 0.0
    %4687 = vmatpush1.xpose.msra.mxu0 0.0
    %4688 = vmatprep.subr.mxu0 0.0
    %4689 = vmatpush1.xpose.msra.mxu0 0.0
    %4690 = vmatprep.subr.mxu0 0.0
    %4691 = vmatpush1.xpose.msra.mxu0 0.0
    %4692 = vmatprep.subr.mxu0 0.0
    %4693 = vmatpush1.xpose.msra.mxu0 0.0
    %4694 = vmatprep.subr.mxu0 0.0
    %4695 = vmatpush1.xpose.msra.mxu0 0.0
    %4696 = vmatprep.subr.mxu0 0.0
    %4697 = vmatpush1.xpose.msra.mxu0 0.0
    %4698 = vmatprep.subr.mxu0 0.0
    %4699 = vmatpush1.xpose.msra.mxu0 0.0
    %4700 = vmatprep.subr.mxu0 0.0
    %4701 = vmatpush1.xpose.msra.mxu0 0.0
    %4702 = vmatprep.subr.mxu0 0.0
    %4703 = vmatpush1.xpose.msra.mxu0 0.0
    %4704 = vmatprep.subr.mxu0 0.0
    %4705 = vmatpush1.xpose.msra.mxu0 0.0
    %4706 = vmatprep.subr.mxu0 0.0
    %4707 = vmatpush1.xpose.msra.mxu0 0.0
    %4708 = vmatprep.subr.mxu0 0.0
    %4709 = vmatpush1.xpose.msra.mxu0 0.0
    %4710 = vmatprep.subr.mxu0 0.0
    %4711 = vmatpush1.xpose.msra.mxu0 0.0
    %4712 = vmatprep.subr.mxu0 0.0
    %4713 = vmatpush1.xpose.msra.mxu0 0.0
    %4714 = vmatprep.subr.mxu0 0.0
    %4715 = vmatpush1.xpose.msra.mxu0 0.0
    %4716 = vmatprep.subr.mxu0 0.0
    %4717 = vmatpush1.xpose.msra.mxu0 0.0
    %4718 = vmatprep.subr.mxu0 0.0
    %4719 = vmatpush1.xpose.msra.mxu0 0.0
    %4720 = vmatprep.subr.mxu0 0.0
    %4721 = vmatpush1.xpose.msra.mxu0 0.0
    %4722 = vmatprep.mubr.f32.mxu0 0.0
    %4723 = vmatmul.mubr.f32.gmra.mrb[0].mxu0 %v4653
    %v4724 = vpop.f32.mrb[0].mxu0
    %v4725 = vadd.f32 0.0, %v4724
    %v4726 = vpop.f32.mrb[0].mxu0
    %4727 = vdwg.mxu0
    %v4729 = vsel %vm1087, %v3673, 0
    %v4732 = vsel %vm1087, %v3757, 0
    %4734 = vmatprep.subr.mxu0 0.0
    %4735 = vmatpush1.xpose.msra.mxu0 %v4732
    %4736 = vmatprep.subr.mxu0 0.0
    %4737 = vmatpush1.xpose.msra.mxu0 0.0
    %4738 = vmatprep.subr.mxu0 0.0
    %4739 = vmatpush1.xpose.msra.mxu0 0.0
    %4740 = vmatprep.subr.mxu0 0.0
    %4741 = vmatpush1.xpose.msra.mxu0 0.0
    %4742 = vmatprep.subr.mxu0 0.0
    %4743 = vmatpush1.xpose.msra.mxu0 0.0
    %4744 = vmatprep.subr.mxu0 0.0
    %4745 = vmatpush1.xpose.msra.mxu0 0.0
    %4746 = vmatprep.subr.mxu0 0.0
    %4747 = vmatpush1.xpose.msra.mxu0 0.0
    %4748 = vmatprep.subr.mxu0 0.0
    %4749 = vmatpush1.xpose.msra.mxu0 0.0
    %4750 = vmatprep.subr.mxu0 0.0
    %4751 = vmatpush1.xpose.msra.mxu0 0.0
    %4752 = vmatprep.subr.mxu0 0.0
    %4753 = vmatpush1.xpose.msra.mxu0 0.0
    %4754 = vmatprep.subr.mxu0 0.0
    %4755 = vmatpush1.xpose.msra.mxu0 0.0
    %4756 = vmatprep.subr.mxu0 0.0
    %4757 = vmatpush1.xpose.msra.mxu0 0.0
    %4758 = vmatprep.subr.mxu0 0.0
    %4759 = vmatpush1.xpose.msra.mxu0 0.0
    %4760 = vmatprep.subr.mxu0 0.0
    %4761 = vmatpush1.xpose.msra.mxu0 0.0
    %4762 = vmatprep.subr.mxu0 0.0
    %4763 = vmatpush1.xpose.msra.mxu0 0.0
    %4764 = vmatprep.subr.mxu0 0.0
    %4765 = vmatpush1.xpose.msra.mxu0 0.0
    %4766 = vmatprep.subr.mxu0 0.0
    %4767 = vmatpush1.xpose.msra.mxu0 0.0
    %4768 = vmatprep.subr.mxu0 0.0
    %4769 = vmatpush1.xpose.msra.mxu0 0.0
    %4770 = vmatprep.subr.mxu0 0.0
    %4771 = vmatpush1.xpose.msra.mxu0 0.0
    %4772 = vmatprep.subr.mxu0 0.0
    %4773 = vmatpush1.xpose.msra.mxu0 0.0
    %4774 = vmatprep.subr.mxu0 0.0
    %4775 = vmatpush1.xpose.msra.mxu0 0.0
    %4776 = vmatprep.subr.mxu0 0.0
    %4777 = vmatpush1.xpose.msra.mxu0 0.0
    %4778 = vmatprep.subr.mxu0 0.0
    %4779 = vmatpush1.xpose.msra.mxu0 0.0
    %4780 = vmatprep.subr.mxu0 0.0
    %4781 = vmatpush1.xpose.msra.mxu0 0.0
    %4782 = vmatprep.subr.mxu0 0.0
    %4783 = vmatpush1.xpose.msra.mxu0 0.0
    %4784 = vmatprep.subr.mxu0 0.0
    %4785 = vmatpush1.xpose.msra.mxu0 0.0
    %4786 = vmatprep.subr.mxu0 0.0
    %4787 = vmatpush1.xpose.msra.mxu0 0.0
    %4788 = vmatprep.subr.mxu0 0.0
    %4789 = vmatpush1.xpose.msra.mxu0 0.0
    %4790 = vmatprep.subr.mxu0 0.0
    %4791 = vmatpush1.xpose.msra.mxu0 0.0
    %4792 = vmatprep.subr.mxu0 0.0
    %4793 = vmatpush1.xpose.msra.mxu0 0.0
    %4794 = vmatprep.subr.mxu0 0.0
    %4795 = vmatpush1.xpose.msra.mxu0 0.0
    %4796 = vmatprep.subr.mxu0 0.0
    %4797 = vmatpush1.xpose.msra.mxu0 0.0
    %4798 = vmatprep.mubr.f32.mxu0 0.0
    %4799 = vmatmul.mubr.f32.gmra.mrb[0].mxu0 %v4729
    %v4800 = vpop.f32.mrb[0].mxu0
    %v4801 = vadd.f32 0.0, %v4800
    %v4802 = vpop.f32.mrb[0].mxu0
    %4803 = vdwg.mxu0
    %v4805 = vsel %vm1087, %v3925, 0
    %v4808 = vsel %vm1087, %v4009, 0
    %4810 = vmatprep.subr.mxu0 0.0
    %4811 = vmatpush1.xpose.msra.mxu0 %v4808
    %4812 = vmatprep.subr.mxu0 0.0
    %4813 = vmatpush1.xpose.msra.mxu0 0.0
    %4814 = vmatprep.subr.mxu0 0.0
    %4815 = vmatpush1.xpose.msra.mxu0 0.0
    %4816 = vmatprep.subr.mxu0 0.0
    %4817 = vmatpush1.xpose.msra.mxu0 0.0
    %4818 = vmatprep.subr.mxu0 0.0
    %4819 = vmatpush1.xpose.msra.mxu0 0.0
    %4820 = vmatprep.subr.mxu0 0.0
    %4821 = vmatpush1.xpose.msra.mxu0 0.0
    %4822 = vmatprep.subr.mxu0 0.0
    %4823 = vmatpush1.xpose.msra.mxu0 0.0
    %4824 = vmatprep.subr.mxu0 0.0
    %4825 = vmatpush1.xpose.msra.mxu0 0.0
    %4826 = vmatprep.subr.mxu0 0.0
    %4827 = vmatpush1.xpose.msra.mxu0 0.0
    %4828 = vmatprep.subr.mxu0 0.0
    %4829 = vmatpush1.xpose.msra.mxu0 0.0
    %4830 = vmatprep.subr.mxu0 0.0
    %4831 = vmatpush1.xpose.msra.mxu0 0.0
    %4832 = vmatprep.subr.mxu0 0.0
    %4833 = vmatpush1.xpose.msra.mxu0 0.0
    %4834 = vmatprep.subr.mxu0 0.0
    %4835 = vmatpush1.xpose.msra.mxu0 0.0
    %4836 = vmatprep.subr.mxu0 0.0
    %4837 = vmatpush1.xpose.msra.mxu0 0.0
    %4838 = vmatprep.subr.mxu0 0.0
    %4839 = vmatpush1.xpose.msra.mxu0 0.0
    %4840 = vmatprep.subr.mxu0 0.0
    %4841 = vmatpush1.xpose.msra.mxu0 0.0
    %4842 = vmatprep.subr.mxu0 0.0
    %4843 = vmatpush1.xpose.msra.mxu0 0.0
    %4844 = vmatprep.subr.mxu0 0.0
    %4845 = vmatpush1.xpose.msra.mxu0 0.0
    %4846 = vmatprep.subr.mxu0 0.0
    %4847 = vmatpush1.xpose.msra.mxu0 0.0
    %4848 = vmatprep.subr.mxu0 0.0
    %4849 = vmatpush1.xpose.msra.mxu0 0.0
    %4850 = vmatprep.subr.mxu0 0.0
    %4851 = vmatpush1.xpose.msra.mxu0 0.0
    %4852 = vmatprep.subr.mxu0 0.0
    %4853 = vmatpush1.xpose.msra.mxu0 0.0
    %4854 = vmatprep.subr.mxu0 0.0
    %4855 = vmatpush1.xpose.msra.mxu0 0.0
    %4856 = vmatprep.subr.mxu0 0.0
    %4857 = vmatpush1.xpose.msra.mxu0 0.0
    %4858 = vmatprep.subr.mxu0 0.0
    %4859 = vmatpush1.xpose.msra.mxu0 0.0
    %4860 = vmatprep.subr.mxu0 0.0
    %4861 = vmatpush1.xpose.msra.mxu0 0.0
    %4862 = vmatprep.subr.mxu0 0.0
    %4863 = vmatpush1.xpose.msra.mxu0 0.0
    %4864 = vmatprep.subr.mxu0 0.0
    %4865 = vmatpush1.xpose.msra.mxu0 0.0
    %4866 = vmatprep.subr.mxu0 0.0
    %4867 = vmatpush1.xpose.msra.mxu0 0.0
    %4868 = vmatprep.subr.mxu0 0.0
    %4869 = vmatpush1.xpose.msra.mxu0 0.0
    %4870 = vmatprep.subr.mxu0 0.0
    %4871 = vmatpush1.xpose.msra.mxu0 0.0
    %4872 = vmatprep.subr.mxu0 0.0
    %4873 = vmatpush1.xpose.msra.mxu0 0.0
    %4874 = vmatprep.mubr.f32.mxu0 0.0
    %4875 = vmatmul.mubr.f32.gmra.mrb[0].mxu0 %v4805
    %v4876 = vpop.f32.mrb[0].mxu0
    %v4877 = vadd.f32 0.0, %v4876
    %v4878 = vpop.f32.mrb[0].mxu0
    %4879 = vdwg.mxu0
    %v4881 = vsel %vm1087, %v4177, 0
    %v4884 = vsel %vm1087, %v4261, 0
    %4886 = vmatprep.subr.mxu0 0.0
    %4887 = vmatpush1.xpose.msra.mxu0 %v4884
    %4888 = vmatprep.subr.mxu0 0.0
    %4889 = vmatpush1.xpose.msra.mxu0 0.0
    %4890 = vmatprep.subr.mxu0 0.0
    %4891 = vmatpush1.xpose.msra.mxu0 0.0
    %4892 = vmatprep.subr.mxu0 0.0
    %4893 = vmatpush1.xpose.msra.mxu0 0.0
    %4894 = vmatprep.subr.mxu0 0.0
    %4895 = vmatpush1.xpose.msra.mxu0 0.0
    %4896 = vmatprep.subr.mxu0 0.0
    %4897 = vmatpush1.xpose.msra.mxu0 0.0
    %4898 = vmatprep.subr.mxu0 0.0
    %4899 = vmatpush1.xpose.msra.mxu0 0.0
    %4900 = vmatprep.subr.mxu0 0.0
    %4901 = vmatpush1.xpose.msra.mxu0 0.0
    %4902 = vmatprep.subr.mxu0 0.0
    %4903 = vmatpush1.xpose.msra.mxu0 0.0
    %4904 = vmatprep.subr.mxu0 0.0
    %4905 = vmatpush1.xpose.msra.mxu0 0.0
    %4906 = vmatprep.subr.mxu0 0.0
    %4907 = vmatpush1.xpose.msra.mxu0 0.0
    %4908 = vmatprep.subr.mxu0 0.0
    %4909 = vmatpush1.xpose.msra.mxu0 0.0
    %4910 = vmatprep.subr.mxu0 0.0
    %4911 = vmatpush1.xpose.msra.mxu0 0.0
    %4912 = vmatprep.subr.mxu0 0.0
    %4913 = vmatpush1.xpose.msra.mxu0 0.0
    %4914 = vmatprep.subr.mxu0 0.0
    %4915 = vmatpush1.xpose.msra.mxu0 0.0
    %4916 = vmatprep.subr.mxu0 0.0
    %4917 = vmatpush1.xpose.msra.mxu0 0.0
    %4918 = vmatprep.subr.mxu0 0.0
    %4919 = vmatpush1.xpose.msra.mxu0 0.0
    %4920 = vmatprep.subr.mxu0 0.0
    %4921 = vmatpush1.xpose.msra.mxu0 0.0
    %4922 = vmatprep.subr.mxu0 0.0
    %4923 = vmatpush1.xpose.msra.mxu0 0.0
    %4924 = vmatprep.subr.mxu0 0.0
    %4925 = vmatpush1.xpose.msra.mxu0 0.0
    %4926 = vmatprep.subr.mxu0 0.0
    %4927 = vmatpush1.xpose.msra.mxu0 0.0
    %4928 = vmatprep.subr.mxu0 0.0
    %4929 = vmatpush1.xpose.msra.mxu0 0.0
    %4930 = vmatprep.subr.mxu0 0.0
    %4931 = vmatpush1.xpose.msra.mxu0 0.0
    %4932 = vmatprep.subr.mxu0 0.0
    %4933 = vmatpush1.xpose.msra.mxu0 0.0
    %4934 = vmatprep.subr.mxu0 0.0
    %4935 = vmatpush1.xpose.msra.mxu0 0.0
    %4936 = vmatprep.subr.mxu0 0.0
    %4937 = vmatpush1.xpose.msra.mxu0 0.0
    %4938 = vmatprep.subr.mxu0 0.0
    %4939 = vmatpush1.xpose.msra.mxu0 0.0
    %4940 = vmatprep.subr.mxu0 0.0
    %4941 = vmatpush1.xpose.msra.mxu0 0.0
    %4942 = vmatprep.subr.mxu0 0.0
    %4943 = vmatpush1.xpose.msra.mxu0 0.0
    %4944 = vmatprep.subr.mxu0 0.0
    %4945 = vmatpush1.xpose.msra.mxu0 0.0
    %4946 = vmatprep.subr.mxu0 0.0
    %4947 = vmatpush1.xpose.msra.mxu0 0.0
    %4948 = vmatprep.subr.mxu0 0.0
    %4949 = vmatpush1.xpose.msra.mxu0 0.0
    %4950 = vmatprep.mubr.f32.mxu0 0.0
    %4951 = vmatmul.mubr.f32.gmra.mrb[0].mxu0 %v4881
    %v4952 = vpop.f32.mrb[0].mxu0
    %v4953 = vadd.f32 0.0, %v4952
    %v4954 = vpop.f32.mrb[0].mxu0
    %4955 = vdwg.mxu0
    %v4956 = vmul.f32 %v4421, 0.35355338
    %v4957 = vmul.f32 %v4497, 0.35355338
    %v4958 = vmul.f32 %v4573, 0.35355338
    %v4959 = vmul.f32 %v4649, 0.35355338
    %v4960 = vmul.f32 %v4725, 0.35355338
    %v4961 = vmul.f32 %v4801, 0.35355338
    %v4962 = vmul.f32 %v4877, 0.35355338
    %v4963 = vmul.f32 %v4953, 0.35355338
    %v4964 = vadd.f32 %v4956, %v68
    %v4965 = vadd.f32 %v4957, %v68
    %v4966 = vadd.f32 %v4958, %v68
    %v4967 = vadd.f32 %v4959, %v68
    %v4968 = vadd.f32 %v4960, %v72
    %v4969 = vadd.f32 %v4961, %v72
    %v4970 = vadd.f32 %v4962, %v72
    %v4971 = vadd.f32 %v4963, %v72
    %v4972 = vsel %vm1087, %v4964, -inf
    %4973 = vmax.xlane.f32.xlu0 %v4972
    %v4974 = vpop.xlane.xlu0 %4973
    %v4975 = vsel %vm1087, %v4965, -inf
    %4976 = vmax.xlane.f32.xlu0 %v4975
    %v4977 = vpop.xlane.xlu0 %4976
    %v4978 = vsel %vm1087, %v4966, -inf
    %4979 = vmax.xlane.f32.xlu0 %v4978
    %v4980 = vpop.xlane.xlu0 %4979
    %v4981 = vsel %vm1087, %v4967, -inf
    %4982 = vmax.xlane.f32.xlu0 %v4981
    %v4983 = vpop.xlane.xlu0 %4982
    %v4984 = vsel %vm1087, %v4968, -inf
    %4985 = vmax.xlane.f32.xlu0 %v4984
    %v4986 = vpop.xlane.xlu0 %4985
    %v4987 = vsel %vm1087, %v4969, -inf
    %4988 = vmax.xlane.f32.xlu0 %v4987
    %v4989 = vpop.xlane.xlu0 %4988
    %v4990 = vsel %vm1087, %v4970, -inf
    %4991 = vmax.xlane.f32.xlu0 %v4990
    %v4992 = vpop.xlane.xlu0 %4991
    %v4993 = vsel %vm1087, %v4971, -inf
    %4994 = vmax.xlane.f32.xlu0 %v4993
    %v4995 = vpop.xlane.xlu0 %4994
    %v4996 = vsub.f32 %v4964, %v4974
    %v4997 = vsub.f32 %v4965, %v4977
    %v4998 = vsub.f32 %v4966, %v4980
    %v4999 = vsub.f32 %v4967, %v4983
    %v5000 = vsub.f32 %v4968, %v4986
    %v5001 = vsub.f32 %v4969, %v4989
    %v5002 = vsub.f32 %v4970, %v4992
    %v5003 = vsub.f32 %v4971, %v4995
    %v5004 = vmul.f32 %v4996, 1.442695
    %v5005 = vpow.pop %v5004
    %v5006 = vmul.f32 %v4997, 1.442695
    %v5007 = vpow.pop %v5006
    %v5008 = vmul.f32 %v4998, 1.442695
    %v5009 = vpow.pop %v5008
    %v5010 = vmul.f32 %v4999, 1.442695
    %v5011 = vpow.pop %v5010
    %v5012 = vmul.f32 %v5000, 1.442695
    %v5013 = vpow.pop %v5012
    %v5014 = vmul.f32 %v5001, 1.442695
    %v5015 = vpow.pop %v5014
    %v5016 = vmul.f32 %v5002, 1.442695
    %v5017 = vpow.pop %v5016
    %v5018 = vmul.f32 %v5003, 1.442695
    %v5019 = vpow.pop %v5018
    %v5020 = vsel %vm1087, %v5005, 0.0
    %5021 = vadd.xlane.f32.xlu0 %v5020
    %v5022 = vpop.xlane.xlu0 %5021
    %v5023 = vsel %vm1087, %v5007, 0.0
    %5024 = vadd.xlane.f32.xlu0 %v5023
    %v5025 = vpop.xlane.xlu0 %5024
    %v5026 = vsel %vm1087, %v5009, 0.0
    %5027 = vadd.xlane.f32.xlu0 %v5026
    %v5028 = vpop.xlane.xlu0 %5027
    %v5029 = vsel %vm1087, %v5011, 0.0
    %5030 = vadd.xlane.f32.xlu0 %v5029
    %v5031 = vpop.xlane.xlu0 %5030
    %v5032 = vsel %vm1087, %v5013, 0.0
    %5033 = vadd.xlane.f32.xlu0 %v5032
    %v5034 = vpop.xlane.xlu0 %5033
    %v5035 = vsel %vm1087, %v5015, 0.0
    %5036 = vadd.xlane.f32.xlu0 %v5035
    %v5037 = vpop.xlane.xlu0 %5036
    %v5038 = vsel %vm1087, %v5017, 0.0
    %5039 = vadd.xlane.f32.xlu0 %v5038
    %v5040 = vpop.xlane.xlu0 %5039
    %v5041 = vsel %vm1087, %v5019, 0.0
    %5042 = vadd.xlane.f32.xlu0 %v5041
    %v5043 = vpop.xlane.xlu0 %5042
    %v5044 = vrcp.pop %v5022
    %v5045 = vmul.f32 %v5005, %v5044
    %v5046 = vrcp.pop %v5025
    %v5047 = vmul.f32 %v5007, %v5046
    %v5048 = vrcp.pop %v5028
    %v5049 = vmul.f32 %v5009, %v5048
    %v5050 = vrcp.pop %v5031
    %v5051 = vmul.f32 %v5011, %v5050
    %v5052 = vrcp.pop %v5034
    %v5053 = vmul.f32 %v5013, %v5052
    %v5054 = vrcp.pop %v5037
    %v5055 = vmul.f32 %v5015, %v5054
    %v5056 = vrcp.pop %v5040
    %v5057 = vmul.f32 %v5017, %v5056
    %v5058 = vrcp.pop %v5043
    %v5059 = vmul.f32 %v5019, %v5058
    %v5060 = vld [vmem:[%s2 + $0x160] sm:$0xff]
    %v5061 = vld [vmem:[%s2 + $0x168] sm:$0xff]
    %v5062 = vld [vmem:[%s2 + $0x170] sm:$0xff]
    %v5063 = vld [vmem:[%s2 + $0x178] sm:$0xff]
    %v5065 = vsel %vm1087, %v5045, 0
    %5067 = vmatprep.subr.mxu0 0.0
    %5068 = vmatpush1.msra.mxu0 %v3584
    %5069 = vmatprep.subr.mxu0 0.0
    %5070 = vmatpush1.msra.mxu0 0.0
    %5071 = vmatprep.subr.mxu0 0.0
    %5072 = vmatpush1.msra.mxu0 0.0
    %5073 = vmatprep.subr.mxu0 0.0
    %5074 = vmatpush1.msra.mxu0 0.0
    %5075 = vmatprep.subr.mxu0 0.0
    %5076 = vmatpush1.msra.mxu0 0.0
    %5077 = vmatprep.subr.mxu0 0.0
    %5078 = vmatpush1.msra.mxu0 0.0
    %5079 = vmatprep.subr.mxu0 0.0
    %5080 = vmatpush1.msra.mxu0 0.0
    %5081 = vmatprep.subr.mxu0 0.0
    %5082 = vmatpush1.msra.mxu0 0.0
    %5083 = vmatprep.subr.mxu0 0.0
    %5084 = vmatpush1.msra.mxu0 0.0
    %5085 = vmatprep.subr.mxu0 0.0
    %5086 = vmatpush1.msra.mxu0 0.0
    %5087 = vmatprep.subr.mxu0 0.0
    %5088 = vmatpush1.msra.mxu0 0.0
    %5089 = vmatprep.subr.mxu0 0.0
    %5090 = vmatpush1.msra.mxu0 0.0
    %5091 = vmatprep.subr.mxu0 0.0
    %5092 = vmatpush1.msra.mxu0 0.0
    %5093 = vmatprep.subr.mxu0 0.0
    %5094 = vmatpush1.msra.mxu0 0.0
    %5095 = vmatprep.subr.mxu0 0.0
    %5096 = vmatpush1.msra.mxu0 0.0
    %5097 = vmatprep.subr.mxu0 0.0
    %5098 = vmatpush1.msra.mxu0 0.0
    %5099 = vmatprep.subr.mxu0 0.0
    %5100 = vmatpush1.msra.mxu0 0.0
    %5101 = vmatprep.subr.mxu0 0.0
    %5102 = vmatpush1.msra.mxu0 0.0
    %5103 = vmatprep.subr.mxu0 0.0
    %5104 = vmatpush1.msra.mxu0 0.0
    %5105 = vmatprep.subr.mxu0 0.0
    %5106 = vmatpush1.msra.mxu0 0.0
    %5107 = vmatprep.subr.mxu0 0.0
    %5108 = vmatpush1.msra.mxu0 0.0
    %5109 = vmatprep.subr.mxu0 0.0
    %5110 = vmatpush1.msra.mxu0 0.0
    %5111 = vmatprep.subr.mxu0 0.0
    %5112 = vmatpush1.msra.mxu0 0.0
    %5113 = vmatprep.subr.mxu0 0.0
    %5114 = vmatpush1.msra.mxu0 0.0
    %5115 = vmatprep.subr.mxu0 0.0
    %5116 = vmatpush1.msra.mxu0 0.0
    %5117 = vmatprep.subr.mxu0 0.0
    %5118 = vmatpush1.msra.mxu0 0.0
    %5119 = vmatprep.subr.mxu0 0.0
    %5120 = vmatpush1.msra.mxu0 0.0
    %5121 = vmatprep.subr.mxu0 0.0
    %5122 = vmatpush1.msra.mxu0 0.0
    %5123 = vmatprep.subr.mxu0 0.0
    %5124 = vmatpush1.msra.mxu0 0.0
    %5125 = vmatprep.subr.mxu0 0.0
    %5126 = vmatpush1.msra.mxu0 0.0
    %5127 = vmatprep.subr.mxu0 0.0
    %5128 = vmatpush1.msra.mxu0 0.0
    %5129 = vmatprep.subr.mxu0 0.0
    %5130 = vmatpush1.msra.mxu0 0.0
    %5131 = vmatprep.mubr.f32.mxu0 0.0
    %5132 = vmatmul.mubr.f32.gmra.mrb[0].mxu0 %v5065
    %v5133 = vpop.f32.mrb[0].mxu0
    %v5134 = vadd.f32 0.0, %v5133
    %v5135 = vpop.f32.mrb[0].mxu0
    %5136 = vdwg.mxu0
    %v5138 = vsel %vm1087, %v5047, 0
    %5140 = vmatprep.subr.mxu0 0.0
    %5141 = vmatpush1.msra.mxu0 %v3836
    %5142 = vmatprep.subr.mxu0 0.0
    %5143 = vmatpush1.msra.mxu0 0.0
    %5144 = vmatprep.subr.mxu0 0.0
    %5145 = vmatpush1.msra.mxu0 0.0
    %5146 = vmatprep.subr.mxu0 0.0
    %5147 = vmatpush1.msra.mxu0 0.0
    %5148 = vmatprep.subr.mxu0 0.0
    %5149 = vmatpush1.msra.mxu0 0.0
    %5150 = vmatprep.subr.mxu0 0.0
    %5151 = vmatpush1.msra.mxu0 0.0
    %5152 = vmatprep.subr.mxu0 0.0
    %5153 = vmatpush1.msra.mxu0 0.0
    %5154 = vmatprep.subr.mxu0 0.0
    %5155 = vmatpush1.msra.mxu0 0.0
    %5156 = vmatprep.subr.mxu0 0.0
    %5157 = vmatpush1.msra.mxu0 0.0
    %5158 = vmatprep.subr.mxu0 0.0
    %5159 = vmatpush1.msra.mxu0 0.0
    %5160 = vmatprep.subr.mxu0 0.0
    %5161 = vmatpush1.msra.mxu0 0.0
    %5162 = vmatprep.subr.mxu0 0.0
    %5163 = vmatpush1.msra.mxu0 0.0
    %5164 = vmatprep.subr.mxu0 0.0
    %5165 = vmatpush1.msra.mxu0 0.0
    %5166 = vmatprep.subr.mxu0 0.0
    %5167 = vmatpush1.msra.mxu0 0.0
    %5168 = vmatprep.subr.mxu0 0.0
    %5169 = vmatpush1.msra.mxu0 0.0
    %5170 = vmatprep.subr.mxu0 0.0
    %5171 = vmatpush1.msra.mxu0 0.0
    %5172 = vmatprep.subr.mxu0 0.0
    %5173 = vmatpush1.msra.mxu0 0.0
    %5174 = vmatprep.subr.mxu0 0.0
    %5175 = vmatpush1.msra.mxu0 0.0
    %5176 = vmatprep.subr.mxu0 0.0
    %5177 = vmatpush1.msra.mxu0 0.0
    %5178 = vmatprep.subr.mxu0 0.0
    %5179 = vmatpush1.msra.mxu0 0.0
    %5180 = vmatprep.subr.mxu0 0.0
    %5181 = vmatpush1.msra.mxu0 0.0
    %5182 = vmatprep.subr.mxu0 0.0
    %5183 = vmatpush1.msra.mxu0 0.0
    %5184 = vmatprep.subr.mxu0 0.0
    %5185 = vmatpush1.msra.mxu0 0.0
    %5186 = vmatprep.subr.mxu0 0.0
    %5187 = vmatpush1.msra.mxu0 0.0
    %5188 = vmatprep.subr.mxu0 0.0
    %5189 = vmatpush1.msra.mxu0 0.0
    %5190 = vmatprep.subr.mxu0 0.0
    %5191 = vmatpush1.msra.mxu0 0.0
    %5192 = vmatprep.subr.mxu0 0.0
    %5193 = vmatpush1.msra.mxu0 0.0
    %5194 = vmatprep.subr.mxu0 0.0
    %5195 = vmatpush1.msra.mxu0 0.0
    %5196 = vmatprep.subr.mxu0 0.0
    %5197 = vmatpush1.msra.mxu0 0.0
    %5198 = vmatprep.subr.mxu0 0.0
    %5199 = vmatpush1.msra.mxu0 0.0
    %5200 = vmatprep.subr.mxu0 0.0
    %5201 = vmatpush1.msra.mxu0 0.0
    %5202 = vmatprep.subr.mxu0 0.0
    %5203 = vmatpush1.msra.mxu0 0.0
    %5204 = vmatprep.mubr.f32.mxu0 0.0
    %5205 = vmatmul.mubr.f32.gmra.mrb[0].mxu0 %v5138
    %v5206 = vpop.f32.mrb[0].mxu0
    %v5207 = vadd.f32 0.0, %v5206
    %v5208 = vpop.f32.mrb[0].mxu0
    %5209 = vdwg.mxu0
    %v5211 = vsel %vm1087, %v5207, 0
    %5213 = vmatprep.subr.mxu0 0.0
    %5214 = vmatpush1.msra.mxu0 %v5061
    %5215 = vmatprep.subr.mxu0 0.0
    %5216 = vmatpush1.msra.mxu0 0.0
    %5217 = vmatprep.subr.mxu0 0.0
    %5218 = vmatpush1.msra.mxu0 0.0
    %5219 = vmatprep.subr.mxu0 0.0
    %5220 = vmatpush1.msra.mxu0 0.0
    %5221 = vmatprep.subr.mxu0 0.0
    %5222 = vmatpush1.msra.mxu0 0.0
    %5223 = vmatprep.subr.mxu0 0.0
    %5224 = vmatpush1.msra.mxu0 0.0
    %5225 = vmatprep.subr.mxu0 0.0
    %5226 = vmatpush1.msra.mxu0 0.0
    %5227 = vmatprep.subr.mxu0 0.0
    %5228 = vmatpush1.msra.mxu0 0.0
    %5229 = vmatprep.subr.mxu0 0.0
    %5230 = vmatpush1.msra.mxu0 0.0
    %5231 = vmatprep.subr.mxu0 0.0
    %5232 = vmatpush1.msra.mxu0 0.0
    %5233 = vmatprep.subr.mxu0 0.0
    %5234 = vmatpush1.msra.mxu0 0.0
    %5235 = vmatprep.subr.mxu0 0.0
    %5236 = vmatpush1.msra.mxu0 0.0
    %5237 = vmatprep.subr.mxu0 0.0
    %5238 = vmatpush1.msra.mxu0 0.0
    %5239 = vmatprep.subr.mxu0 0.0
    %5240 = vmatpush1.msra.mxu0 0.0
    %5241 = vmatprep.subr.mxu0 0.0
    %5242 = vmatpush1.msra.mxu0 0.0
    %5243 = vmatprep.subr.mxu0 0.0
    %5244 = vmatpush1.msra.mxu0 0.0
    %5245 = vmatprep.subr.mxu0 0.0
    %5246 = vmatpush1.msra.mxu0 0.0
    %5247 = vmatprep.subr.mxu0 0.0
    %5248 = vmatpush1.msra.mxu0 0.0
    %5249 = vmatprep.subr.mxu0 0.0
    %5250 = vmatpush1.msra.mxu0 0.0
    %5251 = vmatprep.subr.mxu0 0.0
    %5252 = vmatpush1.msra.mxu0 0.0
    %5253 = vmatprep.subr.mxu0 0.0
    %5254 = vmatpush1.msra.mxu0 0.0
    %5255 = vmatprep.subr.mxu0 0.0
    %5256 = vmatpush1.msra.mxu0 0.0
    %5257 = vmatprep.subr.mxu0 0.0
    %5258 = vmatpush1.msra.mxu0 0.0
    %5259 = vmatprep.subr.mxu0 0.0
    %5260 = vmatpush1.msra.mxu0 0.0
    %5261 = vmatprep.subr.mxu0 0.0
    %5262 = vmatpush1.msra.mxu0 0.0
    %5263 = vmatprep.subr.mxu0 0.0
    %5264 = vmatpush1.msra.mxu0 0.0
    %5265 = vmatprep.subr.mxu0 0.0
    %5266 = vmatpush1.msra.mxu0 0.0
    %5267 = vmatprep.subr.mxu0 0.0
    %5268 = vmatpush1.msra.mxu0 0.0
    %5269 = vmatprep.subr.mxu0 0.0
    %5270 = vmatpush1.msra.mxu0 0.0
    %5271 = vmatprep.subr.mxu0 0.0
    %5272 = vmatpush1.msra.mxu0 0.0
    %5273 = vmatprep.subr.mxu0 0.0
    %5274 = vmatpush1.msra.mxu0 0.0
    %5275 = vmatprep.subr.mxu0 0.0
    %5276 = vmatpush1.msra.mxu0 0.0
    %5277 = vmatprep.mubr.f32.mxu0 0.0
    %5278 = vmatmul.mubr.f32.gmra.mrb[0].mxu0 %v5211
    %v5279 = vpop.f32.mrb[0].mxu0
    %v5280 = vadd.f32 0.0, %v5279
    %v5281 = vpop.f32.mrb[0].mxu0
    %5282 = vdwg.mxu0
    %v5284 = vsel %vm1087, %v5134, 0
    %5286 = vmatprep.subr.mxu0 0.0
    %5287 = vmatpush1.msra.mxu0 %v5060
    %5288 = vmatprep.subr.mxu0 0.0
    %5289 = vmatpush1.msra.mxu0 0.0
    %5290 = vmatprep.subr.mxu0 0.0
    %5291 = vmatpush1.msra.mxu0 0.0
    %5292 = vmatprep.subr.mxu0 0.0
    %5293 = vmatpush1.msra.mxu0 0.0
    %5294 = vmatprep.subr.mxu0 0.0
    %5295 = vmatpush1.msra.mxu0 0.0
    %5296 = vmatprep.subr.mxu0 0.0
    %5297 = vmatpush1.msra.mxu0 0.0
    %5298 = vmatprep.subr.mxu0 0.0
    %5299 = vmatpush1.msra.mxu0 0.0
    %5300 = vmatprep.subr.mxu0 0.0
    %5301 = vmatpush1.msra.mxu0 0.0
    %5302 = vmatprep.subr.mxu0 0.0
    %5303 = vmatpush1.msra.mxu0 0.0
    %5304 = vmatprep.subr.mxu0 0.0
    %5305 = vmatpush1.msra.mxu0 0.0
    %5306 = vmatprep.subr.mxu0 0.0
    %5307 = vmatpush1.msra.mxu0 0.0
    %5308 = vmatprep.subr.mxu0 0.0
    %5309 = vmatpush1.msra.mxu0 0.0
    %5310 = vmatprep.subr.mxu0 0.0
    %5311 = vmatpush1.msra.mxu0 0.0
    %5312 = vmatprep.subr.mxu0 0.0
    %5313 = vmatpush1.msra.mxu0 0.0
    %5314 = vmatprep.subr.mxu0 0.0
    %5315 = vmatpush1.msra.mxu0 0.0
    %5316 = vmatprep.subr.mxu0 0.0
    %5317 = vmatpush1.msra.mxu0 0.0
    %5318 = vmatprep.subr.mxu0 0.0
    %5319 = vmatpush1.msra.mxu0 0.0
    %5320 = vmatprep.subr.mxu0 0.0
    %5321 = vmatpush1.msra.mxu0 0.0
    %5322 = vmatprep.subr.mxu0 0.0
    %5323 = vmatpush1.msra.mxu0 0.0
    %5324 = vmatprep.subr.mxu0 0.0
    %5325 = vmatpush1.msra.mxu0 0.0
    %5326 = vmatprep.subr.mxu0 0.0
    %5327 = vmatpush1.msra.mxu0 0.0
    %5328 = vmatprep.subr.mxu0 0.0
    %5329 = vmatpush1.msra.mxu0 0.0
    %5330 = vmatprep.subr.mxu0 0.0
    %5331 = vmatpush1.msra.mxu0 0.0
    %5332 = vmatprep.subr.mxu0 0.0
    %5333 = vmatpush1.msra.mxu0 0.0
    %5334 = vmatprep.subr.mxu0 0.0
    %5335 = vmatpush1.msra.mxu0 0.0
    %5336 = vmatprep.subr.mxu0 0.0
    %5337 = vmatpush1.msra.mxu0 0.0
    %5338 = vmatprep.subr.mxu0 0.0
    %5339 = vmatpush1.msra.mxu0 0.0
    %5340 = vmatprep.subr.mxu0 0.0
    %5341 = vmatpush1.msra.mxu0 0.0
    %5342 = vmatprep.subr.mxu0 0.0
    %5343 = vmatpush1.msra.mxu0 0.0
    %5344 = vmatprep.subr.mxu0 0.0
    %5345 = vmatpush1.msra.mxu0 0.0
    %5346 = vmatprep.subr.mxu0 0.0
    %5347 = vmatpush1.msra.mxu0 0.0
    %5348 = vmatprep.subr.mxu0 0.0
    %5349 = vmatpush1.msra.mxu0 0.0
    %5350 = vmatprep.mubr.f32.mxu0 0.0
    %5351 = vmatmul.mubr.f32.gmra.mrb[0].mxu0 %v5284
    %v5352 = vpop.f32.mrb[0].mxu0
    %v5353 = vadd.f32 %v5280, %v5352
    %v5354 = vpop.f32.mrb[0].mxu0
    %5355 = vdwg.mxu0
    %v5357 = vsel %vm1087, %v5049, 0
    %5359 = vmatprep.subr.mxu0 0.0
    %5360 = vmatpush1.msra.mxu0 %v4088
    %5361 = vmatprep.subr.mxu0 0.0
    %5362 = vmatpush1.msra.mxu0 0.0
    %5363 = vmatprep.subr.mxu0 0.0
    %5364 = vmatpush1.msra.mxu0 0.0
    %5365 = vmatprep.subr.mxu0 0.0
    %5366 = vmatpush1.msra.mxu0 0.0
    %5367 = vmatprep.subr.mxu0 0.0
    %5368 = vmatpush1.msra.mxu0 0.0
    %5369 = vmatprep.subr.mxu0 0.0
    %5370 = vmatpush1.msra.mxu0 0.0
    %5371 = vmatprep.subr.mxu0 0.0
    %5372 = vmatpush1.msra.mxu0 0.0
    %5373 = vmatprep.subr.mxu0 0.0
    %5374 = vmatpush1.msra.mxu0 0.0
    %5375 = vmatprep.subr.mxu0 0.0
    %5376 = vmatpush1.msra.mxu0 0.0
    %5377 = vmatprep.subr.mxu0 0.0
    %5378 = vmatpush1.msra.mxu0 0.0
    %5379 = vmatprep.subr.mxu0 0.0
    %5380 = vmatpush1.msra.mxu0 0.0
    %5381 = vmatprep.subr.mxu0 0.0
    %5382 = vmatpush1.msra.mxu0 0.0
    %5383 = vmatprep.subr.mxu0 0.0
    %5384 = vmatpush1.msra.mxu0 0.0
    %5385 = vmatprep.subr.mxu0 0.0
    %5386 = vmatpush1.msra.mxu0 0.0
    %5387 = vmatprep.subr.mxu0 0.0
    %5388 = vmatpush1.msra.mxu0 0.0
    %5389 = vmatprep.subr.mxu0 0.0
    %5390 = vmatpush1.msra.mxu0 0.0
    %5391 = vmatprep.subr.mxu0 0.0
    %5392 = vmatpush1.msra.mxu0 0.0
    %5393 = vmatprep.subr.mxu0 0.0
    %5394 = vmatpush1.msra.mxu0 0.0
    %5395 = vmatprep.subr.mxu0 0.0
    %5396 = vmatpush1.msra.mxu0 0.0
    %5397 = vmatprep.subr.mxu0 0.0
    %5398 = vmatpush1.msra.mxu0 0.0
    %5399 = vmatprep.subr.mxu0 0.0
    %5400 = vmatpush1.msra.mxu0 0.0
    %5401 = vmatprep.subr.mxu0 0.0
    %5402 = vmatpush1.msra.mxu0 0.0
    %5403 = vmatprep.subr.mxu0 0.0
    %5404 = vmatpush1.msra.mxu0 0.0
    %5405 = vmatprep.subr.mxu0 0.0
    %5406 = vmatpush1.msra.mxu0 0.0
    %5407 = vmatprep.subr.mxu0 0.0
    %5408 = vmatpush1.msra.mxu0 0.0
    %5409 = vmatprep.subr.mxu0 0.0
    %5410 = vmatpush1.msra.mxu0 0.0
    %5411 = vmatprep.subr.mxu0 0.0
    %5412 = vmatpush1.msra.mxu0 0.0
    %5413 = vmatprep.subr.mxu0 0.0
    %5414 = vmatpush1.msra.mxu0 0.0
    %5415 = vmatprep.subr.mxu0 0.0
    %5416 = vmatpush1.msra.mxu0 0.0
    %5417 = vmatprep.subr.mxu0 0.0
    %5418 = vmatpush1.msra.mxu0 0.0
    %5419 = vmatprep.subr.mxu0 0.0
    %5420 = vmatpush1.msra.mxu0 0.0
    %5421 = vmatprep.subr.mxu0 0.0
    %5422 = vmatpush1.msra.mxu0 0.0
    %5423 = vmatprep.mubr.f32.mxu0 0.0
    %5424 = vmatmul.mubr.f32.gmra.mrb[0].mxu0 %v5357
    %v5425 = vpop.f32.mrb[0].mxu0
    %v5426 = vadd.f32 0.0, %v5425
    %v5427 = vpop.f32.mrb[0].mxu0
    %5428 = vdwg.mxu0
    %v5430 = vsel %vm1087, %v5426, 0
    %5432 = vmatprep.subr.mxu0 0.0
    %5433 = vmatpush1.msra.mxu0 %v5062
    %5434 = vmatprep.subr.mxu0 0.0
    %5435 = vmatpush1.msra.mxu0 0.0
    %5436 = vmatprep.subr.mxu0 0.0
    %5437 = vmatpush1.msra.mxu0 0.0
    %5438 = vmatprep.subr.mxu0 0.0
    %5439 = vmatpush1.msra.mxu0 0.0
    %5440 = vmatprep.subr.mxu0 0.0
    %5441 = vmatpush1.msra.mxu0 0.0
    %5442 = vmatprep.subr.mxu0 0.0
    %5443 = vmatpush1.msra.mxu0 0.0
    %5444 = vmatprep.subr.mxu0 0.0
    %5445 = vmatpush1.msra.mxu0 0.0
    %5446 = vmatprep.subr.mxu0 0.0
    %5447 = vmatpush1.msra.mxu0 0.0
    %5448 = vmatprep.subr.mxu0 0.0
    %5449 = vmatpush1.msra.mxu0 0.0
    %5450 = vmatprep.subr.mxu0 0.0
    %5451 = vmatpush1.msra.mxu0 0.0
    %5452 = vmatprep.subr.mxu0 0.0
    %5453 = vmatpush1.msra.mxu0 0.0
    %5454 = vmatprep.subr.mxu0 0.0
    %5455 = vmatpush1.msra.mxu0 0.0
    %5456 = vmatprep.subr.mxu0 0.0
    %5457 = vmatpush1.msra.mxu0 0.0
    %5458 = vmatprep.subr.mxu0 0.0
    %5459 = vmatpush1.msra.mxu0 0.0
    %5460 = vmatprep.subr.mxu0 0.0
    %5461 = vmatpush1.msra.mxu0 0.0
    %5462 = vmatprep.subr.mxu0 0.0
    %5463 = vmatpush1.msra.mxu0 0.0
    %5464 = vmatprep.subr.mxu0 0.0
    %5465 = vmatpush1.msra.mxu0 0.0
    %5466 = vmatprep.subr.mxu0 0.0
    %5467 = vmatpush1.msra.mxu0 0.0
    %5468 = vmatprep.subr.mxu0 0.0
    %5469 = vmatpush1.msra.mxu0 0.0
    %5470 = vmatprep.subr.mxu0 0.0
    %5471 = vmatpush1.msra.mxu0 0.0
    %5472 = vmatprep.subr.mxu0 0.0
    %5473 = vmatpush1.msra.mxu0 0.0
    %5474 = vmatprep.subr.mxu0 0.0
    %5475 = vmatpush1.msra.mxu0 0.0
    %5476 = vmatprep.subr.mxu0 0.0
    %5477 = vmatpush1.msra.mxu0 0.0
    %5478 = vmatprep.subr.mxu0 0.0
    %5479 = vmatpush1.msra.mxu0 0.0
    %5480 = vmatprep.subr.mxu0 0.0
    %5481 = vmatpush1.msra.mxu0 0.0
    %5482 = vmatprep.subr.mxu0 0.0
    %5483 = vmatpush1.msra.mxu0 0.0
    %5484 = vmatprep.subr.mxu0 0.0
    %5485 = vmatpush1.msra.mxu0 0.0
    %5486 = vmatprep.subr.mxu0 0.0
    %5487 = vmatpush1.msra.mxu0 0.0
    %5488 = vmatprep.subr.mxu0 0.0
    %5489 = vmatpush1.msra.mxu0 0.0
    %5490 = vmatprep.subr.mxu0 0.0
    %5491 = vmatpush1.msra.mxu0 0.0
    %5492 = vmatprep.subr.mxu0 0.0
    %5493 = vmatpush1.msra.mxu0 0.0
    %5494 = vmatprep.subr.mxu0 0.0
    %5495 = vmatpush1.msra.mxu0 0.0
    %5496 = vmatprep.mubr.f32.mxu0 0.0
    %5497 = vmatmul.mubr.f32.gmra.mrb[0].mxu0 %v5430
    %v5498 = vpop.f32.mrb[0].mxu0
    %v5499 = vadd.f32 0.0, %v5498
    %v5500 = vpop.f32.mrb[0].mxu0
    %5501 = vdwg.mxu0
    %v5502 = vadd.f32 %v5353, %v5499
    %v5504 = vsel %vm1087, %v5051, 0
    %5506 = vmatprep.subr.mxu0 0.0
    %5507 = vmatpush1.msra.mxu0 %v4340
    %5508 = vmatprep.subr.mxu0 0.0
    %5509 = vmatpush1.msra.mxu0 0.0
    %5510 = vmatprep.subr.mxu0 0.0
    %5511 = vmatpush1.msra.mxu0 0.0
    %5512 = vmatprep.subr.mxu0 0.0
    %5513 = vmatpush1.msra.mxu0 0.0
    %5514 = vmatprep.subr.mxu0 0.0
    %5515 = vmatpush1.msra.mxu0 0.0
    %5516 = vmatprep.subr.mxu0 0.0
    %5517 = vmatpush1.msra.mxu0 0.0
    %5518 = vmatprep.subr.mxu0 0.0
    %5519 = vmatpush1.msra.mxu0 0.0
    %5520 = vmatprep.subr.mxu0 0.0
    %5521 = vmatpush1.msra.mxu0 0.0
    %5522 = vmatprep.subr.mxu0 0.0
    %5523 = vmatpush1.msra.mxu0 0.0
    %5524 = vmatprep.subr.mxu0 0.0
    %5525 = vmatpush1.msra.mxu0 0.0
    %5526 = vmatprep.subr.mxu0 0.0
    %5527 = vmatpush1.msra.mxu0 0.0
    %5528 = vmatprep.subr.mxu0 0.0
    %5529 = vmatpush1.msra.mxu0 0.0
    %5530 = vmatprep.subr.mxu0 0.0
    %5531 = vmatpush1.msra.mxu0 0.0
    %5532 = vmatprep.subr.mxu0 0.0
    %5533 = vmatpush1.msra.mxu0 0.0
    %5534 = vmatprep.subr.mxu0 0.0
    %5535 = vmatpush1.msra.mxu0 0.0
    %5536 = vmatprep.subr.mxu0 0.0
    %5537 = vmatpush1.msra.mxu0 0.0
    %5538 = vmatprep.subr.mxu0 0.0
    %5539 = vmatpush1.msra.mxu0 0.0
    %5540 = vmatprep.subr.mxu0 0.0
    %5541 = vmatpush1.msra.mxu0 0.0
    %5542 = vmatprep.subr.mxu0 0.0
    %5543 = vmatpush1.msra.mxu0 0.0
    %5544 = vmatprep.subr.mxu0 0.0
    %5545 = vmatpush1.msra.mxu0 0.0
    %5546 = vmatprep.subr.mxu0 0.0
    %5547 = vmatpush1.msra.mxu0 0.0
    %5548 = vmatprep.subr.mxu0 0.0
    %5549 = vmatpush1.msra.mxu0 0.0
    %5550 = vmatprep.subr.mxu0 0.0
    %5551 = vmatpush1.msra.mxu0 0.0
    %5552 = vmatprep.subr.mxu0 0.0
    %5553 = vmatpush1.msra.mxu0 0.0
    %5554 = vmatprep.subr.mxu0 0.0
    %5555 = vmatpush1.msra.mxu0 0.0
    %5556 = vmatprep.subr.mxu0 0.0
    %5557 = vmatpush1.msra.mxu0 0.0
    %5558 = vmatprep.subr.mxu0 0.0
    %5559 = vmatpush1.msra.mxu0 0.0
    %5560 = vmatprep.subr.mxu0 0.0
    %5561 = vmatpush1.msra.mxu0 0.0
    %5562 = vmatprep.subr.mxu0 0.0
    %5563 = vmatpush1.msra.mxu0 0.0
    %5564 = vmatprep.subr.mxu0 0.0
    %5565 = vmatpush1.msra.mxu0 0.0
    %5566 = vmatprep.subr.mxu0 0.0
    %5567 = vmatpush1.msra.mxu0 0.0
    %5568 = vmatprep.subr.mxu0 0.0
    %5569 = vmatpush1.msra.mxu0 0.0
    %5570 = vmatprep.mubr.f32.mxu0 0.0
    %5571 = vmatmul.mubr.f32.gmra.mrb[0].mxu0 %v5504
    %v5572 = vpop.f32.mrb[0].mxu0
    %v5573 = vadd.f32 0.0, %v5572
    %v5574 = vpop.f32.mrb[0].mxu0
    %5575 = vdwg.mxu0
    %v5577 = vsel %vm1087, %v5573, 0
    %5579 = vmatprep.subr.mxu0 0.0
    %5580 = vmatpush1.msra.mxu0 %v5063
    %5581 = vmatprep.subr.mxu0 0.0
    %5582 = vmatpush1.msra.mxu0 0.0
    %5583 = vmatprep.subr.mxu0 0.0
    %5584 = vmatpush1.msra.mxu0 0.0
    %5585 = vmatprep.subr.mxu0 0.0
    %5586 = vmatpush1.msra.mxu0 0.0
    %5587 = vmatprep.subr.mxu0 0.0
    %5588 = vmatpush1.msra.mxu0 0.0
    %5589 = vmatprep.subr.mxu0 0.0
    %5590 = vmatpush1.msra.mxu0 0.0
    %5591 = vmatprep.subr.mxu0 0.0
    %5592 = vmatpush1.msra.mxu0 0.0
    %5593 = vmatprep.subr.mxu0 0.0
    %5594 = vmatpush1.msra.mxu0 0.0
    %5595 = vmatprep.subr.mxu0 0.0
    %5596 = vmatpush1.msra.mxu0 0.0
    %5597 = vmatprep.subr.mxu0 0.0
    %5598 = vmatpush1.msra.mxu0 0.0
    %5599 = vmatprep.subr.mxu0 0.0
    %5600 = vmatpush1.msra.mxu0 0.0
    %5601 = vmatprep.subr.mxu0 0.0
    %5602 = vmatpush1.msra.mxu0 0.0
    %5603 = vmatprep.subr.mxu0 0.0
    %5604 = vmatpush1.msra.mxu0 0.0
    %5605 = vmatprep.subr.mxu0 0.0
    %5606 = vmatpush1.msra.mxu0 0.0
    %5607 = vmatprep.subr.mxu0 0.0
    %5608 = vmatpush1.msra.mxu0 0.0
    %5609 = vmatprep.subr.mxu0 0.0
    %5610 = vmatpush1.msra.mxu0 0.0
    %5611 = vmatprep.subr.mxu0 0.0
    %5612 = vmatpush1.msra.mxu0 0.0
    %5613 = vmatprep.subr.mxu0 0.0
    %5614 = vmatpush1.msra.mxu0 0.0
    %5615 = vmatprep.subr.mxu0 0.0
    %5616 = vmatpush1.msra.mxu0 0.0
    %5617 = vmatprep.subr.mxu0 0.0
    %5618 = vmatpush1.msra.mxu0 0.0
    %5619 = vmatprep.subr.mxu0 0.0
    %5620 = vmatpush1.msra.mxu0 0.0
    %5621 = vmatprep.subr.mxu0 0.0
    %5622 = vmatpush1.msra.mxu0 0.0
    %5623 = vmatprep.subr.mxu0 0.0
    %5624 = vmatpush1.msra.mxu0 0.0
    %5625 = vmatprep.subr.mxu0 0.0
    %5626 = vmatpush1.msra.mxu0 0.0
    %5627 = vmatprep.subr.mxu0 0.0
    %5628 = vmatpush1.msra.mxu0 0.0
    %5629 = vmatprep.subr.mxu0 0.0
    %5630 = vmatpush1.msra.mxu0 0.0
    %5631 = vmatprep.subr.mxu0 0.0
    %5632 = vmatpush1.msra.mxu0 0.0
    %5633 = vmatprep.subr.mxu0 0.0
    %5634 = vmatpush1.msra.mxu0 0.0
    %5635 = vmatprep.subr.mxu0 0.0
    %5636 = vmatpush1.msra.mxu0 0.0
    %5637 = vmatprep.subr.mxu0 0.0
    %5638 = vmatpush1.msra.mxu0 0.0
    %5639 = vmatprep.subr.mxu0 0.0
    %5640 = vmatpush1.msra.mxu0 0.0
    %5641 = vmatprep.subr.mxu0 0.0
    %5642 = vmatpush1.msra.mxu0 0.0
    %5643 = vmatprep.mubr.f32.mxu0 0.0
    %5644 = vmatmul.mubr.f32.gmra.mrb[0].mxu0 %v5577
    %v5645 = vpop.f32.mrb[0].mxu0
    %v5646 = vadd.f32 0.0, %v5645
    %v5647 = vpop.f32.mrb[0].mxu0
    %5648 = vdwg.mxu0
    %v5649 = vadd.f32 %v5502, %v5646
    %v5651 = vsel %vm1087, %v5053, 0
    %5653 = vmatprep.subr.mxu0 0.0
    %5654 = vmatpush1.msra.mxu0 %v3589
    %5655 = vmatprep.subr.mxu0 0.0
    %5656 = vmatpush1.msra.mxu0 0.0
    %5657 = vmatprep.subr.mxu0 0.0
    %5658 = vmatpush1.msra.mxu0 0.0
    %5659 = vmatprep.subr.mxu0 0.0
    %5660 = vmatpush1.msra.mxu0 0.0
    %5661 = vmatprep.subr.mxu0 0.0
    %5662 = vmatpush1.msra.mxu0 0.0
    %5663 = vmatprep.subr.mxu0 0.0
    %5664 = vmatpush1.msra.mxu0 0.0
    %5665 = vmatprep.subr.mxu0 0.0
    %5666 = vmatpush1.msra.mxu0 0.0
    %5667 = vmatprep.subr.mxu0 0.0
    %5668 = vmatpush1.msra.mxu0 0.0
    %5669 = vmatprep.subr.mxu0 0.0
    %5670 = vmatpush1.msra.mxu0 0.0
    %5671 = vmatprep.subr.mxu0 0.0
    %5672 = vmatpush1.msra.mxu0 0.0
    %5673 = vmatprep.subr.mxu0 0.0
    %5674 = vmatpush1.msra.mxu0 0.0
    %5675 = vmatprep.subr.mxu0 0.0
    %5676 = vmatpush1.msra.mxu0 0.0
    %5677 = vmatprep.subr.mxu0 0.0
    %5678 = vmatpush1.msra.mxu0 0.0
    %5679 = vmatprep.subr.mxu0 0.0
    %5680 = vmatpush1.msra.mxu0 0.0
    %5681 = vmatprep.subr.mxu0 0.0
    %5682 = vmatpush1.msra.mxu0 0.0
    %5683 = vmatprep.subr.mxu0 0.0
    %5684 = vmatpush1.msra.mxu0 0.0
    %5685 = vmatprep.subr.mxu0 0.0
    %5686 = vmatpush1.msra.mxu0 0.0
    %5687 = vmatprep.subr.mxu0 0.0
    %5688 = vmatpush1.msra.mxu0 0.0
    %5689 = vmatprep.subr.mxu0 0.0
    %5690 = vmatpush1.msra.mxu0 0.0
    %5691 = vmatprep.subr.mxu0 0.0
    %5692 = vmatpush1.msra.mxu0 0.0
    %5693 = vmatprep.subr.mxu0 0.0
    %5694 = vmatpush1.msra.mxu0 0.0
    %5695 = vmatprep.subr.mxu0 0.0
    %5696 = vmatpush1.msra.mxu0 0.0
    %5697 = vmatprep.subr.mxu0 0.0
    %5698 = vmatpush1.msra.mxu0 0.0
    %5699 = vmatprep.subr.mxu0 0.0
    %5700 = vmatpush1.msra.mxu0 0.0
    %5701 = vmatprep.subr.mxu0 0.0
    %5702 = vmatpush1.msra.mxu0 0.0
    %5703 = vmatprep.subr.mxu0 0.0
    %5704 = vmatpush1.msra.mxu0 0.0
    %5705 = vmatprep.subr.mxu0 0.0
    %5706 = vmatpush1.msra.mxu0 0.0
    %5707 = vmatprep.subr.mxu0 0.0
    %5708 = vmatpush1.msra.mxu0 0.0
    %5709 = vmatprep.subr.mxu0 0.0
    %5710 = vmatpush1.msra.mxu0 0.0
    %5711 = vmatprep.subr.mxu0 0.0
    %5712 = vmatpush1.msra.mxu0 0.0
    %5713 = vmatprep.subr.mxu0 0.0
    %5714 = vmatpush1.msra.mxu0 0.0
    %5715 = vmatprep.subr.mxu0 0.0
    %5716 = vmatpush1.msra.mxu0 0.0
    %5717 = vmatprep.mubr.f32.mxu0 0.0
    %5718 = vmatmul.mubr.f32.gmra.mrb[0].mxu0 %v5651
    %v5719 = vpop.f32.mrb[0].mxu0
    %v5720 = vadd.f32 0.0, %v5719
    %v5721 = vpop.f32.mrb[0].mxu0
    %5722 = vdwg.mxu0
    %v5724 = vsel %vm1087, %v5055, 0
    %5726 = vmatprep.subr.mxu0 0.0
    %5727 = vmatpush1.msra.mxu0 %v3841
    %5728 = vmatprep.subr.mxu0 0.0
    %5729 = vmatpush1.msra.mxu0 0.0
    %5730 = vmatprep.subr.mxu0 0.0
    %5731 = vmatpush1.msra.mxu0 0.0
    %5732 = vmatprep.subr.mxu0 0.0
    %5733 = vmatpush1.msra.mxu0 0.0
    %5734 = vmatprep.subr.mxu0 0.0
    %5735 = vmatpush1.msra.mxu0 0.0
    %5736 = vmatprep.subr.mxu0 0.0
    %5737 = vmatpush1.msra.mxu0 0.0
    %5738 = vmatprep.subr.mxu0 0.0
    %5739 = vmatpush1.msra.mxu0 0.0
    %5740 = vmatprep.subr.mxu0 0.0
    %5741 = vmatpush1.msra.mxu0 0.0
    %5742 = vmatprep.subr.mxu0 0.0
    %5743 = vmatpush1.msra.mxu0 0.0
    %5744 = vmatprep.subr.mxu0 0.0
    %5745 = vmatpush1.msra.mxu0 0.0
    %5746 = vmatprep.subr.mxu0 0.0
    %5747 = vmatpush1.msra.mxu0 0.0
    %5748 = vmatprep.subr.mxu0 0.0
    %5749 = vmatpush1.msra.mxu0 0.0
    %5750 = vmatprep.subr.mxu0 0.0
    %5751 = vmatpush1.msra.mxu0 0.0
    %5752 = vmatprep.subr.mxu0 0.0
    %5753 = vmatpush1.msra.mxu0 0.0
    %5754 = vmatprep.subr.mxu0 0.0
    %5755 = vmatpush1.msra.mxu0 0.0
    %5756 = vmatprep.subr.mxu0 0.0
    %5757 = vmatpush1.msra.mxu0 0.0
    %5758 = vmatprep.subr.mxu0 0.0
    %5759 = vmatpush1.msra.mxu0 0.0
    %5760 = vmatprep.subr.mxu0 0.0
    %5761 = vmatpush1.msra.mxu0 0.0
    %5762 = vmatprep.subr.mxu0 0.0
    %5763 = vmatpush1.msra.mxu0 0.0
    %5764 = vmatprep.subr.mxu0 0.0
    %5765 = vmatpush1.msra.mxu0 0.0
    %5766 = vmatprep.subr.mxu0 0.0
    %5767 = vmatpush1.msra.mxu0 0.0
    %5768 = vmatprep.subr.mxu0 0.0
    %5769 = vmatpush1.msra.mxu0 0.0
    %5770 = vmatprep.subr.mxu0 0.0
    %5771 = vmatpush1.msra.mxu0 0.0
    %5772 = vmatprep.subr.mxu0 0.0
    %5773 = vmatpush1.msra.mxu0 0.0
    %5774 = vmatprep.subr.mxu0 0.0
    %5775 = vmatpush1.msra.mxu0 0.0
    %5776 = vmatprep.subr.mxu0 0.0
    %5777 = vmatpush1.msra.mxu0 0.0
    %5778 = vmatprep.subr.mxu0 0.0
    %5779 = vmatpush1.msra.mxu0 0.0
    %5780 = vmatprep.subr.mxu0 0.0
    %5781 = vmatpush1.msra.mxu0 0.0
    %5782 = vmatprep.subr.mxu0 0.0
    %5783 = vmatpush1.msra.mxu0 0.0
    %5784 = vmatprep.subr.mxu0 0.0
    %5785 = vmatpush1.msra.mxu0 0.0
    %5786 = vmatprep.subr.mxu0 0.0
    %5787 = vmatpush1.msra.mxu0 0.0
    %5788 = vmatprep.subr.mxu0 0.0
    %5789 = vmatpush1.msra.mxu0 0.0
    %5790 = vmatprep.mubr.f32.mxu0 0.0
    %5791 = vmatmul.mubr.f32.gmra.mrb[0].mxu0 %v5724
    %v5792 = vpop.f32.mrb[0].mxu0
    %v5793 = vadd.f32 0.0, %v5792
    %v5794 = vpop.f32.mrb[0].mxu0
    %5795 = vdwg.mxu0
    %v5797 = vsel %vm1087, %v5793, 0
    %5799 = vmatprep.subr.mxu0 0.0
    %5800 = vmatpush1.msra.mxu0 %v5061
    %5801 = vmatprep.subr.mxu0 0.0
    %5802 = vmatpush1.msra.mxu0 0.0
    %5803 = vmatprep.subr.mxu0 0.0
    %5804 = vmatpush1.msra.mxu0 0.0
    %5805 = vmatprep.subr.mxu0 0.0
    %5806 = vmatpush1.msra.mxu0 0.0
    %5807 = vmatprep.subr.mxu0 0.0
    %5808 = vmatpush1.msra.mxu0 0.0
    %5809 = vmatprep.subr.mxu0 0.0
    %5810 = vmatpush1.msra.mxu0 0.0
    %5811 = vmatprep.subr.mxu0 0.0
    %5812 = vmatpush1.msra.mxu0 0.0
    %5813 = vmatprep.subr.mxu0 0.0
    %5814 = vmatpush1.msra.mxu0 0.0
    %5815 = vmatprep.subr.mxu0 0.0
    %5816 = vmatpush1.msra.mxu0 0.0
    %5817 = vmatprep.subr.mxu0 0.0
    %5818 = vmatpush1.msra.mxu0 0.0
    %5819 = vmatprep.subr.mxu0 0.0
    %5820 = vmatpush1.msra.mxu0 0.0
    %5821 = vmatprep.subr.mxu0 0.0
    %5822 = vmatpush1.msra.mxu0 0.0
    %5823 = vmatprep.subr.mxu0 0.0
    %5824 = vmatpush1.msra.mxu0 0.0
    %5825 = vmatprep.subr.mxu0 0.0
    %5826 = vmatpush1.msra.mxu0 0.0
    %5827 = vmatprep.subr.mxu0 0.0
    %5828 = vmatpush1.msra.mxu0 0.0
    %5829 = vmatprep.subr.mxu0 0.0
    %5830 = vmatpush1.msra.mxu0 0.0
    %5831 = vmatprep.subr.mxu0 0.0
    %5832 = vmatpush1.msra.mxu0 0.0
    %5833 = vmatprep.subr.mxu0 0.0
    %5834 = vmatpush1.msra.mxu0 0.0
    %5835 = vmatprep.subr.mxu0 0.0
    %5836 = vmatpush1.msra.mxu0 0.0
    %5837 = vmatprep.subr.mxu0 0.0
    %5838 = vmatpush1.msra.mxu0 0.0
    %5839 = vmatprep.subr.mxu0 0.0
    %5840 = vmatpush1.msra.mxu0 0.0
    %5841 = vmatprep.subr.mxu0 0.0
    %5842 = vmatpush1.msra.mxu0 0.0
    %5843 = vmatprep.subr.mxu0 0.0
    %5844 = vmatpush1.msra.mxu0 0.0
    %5845 = vmatprep.subr.mxu0 0.0
    %5846 = vmatpush1.msra.mxu0 0.0
    %5847 = vmatprep.subr.mxu0 0.0
    %5848 = vmatpush1.msra.mxu0 0.0
    %5849 = vmatprep.subr.mxu0 0.0
    %5850 = vmatpush1.msra.mxu0 0.0
    %5851 = vmatprep.subr.mxu0 0.0
    %5852 = vmatpush1.msra.mxu0 0.0
    %5853 = vmatprep.subr.mxu0 0.0
    %5854 = vmatpush1.msra.mxu0 0.0
    %5855 = vmatprep.subr.mxu0 0.0
    %5856 = vmatpush1.msra.mxu0 0.0
    %5857 = vmatprep.subr.mxu0 0.0
    %5858 = vmatpush1.msra.mxu0 0.0
    %5859 = vmatprep.subr.mxu0 0.0
    %5860 = vmatpush1.msra.mxu0 0.0
    %5861 = vmatprep.subr.mxu0 0.0
    %5862 = vmatpush1.msra.mxu0 0.0
    %5863 = vmatprep.mubr.f32.mxu0 0.0
    %5864 = vmatmul.mubr.f32.gmra.mrb[0].mxu0 %v5797
    %v5865 = vpop.f32.mrb[0].mxu0
    %v5866 = vadd.f32 0.0, %v5865
    %v5867 = vpop.f32.mrb[0].mxu0
    %5868 = vdwg.mxu0
    %v5870 = vsel %vm1087, %v5720, 0
    %5872 = vmatprep.subr.mxu0 0.0
    %5873 = vmatpush1.msra.mxu0 %v5060
    %5874 = vmatprep.subr.mxu0 0.0
    %5875 = vmatpush1.msra.mxu0 0.0
    %5876 = vmatprep.subr.mxu0 0.0
    %5877 = vmatpush1.msra.mxu0 0.0
    %5878 = vmatprep.subr.mxu0 0.0
    %5879 = vmatpush1.msra.mxu0 0.0
    %5880 = vmatprep.subr.mxu0 0.0
    %5881 = vmatpush1.msra.mxu0 0.0
    %5882 = vmatprep.subr.mxu0 0.0
    %5883 = vmatpush1.msra.mxu0 0.0
    %5884 = vmatprep.subr.mxu0 0.0
    %5885 = vmatpush1.msra.mxu0 0.0
    %5886 = vmatprep.subr.mxu0 0.0
    %5887 = vmatpush1.msra.mxu0 0.0
    %5888 = vmatprep.subr.mxu0 0.0
    %5889 = vmatpush1.msra.mxu0 0.0
    %5890 = vmatprep.subr.mxu0 0.0
    %5891 = vmatpush1.msra.mxu0 0.0
    %5892 = vmatprep.subr.mxu0 0.0
    %5893 = vmatpush1.msra.mxu0 0.0
    %5894 = vmatprep.subr.mxu0 0.0
    %5895 = vmatpush1.msra.mxu0 0.0
    %5896 = vmatprep.subr.mxu0 0.0
    %5897 = vmatpush1.msra.mxu0 0.0
    %5898 = vmatprep.subr.mxu0 0.0
    %5899 = vmatpush1.msra.mxu0 0.0
    %5900 = vmatprep.subr.mxu0 0.0
    %5901 = vmatpush1.msra.mxu0 0.0
    %5902 = vmatprep.subr.mxu0 0.0
    %5903 = vmatpush1.msra.mxu0 0.0
    %5904 = vmatprep.subr.mxu0 0.0
    %5905 = vmatpush1.msra.mxu0 0.0
    %5906 = vmatprep.subr.mxu0 0.0
    %5907 = vmatpush1.msra.mxu0 0.0
    %5908 = vmatprep.subr.mxu0 0.0
    %5909 = vmatpush1.msra.mxu0 0.0
    %5910 = vmatprep.subr.mxu0 0.0
    %5911 = vmatpush1.msra.mxu0 0.0
    %5912 = vmatprep.subr.mxu0 0.0
    %5913 = vmatpush1.msra.mxu0 0.0
    %5914 = vmatprep.subr.mxu0 0.0
    %5915 = vmatpush1.msra.mxu0 0.0
    %5916 = vmatprep.subr.mxu0 0.0
    %5917 = vmatpush1.msra.mxu0 0.0
    %5918 = vmatprep.subr.mxu0 0.0
    %5919 = vmatpush1.msra.mxu0 0.0
    %5920 = vmatprep.subr.mxu0 0.0
    %5921 = vmatpush1.msra.mxu0 0.0
    %5922 = vmatprep.subr.mxu0 0.0
    %5923 = vmatpush1.msra.mxu0 0.0
    %5924 = vmatprep.subr.mxu0 0.0
    %5925 = vmatpush1.msra.mxu0 0.0
    %5926 = vmatprep.subr.mxu0 0.0
    %5927 = vmatpush1.msra.mxu0 0.0
    %5928 = vmatprep.subr.mxu0 0.0
    %5929 = vmatpush1.msra.mxu0 0.0
    %5930 = vmatprep.subr.mxu0 0.0
    %5931 = vmatpush1.msra.mxu0 0.0
    %5932 = vmatprep.subr.mxu0 0.0
    %5933 = vmatpush1.msra.mxu0 0.0
    %5934 = vmatprep.subr.mxu0 0.0
    %5935 = vmatpush1.msra.mxu0 0.0
    %5936 = vmatprep.mubr.f32.mxu0 0.0
    %5937 = vmatmul.mubr.f32.gmra.mrb[0].mxu0 %v5870
    %v5938 = vpop.f32.mrb[0].mxu0
    %v5939 = vadd.f32 %v5866, %v5938
    %v5940 = vpop.f32.mrb[0].mxu0
    %5941 = vdwg.mxu0
    %v5943 = vsel %vm1087, %v5057, 0
    %5945 = vmatprep.subr.mxu0 0.0
    %5946 = vmatpush1.msra.mxu0 %v4093
    %5947 = vmatprep.subr.mxu0 0.0
    %5948 = vmatpush1.msra.mxu0 0.0
    %5949 = vmatprep.subr.mxu0 0.0
    %5950 = vmatpush1.msra.mxu0 0.0
    %5951 = vmatprep.subr.mxu0 0.0
    %5952 = vmatpush1.msra.mxu0 0.0
    %5953 = vmatprep.subr.mxu0 0.0
    %5954 = vmatpush1.msra.mxu0 0.0
    %5955 = vmatprep.subr.mxu0 0.0
    %5956 = vmatpush1.msra.mxu0 0.0
    %5957 = vmatprep.subr.mxu0 0.0
    %5958 = vmatpush1.msra.mxu0 0.0
    %5959 = vmatprep.subr.mxu0 0.0
    %5960 = vmatpush1.msra.mxu0 0.0
    %5961 = vmatprep.subr.mxu0 0.0
    %5962 = vmatpush1.msra.mxu0 0.0
    %5963 = vmatprep.subr.mxu0 0.0
    %5964 = vmatpush1.msra.mxu0 0.0
    %5965 = vmatprep.subr.mxu0 0.0
    %5966 = vmatpush1.msra.mxu0 0.0
    %5967 = vmatprep.subr.mxu0 0.0
    %5968 = vmatpush1.msra.mxu0 0.0
    %5969 = vmatprep.subr.mxu0 0.0
    %5970 = vmatpush1.msra.mxu0 0.0
    %5971 = vmatprep.subr.mxu0 0.0
    %5972 = vmatpush1.msra.mxu0 0.0
    %5973 = vmatprep.subr.mxu0 0.0
    %5974 = vmatpush1.msra.mxu0 0.0
    %5975 = vmatprep.subr.mxu0 0.0
    %5976 = vmatpush1.msra.mxu0 0.0
    %5977 = vmatprep.subr.mxu0 0.0
    %5978 = vmatpush1.msra.mxu0 0.0
    %5979 = vmatprep.subr.mxu0 0.0
    %5980 = vmatpush1.msra.mxu0 0.0
    %5981 = vmatprep.subr.mxu0 0.0
    %5982 = vmatpush1.msra.mxu0 0.0
    %5983 = vmatprep.subr.mxu0 0.0
    %5984 = vmatpush1.msra.mxu0 0.0
    %5985 = vmatprep.subr.mxu0 0.0
    %5986 = vmatpush1.msra.mxu0 0.0
    %5987 = vmatprep.subr.mxu0 0.0
    %5988 = vmatpush1.msra.mxu0 0.0
    %5989 = vmatprep.subr.mxu0 0.0
    %5990 = vmatpush1.msra.mxu0 0.0
    %5991 = vmatprep.subr.mxu0 0.0
    %5992 = vmatpush1.msra.mxu0 0.0
    %5993 = vmatprep.subr.mxu0 0.0
    %5994 = vmatpush1.msra.mxu0 0.0
    %5995 = vmatprep.subr.mxu0 0.0
    %5996 = vmatpush1.msra.mxu0 0.0
    %5997 = vmatprep.subr.mxu0 0.0
    %5998 = vmatpush1.msra.mxu0 0.0
    %5999 = vmatprep.subr.mxu0 0.0
    %6000 = vmatpush1.msra.mxu0 0.0
    %6001 = vmatprep.subr.mxu0 0.0
    %6002 = vmatpush1.msra.mxu0 0.0
    %6003 = vmatprep.subr.mxu0 0.0
    %6004 = vmatpush1.msra.mxu0 0.0
    %6005 = vmatprep.subr.mxu0 0.0
    %6006 = vmatpush1.msra.mxu0 0.0
    %6007 = vmatprep.subr.mxu0 0.0
    %6008 = vmatpush1.msra.mxu0 0.0
    %6009 = vmatprep.mubr.f32.mxu0 0.0
    %6010 = vmatmul.mubr.f32.gmra.mrb[0].mxu0 %v5943
    %v6011 = vpop.f32.mrb[0].mxu0
    %v6012 = vadd.f32 0.0, %v6011
    %v6013 = vpop.f32.mrb[0].mxu0
    %6014 = vdwg.mxu0
    %v6016 = vsel %vm1087, %v6012, 0
    %6018 = vmatprep.subr.mxu0 0.0
    %6019 = vmatpush1.msra.mxu0 %v5062
    %6020 = vmatprep.subr.mxu0 0.0
    %6021 = vmatpush1.msra.mxu0 0.0
    %6022 = vmatprep.subr.mxu0 0.0
    %6023 = vmatpush1.msra.mxu0 0.0
    %6024 = vmatprep.subr.mxu0 0.0
    %6025 = vmatpush1.msra.mxu0 0.0
    %6026 = vmatprep.subr.mxu0 0.0
    %6027 = vmatpush1.msra.mxu0 0.0
    %6028 = vmatprep.subr.mxu0 0.0
    %6029 = vmatpush1.msra.mxu0 0.0
    %6030 = vmatprep.subr.mxu0 0.0
    %6031 = vmatpush1.msra.mxu0 0.0
    %6032 = vmatprep.subr.mxu0 0.0
    %6033 = vmatpush1.msra.mxu0 0.0
    %6034 = vmatprep.subr.mxu0 0.0
    %6035 = vmatpush1.msra.mxu0 0.0
    %6036 = vmatprep.subr.mxu0 0.0
    %6037 = vmatpush1.msra.mxu0 0.0
    %6038 = vmatprep.subr.mxu0 0.0
    %6039 = vmatpush1.msra.mxu0 0.0
    %6040 = vmatprep.subr.mxu0 0.0
    %6041 = vmatpush1.msra.mxu0 0.0
    %6042 = vmatprep.subr.mxu0 0.0
    %6043 = vmatpush1.msra.mxu0 0.0
    %6044 = vmatprep.subr.mxu0 0.0
    %6045 = vmatpush1.msra.mxu0 0.0
    %6046 = vmatprep.subr.mxu0 0.0
    %6047 = vmatpush1.msra.mxu0 0.0
    %6048 = vmatprep.subr.mxu0 0.0
    %6049 = vmatpush1.msra.mxu0 0.0
    %6050 = vmatprep.subr.mxu0 0.0
    %6051 = vmatpush1.msra.mxu0 0.0
    %6052 = vmatprep.subr.mxu0 0.0
    %6053 = vmatpush1.msra.mxu0 0.0
    %6054 = vmatprep.subr.mxu0 0.0
    %6055 = vmatpush1.msra.mxu0 0.0
    %6056 = vmatprep.subr.mxu0 0.0
    %6057 = vmatpush1.msra.mxu0 0.0
    %6058 = vmatprep.subr.mxu0 0.0
    %6059 = vmatpush1.msra.mxu0 0.0
    %6060 = vmatprep.subr.mxu0 0.0
    %6061 = vmatpush1.msra.mxu0 0.0
    %6062 = vmatprep.subr.mxu0 0.0
    %6063 = vmatpush1.msra.mxu0 0.0
    %6064 = vmatprep.subr.mxu0 0.0
    %6065 = vmatpush1.msra.mxu0 0.0
    %6066 = vmatprep.subr.mxu0 0.0
    %6067 = vmatpush1.msra.mxu0 0.0
    %6068 = vmatprep.subr.mxu0 0.0
    %6069 = vmatpush1.msra.mxu0 0.0
    %6070 = vmatprep.subr.mxu0 0.0
    %6071 = vmatpush1.msra.mxu0 0.0
    %6072 = vmatprep.subr.mxu0 0.0
    %6073 = vmatpush1.msra.mxu0 0.0
    %6074 = vmatprep.subr.mxu0 0.0
    %6075 = vmatpush1.msra.mxu0 0.0
    %6076 = vmatprep.subr.mxu0 0.0
    %6077 = vmatpush1.msra.mxu0 0.0
    %6078 = vmatprep.subr.mxu0 0.0
    %6079 = vmatpush1.msra.mxu0 0.0
    %6080 = vmatprep.subr.mxu0 0.0
    %6081 = vmatpush1.msra.mxu0 0.0
    %6082 = vmatprep.mubr.f32.mxu0 0.0
    %6083 = vmatmul.mubr.f32.gmra.mrb[0].mxu0 %v6016
    %v6084 = vpop.f32.mrb[0].mxu0
    %v6085 = vadd.f32 0.0, %v6084
    %v6086 = vpop.f32.mrb[0].mxu0
    %6087 = vdwg.mxu0
    %v6088 = vadd.f32 %v5939, %v6085
    %v6090 = vsel %vm1087, %v5059, 0
    %6092 = vmatprep.subr.mxu0 0.0
    %6093 = vmatpush1.msra.mxu0 %v4345
    %6094 = vmatprep.subr.mxu0 0.0
    %6095 = vmatpush1.msra.mxu0 0.0
    %6096 = vmatprep.subr.mxu0 0.0
    %6097 = vmatpush1.msra.mxu0 0.0
    %6098 = vmatprep.subr.mxu0 0.0
    %6099 = vmatpush1.msra.mxu0 0.0
    %6100 = vmatprep.subr.mxu0 0.0
    %6101 = vmatpush1.msra.mxu0 0.0
    %6102 = vmatprep.subr.mxu0 0.0
    %6103 = vmatpush1.msra.mxu0 0.0
    %6104 = vmatprep.subr.mxu0 0.0
    %6105 = vmatpush1.msra.mxu0 0.0
    %6106 = vmatprep.subr.mxu0 0.0
    %6107 = vmatpush1.msra.mxu0 0.0
    %6108 = vmatprep.subr.mxu0 0.0
    %6109 = vmatpush1.msra.mxu0 0.0
    %6110 = vmatprep.subr.mxu0 0.0
    %6111 = vmatpush1.msra.mxu0 0.0
    %6112 = vmatprep.subr.mxu0 0.0
    %6113 = vmatpush1.msra.mxu0 0.0
    %6114 = vmatprep.subr.mxu0 0.0
    %6115 = vmatpush1.msra.mxu0 0.0
    %6116 = vmatprep.subr.mxu0 0.0
    %6117 = vmatpush1.msra.mxu0 0.0
    %6118 = vmatprep.subr.mxu0 0.0
    %6119 = vmatpush1.msra.mxu0 0.0
    %6120 = vmatprep.subr.mxu0 0.0
    %6121 = vmatpush1.msra.mxu0 0.0
    %6122 = vmatprep.subr.mxu0 0.0
    %6123 = vmatpush1.msra.mxu0 0.0
    %6124 = vmatprep.subr.mxu0 0.0
    %6125 = vmatpush1.msra.mxu0 0.0
    %6126 = vmatprep.subr.mxu0 0.0
    %6127 = vmatpush1.msra.mxu0 0.0
    %6128 = vmatprep.subr.mxu0 0.0
    %6129 = vmatpush1.msra.mxu0 0.0
    %6130 = vmatprep.subr.mxu0 0.0
    %6131 = vmatpush1.msra.mxu0 0.0
    %6132 = vmatprep.subr.mxu0 0.0
    %6133 = vmatpush1.msra.mxu0 0.0
    %6134 = vmatprep.subr.mxu0 0.0
    %6135 = vmatpush1.msra.mxu0 0.0
    %6136 = vmatprep.subr.mxu0 0.0
    %6137 = vmatpush1.msra.mxu0 0.0
    %6138 = vmatprep.subr.mxu0 0.0
    %6139 = vmatpush1.msra.mxu0 0.0
    %6140 = vmatprep.subr.mxu0 0.0
    %6141 = vmatpush1.msra.mxu0 0.0
    %6142 = vmatprep.subr.mxu0 0.0
    %6143 = vmatpush1.msra.mxu0 0.0
    %6144 = vmatprep.subr.mxu0 0.0
    %6145 = vmatpush1.msra.mxu0 0.0
    %6146 = vmatprep.subr.mxu0 0.0
    %6147 = vmatpush1.msra.mxu0 0.0
    %6148 = vmatprep.subr.mxu0 0.0
    %6149 = vmatpush1.msra.mxu0 0.0
    %6150 = vmatprep.subr.mxu0 0.0
    %6151 = vmatpush1.msra.mxu0 0.0
    %6152 = vmatprep.subr.mxu0 0.0
    %6153 = vmatpush1.msra.mxu0 0.0
    %6154 = vmatprep.subr.mxu0 0.0
    %6155 = vmatpush1.msra.mxu0 0.0
    %6156 = vmatprep.mubr.f32.mxu0 0.0
    %6157 = vmatmul.mubr.f32.gmra.mrb[0].mxu0 %v6090
    %v6158 = vpop.f32.mrb[0].mxu0
    %v6159 = vadd.f32 0.0, %v6158
    %v6160 = vpop.f32.mrb[0].mxu0
    %6161 = vdwg.mxu0
    %v6163 = vsel %vm1087, %v6159, 0
    %6165 = vmatprep.subr.mxu0 0.0
    %6166 = vmatpush1.msra.mxu0 %v5063
    %6167 = vmatprep.subr.mxu0 0.0
    %6168 = vmatpush1.msra.mxu0 0.0
    %6169 = vmatprep.subr.mxu0 0.0
    %6170 = vmatpush1.msra.mxu0 0.0
    %6171 = vmatprep.subr.mxu0 0.0
    %6172 = vmatpush1.msra.mxu0 0.0
    %6173 = vmatprep.subr.mxu0 0.0
    %6174 = vmatpush1.msra.mxu0 0.0
    %6175 = vmatprep.subr.mxu0 0.0
    %6176 = vmatpush1.msra.mxu0 0.0
    %6177 = vmatprep.subr.mxu0 0.0
    %6178 = vmatpush1.msra.mxu0 0.0
    %6179 = vmatprep.subr.mxu0 0.0
    %6180 = vmatpush1.msra.mxu0 0.0
    %6181 = vmatprep.subr.mxu0 0.0
    %6182 = vmatpush1.msra.mxu0 0.0
    %6183 = vmatprep.subr.mxu0 0.0
    %6184 = vmatpush1.msra.mxu0 0.0
    %6185 = vmatprep.subr.mxu0 0.0
    %6186 = vmatpush1.msra.mxu0 0.0
    %6187 = vmatprep.subr.mxu0 0.0
    %6188 = vmatpush1.msra.mxu0 0.0
    %6189 = vmatprep.subr.mxu0 0.0
    %6190 = vmatpush1.msra.mxu0 0.0
    %6191 = vmatprep.subr.mxu0 0.0
    %6192 = vmatpush1.msra.mxu0 0.0
    %6193 = vmatprep.subr.mxu0 0.0
    %6194 = vmatpush1.msra.mxu0 0.0
    %6195 = vmatprep.subr.mxu0 0.0
    %6196 = vmatpush1.msra.mxu0 0.0
    %6197 = vmatprep.subr.mxu0 0.0
    %6198 = vmatpush1.msra.mxu0 0.0
    %6199 = vmatprep.subr.mxu0 0.0
    %6200 = vmatpush1.msra.mxu0 0.0
    %6201 = vmatprep.subr.mxu0 0.0
    %6202 = vmatpush1.msra.mxu0 0.0
    %6203 = vmatprep.subr.mxu0 0.0
    %6204 = vmatpush1.msra.mxu0 0.0
    %6205 = vmatprep.subr.mxu0 0.0
    %6206 = vmatpush1.msra.mxu0 0.0
    %6207 = vmatprep.subr.mxu0 0.0
    %6208 = vmatpush1.msra.mxu0 0.0
    %6209 = vmatprep.subr.mxu0 0.0
    %6210 = vmatpush1.msra.mxu0 0.0
    %6211 = vmatprep.subr.mxu0 0.0
    %6212 = vmatpush1.msra.mxu0 0.0
    %6213 = vmatprep.subr.mxu0 0.0
    %6214 = vmatpush1.msra.mxu0 0.0
    %6215 = vmatprep.subr.mxu0 0.0
    %6216 = vmatpush1.msra.mxu0 0.0
    %6217 = vmatprep.subr.mxu0 0.0
    %6218 = vmatpush1.msra.mxu0 0.0
    %6219 = vmatprep.subr.mxu0 0.0
    %6220 = vmatpush1.msra.mxu0 0.0
    %6221 = vmatprep.subr.mxu0 0.0
    %6222 = vmatpush1.msra.mxu0 0.0
    %6223 = vmatprep.subr.mxu0 0.0
    %6224 = vmatpush1.msra.mxu0 0.0
    %6225 = vmatprep.subr.mxu0 0.0
    %6226 = vmatpush1.msra.mxu0 0.0
    %6227 = vmatprep.subr.mxu0 0.0
    %6228 = vmatpush1.msra.mxu0 0.0
    %6229 = vmatprep.mubr.f32.mxu0 0.0
    %6230 = vmatmul.mubr.f32.gmra.mrb[0].mxu0 %v6163
    %v6231 = vpop.f32.mrb[0].mxu0
    %v6232 = vadd.f32 0.0, %v6231
    %v6233 = vpop.f32.mrb[0].mxu0
    %6234 = vdwg.mxu0
    %v6235 = vadd.f32 %v6088, %v6232
    %v6236 = vld [vmem:[%s3 + $0x21] sm:$0x1]
    %v6237 = vlaneseq
    %v6238 = vshrl.u32 %v6237, 7
    %v6239 = vsub.s32 0, %v6238
    %v6240 = vrot.slane %v6236, %v6239
    %v6241 = vadd.f32 %v5649, %v6240
    %v6242 = vadd.f32 %v6235, %v6240
    %v6243 = vadd.f32 %v3332, %v6241
    %v6244 = vadd.f32 %v3333, %v6242
    %v6245 = vld [vmem:[%s3 + $0x22] sm:$0x1]
    %v6246 = vld [vmem:[%s3 + $0x23] sm:$0x1]
    %v6247 = vsel %vm22, %v6243, 0.0
    %6248 = vadd.xlane.f32.xlu0 %v6247
    %v6249 = vpop.xlane.xlu0 %6248
    %v6250 = vsel %vm22, %v6244, 0.0
    %6251 = vadd.xlane.f32.xlu0 %v6250
    %v6252 = vpop.xlane.xlu0 %6251
    %v6253 = vmul.f32 %v6249, %v29
    %v6254 = vmul.f32 %v6252, %v29
    %v6255 = vsub.f32 %v6243, %v6253
    %v6256 = vsub.f32 %v6244, %v6254
    %v6257 = vmul.f32 %v6255, %v6255
    %v6258 = vmul.f32 %v6256, %v6256
    %v6259 = vsel %vm22, %v6257, 0.0
    %6260 = vadd.xlane.f32.xlu0 %v6259
    %v6261 = vpop.xlane.xlu0 %6260
    %v6262 = vsel %vm22, %v6258, 0.0
    %6263 = vadd.xlane.f32.xlu0 %v6262
    %v6264 = vpop.xlane.xlu0 %6263
    %v6265 = vmul.f32 %v6261, %v29
    %v6266 = vmul.f32 %v6264, %v29
    %v6267 = vadd.f32 %v6265, 1e-12
    %v6268 = vadd.f32 %v6266, 1e-12
    %v6269 = vrsqrt.pop %v6267
    %v6270 = vrsqrt.pop %v6268
    %v6271 = vmul.f32 %v6255, %v6269
    %v6272 = vmul.f32 %v6256, %v6270
    %v6273 = vlaneseq
    %v6274 = vshrl.u32 %v6273, 7
    %v6275 = vsub.s32 0, %v6274
    %v6276 = vrot.slane %v6245, %v6275
    %v6277 = vmul.f32 %v6271, %v6276
    %v6278 = vmul.f32 %v6272, %v6276
    %v6279 = vlaneseq
    %v6280 = vshrl.u32 %v6279, 7
    %v6281 = vsub.s32 0, %v6280
    %v6282 = vrot.slane %v6246, %v6281
    %v6283 = vadd.f32 %v6277, %v6282
    %v6284 = vadd.f32 %v6278, %v6282
    %v6285 = vld [vmem:[%s2 + $0x180] sm:$0xff]
    %v6286 = vld [vmem:[%s2 + $0x188] sm:$0xff]
    %v6287 = vld [vmem:[%s2 + $0x190] sm:$0xff]
    %v6288 = vld [vmem:[%s2 + $0x198] sm:$0xff]
    %v6289 = vld [vmem:[%s2 + $0x1a0] sm:$0xff]
    %v6290 = vld [vmem:[%s2 + $0x1a8] sm:$0xff]
    %v6291 = vld [vmem:[%s2 + $0x1b0] sm:$0xff]
    %v6292 = vld [vmem:[%s2 + $0x1b8] sm:$0xff]
    %v6293 = vld [vmem:[%s3 + $0x24] sm:$0x1]
    %v6294 = vlaneseq
    %v6295 = vshrl.u32 %v6294, 7
    %v6296 = vsub.s32 0, %v6295
    %v6297 = vrot.slane %v6293, %v6296
    %v6299 = vsel %vm22, %v6283, 0
    %v6302 = vsel %vm22, %v6284, 0
    %v6305 = vsel %vm22, %v6285, 0
    %v6308 = vsel %vm22, %v6286, 0
    %v6311 = vsel %vm22, %v6287, 0
    %v6314 = vsel %vm22, %v6288, 0
    %v6317 = vsel %vm22, %v6289, 0
    %v6320 = vsel %vm22, %v6290, 0
    %v6323 = vsel %vm22, %v6291, 0
    %v6326 = vsel %vm22, %v6292, 0
    %6328 = vmatprep.subr.mxu0 0.0
    %6329 = vmatpush1.xpose.msra.mxu0 %v6305
    %6330 = vmatprep.subr.mxu0 0.0
    %6331 = vmatpush1.xpose.msra.mxu0 %v6308
    %6332 = vmatprep.subr.mxu0 0.0
    %6333 = vmatpush1.xpose.msra.mxu0 %v6311
    %6334 = vmatprep.subr.mxu0 0.0
    %6335 = vmatpush1.xpose.msra.mxu0 %v6314
    %6336 = vmatprep.subr.mxu0 0.0
    %6337 = vmatpush1.xpose.msra.mxu0 %v6317
    %6338 = vmatprep.subr.mxu0 0.0
    %6339 = vmatpush1.xpose.msra.mxu0 %v6320
    %6340 = vmatprep.subr.mxu0 0.0
    %6341 = vmatpush1.xpose.msra.mxu0 %v6323
    %6342 = vmatprep.subr.mxu0 0.0
    %6343 = vmatpush1.xpose.msra.mxu0 %v6326
    %6344 = vmatprep.subr.mxu0 0.0
    %6345 = vmatpush1.xpose.msra.mxu0 0.0
    %6346 = vmatprep.subr.mxu0 0.0
    %6347 = vmatpush1.xpose.msra.mxu0 0.0
    %6348 = vmatprep.subr.mxu0 0.0
    %6349 = vmatpush1.xpose.msra.mxu0 0.0
    %6350 = vmatprep.subr.mxu0 0.0
    %6351 = vmatpush1.xpose.msra.mxu0 0.0
    %6352 = vmatprep.subr.mxu0 0.0
    %6353 = vmatpush1.xpose.msra.mxu0 0.0
    %6354 = vmatprep.subr.mxu0 0.0
    %6355 = vmatpush1.xpose.msra.mxu0 0.0
    %6356 = vmatprep.subr.mxu0 0.0
    %6357 = vmatpush1.xpose.msra.mxu0 0.0
    %6358 = vmatprep.subr.mxu0 0.0
    %6359 = vmatpush1.xpose.msra.mxu0 0.0
    %6360 = vmatprep.subr.mxu0 0.0
    %6361 = vmatpush1.xpose.msra.mxu0 0.0
    %6362 = vmatprep.subr.mxu0 0.0
    %6363 = vmatpush1.xpose.msra.mxu0 0.0
    %6364 = vmatprep.subr.mxu0 0.0
    %6365 = vmatpush1.xpose.msra.mxu0 0.0
    %6366 = vmatprep.subr.mxu0 0.0
    %6367 = vmatpush1.xpose.msra.mxu0 0.0
    %6368 = vmatprep.subr.mxu0 0.0
    %6369 = vmatpush1.xpose.msra.mxu0 0.0
    %6370 = vmatprep.subr.mxu0 0.0
    %6371 = vmatpush1.xpose.msra.mxu0 0.0
    %6372 = vmatprep.subr.mxu0 0.0
    %6373 = vmatpush1.xpose.msra.mxu0 0.0
    %6374 = vmatprep.subr.mxu0 0.0
    %6375 = vmatpush1.xpose.msra.mxu0 0.0
    %6376 = vmatprep.subr.mxu0 0.0
    %6377 = vmatpush1.xpose.msra.mxu0 0.0
    %6378 = vmatprep.subr.mxu0 0.0
    %6379 = vmatpush1.xpose.msra.mxu0 0.0
    %6380 = vmatprep.subr.mxu0 0.0
    %6381 = vmatpush1.xpose.msra.mxu0 0.0
    %6382 = vmatprep.subr.mxu0 0.0
    %6383 = vmatpush1.xpose.msra.mxu0 0.0
    %6384 = vmatprep.subr.mxu0 0.0
    %6385 = vmatpush1.xpose.msra.mxu0 0.0
    %6386 = vmatprep.subr.mxu0 0.0
    %6387 = vmatpush1.xpose.msra.mxu0 0.0
    %6388 = vmatprep.subr.mxu0 0.0
    %6389 = vmatpush1.xpose.msra.mxu0 0.0
    %6390 = vmatprep.subr.mxu0 0.0
    %6391 = vmatpush1.xpose.msra.mxu0 0.0
    %6392 = vmatprep.mubr.f32.mxu0 0.0
    %6393 = vmatmul.mubr.f32.gmra.mrb[0].mxu0 %v6299
    %v6394 = vpop.f32.mrb[0].mxu0
    %v6395 = vadd.f32 %v6297, %v6394
    %v6396 = vpop.f32.mrb[0].mxu0
    %6397 = vmatprep.mubr.f32.mxu0 0.0
    %6398 = vmatmul.mubr.f32.gmra.mrb[0].mxu0 %v6302
    %v6399 = vpop.f32.mrb[0].mxu0
    %v6400 = vadd.f32 %v6297, %v6399
    %v6401 = vpop.f32.mrb[0].mxu0
    %6402 = vdwg.mxu0
    %v6403 = vmul.f32 %v6395, 0.5
    %v6404 = vmul.f32 %v6400, 0.5
    %v6405 = vmul.f32 %v6395, 0.70710677
    %v6406 = vmul.f32 %v6400, 0.70710677
    %vm6407 = vcmp.ge.f32.partialorder %v6405, 0.0
    %vm6408 = vcmp.ge.f32.partialorder %v6406, 0.0
    %v6409 = vsel %vm6407, 1.0, -1.0
    %v6410 = vsel %vm6408, 1.0, -1.0
    %v6411 = vand.u32 2147483647, %v6405
    %v6412 = vand.u32 2147483647, %v6406
    %v6413 = vmul.f32 %v6411, 0.3275911
    %v6414 = vmul.f32 %v6412, 0.3275911
    %v6415 = vadd.f32 %v6413, 1.0
    %v6416 = vadd.f32 %v6414, 1.0
    %v6417 = vrcp.pop %v6415
    %v6418 = vmul.f32 1.0, %v6417
    %v6419 = vrcp.pop %v6416
    %v6420 = vmul.f32 1.0, %v6419
    %v6421 = vmul.f32 %v6418, 1.0614054
    %v6422 = vmul.f32 %v6420, 1.0614054
    %v6423 = vadd.f32 %v6421, -1.4531521
    %v6424 = vadd.f32 %v6422, -1.4531521
    %v6425 = vmul.f32 %v6423, %v6418
    %v6426 = vmul.f32 %v6424, %v6420
    %v6427 = vadd.f32 %v6425, 1.4214138
    %v6428 = vadd.f32 %v6426, 1.4214138
    %v6429 = vmul.f32 %v6427, %v6418
    %v6430 = vmul.f32 %v6428, %v6420
    %v6431 = vadd.f32 %v6429, -0.28449672
    %v6432 = vadd.f32 %v6430, -0.28449672
    %v6433 = vmul.f32 %v6431, %v6418
    %v6434 = vmul.f32 %v6432, %v6420
    %v6435 = vadd.f32 %v6433, 0.2548296
    %v6436 = vadd.f32 %v6434, 0.2548296
    %v6437 = vmul.f32 %v6435, %v6418
    %v6438 = vmul.f32 %v6436, %v6420
    %v6439 = vsub.f32 0.0, %v6411
    %v6440 = vsub.f32 0.0, %v6412
    %v6441 = vmul.f32 %v6439, %v6411
    %v6442 = vmul.f32 %v6440, %v6412
    %v6443 = vmul.f32 %v6441, 1.442695
    %v6444 = vpow.pop %v6443
    %v6445 = vmul.f32 %v6442, 1.442695
    %v6446 = vpow.pop %v6445
    %v6447 = vmul.f32 %v6437, %v6444
    %v6448 = vmul.f32 %v6438, %v6446
    %v6449 = vsub.f32 1.0, %v6447
    %v6450 = vsub.f32 1.0, %v6448
    %v6451 = vmul.f32 %v6409, %v6449
    %v6452 = vmul.f32 %v6410, %v6450
    %v6453 = vadd.f32 %v6451, 1.0
    %v6454 = vadd.f32 %v6452, 1.0
    %v6455 = vmul.f32 %v6403, %v6453
    %v6456 = vmul.f32 %v6404, %v6454
    %v6457 = vld [vmem:[%s2 + $0x1c0] sm:$0xff]
    %v6458 = vld [vmem:[%s2 + $0x1c8] sm:$0xff]
    %v6459 = vld [vmem:[%s2 + $0x1d0] sm:$0xff]
    %v6460 = vld [vmem:[%s2 + $0x1d8] sm:$0xff]
    %v6461 = vld [vmem:[%s2 + $0x1e0] sm:$0xff]
    %v6462 = vld [vmem:[%s2 + $0x1e8] sm:$0xff]
    %v6463 = vld [vmem:[%s2 + $0x1f0] sm:$0xff]
    %v6464 = vld [vmem:[%s2 + $0x1f8] sm:$0xff]
    %v6465 = vld [vmem:[%s3 + $0x25] sm:$0x1]
    %v6466 = vlaneseq
    %v6467 = vshrl.u32 %v6466, 7
    %v6468 = vsub.s32 0, %v6467
    %v6469 = vrot.slane %v6465, %v6468
    %v6471 = vsel %vm3210, %v6455, 0
    %v6474 = vsel %vm3210, %v6456, 0
    %6476 = vmatprep.subr.mxu0 0.0
    %6477 = vmatpush1.msra.mxu0 %v6457
    %6478 = vmatprep.subr.mxu0 0.0
    %6479 = vmatpush1.msra.mxu0 %v6458
    %6480 = vmatprep.subr.mxu0 0.0
    %6481 = vmatpush1.msra.mxu0 %v6459
    %6482 = vmatprep.subr.mxu0 0.0
    %6483 = vmatpush1.msra.mxu0 %v6460
    %6484 = vmatprep.subr.mxu0 0.0
    %6485 = vmatpush1.msra.mxu0 %v6461
    %6486 = vmatprep.subr.mxu0 0.0
    %6487 = vmatpush1.msra.mxu0 %v6462
    %6488 = vmatprep.subr.mxu0 0.0
    %6489 = vmatpush1.msra.mxu0 %v6463
    %6490 = vmatprep.subr.mxu0 0.0
    %6491 = vmatpush1.msra.mxu0 %v6464
    %6492 = vmatprep.subr.mxu0 0.0
    %6493 = vmatpush1.msra.mxu0 0.0
    %6494 = vmatprep.subr.mxu0 0.0
    %6495 = vmatpush1.msra.mxu0 0.0
    %6496 = vmatprep.subr.mxu0 0.0
    %6497 = vmatpush1.msra.mxu0 0.0
    %6498 = vmatprep.subr.mxu0 0.0
    %6499 = vmatpush1.msra.mxu0 0.0
    %6500 = vmatprep.subr.mxu0 0.0
    %6501 = vmatpush1.msra.mxu0 0.0
    %6502 = vmatprep.subr.mxu0 0.0
    %6503 = vmatpush1.msra.mxu0 0.0
    %6504 = vmatprep.subr.mxu0 0.0
    %6505 = vmatpush1.msra.mxu0 0.0
    %6506 = vmatprep.subr.mxu0 0.0
    %6507 = vmatpush1.msra.mxu0 0.0
    %6508 = vmatprep.subr.mxu0 0.0
    %6509 = vmatpush1.msra.mxu0 0.0
    %6510 = vmatprep.subr.mxu0 0.0
    %6511 = vmatpush1.msra.mxu0 0.0
    %6512 = vmatprep.subr.mxu0 0.0
    %6513 = vmatpush1.msra.mxu0 0.0
    %6514 = vmatprep.subr.mxu0 0.0
    %6515 = vmatpush1.msra.mxu0 0.0
    %6516 = vmatprep.subr.mxu0 0.0
    %6517 = vmatpush1.msra.mxu0 0.0
    %6518 = vmatprep.subr.mxu0 0.0
    %6519 = vmatpush1.msra.mxu0 0.0
    %6520 = vmatprep.subr.mxu0 0.0
    %6521 = vmatpush1.msra.mxu0 0.0
    %6522 = vmatprep.subr.mxu0 0.0
    %6523 = vmatpush1.msra.mxu0 0.0
    %6524 = vmatprep.subr.mxu0 0.0
    %6525 = vmatpush1.msra.mxu0 0.0
    %6526 = vmatprep.subr.mxu0 0.0
    %6527 = vmatpush1.msra.mxu0 0.0
    %6528 = vmatprep.subr.mxu0 0.0
    %6529 = vmatpush1.msra.mxu0 0.0
    %6530 = vmatprep.subr.mxu0 0.0
    %6531 = vmatpush1.msra.mxu0 0.0
    %6532 = vmatprep.subr.mxu0 0.0
    %6533 = vmatpush1.msra.mxu0 0.0
    %6534 = vmatprep.subr.mxu0 0.0
    %6535 = vmatpush1.msra.mxu0 0.0
    %6536 = vmatprep.subr.mxu0 0.0
    %6537 = vmatpush1.msra.mxu0 0.0
    %6538 = vmatprep.subr.mxu0 0.0
    %6539 = vmatpush1.msra.mxu0 0.0
    %6540 = vmatprep.mubr.f32.mxu0 0.0
    %6541 = vmatmul.mubr.f32.gmra.mrb[0].mxu0 %v6471
    %v6542 = vpop.f32.mrb[0].mxu0
    %v6543 = vadd.f32 %v6469, %v6542
    %v6544 = vpop.f32.mrb[0].mxu0
    %6545 = vmatprep.mubr.f32.mxu0 0.0
    %6546 = vmatmul.mubr.f32.gmra.mrb[0].mxu0 %v6474
    %v6547 = vpop.f32.mrb[0].mxu0
    %v6548 = vadd.f32 %v6469, %v6547
    %v6549 = vpop.f32.mrb[0].mxu0
    %6550 = vdwg.mxu0
    %v6551 = vadd.f32 %v6283, %v6543
    %v6552 = vadd.f32 %v6284, %v6548
    %v6553 = vld [vmem:[%s3 + $0x26] sm:$0x1]
    %v6554 = vld [vmem:[%s3 + $0x27] sm:$0x1]
    %v6555 = vsel %vm22, %v6551, 0.0
    %6556 = vadd.xlane.f32.xlu0 %v6555
    %v6557 = vpop.xlane.xlu0 %6556
    %v6558 = vsel %vm22, %v6552, 0.0
    %6559 = vadd.xlane.f32.xlu0 %v6558
    %v6560 = vpop.xlane.xlu0 %6559
    %v6561 = vmul.f32 %v6557, %v29
    %v6562 = vmul.f32 %v6560, %v29
    %v6563 = vsub.f32 %v6551, %v6561
    %v6564 = vsub.f32 %v6552, %v6562
    %v6565 = vmul.f32 %v6563, %v6563
    %v6566 = vmul.f32 %v6564, %v6564
    %v6567 = vsel %vm22, %v6565, 0.0
    %6568 = vadd.xlane.f32.xlu0 %v6567
    %v6569 = vpop.xlane.xlu0 %6568
    %v6570 = vsel %vm22, %v6566, 0.0
    %6571 = vadd.xlane.f32.xlu0 %v6570
    %v6572 = vpop.xlane.xlu0 %6571
    %v6573 = vmul.f32 %v6569, %v29
    %v6574 = vmul.f32 %v6572, %v29
    %v6575 = vadd.f32 %v6573, 1e-12
    %v6576 = vadd.f32 %v6574, 1e-12
    %v6577 = vrsqrt.pop %v6575
    %v6578 = vrsqrt.pop %v6576
    %v6579 = vmul.f32 %v6563, %v6577
    %v6580 = vmul.f32 %v6564, %v6578
    %v6581 = vlaneseq
    %v6582 = vshrl.u32 %v6581, 7
    %v6583 = vsub.s32 0, %v6582
    %v6584 = vrot.slane %v6553, %v6583
    %v6585 = vmul.f32 %v6579, %v6584
    %v6586 = vmul.f32 %v6580, %v6584
    %v6587 = vlaneseq
    %v6588 = vshrl.u32 %v6587, 7
    %v6589 = vsub.s32 0, %v6588
    %v6590 = vrot.slane %v6554, %v6589
    %v6591 = vadd.f32 %v6585, %v6590
    %v6592 = vadd.f32 %v6586, %v6590
    %v6594 = vrot.slane %v6592, 7
    %vm6596 = vcmask 1040384
    %v6597 = vsel %vm6596, %v6591, %v6594
    %v6598 = vld [vmem:[%s2 + $0x200] sm:$0xff]
    %v6599 = vld [vmem:[%s2 + $0x208] sm:$0xff]
    %v6600 = vld [vmem:[%s2 + $0x210] sm:$0xff]
    %v6601 = vld [vmem:[%s2 + $0x218] sm:$0xff]
    %v6602 = vld [vmem:[%s3 + $0x28] sm:$0x1]
    %v6603 = vlaneseq
    %v6604 = vshrl.u32 %v6603, 7
    %v6605 = vsub.s32 0, %v6604
    %v6606 = vrot.slane %v6602, %v6605
    %v6608 = vsel %vm22, %v6597, 0
    %6610 = vmatprep.subr.mxu0 0.0
    %6611 = vmatpush1.msra.mxu0 %v6598
    %6612 = vmatprep.subr.mxu0 0.0
    %6613 = vmatpush1.msra.mxu0 %v6599
    %6614 = vmatprep.subr.mxu0 0.0
    %6615 = vmatpush1.msra.mxu0 %v6600
    %6616 = vmatprep.subr.mxu0 0.0
    %6617 = vmatpush1.msra.mxu0 %v6601
    %6618 = vmatprep.subr.mxu0 0.0
    %6619 = vmatpush1.msra.mxu0 0.0
    %6620 = vmatprep.subr.mxu0 0.0
    %6621 = vmatpush1.msra.mxu0 0.0
    %6622 = vmatprep.subr.mxu0 0.0
    %6623 = vmatpush1.msra.mxu0 0.0
    %6624 = vmatprep.subr.mxu0 0.0
    %6625 = vmatpush1.msra.mxu0 0.0
    %6626 = vmatprep.subr.mxu0 0.0
    %6627 = vmatpush1.msra.mxu0 0.0
    %6628 = vmatprep.subr.mxu0 0.0
    %6629 = vmatpush1.msra.mxu0 0.0
    %6630 = vmatprep.subr.mxu0 0.0
    %6631 = vmatpush1.msra.mxu0 0.0
    %6632 = vmatprep.subr.mxu0 0.0
    %6633 = vmatpush1.msra.mxu0 0.0
    %6634 = vmatprep.subr.mxu0 0.0
    %6635 = vmatpush1.msra.mxu0 0.0
    %6636 = vmatprep.subr.mxu0 0.0
    %6637 = vmatpush1.msra.mxu0 0.0
    %6638 = vmatprep.subr.mxu0 0.0
    %6639 = vmatpush1.msra.mxu0 0.0
    %6640 = vmatprep.subr.mxu0 0.0
    %6641 = vmatpush1.msra.mxu0 0.0
    %6642 = vmatprep.subr.mxu0 0.0
    %6643 = vmatpush1.msra.mxu0 0.0
    %6644 = vmatprep.subr.mxu0 0.0
    %6645 = vmatpush1.msra.mxu0 0.0
    %6646 = vmatprep.subr.mxu0 0.0
    %6647 = vmatpush1.msra.mxu0 0.0
    %6648 = vmatprep.subr.mxu0 0.0
    %6649 = vmatpush1.msra.mxu0 0.0
    %6650 = vmatprep.subr.mxu0 0.0
    %6651 = vmatpush1.msra.mxu0 0.0
    %6652 = vmatprep.subr.mxu0 0.0
    %6653 = vmatpush1.msra.mxu0 0.0
    %6654 = vmatprep.subr.mxu0 0.0
    %6655 = vmatpush1.msra.mxu0 0.0
    %6656 = vmatprep.subr.mxu0 0.0
    %6657 = vmatpush1.msra.mxu0 0.0
    %6658 = vmatprep.subr.mxu0 0.0
    %6659 = vmatpush1.msra.mxu0 0.0
    %6660 = vmatprep.subr.mxu0 0.0
    %6661 = vmatpush1.msra.mxu0 0.0
    %6662 = vmatprep.subr.mxu0 0.0
    %6663 = vmatpush1.msra.mxu0 0.0
    %6664 = vmatprep.subr.mxu0 0.0
    %6665 = vmatpush1.msra.mxu0 0.0
    %6666 = vmatprep.subr.mxu0 0.0
    %6667 = vmatpush1.msra.mxu0 0.0
    %6668 = vmatprep.subr.mxu0 0.0
    %6669 = vmatpush1.msra.mxu0 0.0
    %6670 = vmatprep.subr.mxu0 0.0
    %6671 = vmatpush1.msra.mxu0 0.0
    %6672 = vmatprep.subr.mxu0 0.0
    %6673 = vmatpush1.msra.mxu0 0.0
    %6674 = vmatprep.mubr.f32.mxu0 0.0
    %6675 = vmatmul.mubr.f32.gmra.mrb[0].mxu0 %v6608
    %v6676 = vpop.f32.mrb[0].mxu0
    %v6677 = vadd.f32 %v6606, %v6676
    %v6678 = vpop.f32.mrb[0].mxu0
    %6679 = vdwg.mxu0
    %v6680 = vtanh.pop %v6677
    %vm6681 = vcmask 254976
    %6682 = vst.msk [vmem:[#allocation2] sm:$0x3] %vm6681, %v6680
    // Predicated region
    $region18: #{bm25_network_forward.1} parent=1 // pred_check
      _
    $region19: #{bm25_network_forward.1} parent=1 // pred_check_branch
      %6684 = sbr.rel (0) target = $region21
    $region20: #{bm25_network_forward.1} parent=1 // pred_region
      %s6686 = ssub.s32 32, 32
      %6687 = vsyncadd [#allocation3], %s6686
      %s6689 = sshll.u32 [#allocation2], 4
      %s6690 = int_to_ptr.vmem [resolvable:$true] %s6689
      %6692 = dma.vmem_to_hbm [thread:$0]  %s6690, 32, %s4, [#allocation3]
    $region21: #{bm25_network_forward.1} parent=1 // pred_fallthru
      _
    // Predicated region
    $region22: #{bm25_network_forward.1} parent=1 // pred_check
      _
    $region23: #{bm25_network_forward.1} parent=1 // pred_check_branch
      %6694 = sbr.rel (0) target = $region25
    $region24: #{bm25_network_forward.1} parent=1 // pred_region
      %6695 = dma.done [#allocation3], 32
    $region25: #{bm25_network_forward.1} parent=1 // pred_fallthru
      _
    %6696 = vsyncpa [#allocation3], 1

</llo_original>
